<compile_context>
chip_gen: v5e
topology: v5e:2x2
jax: 0.10.0
libtpu: 0.0.40
codegen_flags: <defaults>
</compile_context>

<pallas_src>
import functools

import numpy as np
import jax
import jax.numpy as jnp
from jax.experimental import pallas as pl
from jax.experimental.pallas import tpu as pltpu

HIDDEN = 256
HEAD_OUT = 128   # lane-dense padded head width (true output width is 3)


def _radiance_field_kernel(x_ref, sum_ref, w1_ref, b1_ref, w2_ref, b2_ref,
                           w3_ref, b3_ref, w4_ref, b4_ref, out_ref, *, inv_s):
    """One (model, tile) grid step: MLP -> sigmoid -> per-ray mean."""
    x = x_ref[...]                                   # [TM, 3]   f32
    w1 = w1_ref[...]                                 # [3, H]    f32

    # ---- layer 1 (K=3): VPU broadcast-FMAs instead of a lane-sparse MXU push.
    h = (x[:, 0:1] * w1[0:1, :]
         + x[:, 1:2] * w1[1:2, :]
         + x[:, 2:3] * w1[2:3, :]
         + b1_ref[...])                              # [TM, H]
    h = jnp.maximum(h, 0.0)

    # ---- layers 2-4: bf16 operands on the MXU, f32 accumulation / bias / ReLU.
    h = jnp.dot(h.astype(jnp.bfloat16), w2_ref[...],
                preferred_element_type=jnp.float32) + b2_ref[...]
    h = jnp.maximum(h, 0.0)
    h = jnp.dot(h.astype(jnp.bfloat16), w3_ref[...],
                preferred_element_type=jnp.float32) + b3_ref[...]
    h = jnp.maximum(h, 0.0)
    rgb_sigma = jnp.dot(h.astype(jnp.bfloat16), w4_ref[...],
                        preferred_element_type=jnp.float32) + b4_ref[...]
    # rgb_sigma: [TM, 128] (columns 3..127 are padding -> sigmoid(0)=0.5,
    # discarded by the wrapper slice).

    # ---- sigmoid: exp and approx-reciprocal both ride the EUP slot.
    rgb = pl.reciprocal(1.0 + jnp.exp(-rgb_sigma), approx=True)   # [TM, 128] f32

    # ---- per-ray mean: single-pass bf16 MXU matmul with the hoisted,
    #      UNscaled block-diagonal ones matrix; exact 1/S scale applied in f32.
    out_ref[...] = inv_s * jnp.dot(sum_ref[...], rgb.astype(jnp.bfloat16),
                                   preferred_element_type=jnp.float32)


def _choose_tile_m(n, num_samples, max_tile=4096):
    """Largest TPU-friendly tile: whole problem if it fits, else a big divisor
    of n that is a multiple of (num_samples * 8) so both tile_m and
    rays_per_tile satisfy the (8,128) sublane constraint."""
    if n <= max_tile:
        return n
    step = num_samples * 8
    tile = (max_tile // step) * step
    while tile >= step:
        if n % tile == 0:
            return tile
        tile -= step
    # Fallback: one whole-problem tile (correct, just not tiled).
    return n


def nerf_render_fused(pts, stacked_params, num_samples, tile_m=None):
    """pts: [N, 3] f32 (samples contiguous per ray).
    stacked_params: each param stacked on a leading axis of size 2
    (index 0 = coarse, 1 = fine); w2/w3/w4 bf16, w4/b4 padded to 128 columns.
    Returns [2, N // num_samples, 3] = per-ray mean of sigmoid(MLP(pts))."""
    w1, b1, w2, b2, w3, b3, w4, b4 = stacked_params
    n = pts.shape[0]
    assert n % num_samples == 0
    rays_total = n // num_samples
    if tile_m is None:
        tile_m = _choose_tile_m(n, num_samples)
    assert n % tile_m == 0 and tile_m % num_samples == 0
    assert tile_m % 8 == 0 or tile_m == n
    rays_per_tile = tile_m // num_samples
    assert rays_per_tile % 8 == 0 or rays_per_tile == rays_total

    # Hoisted block-diagonal summation matrix [rays_per_tile, tile_m], bf16
    # (exact ones), identical for every grid step -> single DMA, no per-step
    # iota / integer-divide / compare work.  The 1/S scale stays in f32 inside
    # the kernel so it is exact for any num_samples.
    row = np.arange(rays_per_tile)[:, None]
    col = np.arange(tile_m)[None, :]
    sum_mat = jnp.asarray((col // num_samples == row).astype(np.float32)
                          ).astype(jnp.bfloat16)

    full3 = lambda m, i: (m, 0, 0)
    grid = (2, n // tile_m)   # (model, tile) — both parallel (v7x: 2 TCs)

    kernel = functools.partial(_radiance_field_kernel,
                               inv_s=float(1.0 / num_samples))

    out = pl.pallas_call(
        kernel,
        out_shape=jax.ShapeDtypeStruct((2, rays_total, HEAD_OUT), jnp.float32),
        grid=grid,
        in_specs=[
            pl.BlockSpec((tile_m, 3), lambda m, i: (i, 0)),              # pts
            pl.BlockSpec((rays_per_tile, tile_m), lambda m, i: (0, 0)),  # sum_mat (bf16)
            pl.BlockSpec((None, 3, HIDDEN), full3),                      # w1 (f32)
            pl.BlockSpec((None, 1, HIDDEN), full3),                      # b1
            pl.BlockSpec((None, HIDDEN, HIDDEN), full3),                 # w2 (bf16)
            pl.BlockSpec((None, 1, HIDDEN), full3),                      # b2
            pl.BlockSpec((None, HIDDEN, HIDDEN), full3),                 # w3 (bf16)
            pl.BlockSpec((None, 1, HIDDEN), full3),                      # b3
            pl.BlockSpec((None, HIDDEN, HEAD_OUT), full3),               # w4 (bf16, padded)
            pl.BlockSpec((None, 1, HEAD_OUT), full3),                    # b4 (padded)
        ],
        # Lane-dense 128-wide output: full unmasked stores; real 3 columns are
        # sliced out in the wrapper below.
        out_specs=pl.BlockSpec((None, rays_per_tile, HEAD_OUT),
                               lambda m, i: (m, i, 0)),
        compiler_params=pltpu.CompilerParams(
            dimension_semantics=("parallel", "parallel")),
    )(pts, sum_mat, w1, b1, w2, b2, w3, b3, w4, b4)
    return out[:, :, :3]


def stack_and_cast_params(coarse_params, fine_params):
    """Stack coarse/fine params on a leading axis; pad the head (w4/b4) to 128
    output columns (lane-dense store path); cast w2/w3/w4 to bf16."""
    stacked = []
    for idx, (c, f) in enumerate(zip(coarse_params, fine_params)):
        s = jnp.stack([c, f], axis=0)
        if idx in (6, 7):   # w4, b4: zero-pad output dim 3 -> HEAD_OUT
            pad = HEAD_OUT - s.shape[-1]
            s = jnp.pad(s, ((0, 0), (0, 0), (0, pad)))
        if idx in (2, 4, 6):   # w2, w3, w4 -> bf16 MXU operands
            s = s.astype(jnp.bfloat16)
        else:
            s = s.astype(jnp.float32)
        stacked.append(s)
    return tuple(stacked)


def nerf_forward(coarse_params, fine_params, o, d, num_samples=32):
    """o, d: [B, R, 3]. Mirrors NeRF.forward (coarse + fine volume rendering)."""
    b, r, _ = o.shape
    t_vals = jnp.linspace(0.0, 1.0, num_samples, dtype=jnp.float32)
    z_vals = t_vals * 4.0                                        # [S]
    pts = o[:, :, None, :] + d[:, :, None, :] * z_vals[None, None, :, None]
    pts = pts.reshape(-1, 3).astype(jnp.float32)                 # [B*R*S, 3]
    stacked = stack_and_cast_params(coarse_params, fine_params)
    out = nerf_render_fused(pts, stacked, num_samples)           # [2, B*R, 3]
    coarse_out = out[0].reshape(b, r, 3)
    fine_out = out[1].reshape(b, r, 3)
    return coarse_out, fine_out


# ---------------- parameter init (deterministic, PyTorch-style) --------------

def _linear_init(key, fan_in, fan_out):
    """Matches nn.Linear default init: U(-1/sqrt(fan_in), 1/sqrt(fan_in))."""
    kw, kb = jax.random.split(key)
    bound = 1.0 / jnp.sqrt(float(fan_in))
    w = jax.random.uniform(kw, (fan_in, fan_out), jnp.float32, -bound, bound)
    b = jax.random.uniform(kb, (1, fan_out), jnp.float32, -bound, bound)
    return w, b


def init_radiance_field(key):
    k1, k2, k3, k4 = jax.random.split(key, 4)
    w1, b1 = _linear_init(k1, 3, HIDDEN)
    w2, b2 = _linear_init(k2, HIDDEN, HIDDEN)
    w3, b3 = _linear_init(k3, HIDDEN, HIDDEN)
    w4, b4 = _linear_init(k4, HIDDEN, 3)
    return (w1, b1, w2, b2, w3, b3, w4, b4)


# ---------------- pure-JAX reference for verification ------------------------

def _radiance_field_ref(pts, params):
    w1, b1, w2, b2, w3, b3, w4, b4 = params
    h = jnp.maximum(pts @ w1 + b1, 0.0)
    h = jnp.maximum(h @ w2 + b2, 0.0)
    h = jnp.maximum(h @ w3 + b3, 0.0)
    return h @ w4 + b4


def _volume_rendering_ref(params, o, d, num_samples=32):
    b, r, _ = o.shape
    t_vals = jnp.linspace(0.0, 1.0, num_samples, dtype=jnp.float32)
    z_vals = t_vals * 4.0
    pts = o[:, :, None, :] + d[:, :, None, :] * z_vals[None, None, :, None]
    pts = pts.reshape(-1, 3)
    rgb = jax.nn.sigmoid(_radiance_field_ref(pts, params))
    rgb = rgb.reshape(b, r, num_samples, 3)
    return jnp.sum(rgb, axis=2) / num_samples


if __name__ == "__main__":
    key = jax.random.PRNGKey(0)
    k_coarse, k_fine, k_o, k_d = jax.random.split(key, 4)

    coarse_params = init_radiance_field(k_coarse)
    fine_params = init_radiance_field(k_fine)

    # Small shapes: batch=2, rays=16, num_samples=32 -> 1024 points per MLP call.
    B, R, S = 2, 16, 32
    o = jax.random.normal(k_o, (B, R, 3), dtype=jnp.float32)
    d = jax.random.normal(k_d, (B, R, 3), dtype=jnp.float32)

    fwd = jax.jit(functools.partial(nerf_forward, num_samples=S))
    coarse_out, fine_out = fwd(coarse_params, fine_params, o, d)
    jax.block_until_ready((coarse_out, fine_out))

    # Verify against the pure-JAX f32 reference of the PyTorch forward
    # (bf16 MXU GEMMs + bf16 reduction + approx reciprocal -> ~1e-2 budget).
    coarse_ref = _volume_rendering_ref(coarse_params, o, d, S)
    fine_ref = _volume_rendering_ref(fine_params, o, d, S)
    assert coarse_out.shape == (B, R, 3) and fine_out.shape == (B, R, 3)
    assert jnp.max(jnp.abs(coarse_out - coarse_ref)) < 2e-2
    assert jnp.max(jnp.abs(fine_out - fine_ref)) < 2e-2

    print("KERNEL_OK")
</pallas_src>

<mosaic_0001>
module attributes {stable_mosaic.version = 11 : i64} {
  func.func @_radiance_field_kernel(%arg0: i32, %arg1: i32, %arg2: memref<1024x3xf32, #tpu.memory_space<vmem>>, %arg3: memref<32x1024xbf16, #tpu.memory_space<vmem>>, %arg4: memref<1x3x256xf32, #tpu.memory_space<vmem>>, %arg5: memref<1x1x256xf32, #tpu.memory_space<vmem>>, %arg6: memref<1x256x256xbf16, #tpu.memory_space<vmem>>, %arg7: memref<1x1x256xf32, #tpu.memory_space<vmem>>, %arg8: memref<1x256x256xbf16, #tpu.memory_space<vmem>>, %arg9: memref<1x1x256xf32, #tpu.memory_space<vmem>>, %arg10: memref<1x256x128xbf16, #tpu.memory_space<vmem>>, %arg11: memref<1x1x128xf32, #tpu.memory_space<vmem>>, %arg12: memref<1x32x128xf32, #tpu.memory_space<vmem>>) attributes {dimension_semantics = [#tpu.dimension_semantics<parallel>, #tpu.dimension_semantics<parallel>], iteration_bounds = array<i64: 2, 1>, scalar_prefetch = 0 : i64, scratch_operands = 0 : i64, tpu.core_type = #tpu.core_type<tc>, window_params = [{transform_indices = @transform_0, window_bounds = array<i64: 1024, 3>}, {pipeline_mode = #tpu.pipeline_mode<synchronous>, transform_indices = @transform_1, window_bounds = array<i64: 32, 1024>}, {transform_indices = @transform_2, window_bounds = array<i64: 1, 3, 256>}, {transform_indices = @transform_3, window_bounds = array<i64: 1, 1, 256>}, {transform_indices = @transform_4, window_bounds = array<i64: 1, 256, 256>}, {transform_indices = @transform_5, window_bounds = array<i64: 1, 1, 256>}, {transform_indices = @transform_6, window_bounds = array<i64: 1, 256, 256>}, {transform_indices = @transform_7, window_bounds = array<i64: 1, 1, 256>}, {transform_indices = @transform_8, window_bounds = array<i64: 1, 256, 128>}, {transform_indices = @transform_9, window_bounds = array<i64: 1, 1, 128>}, {transform_indices = @transform_10, window_bounds = array<i64: 1, 32, 128>}]} {
    %c0 = arith.constant 0 : index
    %c0_0 = arith.constant 0 : index
    %0 = vector.load %arg2[%c0, %c0_0] : memref<1024x3xf32, #tpu.memory_space<vmem>>, vector<1024x3xf32>
    %c0_1 = arith.constant 0 : index
    %c0_2 = arith.constant 0 : index
    %c0_3 = arith.constant 0 : index
    %1 = vector.load %arg4[%c0_1, %c0_2, %c0_3] : memref<1x3x256xf32, #tpu.memory_space<vmem>>, vector<1x3x256xf32>
    %2 = vector.shape_cast %1 : vector<1x3x256xf32> to vector<3x256xf32>
    %3 = vector.extract_strided_slice %0 {offsets = [0, 0], sizes = [1024, 1], strides = [1, 1]} : vector<1024x3xf32> to vector<1024x1xf32>
    %4 = vector.extract_strided_slice %2 {offsets = [0, 0], sizes = [1, 256], strides = [1, 1]} : vector<3x256xf32> to vector<1x256xf32>
    %5 = vector.broadcast %3 : vector<1024x1xf32> to vector<1024x256xf32>
    %6 = vector.broadcast %4 : vector<1x256xf32> to vector<1024x256xf32>
    %7 = arith.mulf %5, %6 : vector<1024x256xf32>
    %8 = vector.extract_strided_slice %0 {offsets = [0, 1], sizes = [1024, 1], strides = [1, 1]} : vector<1024x3xf32> to vector<1024x1xf32>
    %9 = vector.extract_strided_slice %2 {offsets = [1, 0], sizes = [1, 256], strides = [1, 1]} : vector<3x256xf32> to vector<1x256xf32>
    %10 = vector.broadcast %8 : vector<1024x1xf32> to vector<1024x256xf32>
    %11 = vector.broadcast %9 : vector<1x256xf32> to vector<1024x256xf32>
    %12 = arith.mulf %10, %11 : vector<1024x256xf32>
    %13 = arith.addf %7, %12 : vector<1024x256xf32>
    %14 = vector.extract_strided_slice %0 {offsets = [0, 2], sizes = [1024, 1], strides = [1, 1]} : vector<1024x3xf32> to vector<1024x1xf32>
    %15 = vector.extract_strided_slice %2 {offsets = [2, 0], sizes = [1, 256], strides = [1, 1]} : vector<3x256xf32> to vector<1x256xf32>
    %16 = vector.broadcast %14 : vector<1024x1xf32> to vector<1024x256xf32>
    %17 = vector.broadcast %15 : vector<1x256xf32> to vector<1024x256xf32>
    %18 = arith.mulf %16, %17 : vector<1024x256xf32>
    %19 = arith.addf %13, %18 : vector<1024x256xf32>
    %c0_4 = arith.constant 0 : index
    %c0_5 = arith.constant 0 : index
    %c0_6 = arith.constant 0 : index
    %20 = vector.load %arg5[%c0_4, %c0_5, %c0_6] : memref<1x1x256xf32, #tpu.memory_space<vmem>>, vector<1x1x256xf32>
    %21 = vector.shape_cast %20 : vector<1x1x256xf32> to vector<1x256xf32>
    %22 = vector.broadcast %21 : vector<1x256xf32> to vector<1024x256xf32>
    %23 = arith.addf %19, %22 : vector<1024x256xf32>
    %cst = arith.constant 0.000000e+00 : f32
    %24 = vector.broadcast %cst : f32 to vector<1024x256xf32>
    %25 = arith.maximumf %23, %24 : vector<1024x256xf32>
    %26 = arith.truncf %25 : vector<1024x256xf32> to vector<1024x256xbf16>
    %c0_7 = arith.constant 0 : index
    %c0_8 = arith.constant 0 : index
    %c0_9 = arith.constant 0 : index
    %27 = vector.load %arg6[%c0_7, %c0_8, %c0_9] : memref<1x256x256xbf16, #tpu.memory_space<vmem>>, vector<1x256x256xbf16>
    %28 = vector.shape_cast %27 : vector<1x256x256xbf16> to vector<256x256xbf16>
    %cst_10 = arith.constant dense<0.000000e+00> : vector<1024x256xf32>
    %29 = tpu.matmul %26, %28, %cst_10 {dimension_numbers = #tpu.dot_dimension_numbers<[1], [0], [0], [1], [0, 0, 1, 1], [], []>} : vector<1024x256xbf16>, vector<256x256xbf16>, vector<1024x256xf32> -> vector<1024x256xf32>
    %c0_11 = arith.constant 0 : index
    %c0_12 = arith.constant 0 : index
    %c0_13 = arith.constant 0 : index
    %30 = vector.load %arg7[%c0_11, %c0_12, %c0_13] : memref<1x1x256xf32, #tpu.memory_space<vmem>>, vector<1x1x256xf32>
    %31 = vector.shape_cast %30 : vector<1x1x256xf32> to vector<1x256xf32>
    %32 = vector.broadcast %31 : vector<1x256xf32> to vector<1024x256xf32>
    %33 = arith.addf %29, %32 : vector<1024x256xf32>
    %cst_14 = arith.constant 0.000000e+00 : f32
    %34 = vector.broadcast %cst_14 : f32 to vector<1024x256xf32>
    %35 = arith.maximumf %33, %34 : vector<1024x256xf32>
    %36 = arith.truncf %35 : vector<1024x256xf32> to vector<1024x256xbf16>
    %c0_15 = arith.constant 0 : index
    %c0_16 = arith.constant 0 : index
    %c0_17 = arith.constant 0 : index
    %37 = vector.load %arg8[%c0_15, %c0_16, %c0_17] : memref<1x256x256xbf16, #tpu.memory_space<vmem>>, vector<1x256x256xbf16>
    %38 = vector.shape_cast %37 : vector<1x256x256xbf16> to vector<256x256xbf16>
    %cst_18 = arith.constant dense<0.000000e+00> : vector<1024x256xf32>
    %39 = tpu.matmul %36, %38, %cst_18 {dimension_numbers = #tpu.dot_dimension_numbers<[1], [0], [0], [1], [0, 0, 1, 1], [], []>} : vector<1024x256xbf16>, vector<256x256xbf16>, vector<1024x256xf32> -> vector<1024x256xf32>
    %c0_19 = arith.constant 0 : index
    %c0_20 = arith.constant 0 : index
    %c0_21 = arith.constant 0 : index
    %40 = vector.load %arg9[%c0_19, %c0_20, %c0_21] : memref<1x1x256xf32, #tpu.memory_space<vmem>>, vector<1x1x256xf32>
    %41 = vector.shape_cast %40 : vector<1x1x256xf32> to vector<1x256xf32>
    %42 = vector.broadcast %41 : vector<1x256xf32> to vector<1024x256xf32>
    %43 = arith.addf %39, %42 : vector<1024x256xf32>
    %cst_22 = arith.constant 0.000000e+00 : f32
    %44 = vector.broadcast %cst_22 : f32 to vector<1024x256xf32>
    %45 = arith.maximumf %43, %44 : vector<1024x256xf32>
    %46 = arith.truncf %45 : vector<1024x256xf32> to vector<1024x256xbf16>
    %c0_23 = arith.constant 0 : index
    %c0_24 = arith.constant 0 : index
    %c0_25 = arith.constant 0 : index
    %47 = vector.load %arg10[%c0_23, %c0_24, %c0_25] : memref<1x256x128xbf16, #tpu.memory_space<vmem>>, vector<1x256x128xbf16>
    %48 = vector.shape_cast %47 : vector<1x256x128xbf16> to vector<256x128xbf16>
    %cst_26 = arith.constant dense<0.000000e+00> : vector<1024x128xf32>
    %49 = tpu.matmul %46, %48, %cst_26 {dimension_numbers = #tpu.dot_dimension_numbers<[1], [0], [0], [1], [0, 0, 1, 1], [], []>} : vector<1024x256xbf16>, vector<256x128xbf16>, vector<1024x128xf32> -> vector<1024x128xf32>
    %c0_27 = arith.constant 0 : index
    %c0_28 = arith.constant 0 : index
    %c0_29 = arith.constant 0 : index
    %50 = vector.load %arg11[%c0_27, %c0_28, %c0_29] : memref<1x1x128xf32, #tpu.memory_space<vmem>>, vector<1x1x128xf32>
    %51 = vector.shape_cast %50 : vector<1x1x128xf32> to vector<1x128xf32>
    %52 = vector.broadcast %51 : vector<1x128xf32> to vector<1024x128xf32>
    %53 = arith.addf %49, %52 : vector<1024x128xf32>
    %cst_30 = arith.constant 0.000000e+00 : f32
    %54 = vector.broadcast %cst_30 : f32 to vector<1024x128xf32>
    %55 = arith.subf %54, %53 : vector<1024x128xf32>
    %56 = math.exp %55 : vector<1024x128xf32>
    %cst_31 = arith.constant 1.000000e+00 : f32
    %57 = vector.broadcast %cst_31 : f32 to vector<1024x128xf32>
    %58 = arith.addf %57, %56 : vector<1024x128xf32>
    %59 = tpu.reciprocal %58 {approx = true} : vector<1024x128xf32> -> vector<1024x128xf32>
    %c0_32 = arith.constant 0 : index
    %c0_33 = arith.constant 0 : index
    %60 = vector.load %arg3[%c0_32, %c0_33] : memref<32x1024xbf16, #tpu.memory_space<vmem>>, vector<32x1024xbf16>
    %61 = arith.truncf %59 : vector<1024x128xf32> to vector<1024x128xbf16>
    %cst_34 = arith.constant dense<0.000000e+00> : vector<32x128xf32>
    %62 = tpu.matmul %60, %61, %cst_34 {dimension_numbers = #tpu.dot_dimension_numbers<[1], [0], [0], [1], [0, 0, 1, 1], [], []>} : vector<32x1024xbf16>, vector<1024x128xbf16>, vector<32x128xf32> -> vector<32x128xf32>
    %cst_35 = arith.constant 3.125000e-02 : f32
    %63 = vector.broadcast %cst_35 : f32 to vector<32x128xf32>
    %64 = arith.mulf %63, %62 : vector<32x128xf32>
    %c0_36 = arith.constant 0 : index
    %c0_37 = arith.constant 0 : index
    %c0_38 = arith.constant 0 : index
    %65 = vector.load %arg12[%c0_36, %c0_37, %c0_38] : memref<1x32x128xf32, #tpu.memory_space<vmem>>, vector<1x32x128xf32>
    %66 = vector.shape_cast %65 : vector<1x32x128xf32> to vector<32x128xf32>
    %67 = vector.shape_cast %64 : vector<32x128xf32> to vector<1x32x128xf32>
    tpu.vector_store %arg12[%c0_36, %c0_37, %c0_38], %67 {strides = array<i32>} : memref<1x32x128xf32, #tpu.memory_space<vmem>>, vector<1x32x128xf32>,
    return
  }
  func.func @transform_0(%arg0: i32, %arg1: i32) -> (i32, i32) {
    %c0_i32 = arith.constant 0 : i32
    %c0_i32_0 = arith.constant 0 : i32
    return %arg1, %c0_i32 : i32, i32
  }
  func.func @transform_1(%arg0: i32, %arg1: i32) -> (i32, i32) {
    %c0_i32 = arith.constant 0 : i32
    %c0_i32_0 = arith.constant 0 : i32
    %c0_i32_1 = arith.constant 0 : i32
    return %c0_i32, %c0_i32_0 : i32, i32
  }
  func.func @transform_2(%arg0: i32, %arg1: i32) -> (i32, i32, i32) {
    %c0_i32 = arith.constant 0 : i32
    %c0_i32_0 = arith.constant 0 : i32
    %c0_i32_1 = arith.constant 0 : i32
    return %arg0, %c0_i32, %c0_i32_0 : i32, i32, i32
  }
  func.func @transform_3(%arg0: i32, %arg1: i32) -> (i32, i32, i32) {
    %c0_i32 = arith.constant 0 : i32
    %c0_i32_0 = arith.constant 0 : i32
    %c0_i32_1 = arith.constant 0 : i32
    return %arg0, %c0_i32, %c0_i32_0 : i32, i32, i32
  }
  func.func @transform_4(%arg0: i32, %arg1: i32) -> (i32, i32, i32) {
    %c0_i32 = arith.constant 0 : i32
    %c0_i32_0 = arith.constant 0 : i32
    %c0_i32_1 = arith.constant 0 : i32
    return %arg0, %c0_i32, %c0_i32_0 : i32, i32, i32
  }
  func.func @transform_5(%arg0: i32, %arg1: i32) -> (i32, i32, i32) {
    %c0_i32 = arith.constant 0 : i32
    %c0_i32_0 = arith.constant 0 : i32
    %c0_i32_1 = arith.constant 0 : i32
    return %arg0, %c0_i32, %c0_i32_0 : i32, i32, i32
  }
  func.func @transform_6(%arg0: i32, %arg1: i32) -> (i32, i32, i32) {
    %c0_i32 = arith.constant 0 : i32
    %c0_i32_0 = arith.constant 0 : i32
    %c0_i32_1 = arith.constant 0 : i32
    return %arg0, %c0_i32, %c0_i32_0 : i32, i32, i32
  }
  func.func @transform_7(%arg0: i32, %arg1: i32) -> (i32, i32, i32) {
    %c0_i32 = arith.constant 0 : i32
    %c0_i32_0 = arith.constant 0 : i32
    %c0_i32_1 = arith.constant 0 : i32
    return %arg0, %c0_i32, %c0_i32_0 : i32, i32, i32
  }
  func.func @transform_8(%arg0: i32, %arg1: i32) -> (i32, i32, i32) {
    %c0_i32 = arith.constant 0 : i32
    %c0_i32_0 = arith.constant 0 : i32
    %c0_i32_1 = arith.constant 0 : i32
    return %arg0, %c0_i32, %c0_i32_0 : i32, i32, i32
  }
  func.func @transform_9(%arg0: i32, %arg1: i32) -> (i32, i32, i32) {
    %c0_i32 = arith.constant 0 : i32
    %c0_i32_0 = arith.constant 0 : i32
    %c0_i32_1 = arith.constant 0 : i32
    return %arg0, %c0_i32, %c0_i32_0 : i32, i32, i32
  }
  func.func @transform_10(%arg0: i32, %arg1: i32) -> (i32, i32, i32) {
    %c0_i32 = arith.constant 0 : i32
    %c0_i32_0 = arith.constant 0 : i32
    return %arg0, %arg1, %c0_i32 : i32, i32, i32
  }
}

</mosaic_0001>

<llo_original>
// kernel: nerf_forward.1
$region0: #{nerf_forward.1}
  #allocation0 [shape = 'u32[]', space=smem, size = 0x4, offset = 0x4, fixed_abs, tag = 'smem constant byte address 0x4 - core index']
  #allocation1 [shape = 'u32[72,128]{1,0:T(1,128)}', space=vmem, size = 0x9000, scoped, tag = 'internal scratch']
  %s0 = inlined_call_operand.vmem [shape: f32[1024,3], index: 0, kind: input, shape index: {}]
  %s1 = inlined_call_operand.vmem [shape: bf16[32,1024], index: 1, kind: input, shape index: {}]
  %s2 = inlined_call_operand.vmem [shape: f32[2,3,256], index: 2, kind: input, shape index: {}]
  %s3 = inlined_call_operand.vmem [shape: f32[2,1,256], index: 3, kind: input, shape index: {}]
  %s4 = inlined_call_operand.vmem [shape: bf16[2,256,256], index: 4, kind: input, shape index: {}]
  %s5 = inlined_call_operand.vmem [shape: f32[2,1,256], index: 5, kind: input, shape index: {}]
  %s6 = inlined_call_operand.vmem [shape: bf16[2,256,256], index: 6, kind: input, shape index: {}]
  %s7 = inlined_call_operand.vmem [shape: f32[2,1,256], index: 7, kind: input, shape index: {}]
  %s8 = inlined_call_operand.vmem [shape: bf16[2,256,128], index: 8, kind: input, shape index: {}]
  %s9 = inlined_call_operand.vmem [shape: f32[2,1,128], index: 9, kind: input, shape index: {}]
  %s10 = inlined_call_operand.vmem [shape: f32[2,32,128], index: 10, kind: output, shape index: {}]
  %s11 = sld [smem:[#allocation0]]
  $region73: #{nerf_forward.1} parent=0
    _
  %s13 = ssub.s32 1, %s11
  %s14 = scalar_select 0, %s13, %s11
  loop: start=0, step=1, limit=4
  $region2: #{nerf_forward.1} parent=0 // loop_pre_header
    _
  $region3: #{nerf_forward.1} parent=0 // loop_header
    %s16 = sphi 0, %s20
    %p17 = scmp.ge.s32.totalorder %s16, 4
    %s23 = sphi 0, %s35
    %s24 = sphi 0, %s31
    %s25 = sphi 0, %s23
    %s26 = sphi 0, %s24
    %s27 = sphi 0, %s25
    %s28 = sphi 0, %s26
    %s38 = sphi 0, %s40
    %s41 = sphi 0, %s38
    %s42 = sphi 0, %s41
    %s58 = sphi 0, %s42
    %s62 = sphi 0, %s62
    %s64 = sphi 0, %s62
    %s65 = sphi 0, %s64
    %s79 = sphi 0, %s65
    %s85 = sphi 0, %s87
    %s88 = sphi 0, %s85
    %s89 = sphi 0, %s88
    %s105 = sphi 0, %s89
    %s111 = sphi 0, %s113
    %s114 = sphi 0, %s111
    %s115 = sphi 0, %s114
    %s131 = sphi 0, %s115
    %s137 = sphi 0, %s139
    %s140 = sphi 0, %s137
    %s141 = sphi 0, %s140
    %s157 = sphi 0, %s141
    %s163 = sphi 0, %s165
    %s166 = sphi 0, %s163
    %s167 = sphi 0, %s166
    %s183 = sphi 0, %s167
    %s189 = sphi 0, %s191
    %s192 = sphi 0, %s189
    %s193 = sphi 0, %s192
    %s209 = sphi 0, %s193
    %s215 = sphi 0, %s217
    %s218 = sphi 0, %s215
    %s219 = sphi 0, %s218
    %s235 = sphi 0, %s219
    %s241 = sphi 0, %s243
    %s244 = sphi 0, %s241
    %s245 = sphi 0, %s244
    %s261 = sphi 0, %s245
    %s267 = sphi 0, %s269
    %s270 = sphi 0, %s267
    %s271 = sphi 0, %s270
    %s287 = sphi 0, %s271
    %s295 = sphi 0, %s297
    %s298 = sphi 0, %s295
    %s299 = sphi 0, %s298
    %s315 = sphi 0, %s299
  $region4: #{nerf_forward.1} parent=0 // loop_header_branch
    %19 = sbr.rel (%p17) target = $region8
  $region5: #{nerf_forward.1} parent=0 // loop_body
    %s21 = ssub.s32 %s16, 1
    %s22 = ssub.s32 %s16, 2
    %s29 = sadd.s32 1, %s24
    %p30 = scmp.ge.s32.totalorder %s29, 1
    %s31 = scalar_select %p30, 0, %s29
    %s32 = sadd.s32 1, %s23
    %s33 = scalar_select %p30, %s32, %s23
    %p34 = scmp.ge.s32.totalorder %s33, 2
    %s35 = scalar_select %p34, 0, %s33
    %s36 = ssub.s32 %s24, %s31
    %p37 = scmp.eq.s32.totalorder %s36, 0
    %s39 = sadd.s32 %s38, 1
    %s40 = scalar_select %p37, %s38, %s39
    %p43 = pneg %p37
    %p44 = scmp.eq.s32.totalorder %s16, 1
    %p45 = por %p43, %p44
    %p46 = scmp.ne.s32.totalorder %s38, %s41
    %p47 = scmp.eq.s32.totalorder %s16, 0
    %p48 = por %p46, %p47
    %p49 = scmp.ne.s32.totalorder %s38, %s41
    %p50 = scmp.eq.s32.totalorder %s21, 1
    %p51 = por %p49, %p50
    %p52 = scmp.ne.s32.totalorder %s41, %s42
    %p53 = scmp.eq.s32.totalorder %s21, 0
    %p54 = por %p52, %p53
    %p55 = scmp.ne.s32.totalorder %s41, %s42
    %p56 = scmp.eq.s32.totalorder %s22, 1
    %p57 = por %p55, %p56
    %p59 = scmp.ne.s32.totalorder %s42, %s58
    %p60 = scmp.eq.s32.totalorder %s22, 0
    %p61 = por %p59, %p60
    %s63 = sadd.s32 %s62, 1
    %p66 = scmp.eq.s32.totalorder %s16, 1
    %p67 = scmp.ne.s32.totalorder %s62, %s64
    %p68 = scmp.eq.s32.totalorder %s16, 0
    %p69 = por %p67, %p68
    %p70 = scmp.ne.s32.totalorder %s62, %s64
    %p71 = scmp.eq.s32.totalorder %s21, 1
    %p72 = por %p70, %p71
    %p73 = scmp.ne.s32.totalorder %s64, %s65
    %p74 = scmp.eq.s32.totalorder %s21, 0
    %p75 = por %p73, %p74
    %p76 = scmp.ne.s32.totalorder %s64, %s65
    %p77 = scmp.eq.s32.totalorder %s22, 1
    %p78 = por %p76, %p77
    %p80 = scmp.ne.s32.totalorder %s65, %s79
    %p81 = scmp.eq.s32.totalorder %s22, 0
    %p82 = por %p80, %p81
    %s83 = ssub.s32 %s23, %s35
    %p84 = scmp.eq.s32.totalorder %s83, 0
    %s86 = sadd.s32 %s85, 1
    %s87 = scalar_select %p84, %s85, %s86
    %p90 = pneg %p84
    %p91 = scmp.eq.s32.totalorder %s16, 1
    %p92 = por %p90, %p91
    %p93 = scmp.ne.s32.totalorder %s85, %s88
    %p94 = scmp.eq.s32.totalorder %s16, 0
    %p95 = por %p93, %p94
    %p96 = scmp.ne.s32.totalorder %s85, %s88
    %p97 = scmp.eq.s32.totalorder %s21, 1
    %p98 = por %p96, %p97
    %p99 = scmp.ne.s32.totalorder %s88, %s89
    %p100 = scmp.eq.s32.totalorder %s21, 0
    %p101 = por %p99, %p100
    %p102 = scmp.ne.s32.totalorder %s88, %s89
    %p103 = scmp.eq.s32.totalorder %s22, 1
    %p104 = por %p102, %p103
    %p106 = scmp.ne.s32.totalorder %s89, %s105
    %p107 = scmp.eq.s32.totalorder %s22, 0
    %p108 = por %p106, %p107
    %s109 = ssub.s32 %s23, %s35
    %p110 = scmp.eq.s32.totalorder %s109, 0
    %s112 = sadd.s32 %s111, 1
    %s113 = scalar_select %p110, %s111, %s112
    %p116 = pneg %p110
    %p117 = scmp.eq.s32.totalorder %s16, 1
    %p118 = por %p116, %p117
    %p119 = scmp.ne.s32.totalorder %s111, %s114
    %p120 = scmp.eq.s32.totalorder %s16, 0
    %p121 = por %p119, %p120
    %p122 = scmp.ne.s32.totalorder %s111, %s114
    %p123 = scmp.eq.s32.totalorder %s21, 1
    %p124 = por %p122, %p123
    %p125 = scmp.ne.s32.totalorder %s114, %s115
    %p126 = scmp.eq.s32.totalorder %s21, 0
    %p127 = por %p125, %p126
    %p128 = scmp.ne.s32.totalorder %s114, %s115
    %p129 = scmp.eq.s32.totalorder %s22, 1
    %p130 = por %p128, %p129
    %p132 = scmp.ne.s32.totalorder %s115, %s131
    %p133 = scmp.eq.s32.totalorder %s22, 0
    %p134 = por %p132, %p133
    %s135 = ssub.s32 %s23, %s35
    %p136 = scmp.eq.s32.totalorder %s135, 0
    %s138 = sadd.s32 %s137, 1
    %s139 = scalar_select %p136, %s137, %s138
    %p142 = pneg %p136
    %p143 = scmp.eq.s32.totalorder %s16, 1
    %p144 = por %p142, %p143
    %p145 = scmp.ne.s32.totalorder %s137, %s140
    %p146 = scmp.eq.s32.totalorder %s16, 0
    %p147 = por %p145, %p146
    %p148 = scmp.ne.s32.totalorder %s137, %s140
    %p149 = scmp.eq.s32.totalorder %s21, 1
    %p150 = por %p148, %p149
    %p151 = scmp.ne.s32.totalorder %s140, %s141
    %p152 = scmp.eq.s32.totalorder %s21, 0
    %p153 = por %p151, %p152
    %p154 = scmp.ne.s32.totalorder %s140, %s141
    %p155 = scmp.eq.s32.totalorder %s22, 1
    %p156 = por %p154, %p155
    %p158 = scmp.ne.s32.totalorder %s141, %s157
    %p159 = scmp.eq.s32.totalorder %s22, 0
    %p160 = por %p158, %p159
    %s161 = ssub.s32 %s23, %s35
    %p162 = scmp.eq.s32.totalorder %s161, 0
    %s164 = sadd.s32 %s163, 1
    %s165 = scalar_select %p162, %s163, %s164
    %p168 = pneg %p162
    %p169 = scmp.eq.s32.totalorder %s16, 1
    %p170 = por %p168, %p169
    %p171 = scmp.ne.s32.totalorder %s163, %s166
    %p172 = scmp.eq.s32.totalorder %s16, 0
    %p173 = por %p171, %p172
    %p174 = scmp.ne.s32.totalorder %s163, %s166
    %p175 = scmp.eq.s32.totalorder %s21, 1
    %p176 = por %p174, %p175
    %p177 = scmp.ne.s32.totalorder %s166, %s167
    %p178 = scmp.eq.s32.totalorder %s21, 0
    %p179 = por %p177, %p178
    %p180 = scmp.ne.s32.totalorder %s166, %s167
    %p181 = scmp.eq.s32.totalorder %s22, 1
    %p182 = por %p180, %p181
    %p184 = scmp.ne.s32.totalorder %s167, %s183
    %p185 = scmp.eq.s32.totalorder %s22, 0
    %p186 = por %p184, %p185
    %s187 = ssub.s32 %s23, %s35
    %p188 = scmp.eq.s32.totalorder %s187, 0
    %s190 = sadd.s32 %s189, 1
    %s191 = scalar_select %p188, %s189, %s190
    %p194 = pneg %p188
    %p195 = scmp.eq.s32.totalorder %s16, 1
    %p196 = por %p194, %p195
    %p197 = scmp.ne.s32.totalorder %s189, %s192
    %p198 = scmp.eq.s32.totalorder %s16, 0
    %p199 = por %p197, %p198
    %p200 = scmp.ne.s32.totalorder %s189, %s192
    %p201 = scmp.eq.s32.totalorder %s21, 1
    %p202 = por %p200, %p201
    %p203 = scmp.ne.s32.totalorder %s192, %s193
    %p204 = scmp.eq.s32.totalorder %s21, 0
    %p205 = por %p203, %p204
    %p206 = scmp.ne.s32.totalorder %s192, %s193
    %p207 = scmp.eq.s32.totalorder %s22, 1
    %p208 = por %p206, %p207
    %p210 = scmp.ne.s32.totalorder %s193, %s209
    %p211 = scmp.eq.s32.totalorder %s22, 0
    %p212 = por %p210, %p211
    %s213 = ssub.s32 %s23, %s35
    %p214 = scmp.eq.s32.totalorder %s213, 0
    %s216 = sadd.s32 %s215, 1
    %s217 = scalar_select %p214, %s215, %s216
    %p220 = pneg %p214
    %p221 = scmp.eq.s32.totalorder %s16, 1
    %p222 = por %p220, %p221
    %p223 = scmp.ne.s32.totalorder %s215, %s218
    %p224 = scmp.eq.s32.totalorder %s16, 0
    %p225 = por %p223, %p224
    %p226 = scmp.ne.s32.totalorder %s215, %s218
    %p227 = scmp.eq.s32.totalorder %s21, 1
    %p228 = por %p226, %p227
    %p229 = scmp.ne.s32.totalorder %s218, %s219
    %p230 = scmp.eq.s32.totalorder %s21, 0
    %p231 = por %p229, %p230
    %p232 = scmp.ne.s32.totalorder %s218, %s219
    %p233 = scmp.eq.s32.totalorder %s22, 1
    %p234 = por %p232, %p233
    %p236 = scmp.ne.s32.totalorder %s219, %s235
    %p237 = scmp.eq.s32.totalorder %s22, 0
    %p238 = por %p236, %p237
    %s239 = ssub.s32 %s23, %s35
    %p240 = scmp.eq.s32.totalorder %s239, 0
    %s242 = sadd.s32 %s241, 1
    %s243 = scalar_select %p240, %s241, %s242
    %p246 = pneg %p240
    %p247 = scmp.eq.s32.totalorder %s16, 1
    %p248 = por %p246, %p247
    %p249 = scmp.ne.s32.totalorder %s241, %s244
    %p250 = scmp.eq.s32.totalorder %s16, 0
    %p251 = por %p249, %p250
    %p252 = scmp.ne.s32.totalorder %s241, %s244
    %p253 = scmp.eq.s32.totalorder %s21, 1
    %p254 = por %p252, %p253
    %p255 = scmp.ne.s32.totalorder %s244, %s245
    %p256 = scmp.eq.s32.totalorder %s21, 0
    %p257 = por %p255, %p256
    %p258 = scmp.ne.s32.totalorder %s244, %s245
    %p259 = scmp.eq.s32.totalorder %s22, 1
    %p260 = por %p258, %p259
    %p262 = scmp.ne.s32.totalorder %s245, %s261
    %p263 = scmp.eq.s32.totalorder %s22, 0
    %p264 = por %p262, %p263
    %s265 = ssub.s32 %s23, %s35
    %p266 = scmp.eq.s32.totalorder %s265, 0
    %s268 = sadd.s32 %s267, 1
    %s269 = scalar_select %p266, %s267, %s268
    %p272 = pneg %p266
    %p273 = scmp.eq.s32.totalorder %s16, 1
    %p274 = por %p272, %p273
    %p275 = scmp.ne.s32.totalorder %s267, %s270
    %p276 = scmp.eq.s32.totalorder %s16, 0
    %p277 = por %p275, %p276
    %p278 = scmp.ne.s32.totalorder %s267, %s270
    %p279 = scmp.eq.s32.totalorder %s21, 1
    %p280 = por %p278, %p279
    %p281 = scmp.ne.s32.totalorder %s270, %s271
    %p282 = scmp.eq.s32.totalorder %s21, 0
    %p283 = por %p281, %p282
    %p284 = scmp.ne.s32.totalorder %s270, %s271
    %p285 = scmp.eq.s32.totalorder %s22, 1
    %p286 = por %p284, %p285
    %p288 = scmp.ne.s32.totalorder %s271, %s287
    %p289 = scmp.eq.s32.totalorder %s22, 0
    %p290 = por %p288, %p289
    %s291 = ssub.s32 %s23, %s35
    %s292 = ssub.s32 %s24, %s31
    %s293 = sor.u32 %s291, %s292
    %p294 = scmp.eq.s32.totalorder %s293, 0
    %s296 = sadd.s32 %s295, 1
    %s297 = scalar_select %p294, %s295, %s296
    %p300 = pneg %p294
    %p301 = scmp.eq.s32.totalorder %s16, 1
    %p302 = por %p300, %p301
    %p303 = scmp.ne.s32.totalorder %s295, %s298
    %p304 = scmp.eq.s32.totalorder %s16, 0
    %p305 = por %p303, %p304
    %p306 = scmp.ne.s32.totalorder %s295, %s298
    %p307 = scmp.eq.s32.totalorder %s21, 1
    %p308 = por %p306, %p307
    %p309 = scmp.ne.s32.totalorder %s298, %s299
    %p310 = scmp.eq.s32.totalorder %s21, 0
    %p311 = por %p309, %p310
    %p312 = scmp.ne.s32.totalorder %s298, %s299
    %p313 = scmp.eq.s32.totalorder %s22, 1
    %p314 = por %p312, %p313
    %p316 = scmp.ne.s32.totalorder %s299, %s315
    %p317 = scmp.eq.s32.totalorder %s22, 0
    %p318 = por %p316, %p317
    %p319 = scmp.le.s32.totalorder 1, %s16
    %p320 = scmp.lt.s32.totalorder %s16, 3
    %p321 = pnand %p319, %p320
    %p322 = pneg %p321
    // Predicated region
    $region9: #{nerf_forward.1} parent=5 // pred_check
      _
    $region10: #{nerf_forward.1} parent=5 // pred_check_branch
      %324 = sbr.rel (%p321) target = $region12
    $region11: #{nerf_forward.1} parent=5 // pred_region
      %s325 = ssub.s32 %s16, 1
      // Predicated region
      $region13: #{nerf_forward.1} parent=11 // pred_check
        %p326 = pneg %p54
      $region14: #{nerf_forward.1} parent=11 // pred_check_branch
        %328 = sbr.rel (%p326) target = $region16
      $region15: #{nerf_forward.1} parent=11 // pred_region
        %s329 = smul.u32 128, %s26
        %p330 = scmp.lt.s32.totalorder %s329, 127
        %s331 = scalar_select %p330, %s329, 127
        %s332 = smul.addr %s331, 8
        %s333 = scalar_lea.vmem %s0, %s332
        %s334 = smul.u32 128, %s26
      $region16: #{nerf_forward.1} parent=11 // pred_fallthru
        _
      // Predicated region
      $region17: #{nerf_forward.1} parent=11 // pred_check
        %p335 = pneg %p75
      $region18: #{nerf_forward.1} parent=11 // pred_check_branch
        %337 = sbr.rel (%p335) target = $region20
      $region19: #{nerf_forward.1} parent=11 // pred_region
        _
      $region20: #{nerf_forward.1} parent=11 // pred_fallthru
        _
    $region12: #{nerf_forward.1} parent=5 // pred_fallthru
      _
    %p338 = scmp.lt.s32.totalorder %s16, 2
    // Predicated region
    $region21: #{nerf_forward.1} parent=5 // pred_check
      %p339 = pneg %p338
    $region22: #{nerf_forward.1} parent=5 // pred_check_branch
      %341 = sbr.rel (%p339) target = $region24
    $region23: #{nerf_forward.1} parent=5 // pred_region
      // Predicated region
      $region25: #{nerf_forward.1} parent=23 // pred_check
        %p342 = pneg %p95
      $region26: #{nerf_forward.1} parent=23 // pred_check_branch
        %344 = sbr.rel (%p342) target = $region28
      $region27: #{nerf_forward.1} parent=23 // pred_region
        %p345 = scmp.lt.s32.totalorder %s23, 1
        %s346 = scalar_select %p345, %s23, 1
        %s347 = smul.addr %s346, 2
        %s348 = smul.addr %s347, 4
        %s349 = scalar_lea.vmem %s2, %s348
      $region28: #{nerf_forward.1} parent=23 // pred_fallthru
        _
      // Predicated region
      $region29: #{nerf_forward.1} parent=23 // pred_check
        %p350 = pneg %p121
      $region30: #{nerf_forward.1} parent=23 // pred_check_branch
        %352 = sbr.rel (%p350) target = $region32
      $region31: #{nerf_forward.1} parent=23 // pred_region
        %p353 = scmp.lt.s32.totalorder %s23, 1
        %s354 = scalar_select %p353, %s23, 1
        %s355 = smul.addr %s354, 2
        %s356 = scalar_lea.vmem %s3, %s355
      $region32: #{nerf_forward.1} parent=23 // pred_fallthru
        _
      // Predicated region
      $region33: #{nerf_forward.1} parent=23 // pred_check
        %p357 = pneg %p147
      $region34: #{nerf_forward.1} parent=23 // pred_check_branch
        %359 = sbr.rel (%p357) target = $region36
      $region35: #{nerf_forward.1} parent=23 // pred_region
        %p360 = scmp.lt.s32.totalorder %s23, 1
        %s361 = scalar_select %p360, %s23, 1
        %s362 = smul.addr %s361, 64
        %s363 = smul.addr %s362, 4
        %s364 = scalar_lea.vmem %s4, %s363
      $region36: #{nerf_forward.1} parent=23 // pred_fallthru
        _
      // Predicated region
      $region37: #{nerf_forward.1} parent=23 // pred_check
        %p365 = pneg %p173
      $region38: #{nerf_forward.1} parent=23 // pred_check_branch
        %367 = sbr.rel (%p365) target = $region40
      $region39: #{nerf_forward.1} parent=23 // pred_region
        %p368 = scmp.lt.s32.totalorder %s23, 1
        %s369 = scalar_select %p368, %s23, 1
        %s370 = smul.addr %s369, 2
        %s371 = scalar_lea.vmem %s5, %s370
      $region40: #{nerf_forward.1} parent=23 // pred_fallthru
        _
      // Predicated region
      $region41: #{nerf_forward.1} parent=23 // pred_check
        %p372 = pneg %p199
      $region42: #{nerf_forward.1} parent=23 // pred_check_branch
        %374 = sbr.rel (%p372) target = $region44
      $region43: #{nerf_forward.1} parent=23 // pred_region
        %p375 = scmp.lt.s32.totalorder %s23, 1
        %s376 = scalar_select %p375, %s23, 1
        %s377 = smul.addr %s376, 64
        %s378 = smul.addr %s377, 4
        %s379 = scalar_lea.vmem %s6, %s378
      $region44: #{nerf_forward.1} parent=23 // pred_fallthru
        _
      // Predicated region
      $region45: #{nerf_forward.1} parent=23 // pred_check
        %p380 = pneg %p225
      $region46: #{nerf_forward.1} parent=23 // pred_check_branch
        %382 = sbr.rel (%p380) target = $region48
      $region47: #{nerf_forward.1} parent=23 // pred_region
        %p383 = scmp.lt.s32.totalorder %s23, 1
        %s384 = scalar_select %p383, %s23, 1
        %s385 = smul.addr %s384, 2
        %s386 = scalar_lea.vmem %s7, %s385
      $region48: #{nerf_forward.1} parent=23 // pred_fallthru
        _
      // Predicated region
      $region49: #{nerf_forward.1} parent=23 // pred_check
        %p387 = pneg %p251
      $region50: #{nerf_forward.1} parent=23 // pred_check_branch
        %389 = sbr.rel (%p387) target = $region52
      $region51: #{nerf_forward.1} parent=23 // pred_region
        %p390 = scmp.lt.s32.totalorder %s23, 1
        %s391 = scalar_select %p390, %s23, 1
        %s392 = smul.addr %s391, 32
        %s393 = smul.addr %s392, 4
        %s394 = scalar_lea.vmem %s8, %s393
      $region52: #{nerf_forward.1} parent=23 // pred_fallthru
        _
      // Predicated region
      $region53: #{nerf_forward.1} parent=23 // pred_check
        %p395 = pneg %p277
      $region54: #{nerf_forward.1} parent=23 // pred_check_branch
        %397 = sbr.rel (%p395) target = $region56
      $region55: #{nerf_forward.1} parent=23 // pred_region
        %p398 = scmp.lt.s32.totalorder %s23, 1
        %s399 = scalar_select %p398, %s23, 1
        %s400 = scalar_lea.vmem %s9, %s399
      $region56: #{nerf_forward.1} parent=23 // pred_fallthru
        _
    $region24: #{nerf_forward.1} parent=5 // pred_fallthru
      _
    %p401 = scmp.le.s32.totalorder 1, %s16
    %p402 = scmp.lt.s32.totalorder %s16, 3
    %p403 = pnand %p401, %p402
    %p404 = pneg %p403
    // Predicated region
    $region57: #{nerf_forward.1} parent=5 // pred_check
      _
    $region58: #{nerf_forward.1} parent=5 // pred_check_branch
      %406 = sbr.rel (%p403) target = $region60
    $region59: #{nerf_forward.1} parent=5 // pred_region
      %s407 = ssub.s32 %s16, 1
      %s408 = smul.u32 128, %s26
      %p409 = scmp.lt.s32.totalorder %s408, 127
      %s410 = scalar_select %p409, %s408, 127
      %s411 = smul.addr %s410, 8
      %s412 = scalar_lea.vmem %s0, %s411
      %p413 = pneg %p54
      %p414 = pneg %p51
      %p415 = pneg %p75
      %p416 = pneg %p72
      %p417 = scmp.lt.s32.totalorder %s25, 1
      %s418 = scalar_select %p417, %s25, 1
      %s419 = smul.addr %s418, 2
      %s420 = smul.addr %s419, 4
      %s421 = scalar_lea.vmem %s2, %s420
      %p422 = pneg %p101
      %p423 = pneg %p98
      %p424 = scmp.lt.s32.totalorder %s25, 1
      %s425 = scalar_select %p424, %s25, 1
      %s426 = smul.addr %s425, 2
      %s427 = scalar_lea.vmem %s3, %s426
      %p428 = pneg %p127
      %p429 = pneg %p124
      %p430 = scmp.lt.s32.totalorder %s25, 1
      %s431 = scalar_select %p430, %s25, 1
      %s432 = smul.addr %s431, 64
      %s433 = smul.addr %s432, 4
      %s434 = scalar_lea.vmem %s4, %s433
      %p435 = pneg %p153
      %p436 = pneg %p150
      %p437 = scmp.lt.s32.totalorder %s25, 1
      %s438 = scalar_select %p437, %s25, 1
      %s439 = smul.addr %s438, 2
      %s440 = scalar_lea.vmem %s5, %s439
      %p441 = pneg %p179
      %p442 = pneg %p176
      %p443 = scmp.lt.s32.totalorder %s25, 1
      %s444 = scalar_select %p443, %s25, 1
      %s445 = smul.addr %s444, 64
      %s446 = smul.addr %s445, 4
      %s447 = scalar_lea.vmem %s6, %s446
      %p448 = pneg %p205
      %p449 = pneg %p202
      %p450 = scmp.lt.s32.totalorder %s25, 1
      %s451 = scalar_select %p450, %s25, 1
      %s452 = smul.addr %s451, 2
      %s453 = scalar_lea.vmem %s7, %s452
      %p454 = pneg %p231
      %p455 = pneg %p228
      %p456 = scmp.lt.s32.totalorder %s25, 1
      %s457 = scalar_select %p456, %s25, 1
      %s458 = smul.addr %s457, 32
      %s459 = smul.addr %s458, 4
      %s460 = scalar_lea.vmem %s8, %s459
      %p461 = pneg %p257
      %p462 = pneg %p254
      %p463 = scmp.lt.s32.totalorder %s25, 1
      %s464 = scalar_select %p463, %s25, 1
      %s465 = scalar_lea.vmem %s9, %s464
      %p466 = pneg %p283
      %p467 = pneg %p280
      %p468 = pneg %p311
      %p469 = pneg %p308
      %s470 = smul.u32 4, %s26
      %p471 = scmp.lt.s32.totalorder %s25, 1
      %s472 = scalar_select %p471, %s25, 1
      %p473 = scmp.lt.s32.totalorder %s470, 3
      %s474 = scalar_select %p473, %s470, 3
      %s475 = smul.addr %s472, 4
      %s476 = sadd.s32 %s474, %s475
      %s477 = smul.addr %s476, 8
      %s478 = scalar_lea.vmem %s10, %s477
      %s479 = smul.u32 128, %s26
      %p480 = scmp.lt.s32.totalorder %s479, 127
      %s481 = scalar_select %p480, %s479, 127
      %s482 = smul.addr %s481, 8
      %s483 = scalar_lea.vmem %s0, %s482
      %s484 = smul.u32 128, %s26
      %p485 = scmp.lt.s32.totalorder %s25, 1
      %s486 = scalar_select %p485, %s25, 1
      %s487 = smul.addr %s486, 2
      %s488 = smul.addr %s487, 4
      %s489 = scalar_lea.vmem %s2, %s488
      %p490 = scmp.lt.s32.totalorder %s25, 1
      %s491 = scalar_select %p490, %s25, 1
      %s492 = smul.addr %s491, 2
      %s493 = scalar_lea.vmem %s3, %s492
      %p494 = scmp.lt.s32.totalorder %s25, 1
      %s495 = scalar_select %p494, %s25, 1
      %s496 = smul.addr %s495, 64
      %s497 = smul.addr %s496, 4
      %s498 = scalar_lea.vmem %s4, %s497
      %p499 = scmp.lt.s32.totalorder %s25, 1
      %s500 = scalar_select %p499, %s25, 1
      %s501 = smul.addr %s500, 2
      %s502 = scalar_lea.vmem %s5, %s501
      %p503 = scmp.lt.s32.totalorder %s25, 1
      %s504 = scalar_select %p503, %s25, 1
      %s505 = smul.addr %s504, 64
      %s506 = smul.addr %s505, 4
      %s507 = scalar_lea.vmem %s6, %s506
      %p508 = scmp.lt.s32.totalorder %s25, 1
      %s509 = scalar_select %p508, %s25, 1
      %s510 = smul.addr %s509, 2
      %s511 = scalar_lea.vmem %s7, %s510
      %p512 = scmp.lt.s32.totalorder %s25, 1
      %s513 = scalar_select %p512, %s25, 1
      %s514 = smul.addr %s513, 32
      %s515 = smul.addr %s514, 4
      %s516 = scalar_lea.vmem %s8, %s515
      %p517 = scmp.lt.s32.totalorder %s25, 1
      %s518 = scalar_select %p517, %s25, 1
      %s519 = scalar_lea.vmem %s9, %s518
      %s520 = smul.u32 4, %s26
      %p521 = scmp.lt.s32.totalorder %s25, 1
      %s522 = scalar_select %p521, %s25, 1
      %p523 = scmp.lt.s32.totalorder %s520, 3
      %s524 = scalar_select %p523, %s520, 3
      %s525 = smul.addr %s522, 4
      %s526 = sadd.s32 %s524, %s525
      %s527 = smul.addr %s526, 8
      %s528 = scalar_lea.vmem %s10, %s527
      %s529 = smul.u32 4, %s26
      %v530 = vld [vmem:[%s483] sm:$0xff]
      %v531 = vld [vmem:[%s483 + $0x8] sm:$0xff]
      %v532 = vld [vmem:[%s483 + $0x10] sm:$0xff]
      %v533 = vld [vmem:[%s483 + $0x18] sm:$0xff]
      %v534 = vld [vmem:[%s483 + $0x20] sm:$0xff]
      %v535 = vld [vmem:[%s483 + $0x28] sm:$0xff]
      %v536 = vld [vmem:[%s483 + $0x30] sm:$0xff]
      %v537 = vld [vmem:[%s483 + $0x38] sm:$0xff]
      %v538 = vld [vmem:[%s483 + $0x40] sm:$0xff]
      %v539 = vld [vmem:[%s483 + $0x48] sm:$0xff]
      %v540 = vld [vmem:[%s483 + $0x50] sm:$0xff]
      %v541 = vld [vmem:[%s483 + $0x58] sm:$0xff]
      %v542 = vld [vmem:[%s483 + $0x60] sm:$0xff]
      %v543 = vld [vmem:[%s483 + $0x68] sm:$0xff]
      %v544 = vld [vmem:[%s483 + $0x70] sm:$0xff]
      %v545 = vld [vmem:[%s483 + $0x78] sm:$0xff]
      %v546 = vld [vmem:[%s483 + $0x80] sm:$0xff]
      %v547 = vld [vmem:[%s483 + $0x88] sm:$0xff]
      %v548 = vld [vmem:[%s483 + $0x90] sm:$0xff]
      %v549 = vld [vmem:[%s483 + $0x98] sm:$0xff]
      %v550 = vld [vmem:[%s483 + $0xa0] sm:$0xff]
      %v551 = vld [vmem:[%s483 + $0xa8] sm:$0xff]
      %v552 = vld [vmem:[%s483 + $0xb0] sm:$0xff]
      %v553 = vld [vmem:[%s483 + $0xb8] sm:$0xff]
      %v554 = vld [vmem:[%s483 + $0xc0] sm:$0xff]
      %v555 = vld [vmem:[%s483 + $0xc8] sm:$0xff]
      %v556 = vld [vmem:[%s483 + $0xd0] sm:$0xff]
      %v557 = vld [vmem:[%s483 + $0xd8] sm:$0xff]
      %v558 = vld [vmem:[%s483 + $0xe0] sm:$0xff]
      %v559 = vld [vmem:[%s483 + $0xe8] sm:$0xff]
      %v560 = vld [vmem:[%s483 + $0xf0] sm:$0xff]
      %v561 = vld [vmem:[%s483 + $0xf8] sm:$0xff]
      %v562 = vld [vmem:[%s483 + $0x100] sm:$0xff]
      %v563 = vld [vmem:[%s483 + $0x108] sm:$0xff]
      %v564 = vld [vmem:[%s483 + $0x110] sm:$0xff]
      %v565 = vld [vmem:[%s483 + $0x118] sm:$0xff]
      %v566 = vld [vmem:[%s483 + $0x120] sm:$0xff]
      %v567 = vld [vmem:[%s483 + $0x128] sm:$0xff]
      %v568 = vld [vmem:[%s483 + $0x130] sm:$0xff]
      %v569 = vld [vmem:[%s483 + $0x138] sm:$0xff]
      %v570 = vld [vmem:[%s483 + $0x140] sm:$0xff]
      %v571 = vld [vmem:[%s483 + $0x148] sm:$0xff]
      %v572 = vld [vmem:[%s483 + $0x150] sm:$0xff]
      %v573 = vld [vmem:[%s483 + $0x158] sm:$0xff]
      %v574 = vld [vmem:[%s483 + $0x160] sm:$0xff]
      %v575 = vld [vmem:[%s483 + $0x168] sm:$0xff]
      %v576 = vld [vmem:[%s483 + $0x170] sm:$0xff]
      %v577 = vld [vmem:[%s483 + $0x178] sm:$0xff]
      %v578 = vld [vmem:[%s483 + $0x180] sm:$0xff]
      %v579 = vld [vmem:[%s483 + $0x188] sm:$0xff]
      %v580 = vld [vmem:[%s483 + $0x190] sm:$0xff]
      %v581 = vld [vmem:[%s483 + $0x198] sm:$0xff]
      %v582 = vld [vmem:[%s483 + $0x1a0] sm:$0xff]
      %v583 = vld [vmem:[%s483 + $0x1a8] sm:$0xff]
      %v584 = vld [vmem:[%s483 + $0x1b0] sm:$0xff]
      %v585 = vld [vmem:[%s483 + $0x1b8] sm:$0xff]
      %v586 = vld [vmem:[%s483 + $0x1c0] sm:$0xff]
      %v587 = vld [vmem:[%s483 + $0x1c8] sm:$0xff]
      %v588 = vld [vmem:[%s483 + $0x1d0] sm:$0xff]
      %v589 = vld [vmem:[%s483 + $0x1d8] sm:$0xff]
      %v590 = vld [vmem:[%s483 + $0x1e0] sm:$0xff]
      %v591 = vld [vmem:[%s483 + $0x1e8] sm:$0xff]
      %v592 = vld [vmem:[%s483 + $0x1f0] sm:$0xff]
      %v593 = vld [vmem:[%s483 + $0x1f8] sm:$0xff]
      %v594 = vld [vmem:[%s483 + $0x200] sm:$0xff]
      %v595 = vld [vmem:[%s483 + $0x208] sm:$0xff]
      %v596 = vld [vmem:[%s483 + $0x210] sm:$0xff]
      %v597 = vld [vmem:[%s483 + $0x218] sm:$0xff]
      %v598 = vld [vmem:[%s483 + $0x220] sm:$0xff]
      %v599 = vld [vmem:[%s483 + $0x228] sm:$0xff]
      %v600 = vld [vmem:[%s483 + $0x230] sm:$0xff]
      %v601 = vld [vmem:[%s483 + $0x238] sm:$0xff]
      %v602 = vld [vmem:[%s483 + $0x240] sm:$0xff]
      %v603 = vld [vmem:[%s483 + $0x248] sm:$0xff]
      %v604 = vld [vmem:[%s483 + $0x250] sm:$0xff]
      %v605 = vld [vmem:[%s483 + $0x258] sm:$0xff]
      %v606 = vld [vmem:[%s483 + $0x260] sm:$0xff]
      %v607 = vld [vmem:[%s483 + $0x268] sm:$0xff]
      %v608 = vld [vmem:[%s483 + $0x270] sm:$0xff]
      %v609 = vld [vmem:[%s483 + $0x278] sm:$0xff]
      %v610 = vld [vmem:[%s483 + $0x280] sm:$0xff]
      %v611 = vld [vmem:[%s483 + $0x288] sm:$0xff]
      %v612 = vld [vmem:[%s483 + $0x290] sm:$0xff]
      %v613 = vld [vmem:[%s483 + $0x298] sm:$0xff]
      %v614 = vld [vmem:[%s483 + $0x2a0] sm:$0xff]
      %v615 = vld [vmem:[%s483 + $0x2a8] sm:$0xff]
      %v616 = vld [vmem:[%s483 + $0x2b0] sm:$0xff]
      %v617 = vld [vmem:[%s483 + $0x2b8] sm:$0xff]
      %v618 = vld [vmem:[%s483 + $0x2c0] sm:$0xff]
      %v619 = vld [vmem:[%s483 + $0x2c8] sm:$0xff]
      %v620 = vld [vmem:[%s483 + $0x2d0] sm:$0xff]
      %v621 = vld [vmem:[%s483 + $0x2d8] sm:$0xff]
      %v622 = vld [vmem:[%s483 + $0x2e0] sm:$0xff]
      %v623 = vld [vmem:[%s483 + $0x2e8] sm:$0xff]
      %v624 = vld [vmem:[%s483 + $0x2f0] sm:$0xff]
      %v625 = vld [vmem:[%s483 + $0x2f8] sm:$0xff]
      %v626 = vld [vmem:[%s483 + $0x300] sm:$0xff]
      %v627 = vld [vmem:[%s483 + $0x308] sm:$0xff]
      %v628 = vld [vmem:[%s483 + $0x310] sm:$0xff]
      %v629 = vld [vmem:[%s483 + $0x318] sm:$0xff]
      %v630 = vld [vmem:[%s483 + $0x320] sm:$0xff]
      %v631 = vld [vmem:[%s483 + $0x328] sm:$0xff]
      %v632 = vld [vmem:[%s483 + $0x330] sm:$0xff]
      %v633 = vld [vmem:[%s483 + $0x338] sm:$0xff]
      %v634 = vld [vmem:[%s483 + $0x340] sm:$0xff]
      %v635 = vld [vmem:[%s483 + $0x348] sm:$0xff]
      %v636 = vld [vmem:[%s483 + $0x350] sm:$0xff]
      %v637 = vld [vmem:[%s483 + $0x358] sm:$0xff]
      %v638 = vld [vmem:[%s483 + $0x360] sm:$0xff]
      %v639 = vld [vmem:[%s483 + $0x368] sm:$0xff]
      %v640 = vld [vmem:[%s483 + $0x370] sm:$0xff]
      %v641 = vld [vmem:[%s483 + $0x378] sm:$0xff]
      %v642 = vld [vmem:[%s483 + $0x380] sm:$0xff]
      %v643 = vld [vmem:[%s483 + $0x388] sm:$0xff]
      %v644 = vld [vmem:[%s483 + $0x390] sm:$0xff]
      %v645 = vld [vmem:[%s483 + $0x398] sm:$0xff]
      %v646 = vld [vmem:[%s483 + $0x3a0] sm:$0xff]
      %v647 = vld [vmem:[%s483 + $0x3a8] sm:$0xff]
      %v648 = vld [vmem:[%s483 + $0x3b0] sm:$0xff]
      %v649 = vld [vmem:[%s483 + $0x3b8] sm:$0xff]
      %v650 = vld [vmem:[%s483 + $0x3c0] sm:$0xff]
      %v651 = vld [vmem:[%s483 + $0x3c8] sm:$0xff]
      %v652 = vld [vmem:[%s483 + $0x3d0] sm:$0xff]
      %v653 = vld [vmem:[%s483 + $0x3d8] sm:$0xff]
      %v654 = vld [vmem:[%s483 + $0x3e0] sm:$0xff]
      %v655 = vld [vmem:[%s483 + $0x3e8] sm:$0xff]
      %v656 = vld [vmem:[%s483 + $0x3f0] sm:$0xff]
      %v657 = vld [vmem:[%s483 + $0x3f8] sm:$0xff]
      %v658 = vld [vmem:[%s489] sm:$0x77]
      %660 = vset.pattern.permute.xlu0 0
      %661 = vperm.xlu0 %660, %v530
      %v662 = vpop.permute.xlu0 %661
      %665 = vset.pattern.permute.xlu0 0
      %666 = vperm.xlu0 %665, %v531
      %v667 = vpop.permute.xlu0 %666
      %670 = vset.pattern.permute.xlu0 0
      %671 = vperm.xlu0 %670, %v532
      %v672 = vpop.permute.xlu0 %671
      %675 = vset.pattern.permute.xlu0 0
      %676 = vperm.xlu0 %675, %v533
      %v677 = vpop.permute.xlu0 %676
      %680 = vset.pattern.permute.xlu0 0
      %681 = vperm.xlu0 %680, %v534
      %v682 = vpop.permute.xlu0 %681
      %685 = vset.pattern.permute.xlu0 0
      %686 = vperm.xlu0 %685, %v535
      %v687 = vpop.permute.xlu0 %686
      %690 = vset.pattern.permute.xlu0 0
      %691 = vperm.xlu0 %690, %v536
      %v692 = vpop.permute.xlu0 %691
      %695 = vset.pattern.permute.xlu0 0
      %696 = vperm.xlu0 %695, %v537
      %v697 = vpop.permute.xlu0 %696
      %700 = vset.pattern.permute.xlu0 0
      %701 = vperm.xlu0 %700, %v538
      %v702 = vpop.permute.xlu0 %701
      %705 = vset.pattern.permute.xlu0 0
      %706 = vperm.xlu0 %705, %v539
      %v707 = vpop.permute.xlu0 %706
      %710 = vset.pattern.permute.xlu0 0
      %711 = vperm.xlu0 %710, %v540
      %v712 = vpop.permute.xlu0 %711
      %715 = vset.pattern.permute.xlu0 0
      %716 = vperm.xlu0 %715, %v541
      %v717 = vpop.permute.xlu0 %716
      %720 = vset.pattern.permute.xlu0 0
      %721 = vperm.xlu0 %720, %v542
      %v722 = vpop.permute.xlu0 %721
      %725 = vset.pattern.permute.xlu0 0
      %726 = vperm.xlu0 %725, %v543
      %v727 = vpop.permute.xlu0 %726
      %730 = vset.pattern.permute.xlu0 0
      %731 = vperm.xlu0 %730, %v544
      %v732 = vpop.permute.xlu0 %731
      %735 = vset.pattern.permute.xlu0 0
      %736 = vperm.xlu0 %735, %v545
      %v737 = vpop.permute.xlu0 %736
      %740 = vset.pattern.permute.xlu0 0
      %741 = vperm.xlu0 %740, %v546
      %v742 = vpop.permute.xlu0 %741
      %745 = vset.pattern.permute.xlu0 0
      %746 = vperm.xlu0 %745, %v547
      %v747 = vpop.permute.xlu0 %746
      %750 = vset.pattern.permute.xlu0 0
      %751 = vperm.xlu0 %750, %v548
      %v752 = vpop.permute.xlu0 %751
      %755 = vset.pattern.permute.xlu0 0
      %756 = vperm.xlu0 %755, %v549
      %v757 = vpop.permute.xlu0 %756
      %760 = vset.pattern.permute.xlu0 0
      %761 = vperm.xlu0 %760, %v550
      %v762 = vpop.permute.xlu0 %761
      %765 = vset.pattern.permute.xlu0 0
      %766 = vperm.xlu0 %765, %v551
      %v767 = vpop.permute.xlu0 %766
      %770 = vset.pattern.permute.xlu0 0
      %771 = vperm.xlu0 %770, %v552
      %v772 = vpop.permute.xlu0 %771
      %775 = vset.pattern.permute.xlu0 0
      %776 = vperm.xlu0 %775, %v553
      %v777 = vpop.permute.xlu0 %776
      %780 = vset.pattern.permute.xlu0 0
      %781 = vperm.xlu0 %780, %v554
      %v782 = vpop.permute.xlu0 %781
      %785 = vset.pattern.permute.xlu0 0
      %786 = vperm.xlu0 %785, %v555
      %v787 = vpop.permute.xlu0 %786
      %790 = vset.pattern.permute.xlu0 0
      %791 = vperm.xlu0 %790, %v556
      %v792 = vpop.permute.xlu0 %791
      %795 = vset.pattern.permute.xlu0 0
      %796 = vperm.xlu0 %795, %v557
      %v797 = vpop.permute.xlu0 %796
      %800 = vset.pattern.permute.xlu0 0
      %801 = vperm.xlu0 %800, %v558
      %v802 = vpop.permute.xlu0 %801
      %805 = vset.pattern.permute.xlu0 0
      %806 = vperm.xlu0 %805, %v559
      %v807 = vpop.permute.xlu0 %806
      %810 = vset.pattern.permute.xlu0 0
      %811 = vperm.xlu0 %810, %v560
      %v812 = vpop.permute.xlu0 %811
      %815 = vset.pattern.permute.xlu0 0
      %816 = vperm.xlu0 %815, %v561
      %v817 = vpop.permute.xlu0 %816
      %820 = vset.pattern.permute.xlu0 0
      %821 = vperm.xlu0 %820, %v562
      %v822 = vpop.permute.xlu0 %821
      %825 = vset.pattern.permute.xlu0 0
      %826 = vperm.xlu0 %825, %v563
      %v827 = vpop.permute.xlu0 %826
      %830 = vset.pattern.permute.xlu0 0
      %831 = vperm.xlu0 %830, %v564
      %v832 = vpop.permute.xlu0 %831
      %835 = vset.pattern.permute.xlu0 0
      %836 = vperm.xlu0 %835, %v565
      %v837 = vpop.permute.xlu0 %836
      %840 = vset.pattern.permute.xlu0 0
      %841 = vperm.xlu0 %840, %v566
      %v842 = vpop.permute.xlu0 %841
      %845 = vset.pattern.permute.xlu0 0
      %846 = vperm.xlu0 %845, %v567
      %v847 = vpop.permute.xlu0 %846
      %850 = vset.pattern.permute.xlu0 0
      %851 = vperm.xlu0 %850, %v568
      %v852 = vpop.permute.xlu0 %851
      %855 = vset.pattern.permute.xlu0 0
      %856 = vperm.xlu0 %855, %v569
      %v857 = vpop.permute.xlu0 %856
      %860 = vset.pattern.permute.xlu0 0
      %861 = vperm.xlu0 %860, %v570
      %v862 = vpop.permute.xlu0 %861
      %865 = vset.pattern.permute.xlu0 0
      %866 = vperm.xlu0 %865, %v571
      %v867 = vpop.permute.xlu0 %866
      %870 = vset.pattern.permute.xlu0 0
      %871 = vperm.xlu0 %870, %v572
      %v872 = vpop.permute.xlu0 %871
      %875 = vset.pattern.permute.xlu0 0
      %876 = vperm.xlu0 %875, %v573
      %v877 = vpop.permute.xlu0 %876
      %880 = vset.pattern.permute.xlu0 0
      %881 = vperm.xlu0 %880, %v574
      %v882 = vpop.permute.xlu0 %881
      %885 = vset.pattern.permute.xlu0 0
      %886 = vperm.xlu0 %885, %v575
      %v887 = vpop.permute.xlu0 %886
      %890 = vset.pattern.permute.xlu0 0
      %891 = vperm.xlu0 %890, %v576
      %v892 = vpop.permute.xlu0 %891
      %895 = vset.pattern.permute.xlu0 0
      %896 = vperm.xlu0 %895, %v577
      %v897 = vpop.permute.xlu0 %896
      %900 = vset.pattern.permute.xlu0 0
      %901 = vperm.xlu0 %900, %v578
      %v902 = vpop.permute.xlu0 %901
      %905 = vset.pattern.permute.xlu0 0
      %906 = vperm.xlu0 %905, %v579
      %v907 = vpop.permute.xlu0 %906
      %910 = vset.pattern.permute.xlu0 0
      %911 = vperm.xlu0 %910, %v580
      %v912 = vpop.permute.xlu0 %911
      %915 = vset.pattern.permute.xlu0 0
      %916 = vperm.xlu0 %915, %v581
      %v917 = vpop.permute.xlu0 %916
      %920 = vset.pattern.permute.xlu0 0
      %921 = vperm.xlu0 %920, %v582
      %v922 = vpop.permute.xlu0 %921
      %925 = vset.pattern.permute.xlu0 0
      %926 = vperm.xlu0 %925, %v583
      %v927 = vpop.permute.xlu0 %926
      %930 = vset.pattern.permute.xlu0 0
      %931 = vperm.xlu0 %930, %v584
      %v932 = vpop.permute.xlu0 %931
      %935 = vset.pattern.permute.xlu0 0
      %936 = vperm.xlu0 %935, %v585
      %v937 = vpop.permute.xlu0 %936
      %940 = vset.pattern.permute.xlu0 0
      %941 = vperm.xlu0 %940, %v586
      %v942 = vpop.permute.xlu0 %941
      %945 = vset.pattern.permute.xlu0 0
      %946 = vperm.xlu0 %945, %v587
      %v947 = vpop.permute.xlu0 %946
      %950 = vset.pattern.permute.xlu0 0
      %951 = vperm.xlu0 %950, %v588
      %v952 = vpop.permute.xlu0 %951
      %955 = vset.pattern.permute.xlu0 0
      %956 = vperm.xlu0 %955, %v589
      %v957 = vpop.permute.xlu0 %956
      %960 = vset.pattern.permute.xlu0 0
      %961 = vperm.xlu0 %960, %v590
      %v962 = vpop.permute.xlu0 %961
      %965 = vset.pattern.permute.xlu0 0
      %966 = vperm.xlu0 %965, %v591
      %v967 = vpop.permute.xlu0 %966
      %970 = vset.pattern.permute.xlu0 0
      %971 = vperm.xlu0 %970, %v592
      %v972 = vpop.permute.xlu0 %971
      %975 = vset.pattern.permute.xlu0 0
      %976 = vperm.xlu0 %975, %v593
      %v977 = vpop.permute.xlu0 %976
      %980 = vset.pattern.permute.xlu0 0
      %981 = vperm.xlu0 %980, %v594
      %v982 = vpop.permute.xlu0 %981
      %985 = vset.pattern.permute.xlu0 0
      %986 = vperm.xlu0 %985, %v595
      %v987 = vpop.permute.xlu0 %986
      %990 = vset.pattern.permute.xlu0 0
      %991 = vperm.xlu0 %990, %v596
      %v992 = vpop.permute.xlu0 %991
      %995 = vset.pattern.permute.xlu0 0
      %996 = vperm.xlu0 %995, %v597
      %v997 = vpop.permute.xlu0 %996
      %1000 = vset.pattern.permute.xlu0 0
      %1001 = vperm.xlu0 %1000, %v598
      %v1002 = vpop.permute.xlu0 %1001
      %1005 = vset.pattern.permute.xlu0 0
      %1006 = vperm.xlu0 %1005, %v599
      %v1007 = vpop.permute.xlu0 %1006
      %1010 = vset.pattern.permute.xlu0 0
      %1011 = vperm.xlu0 %1010, %v600
      %v1012 = vpop.permute.xlu0 %1011
      %1015 = vset.pattern.permute.xlu0 0
      %1016 = vperm.xlu0 %1015, %v601
      %v1017 = vpop.permute.xlu0 %1016
      %1020 = vset.pattern.permute.xlu0 0
      %1021 = vperm.xlu0 %1020, %v602
      %v1022 = vpop.permute.xlu0 %1021
      %1025 = vset.pattern.permute.xlu0 0
      %1026 = vperm.xlu0 %1025, %v603
      %v1027 = vpop.permute.xlu0 %1026
      %1030 = vset.pattern.permute.xlu0 0
      %1031 = vperm.xlu0 %1030, %v604
      %v1032 = vpop.permute.xlu0 %1031
      %1035 = vset.pattern.permute.xlu0 0
      %1036 = vperm.xlu0 %1035, %v605
      %v1037 = vpop.permute.xlu0 %1036
      %1040 = vset.pattern.permute.xlu0 0
      %1041 = vperm.xlu0 %1040, %v606
      %v1042 = vpop.permute.xlu0 %1041
      %1045 = vset.pattern.permute.xlu0 0
      %1046 = vperm.xlu0 %1045, %v607
      %v1047 = vpop.permute.xlu0 %1046
      %1050 = vset.pattern.permute.xlu0 0
      %1051 = vperm.xlu0 %1050, %v608
      %v1052 = vpop.permute.xlu0 %1051
      %1055 = vset.pattern.permute.xlu0 0
      %1056 = vperm.xlu0 %1055, %v609
      %v1057 = vpop.permute.xlu0 %1056
      %1060 = vset.pattern.permute.xlu0 0
      %1061 = vperm.xlu0 %1060, %v610
      %v1062 = vpop.permute.xlu0 %1061
      %1065 = vset.pattern.permute.xlu0 0
      %1066 = vperm.xlu0 %1065, %v611
      %v1067 = vpop.permute.xlu0 %1066
      %1070 = vset.pattern.permute.xlu0 0
      %1071 = vperm.xlu0 %1070, %v612
      %v1072 = vpop.permute.xlu0 %1071
      %1075 = vset.pattern.permute.xlu0 0
      %1076 = vperm.xlu0 %1075, %v613
      %v1077 = vpop.permute.xlu0 %1076
      %1080 = vset.pattern.permute.xlu0 0
      %1081 = vperm.xlu0 %1080, %v614
      %v1082 = vpop.permute.xlu0 %1081
      %1085 = vset.pattern.permute.xlu0 0
      %1086 = vperm.xlu0 %1085, %v615
      %v1087 = vpop.permute.xlu0 %1086
      %1090 = vset.pattern.permute.xlu0 0
      %1091 = vperm.xlu0 %1090, %v616
      %v1092 = vpop.permute.xlu0 %1091
      %1095 = vset.pattern.permute.xlu0 0
      %1096 = vperm.xlu0 %1095, %v617
      %v1097 = vpop.permute.xlu0 %1096
      %1100 = vset.pattern.permute.xlu0 0
      %1101 = vperm.xlu0 %1100, %v618
      %v1102 = vpop.permute.xlu0 %1101
      %1105 = vset.pattern.permute.xlu0 0
      %1106 = vperm.xlu0 %1105, %v619
      %v1107 = vpop.permute.xlu0 %1106
      %1110 = vset.pattern.permute.xlu0 0
      %1111 = vperm.xlu0 %1110, %v620
      %v1112 = vpop.permute.xlu0 %1111
      %1115 = vset.pattern.permute.xlu0 0
      %1116 = vperm.xlu0 %1115, %v621
      %v1117 = vpop.permute.xlu0 %1116
      %1120 = vset.pattern.permute.xlu0 0
      %1121 = vperm.xlu0 %1120, %v622
      %v1122 = vpop.permute.xlu0 %1121
      %1125 = vset.pattern.permute.xlu0 0
      %1126 = vperm.xlu0 %1125, %v623
      %v1127 = vpop.permute.xlu0 %1126
      %1130 = vset.pattern.permute.xlu0 0
      %1131 = vperm.xlu0 %1130, %v624
      %v1132 = vpop.permute.xlu0 %1131
      %1135 = vset.pattern.permute.xlu0 0
      %1136 = vperm.xlu0 %1135, %v625
      %v1137 = vpop.permute.xlu0 %1136
      %1140 = vset.pattern.permute.xlu0 0
      %1141 = vperm.xlu0 %1140, %v626
      %v1142 = vpop.permute.xlu0 %1141
      %1145 = vset.pattern.permute.xlu0 0
      %1146 = vperm.xlu0 %1145, %v627
      %v1147 = vpop.permute.xlu0 %1146
      %1150 = vset.pattern.permute.xlu0 0
      %1151 = vperm.xlu0 %1150, %v628
      %v1152 = vpop.permute.xlu0 %1151
      %1155 = vset.pattern.permute.xlu0 0
      %1156 = vperm.xlu0 %1155, %v629
      %v1157 = vpop.permute.xlu0 %1156
      %1160 = vset.pattern.permute.xlu0 0
      %1161 = vperm.xlu0 %1160, %v630
      %v1162 = vpop.permute.xlu0 %1161
      %1165 = vset.pattern.permute.xlu0 0
      %1166 = vperm.xlu0 %1165, %v631
      %v1167 = vpop.permute.xlu0 %1166
      %1170 = vset.pattern.permute.xlu0 0
      %1171 = vperm.xlu0 %1170, %v632
      %v1172 = vpop.permute.xlu0 %1171
      %1175 = vset.pattern.permute.xlu0 0
      %1176 = vperm.xlu0 %1175, %v633
      %v1177 = vpop.permute.xlu0 %1176
      %1180 = vset.pattern.permute.xlu0 0
      %1181 = vperm.xlu0 %1180, %v634
      %v1182 = vpop.permute.xlu0 %1181
      %1185 = vset.pattern.permute.xlu0 0
      %1186 = vperm.xlu0 %1185, %v635
      %v1187 = vpop.permute.xlu0 %1186
      %1190 = vset.pattern.permute.xlu0 0
      %1191 = vperm.xlu0 %1190, %v636
      %v1192 = vpop.permute.xlu0 %1191
      %1195 = vset.pattern.permute.xlu0 0
      %1196 = vperm.xlu0 %1195, %v637
      %v1197 = vpop.permute.xlu0 %1196
      %1200 = vset.pattern.permute.xlu0 0
      %1201 = vperm.xlu0 %1200, %v638
      %v1202 = vpop.permute.xlu0 %1201
      %1205 = vset.pattern.permute.xlu0 0
      %1206 = vperm.xlu0 %1205, %v639
      %v1207 = vpop.permute.xlu0 %1206
      %1210 = vset.pattern.permute.xlu0 0
      %1211 = vperm.xlu0 %1210, %v640
      %v1212 = vpop.permute.xlu0 %1211
      %1215 = vset.pattern.permute.xlu0 0
      %1216 = vperm.xlu0 %1215, %v641
      %v1217 = vpop.permute.xlu0 %1216
      %1220 = vset.pattern.permute.xlu0 0
      %1221 = vperm.xlu0 %1220, %v642
      %v1222 = vpop.permute.xlu0 %1221
      %1225 = vset.pattern.permute.xlu0 0
      %1226 = vperm.xlu0 %1225, %v643
      %v1227 = vpop.permute.xlu0 %1226
      %1230 = vset.pattern.permute.xlu0 0
      %1231 = vperm.xlu0 %1230, %v644
      %v1232 = vpop.permute.xlu0 %1231
      %1235 = vset.pattern.permute.xlu0 0
      %1236 = vperm.xlu0 %1235, %v645
      %v1237 = vpop.permute.xlu0 %1236
      %1240 = vset.pattern.permute.xlu0 0
      %1241 = vperm.xlu0 %1240, %v646
      %v1242 = vpop.permute.xlu0 %1241
      %1245 = vset.pattern.permute.xlu0 0
      %1246 = vperm.xlu0 %1245, %v647
      %v1247 = vpop.permute.xlu0 %1246
      %1250 = vset.pattern.permute.xlu0 0
      %1251 = vperm.xlu0 %1250, %v648
      %v1252 = vpop.permute.xlu0 %1251
      %1255 = vset.pattern.permute.xlu0 0
      %1256 = vperm.xlu0 %1255, %v649
      %v1257 = vpop.permute.xlu0 %1256
      %1260 = vset.pattern.permute.xlu0 0
      %1261 = vperm.xlu0 %1260, %v650
      %v1262 = vpop.permute.xlu0 %1261
      %1265 = vset.pattern.permute.xlu0 0
      %1266 = vperm.xlu0 %1265, %v651
      %v1267 = vpop.permute.xlu0 %1266
      %1270 = vset.pattern.permute.xlu0 0
      %1271 = vperm.xlu0 %1270, %v652
      %v1272 = vpop.permute.xlu0 %1271
      %1275 = vset.pattern.permute.xlu0 0
      %1276 = vperm.xlu0 %1275, %v653
      %v1277 = vpop.permute.xlu0 %1276
      %1280 = vset.pattern.permute.xlu0 0
      %1281 = vperm.xlu0 %1280, %v654
      %v1282 = vpop.permute.xlu0 %1281
      %1285 = vset.pattern.permute.xlu0 0
      %1286 = vperm.xlu0 %1285, %v655
      %v1287 = vpop.permute.xlu0 %1286
      %1290 = vset.pattern.permute.xlu0 0
      %1291 = vperm.xlu0 %1290, %v656
      %v1292 = vpop.permute.xlu0 %1291
      %1295 = vset.pattern.permute.xlu0 0
      %1296 = vperm.xlu0 %1295, %v657
      %v1297 = vpop.permute.xlu0 %1296
      %v1300 = vperm.slane %v658, 0
      %v1301 = vperm.slane %v658, 4
      %v1304 = vperm.slane %v1300, 0
      %v1305 = vperm.slane %v1301, 0
      %v1306 = vmul.f32 %v662, %v1304
      %v1307 = vmul.f32 %v662, %v1305
      %v1308 = vmul.f32 %v667, %v1304
      %v1309 = vmul.f32 %v667, %v1305
      %v1310 = vmul.f32 %v672, %v1304
      %v1311 = vmul.f32 %v672, %v1305
      %v1312 = vmul.f32 %v677, %v1304
      %v1313 = vmul.f32 %v677, %v1305
      %v1314 = vmul.f32 %v682, %v1304
      %v1315 = vmul.f32 %v682, %v1305
      %v1316 = vmul.f32 %v687, %v1304
      %v1317 = vmul.f32 %v687, %v1305
      %v1318 = vmul.f32 %v692, %v1304
      %v1319 = vmul.f32 %v692, %v1305
      %v1320 = vmul.f32 %v697, %v1304
      %v1321 = vmul.f32 %v697, %v1305
      %v1322 = vmul.f32 %v702, %v1304
      %v1323 = vmul.f32 %v702, %v1305
      %v1324 = vmul.f32 %v707, %v1304
      %v1325 = vmul.f32 %v707, %v1305
      %v1326 = vmul.f32 %v712, %v1304
      %v1327 = vmul.f32 %v712, %v1305
      %v1328 = vmul.f32 %v717, %v1304
      %v1329 = vmul.f32 %v717, %v1305
      %v1330 = vmul.f32 %v722, %v1304
      %v1331 = vmul.f32 %v722, %v1305
      %v1332 = vmul.f32 %v727, %v1304
      %v1333 = vmul.f32 %v727, %v1305
      %v1334 = vmul.f32 %v732, %v1304
      %v1335 = vmul.f32 %v732, %v1305
      %v1336 = vmul.f32 %v737, %v1304
      %v1337 = vmul.f32 %v737, %v1305
      %v1338 = vmul.f32 %v742, %v1304
      %v1339 = vmul.f32 %v742, %v1305
      %v1340 = vmul.f32 %v747, %v1304
      %v1341 = vmul.f32 %v747, %v1305
      %v1342 = vmul.f32 %v752, %v1304
      %v1343 = vmul.f32 %v752, %v1305
      %v1344 = vmul.f32 %v757, %v1304
      %v1345 = vmul.f32 %v757, %v1305
      %v1346 = vmul.f32 %v762, %v1304
      %v1347 = vmul.f32 %v762, %v1305
      %v1348 = vmul.f32 %v767, %v1304
      %v1349 = vmul.f32 %v767, %v1305
      %v1350 = vmul.f32 %v772, %v1304
      %v1351 = vmul.f32 %v772, %v1305
      %v1352 = vmul.f32 %v777, %v1304
      %v1353 = vmul.f32 %v777, %v1305
      %v1354 = vmul.f32 %v782, %v1304
      %v1355 = vmul.f32 %v782, %v1305
      %v1356 = vmul.f32 %v787, %v1304
      %v1357 = vmul.f32 %v787, %v1305
      %v1358 = vmul.f32 %v792, %v1304
      %v1359 = vmul.f32 %v792, %v1305
      %v1360 = vmul.f32 %v797, %v1304
      %v1361 = vmul.f32 %v797, %v1305
      %v1362 = vmul.f32 %v802, %v1304
      %v1363 = vmul.f32 %v802, %v1305
      %v1364 = vmul.f32 %v807, %v1304
      %v1365 = vmul.f32 %v807, %v1305
      %v1366 = vmul.f32 %v812, %v1304
      %v1367 = vmul.f32 %v812, %v1305
      %v1368 = vmul.f32 %v817, %v1304
      %v1369 = vmul.f32 %v817, %v1305
      %v1370 = vmul.f32 %v822, %v1304
      %v1371 = vmul.f32 %v822, %v1305
      %v1372 = vmul.f32 %v827, %v1304
      %v1373 = vmul.f32 %v827, %v1305
      %v1374 = vmul.f32 %v832, %v1304
      %v1375 = vmul.f32 %v832, %v1305
      %v1376 = vmul.f32 %v837, %v1304
      %v1377 = vmul.f32 %v837, %v1305
      %v1378 = vmul.f32 %v842, %v1304
      %v1379 = vmul.f32 %v842, %v1305
      %v1380 = vmul.f32 %v847, %v1304
      %v1381 = vmul.f32 %v847, %v1305
      %v1382 = vmul.f32 %v852, %v1304
      %v1383 = vmul.f32 %v852, %v1305
      %v1384 = vmul.f32 %v857, %v1304
      %v1385 = vmul.f32 %v857, %v1305
      %v1386 = vmul.f32 %v862, %v1304
      %v1387 = vmul.f32 %v862, %v1305
      %v1388 = vmul.f32 %v867, %v1304
      %v1389 = vmul.f32 %v867, %v1305
      %v1390 = vmul.f32 %v872, %v1304
      %v1391 = vmul.f32 %v872, %v1305
      %v1392 = vmul.f32 %v877, %v1304
      %v1393 = vmul.f32 %v877, %v1305
      %v1394 = vmul.f32 %v882, %v1304
      %v1395 = vmul.f32 %v882, %v1305
      %v1396 = vmul.f32 %v887, %v1304
      %v1397 = vmul.f32 %v887, %v1305
      %v1398 = vmul.f32 %v892, %v1304
      %v1399 = vmul.f32 %v892, %v1305
      %v1400 = vmul.f32 %v897, %v1304
      %v1401 = vmul.f32 %v897, %v1305
      %v1402 = vmul.f32 %v902, %v1304
      %v1403 = vmul.f32 %v902, %v1305
      %v1404 = vmul.f32 %v907, %v1304
      %v1405 = vmul.f32 %v907, %v1305
      %v1406 = vmul.f32 %v912, %v1304
      %v1407 = vmul.f32 %v912, %v1305
      %v1408 = vmul.f32 %v917, %v1304
      %v1409 = vmul.f32 %v917, %v1305
      %v1410 = vmul.f32 %v922, %v1304
      %v1411 = vmul.f32 %v922, %v1305
      %v1412 = vmul.f32 %v927, %v1304
      %v1413 = vmul.f32 %v927, %v1305
      %v1414 = vmul.f32 %v932, %v1304
      %v1415 = vmul.f32 %v932, %v1305
      %v1416 = vmul.f32 %v937, %v1304
      %v1417 = vmul.f32 %v937, %v1305
      %v1418 = vmul.f32 %v942, %v1304
      %v1419 = vmul.f32 %v942, %v1305
      %v1420 = vmul.f32 %v947, %v1304
      %v1421 = vmul.f32 %v947, %v1305
      %v1422 = vmul.f32 %v952, %v1304
      %v1423 = vmul.f32 %v952, %v1305
      %v1424 = vmul.f32 %v957, %v1304
      %v1425 = vmul.f32 %v957, %v1305
      %v1426 = vmul.f32 %v962, %v1304
      %v1427 = vmul.f32 %v962, %v1305
      %v1428 = vmul.f32 %v967, %v1304
      %v1429 = vmul.f32 %v967, %v1305
      %v1430 = vmul.f32 %v972, %v1304
      %v1431 = vmul.f32 %v972, %v1305
      %v1432 = vmul.f32 %v977, %v1304
      %v1433 = vmul.f32 %v977, %v1305
      %v1434 = vmul.f32 %v982, %v1304
      %v1435 = vmul.f32 %v982, %v1305
      %v1436 = vmul.f32 %v987, %v1304
      %v1437 = vmul.f32 %v987, %v1305
      %v1438 = vmul.f32 %v992, %v1304
      %v1439 = vmul.f32 %v992, %v1305
      %v1440 = vmul.f32 %v997, %v1304
      %v1441 = vmul.f32 %v997, %v1305
      %v1442 = vmul.f32 %v1002, %v1304
      %v1443 = vmul.f32 %v1002, %v1305
      %v1444 = vmul.f32 %v1007, %v1304
      %v1445 = vmul.f32 %v1007, %v1305
      %v1446 = vmul.f32 %v1012, %v1304
      %v1447 = vmul.f32 %v1012, %v1305
      %v1448 = vmul.f32 %v1017, %v1304
      %v1449 = vmul.f32 %v1017, %v1305
      %v1450 = vmul.f32 %v1022, %v1304
      %v1451 = vmul.f32 %v1022, %v1305
      %v1452 = vmul.f32 %v1027, %v1304
      %v1453 = vmul.f32 %v1027, %v1305
      %v1454 = vmul.f32 %v1032, %v1304
      %v1455 = vmul.f32 %v1032, %v1305
      %v1456 = vmul.f32 %v1037, %v1304
      %v1457 = vmul.f32 %v1037, %v1305
      %v1458 = vmul.f32 %v1042, %v1304
      %v1459 = vmul.f32 %v1042, %v1305
      %v1460 = vmul.f32 %v1047, %v1304
      %v1461 = vmul.f32 %v1047, %v1305
      %v1462 = vmul.f32 %v1052, %v1304
      %v1463 = vmul.f32 %v1052, %v1305
      %v1464 = vmul.f32 %v1057, %v1304
      %v1465 = vmul.f32 %v1057, %v1305
      %v1466 = vmul.f32 %v1062, %v1304
      %v1467 = vmul.f32 %v1062, %v1305
      %v1468 = vmul.f32 %v1067, %v1304
      %v1469 = vmul.f32 %v1067, %v1305
      %v1470 = vmul.f32 %v1072, %v1304
      %v1471 = vmul.f32 %v1072, %v1305
      %v1472 = vmul.f32 %v1077, %v1304
      %v1473 = vmul.f32 %v1077, %v1305
      %v1474 = vmul.f32 %v1082, %v1304
      %v1475 = vmul.f32 %v1082, %v1305
      %v1476 = vmul.f32 %v1087, %v1304
      %v1477 = vmul.f32 %v1087, %v1305
      %v1478 = vmul.f32 %v1092, %v1304
      %v1479 = vmul.f32 %v1092, %v1305
      %v1480 = vmul.f32 %v1097, %v1304
      %v1481 = vmul.f32 %v1097, %v1305
      %v1482 = vmul.f32 %v1102, %v1304
      %v1483 = vmul.f32 %v1102, %v1305
      %v1484 = vmul.f32 %v1107, %v1304
      %v1485 = vmul.f32 %v1107, %v1305
      %v1486 = vmul.f32 %v1112, %v1304
      %v1487 = vmul.f32 %v1112, %v1305
      %v1488 = vmul.f32 %v1117, %v1304
      %v1489 = vmul.f32 %v1117, %v1305
      %v1490 = vmul.f32 %v1122, %v1304
      %v1491 = vmul.f32 %v1122, %v1305
      %v1492 = vmul.f32 %v1127, %v1304
      %v1493 = vmul.f32 %v1127, %v1305
      %v1494 = vmul.f32 %v1132, %v1304
      %v1495 = vmul.f32 %v1132, %v1305
      %v1496 = vmul.f32 %v1137, %v1304
      %v1497 = vmul.f32 %v1137, %v1305
      %v1498 = vmul.f32 %v1142, %v1304
      %v1499 = vmul.f32 %v1142, %v1305
      %v1500 = vmul.f32 %v1147, %v1304
      %v1501 = vmul.f32 %v1147, %v1305
      %v1502 = vmul.f32 %v1152, %v1304
      %v1503 = vmul.f32 %v1152, %v1305
      %v1504 = vmul.f32 %v1157, %v1304
      %v1505 = vmul.f32 %v1157, %v1305
      %v1506 = vmul.f32 %v1162, %v1304
      %v1507 = vmul.f32 %v1162, %v1305
      %v1508 = vmul.f32 %v1167, %v1304
      %v1509 = vmul.f32 %v1167, %v1305
      %v1510 = vmul.f32 %v1172, %v1304
      %v1511 = vmul.f32 %v1172, %v1305
      %v1512 = vmul.f32 %v1177, %v1304
      %v1513 = vmul.f32 %v1177, %v1305
      %v1514 = vmul.f32 %v1182, %v1304
      %v1515 = vmul.f32 %v1182, %v1305
      %v1516 = vmul.f32 %v1187, %v1304
      %v1517 = vmul.f32 %v1187, %v1305
      %v1518 = vmul.f32 %v1192, %v1304
      %v1519 = vmul.f32 %v1192, %v1305
      %v1520 = vmul.f32 %v1197, %v1304
      %v1521 = vmul.f32 %v1197, %v1305
      %v1522 = vmul.f32 %v1202, %v1304
      %v1523 = vmul.f32 %v1202, %v1305
      %v1524 = vmul.f32 %v1207, %v1304
      %v1525 = vmul.f32 %v1207, %v1305
      %v1526 = vmul.f32 %v1212, %v1304
      %v1527 = vmul.f32 %v1212, %v1305
      %v1528 = vmul.f32 %v1217, %v1304
      %v1529 = vmul.f32 %v1217, %v1305
      %v1530 = vmul.f32 %v1222, %v1304
      %v1531 = vmul.f32 %v1222, %v1305
      %v1532 = vmul.f32 %v1227, %v1304
      %v1533 = vmul.f32 %v1227, %v1305
      %v1534 = vmul.f32 %v1232, %v1304
      %v1535 = vmul.f32 %v1232, %v1305
      %v1536 = vmul.f32 %v1237, %v1304
      %v1537 = vmul.f32 %v1237, %v1305
      %v1538 = vmul.f32 %v1242, %v1304
      %v1539 = vmul.f32 %v1242, %v1305
      %v1540 = vmul.f32 %v1247, %v1304
      %v1541 = vmul.f32 %v1247, %v1305
      %v1542 = vmul.f32 %v1252, %v1304
      %v1543 = vmul.f32 %v1252, %v1305
      %v1544 = vmul.f32 %v1257, %v1304
      %v1545 = vmul.f32 %v1257, %v1305
      %v1546 = vmul.f32 %v1262, %v1304
      %v1547 = vmul.f32 %v1262, %v1305
      %v1548 = vmul.f32 %v1267, %v1304
      %v1549 = vmul.f32 %v1267, %v1305
      %v1550 = vmul.f32 %v1272, %v1304
      %v1551 = vmul.f32 %v1272, %v1305
      %v1552 = vmul.f32 %v1277, %v1304
      %v1553 = vmul.f32 %v1277, %v1305
      %v1554 = vmul.f32 %v1282, %v1304
      %v1555 = vmul.f32 %v1282, %v1305
      %v1556 = vmul.f32 %v1287, %v1304
      %v1557 = vmul.f32 %v1287, %v1305
      %v1558 = vmul.f32 %v1292, %v1304
      %v1559 = vmul.f32 %v1292, %v1305
      %v1560 = vmul.f32 %v1297, %v1304
      %v1561 = vmul.f32 %v1297, %v1305
      %1562 = vset.pattern.permute.xlu0 1
      %1563 = vperm.xlu0 %1562, %v530
      %v1564 = vpop.permute.xlu0 %1563
      %1566 = vset.pattern.permute.xlu0 1
      %1567 = vperm.xlu0 %1566, %v531
      %v1568 = vpop.permute.xlu0 %1567
      %1570 = vset.pattern.permute.xlu0 1
      %1571 = vperm.xlu0 %1570, %v532
      %v1572 = vpop.permute.xlu0 %1571
      %1574 = vset.pattern.permute.xlu0 1
      %1575 = vperm.xlu0 %1574, %v533
      %v1576 = vpop.permute.xlu0 %1575
      %1578 = vset.pattern.permute.xlu0 1
      %1579 = vperm.xlu0 %1578, %v534
      %v1580 = vpop.permute.xlu0 %1579
      %1582 = vset.pattern.permute.xlu0 1
      %1583 = vperm.xlu0 %1582, %v535
      %v1584 = vpop.permute.xlu0 %1583
      %1586 = vset.pattern.permute.xlu0 1
      %1587 = vperm.xlu0 %1586, %v536
      %v1588 = vpop.permute.xlu0 %1587
      %1590 = vset.pattern.permute.xlu0 1
      %1591 = vperm.xlu0 %1590, %v537
      %v1592 = vpop.permute.xlu0 %1591
      %1594 = vset.pattern.permute.xlu0 1
      %1595 = vperm.xlu0 %1594, %v538
      %v1596 = vpop.permute.xlu0 %1595
      %1598 = vset.pattern.permute.xlu0 1
      %1599 = vperm.xlu0 %1598, %v539
      %v1600 = vpop.permute.xlu0 %1599
      %1602 = vset.pattern.permute.xlu0 1
      %1603 = vperm.xlu0 %1602, %v540
      %v1604 = vpop.permute.xlu0 %1603
      %1606 = vset.pattern.permute.xlu0 1
      %1607 = vperm.xlu0 %1606, %v541
      %v1608 = vpop.permute.xlu0 %1607
      %1610 = vset.pattern.permute.xlu0 1
      %1611 = vperm.xlu0 %1610, %v542
      %v1612 = vpop.permute.xlu0 %1611
      %1614 = vset.pattern.permute.xlu0 1
      %1615 = vperm.xlu0 %1614, %v543
      %v1616 = vpop.permute.xlu0 %1615
      %1618 = vset.pattern.permute.xlu0 1
      %1619 = vperm.xlu0 %1618, %v544
      %v1620 = vpop.permute.xlu0 %1619
      %1622 = vset.pattern.permute.xlu0 1
      %1623 = vperm.xlu0 %1622, %v545
      %v1624 = vpop.permute.xlu0 %1623
      %1626 = vset.pattern.permute.xlu0 1
      %1627 = vperm.xlu0 %1626, %v546
      %v1628 = vpop.permute.xlu0 %1627
      %1630 = vset.pattern.permute.xlu0 1
      %1631 = vperm.xlu0 %1630, %v547
      %v1632 = vpop.permute.xlu0 %1631
      %1634 = vset.pattern.permute.xlu0 1
      %1635 = vperm.xlu0 %1634, %v548
      %v1636 = vpop.permute.xlu0 %1635
      %1638 = vset.pattern.permute.xlu0 1
      %1639 = vperm.xlu0 %1638, %v549
      %v1640 = vpop.permute.xlu0 %1639
      %1642 = vset.pattern.permute.xlu0 1
      %1643 = vperm.xlu0 %1642, %v550
      %v1644 = vpop.permute.xlu0 %1643
      %1646 = vset.pattern.permute.xlu0 1
      %1647 = vperm.xlu0 %1646, %v551
      %v1648 = vpop.permute.xlu0 %1647
      %1650 = vset.pattern.permute.xlu0 1
      %1651 = vperm.xlu0 %1650, %v552
      %v1652 = vpop.permute.xlu0 %1651
      %1654 = vset.pattern.permute.xlu0 1
      %1655 = vperm.xlu0 %1654, %v553
      %v1656 = vpop.permute.xlu0 %1655
      %1658 = vset.pattern.permute.xlu0 1
      %1659 = vperm.xlu0 %1658, %v554
      %v1660 = vpop.permute.xlu0 %1659
      %1662 = vset.pattern.permute.xlu0 1
      %1663 = vperm.xlu0 %1662, %v555
      %v1664 = vpop.permute.xlu0 %1663
      %1666 = vset.pattern.permute.xlu0 1
      %1667 = vperm.xlu0 %1666, %v556
      %v1668 = vpop.permute.xlu0 %1667
      %1670 = vset.pattern.permute.xlu0 1
      %1671 = vperm.xlu0 %1670, %v557
      %v1672 = vpop.permute.xlu0 %1671
      %1674 = vset.pattern.permute.xlu0 1
      %1675 = vperm.xlu0 %1674, %v558
      %v1676 = vpop.permute.xlu0 %1675
      %1678 = vset.pattern.permute.xlu0 1
      %1679 = vperm.xlu0 %1678, %v559
      %v1680 = vpop.permute.xlu0 %1679
      %1682 = vset.pattern.permute.xlu0 1
      %1683 = vperm.xlu0 %1682, %v560
      %v1684 = vpop.permute.xlu0 %1683
      %1686 = vset.pattern.permute.xlu0 1
      %1687 = vperm.xlu0 %1686, %v561
      %v1688 = vpop.permute.xlu0 %1687
      %1690 = vset.pattern.permute.xlu0 1
      %1691 = vperm.xlu0 %1690, %v562
      %v1692 = vpop.permute.xlu0 %1691
      %1694 = vset.pattern.permute.xlu0 1
      %1695 = vperm.xlu0 %1694, %v563
      %v1696 = vpop.permute.xlu0 %1695
      %1698 = vset.pattern.permute.xlu0 1
      %1699 = vperm.xlu0 %1698, %v564
      %v1700 = vpop.permute.xlu0 %1699
      %1702 = vset.pattern.permute.xlu0 1
      %1703 = vperm.xlu0 %1702, %v565
      %v1704 = vpop.permute.xlu0 %1703
      %1706 = vset.pattern.permute.xlu0 1
      %1707 = vperm.xlu0 %1706, %v566
      %v1708 = vpop.permute.xlu0 %1707
      %1710 = vset.pattern.permute.xlu0 1
      %1711 = vperm.xlu0 %1710, %v567
      %v1712 = vpop.permute.xlu0 %1711
      %1714 = vset.pattern.permute.xlu0 1
      %1715 = vperm.xlu0 %1714, %v568
      %v1716 = vpop.permute.xlu0 %1715
      %1718 = vset.pattern.permute.xlu0 1
      %1719 = vperm.xlu0 %1718, %v569
      %v1720 = vpop.permute.xlu0 %1719
      %1722 = vset.pattern.permute.xlu0 1
      %1723 = vperm.xlu0 %1722, %v570
      %v1724 = vpop.permute.xlu0 %1723
      %1726 = vset.pattern.permute.xlu0 1
      %1727 = vperm.xlu0 %1726, %v571
      %v1728 = vpop.permute.xlu0 %1727
      %1730 = vset.pattern.permute.xlu0 1
      %1731 = vperm.xlu0 %1730, %v572
      %v1732 = vpop.permute.xlu0 %1731
      %1734 = vset.pattern.permute.xlu0 1
      %1735 = vperm.xlu0 %1734, %v573
      %v1736 = vpop.permute.xlu0 %1735
      %1738 = vset.pattern.permute.xlu0 1
      %1739 = vperm.xlu0 %1738, %v574
      %v1740 = vpop.permute.xlu0 %1739
      %1742 = vset.pattern.permute.xlu0 1
      %1743 = vperm.xlu0 %1742, %v575
      %v1744 = vpop.permute.xlu0 %1743
      %1746 = vset.pattern.permute.xlu0 1
      %1747 = vperm.xlu0 %1746, %v576
      %v1748 = vpop.permute.xlu0 %1747
      %1750 = vset.pattern.permute.xlu0 1
      %1751 = vperm.xlu0 %1750, %v577
      %v1752 = vpop.permute.xlu0 %1751
      %1754 = vset.pattern.permute.xlu0 1
      %1755 = vperm.xlu0 %1754, %v578
      %v1756 = vpop.permute.xlu0 %1755
      %1758 = vset.pattern.permute.xlu0 1
      %1759 = vperm.xlu0 %1758, %v579
      %v1760 = vpop.permute.xlu0 %1759
      %1762 = vset.pattern.permute.xlu0 1
      %1763 = vperm.xlu0 %1762, %v580
      %v1764 = vpop.permute.xlu0 %1763
      %1766 = vset.pattern.permute.xlu0 1
      %1767 = vperm.xlu0 %1766, %v581
      %v1768 = vpop.permute.xlu0 %1767
      %1770 = vset.pattern.permute.xlu0 1
      %1771 = vperm.xlu0 %1770, %v582
      %v1772 = vpop.permute.xlu0 %1771
      %1774 = vset.pattern.permute.xlu0 1
      %1775 = vperm.xlu0 %1774, %v583
      %v1776 = vpop.permute.xlu0 %1775
      %1778 = vset.pattern.permute.xlu0 1
      %1779 = vperm.xlu0 %1778, %v584
      %v1780 = vpop.permute.xlu0 %1779
      %1782 = vset.pattern.permute.xlu0 1
      %1783 = vperm.xlu0 %1782, %v585
      %v1784 = vpop.permute.xlu0 %1783
      %1786 = vset.pattern.permute.xlu0 1
      %1787 = vperm.xlu0 %1786, %v586
      %v1788 = vpop.permute.xlu0 %1787
      %1790 = vset.pattern.permute.xlu0 1
      %1791 = vperm.xlu0 %1790, %v587
      %v1792 = vpop.permute.xlu0 %1791
      %1794 = vset.pattern.permute.xlu0 1
      %1795 = vperm.xlu0 %1794, %v588
      %v1796 = vpop.permute.xlu0 %1795
      %1798 = vset.pattern.permute.xlu0 1
      %1799 = vperm.xlu0 %1798, %v589
      %v1800 = vpop.permute.xlu0 %1799
      %1802 = vset.pattern.permute.xlu0 1
      %1803 = vperm.xlu0 %1802, %v590
      %v1804 = vpop.permute.xlu0 %1803
      %1806 = vset.pattern.permute.xlu0 1
      %1807 = vperm.xlu0 %1806, %v591
      %v1808 = vpop.permute.xlu0 %1807
      %1810 = vset.pattern.permute.xlu0 1
      %1811 = vperm.xlu0 %1810, %v592
      %v1812 = vpop.permute.xlu0 %1811
      %1814 = vset.pattern.permute.xlu0 1
      %1815 = vperm.xlu0 %1814, %v593
      %v1816 = vpop.permute.xlu0 %1815
      %1818 = vset.pattern.permute.xlu0 1
      %1819 = vperm.xlu0 %1818, %v594
      %v1820 = vpop.permute.xlu0 %1819
      %1822 = vset.pattern.permute.xlu0 1
      %1823 = vperm.xlu0 %1822, %v595
      %v1824 = vpop.permute.xlu0 %1823
      %1826 = vset.pattern.permute.xlu0 1
      %1827 = vperm.xlu0 %1826, %v596
      %v1828 = vpop.permute.xlu0 %1827
      %1830 = vset.pattern.permute.xlu0 1
      %1831 = vperm.xlu0 %1830, %v597
      %v1832 = vpop.permute.xlu0 %1831
      %1834 = vset.pattern.permute.xlu0 1
      %1835 = vperm.xlu0 %1834, %v598
      %v1836 = vpop.permute.xlu0 %1835
      %1838 = vset.pattern.permute.xlu0 1
      %1839 = vperm.xlu0 %1838, %v599
      %v1840 = vpop.permute.xlu0 %1839
      %1842 = vset.pattern.permute.xlu0 1
      %1843 = vperm.xlu0 %1842, %v600
      %v1844 = vpop.permute.xlu0 %1843
      %1846 = vset.pattern.permute.xlu0 1
      %1847 = vperm.xlu0 %1846, %v601
      %v1848 = vpop.permute.xlu0 %1847
      %1850 = vset.pattern.permute.xlu0 1
      %1851 = vperm.xlu0 %1850, %v602
      %v1852 = vpop.permute.xlu0 %1851
      %1854 = vset.pattern.permute.xlu0 1
      %1855 = vperm.xlu0 %1854, %v603
      %v1856 = vpop.permute.xlu0 %1855
      %1858 = vset.pattern.permute.xlu0 1
      %1859 = vperm.xlu0 %1858, %v604
      %v1860 = vpop.permute.xlu0 %1859
      %1862 = vset.pattern.permute.xlu0 1
      %1863 = vperm.xlu0 %1862, %v605
      %v1864 = vpop.permute.xlu0 %1863
      %1866 = vset.pattern.permute.xlu0 1
      %1867 = vperm.xlu0 %1866, %v606
      %v1868 = vpop.permute.xlu0 %1867
      %1870 = vset.pattern.permute.xlu0 1
      %1871 = vperm.xlu0 %1870, %v607
      %v1872 = vpop.permute.xlu0 %1871
      %1874 = vset.pattern.permute.xlu0 1
      %1875 = vperm.xlu0 %1874, %v608
      %v1876 = vpop.permute.xlu0 %1875
      %1878 = vset.pattern.permute.xlu0 1
      %1879 = vperm.xlu0 %1878, %v609
      %v1880 = vpop.permute.xlu0 %1879
      %1882 = vset.pattern.permute.xlu0 1
      %1883 = vperm.xlu0 %1882, %v610
      %v1884 = vpop.permute.xlu0 %1883
      %1886 = vset.pattern.permute.xlu0 1
      %1887 = vperm.xlu0 %1886, %v611
      %v1888 = vpop.permute.xlu0 %1887
      %1890 = vset.pattern.permute.xlu0 1
      %1891 = vperm.xlu0 %1890, %v612
      %v1892 = vpop.permute.xlu0 %1891
      %1894 = vset.pattern.permute.xlu0 1
      %1895 = vperm.xlu0 %1894, %v613
      %v1896 = vpop.permute.xlu0 %1895
      %1898 = vset.pattern.permute.xlu0 1
      %1899 = vperm.xlu0 %1898, %v614
      %v1900 = vpop.permute.xlu0 %1899
      %1902 = vset.pattern.permute.xlu0 1
      %1903 = vperm.xlu0 %1902, %v615
      %v1904 = vpop.permute.xlu0 %1903
      %1906 = vset.pattern.permute.xlu0 1
      %1907 = vperm.xlu0 %1906, %v616
      %v1908 = vpop.permute.xlu0 %1907
      %1910 = vset.pattern.permute.xlu0 1
      %1911 = vperm.xlu0 %1910, %v617
      %v1912 = vpop.permute.xlu0 %1911
      %1914 = vset.pattern.permute.xlu0 1
      %1915 = vperm.xlu0 %1914, %v618
      %v1916 = vpop.permute.xlu0 %1915
      %1918 = vset.pattern.permute.xlu0 1
      %1919 = vperm.xlu0 %1918, %v619
      %v1920 = vpop.permute.xlu0 %1919
      %1922 = vset.pattern.permute.xlu0 1
      %1923 = vperm.xlu0 %1922, %v620
      %v1924 = vpop.permute.xlu0 %1923
      %1926 = vset.pattern.permute.xlu0 1
      %1927 = vperm.xlu0 %1926, %v621
      %v1928 = vpop.permute.xlu0 %1927
      %1930 = vset.pattern.permute.xlu0 1
      %1931 = vperm.xlu0 %1930, %v622
      %v1932 = vpop.permute.xlu0 %1931
      %1934 = vset.pattern.permute.xlu0 1
      %1935 = vperm.xlu0 %1934, %v623
      %v1936 = vpop.permute.xlu0 %1935
      %1938 = vset.pattern.permute.xlu0 1
      %1939 = vperm.xlu0 %1938, %v624
      %v1940 = vpop.permute.xlu0 %1939
      %1942 = vset.pattern.permute.xlu0 1
      %1943 = vperm.xlu0 %1942, %v625
      %v1944 = vpop.permute.xlu0 %1943
      %1946 = vset.pattern.permute.xlu0 1
      %1947 = vperm.xlu0 %1946, %v626
      %v1948 = vpop.permute.xlu0 %1947
      %1950 = vset.pattern.permute.xlu0 1
      %1951 = vperm.xlu0 %1950, %v627
      %v1952 = vpop.permute.xlu0 %1951
      %1954 = vset.pattern.permute.xlu0 1
      %1955 = vperm.xlu0 %1954, %v628
      %v1956 = vpop.permute.xlu0 %1955
      %1958 = vset.pattern.permute.xlu0 1
      %1959 = vperm.xlu0 %1958, %v629
      %v1960 = vpop.permute.xlu0 %1959
      %1962 = vset.pattern.permute.xlu0 1
      %1963 = vperm.xlu0 %1962, %v630
      %v1964 = vpop.permute.xlu0 %1963
      %1966 = vset.pattern.permute.xlu0 1
      %1967 = vperm.xlu0 %1966, %v631
      %v1968 = vpop.permute.xlu0 %1967
      %1970 = vset.pattern.permute.xlu0 1
      %1971 = vperm.xlu0 %1970, %v632
      %v1972 = vpop.permute.xlu0 %1971
      %1974 = vset.pattern.permute.xlu0 1
      %1975 = vperm.xlu0 %1974, %v633
      %v1976 = vpop.permute.xlu0 %1975
      %1978 = vset.pattern.permute.xlu0 1
      %1979 = vperm.xlu0 %1978, %v634
      %v1980 = vpop.permute.xlu0 %1979
      %1982 = vset.pattern.permute.xlu0 1
      %1983 = vperm.xlu0 %1982, %v635
      %v1984 = vpop.permute.xlu0 %1983
      %1986 = vset.pattern.permute.xlu0 1
      %1987 = vperm.xlu0 %1986, %v636
      %v1988 = vpop.permute.xlu0 %1987
      %1990 = vset.pattern.permute.xlu0 1
      %1991 = vperm.xlu0 %1990, %v637
      %v1992 = vpop.permute.xlu0 %1991
      %1994 = vset.pattern.permute.xlu0 1
      %1995 = vperm.xlu0 %1994, %v638
      %v1996 = vpop.permute.xlu0 %1995
      %1998 = vset.pattern.permute.xlu0 1
      %1999 = vperm.xlu0 %1998, %v639
      %v2000 = vpop.permute.xlu0 %1999
      %2002 = vset.pattern.permute.xlu0 1
      %2003 = vperm.xlu0 %2002, %v640
      %v2004 = vpop.permute.xlu0 %2003
      %2006 = vset.pattern.permute.xlu0 1
      %2007 = vperm.xlu0 %2006, %v641
      %v2008 = vpop.permute.xlu0 %2007
      %2010 = vset.pattern.permute.xlu0 1
      %2011 = vperm.xlu0 %2010, %v642
      %v2012 = vpop.permute.xlu0 %2011
      %2014 = vset.pattern.permute.xlu0 1
      %2015 = vperm.xlu0 %2014, %v643
      %v2016 = vpop.permute.xlu0 %2015
      %2018 = vset.pattern.permute.xlu0 1
      %2019 = vperm.xlu0 %2018, %v644
      %v2020 = vpop.permute.xlu0 %2019
      %2022 = vset.pattern.permute.xlu0 1
      %2023 = vperm.xlu0 %2022, %v645
      %v2024 = vpop.permute.xlu0 %2023
      %2026 = vset.pattern.permute.xlu0 1
      %2027 = vperm.xlu0 %2026, %v646
      %v2028 = vpop.permute.xlu0 %2027
      %2030 = vset.pattern.permute.xlu0 1
      %2031 = vperm.xlu0 %2030, %v647
      %v2032 = vpop.permute.xlu0 %2031
      %2034 = vset.pattern.permute.xlu0 1
      %2035 = vperm.xlu0 %2034, %v648
      %v2036 = vpop.permute.xlu0 %2035
      %2038 = vset.pattern.permute.xlu0 1
      %2039 = vperm.xlu0 %2038, %v649
      %v2040 = vpop.permute.xlu0 %2039
      %2042 = vset.pattern.permute.xlu0 1
      %2043 = vperm.xlu0 %2042, %v650
      %v2044 = vpop.permute.xlu0 %2043
      %2046 = vset.pattern.permute.xlu0 1
      %2047 = vperm.xlu0 %2046, %v651
      %v2048 = vpop.permute.xlu0 %2047
      %2050 = vset.pattern.permute.xlu0 1
      %2051 = vperm.xlu0 %2050, %v652
      %v2052 = vpop.permute.xlu0 %2051
      %2054 = vset.pattern.permute.xlu0 1
      %2055 = vperm.xlu0 %2054, %v653
      %v2056 = vpop.permute.xlu0 %2055
      %2058 = vset.pattern.permute.xlu0 1
      %2059 = vperm.xlu0 %2058, %v654
      %v2060 = vpop.permute.xlu0 %2059
      %2062 = vset.pattern.permute.xlu0 1
      %2063 = vperm.xlu0 %2062, %v655
      %v2064 = vpop.permute.xlu0 %2063
      %2066 = vset.pattern.permute.xlu0 1
      %2067 = vperm.xlu0 %2066, %v656
      %v2068 = vpop.permute.xlu0 %2067
      %2070 = vset.pattern.permute.xlu0 1
      %2071 = vperm.xlu0 %2070, %v657
      %v2072 = vpop.permute.xlu0 %2071
      %v2074 = vperm.slane %v658, 1
      %v2075 = vperm.slane %v658, 5
      %v2078 = vperm.slane %v2074, 1
      %v2079 = vperm.slane %v2075, 1
      %v2080 = vmul.f32 %v1564, %v2078
      %v2081 = vmul.f32 %v1564, %v2079
      %v2082 = vmul.f32 %v1568, %v2078
      %v2083 = vmul.f32 %v1568, %v2079
      %v2084 = vmul.f32 %v1572, %v2078
      %v2085 = vmul.f32 %v1572, %v2079
      %v2086 = vmul.f32 %v1576, %v2078
      %v2087 = vmul.f32 %v1576, %v2079
      %v2088 = vmul.f32 %v1580, %v2078
      %v2089 = vmul.f32 %v1580, %v2079
      %v2090 = vmul.f32 %v1584, %v2078
      %v2091 = vmul.f32 %v1584, %v2079
      %v2092 = vmul.f32 %v1588, %v2078
      %v2093 = vmul.f32 %v1588, %v2079
      %v2094 = vmul.f32 %v1592, %v2078
      %v2095 = vmul.f32 %v1592, %v2079
      %v2096 = vmul.f32 %v1596, %v2078
      %v2097 = vmul.f32 %v1596, %v2079
      %v2098 = vmul.f32 %v1600, %v2078
      %v2099 = vmul.f32 %v1600, %v2079
      %v2100 = vmul.f32 %v1604, %v2078
      %v2101 = vmul.f32 %v1604, %v2079
      %v2102 = vmul.f32 %v1608, %v2078
      %v2103 = vmul.f32 %v1608, %v2079
      %v2104 = vmul.f32 %v1612, %v2078
      %v2105 = vmul.f32 %v1612, %v2079
      %v2106 = vmul.f32 %v1616, %v2078
      %v2107 = vmul.f32 %v1616, %v2079
      %v2108 = vmul.f32 %v1620, %v2078
      %v2109 = vmul.f32 %v1620, %v2079
      %v2110 = vmul.f32 %v1624, %v2078
      %v2111 = vmul.f32 %v1624, %v2079
      %v2112 = vmul.f32 %v1628, %v2078
      %v2113 = vmul.f32 %v1628, %v2079
      %v2114 = vmul.f32 %v1632, %v2078
      %v2115 = vmul.f32 %v1632, %v2079
      %v2116 = vmul.f32 %v1636, %v2078
      %v2117 = vmul.f32 %v1636, %v2079
      %v2118 = vmul.f32 %v1640, %v2078
      %v2119 = vmul.f32 %v1640, %v2079
      %v2120 = vmul.f32 %v1644, %v2078
      %v2121 = vmul.f32 %v1644, %v2079
      %v2122 = vmul.f32 %v1648, %v2078
      %v2123 = vmul.f32 %v1648, %v2079
      %v2124 = vmul.f32 %v1652, %v2078
      %v2125 = vmul.f32 %v1652, %v2079
      %v2126 = vmul.f32 %v1656, %v2078
      %v2127 = vmul.f32 %v1656, %v2079
      %v2128 = vmul.f32 %v1660, %v2078
      %v2129 = vmul.f32 %v1660, %v2079
      %v2130 = vmul.f32 %v1664, %v2078
      %v2131 = vmul.f32 %v1664, %v2079
      %v2132 = vmul.f32 %v1668, %v2078
      %v2133 = vmul.f32 %v1668, %v2079
      %v2134 = vmul.f32 %v1672, %v2078
      %v2135 = vmul.f32 %v1672, %v2079
      %v2136 = vmul.f32 %v1676, %v2078
      %v2137 = vmul.f32 %v1676, %v2079
      %v2138 = vmul.f32 %v1680, %v2078
      %v2139 = vmul.f32 %v1680, %v2079
      %v2140 = vmul.f32 %v1684, %v2078
      %v2141 = vmul.f32 %v1684, %v2079
      %v2142 = vmul.f32 %v1688, %v2078
      %v2143 = vmul.f32 %v1688, %v2079
      %v2144 = vmul.f32 %v1692, %v2078
      %v2145 = vmul.f32 %v1692, %v2079
      %v2146 = vmul.f32 %v1696, %v2078
      %v2147 = vmul.f32 %v1696, %v2079
      %v2148 = vmul.f32 %v1700, %v2078
      %v2149 = vmul.f32 %v1700, %v2079
      %v2150 = vmul.f32 %v1704, %v2078
      %v2151 = vmul.f32 %v1704, %v2079
      %v2152 = vmul.f32 %v1708, %v2078
      %v2153 = vmul.f32 %v1708, %v2079
      %v2154 = vmul.f32 %v1712, %v2078
      %v2155 = vmul.f32 %v1712, %v2079
      %v2156 = vmul.f32 %v1716, %v2078
      %v2157 = vmul.f32 %v1716, %v2079
      %v2158 = vmul.f32 %v1720, %v2078
      %v2159 = vmul.f32 %v1720, %v2079
      %v2160 = vmul.f32 %v1724, %v2078
      %v2161 = vmul.f32 %v1724, %v2079
      %v2162 = vmul.f32 %v1728, %v2078
      %v2163 = vmul.f32 %v1728, %v2079
      %v2164 = vmul.f32 %v1732, %v2078
      %v2165 = vmul.f32 %v1732, %v2079
      %v2166 = vmul.f32 %v1736, %v2078
      %v2167 = vmul.f32 %v1736, %v2079
      %v2168 = vmul.f32 %v1740, %v2078
      %v2169 = vmul.f32 %v1740, %v2079
      %v2170 = vmul.f32 %v1744, %v2078
      %v2171 = vmul.f32 %v1744, %v2079
      %v2172 = vmul.f32 %v1748, %v2078
      %v2173 = vmul.f32 %v1748, %v2079
      %v2174 = vmul.f32 %v1752, %v2078
      %v2175 = vmul.f32 %v1752, %v2079
      %v2176 = vmul.f32 %v1756, %v2078
      %v2177 = vmul.f32 %v1756, %v2079
      %v2178 = vmul.f32 %v1760, %v2078
      %v2179 = vmul.f32 %v1760, %v2079
      %v2180 = vmul.f32 %v1764, %v2078
      %v2181 = vmul.f32 %v1764, %v2079
      %v2182 = vmul.f32 %v1768, %v2078
      %v2183 = vmul.f32 %v1768, %v2079
      %v2184 = vmul.f32 %v1772, %v2078
      %v2185 = vmul.f32 %v1772, %v2079
      %v2186 = vmul.f32 %v1776, %v2078
      %v2187 = vmul.f32 %v1776, %v2079
      %v2188 = vmul.f32 %v1780, %v2078
      %v2189 = vmul.f32 %v1780, %v2079
      %v2190 = vmul.f32 %v1784, %v2078
      %v2191 = vmul.f32 %v1784, %v2079
      %v2192 = vmul.f32 %v1788, %v2078
      %v2193 = vmul.f32 %v1788, %v2079
      %v2194 = vmul.f32 %v1792, %v2078
      %v2195 = vmul.f32 %v1792, %v2079
      %v2196 = vmul.f32 %v1796, %v2078
      %v2197 = vmul.f32 %v1796, %v2079
      %v2198 = vmul.f32 %v1800, %v2078
      %v2199 = vmul.f32 %v1800, %v2079
      %v2200 = vmul.f32 %v1804, %v2078
      %v2201 = vmul.f32 %v1804, %v2079
      %v2202 = vmul.f32 %v1808, %v2078
      %v2203 = vmul.f32 %v1808, %v2079
      %v2204 = vmul.f32 %v1812, %v2078
      %v2205 = vmul.f32 %v1812, %v2079
      %v2206 = vmul.f32 %v1816, %v2078
      %v2207 = vmul.f32 %v1816, %v2079
      %v2208 = vmul.f32 %v1820, %v2078
      %v2209 = vmul.f32 %v1820, %v2079
      %v2210 = vmul.f32 %v1824, %v2078
      %v2211 = vmul.f32 %v1824, %v2079
      %v2212 = vmul.f32 %v1828, %v2078
      %v2213 = vmul.f32 %v1828, %v2079
      %v2214 = vmul.f32 %v1832, %v2078
      %v2215 = vmul.f32 %v1832, %v2079
      %v2216 = vmul.f32 %v1836, %v2078
      %v2217 = vmul.f32 %v1836, %v2079
      %v2218 = vmul.f32 %v1840, %v2078
      %v2219 = vmul.f32 %v1840, %v2079
      %v2220 = vmul.f32 %v1844, %v2078
      %v2221 = vmul.f32 %v1844, %v2079
      %v2222 = vmul.f32 %v1848, %v2078
      %v2223 = vmul.f32 %v1848, %v2079
      %v2224 = vmul.f32 %v1852, %v2078
      %v2225 = vmul.f32 %v1852, %v2079
      %v2226 = vmul.f32 %v1856, %v2078
      %v2227 = vmul.f32 %v1856, %v2079
      %v2228 = vmul.f32 %v1860, %v2078
      %v2229 = vmul.f32 %v1860, %v2079
      %v2230 = vmul.f32 %v1864, %v2078
      %v2231 = vmul.f32 %v1864, %v2079
      %v2232 = vmul.f32 %v1868, %v2078
      %v2233 = vmul.f32 %v1868, %v2079
      %v2234 = vmul.f32 %v1872, %v2078
      %v2235 = vmul.f32 %v1872, %v2079
      %v2236 = vmul.f32 %v1876, %v2078
      %v2237 = vmul.f32 %v1876, %v2079
      %v2238 = vmul.f32 %v1880, %v2078
      %v2239 = vmul.f32 %v1880, %v2079
      %v2240 = vmul.f32 %v1884, %v2078
      %v2241 = vmul.f32 %v1884, %v2079
      %v2242 = vmul.f32 %v1888, %v2078
      %v2243 = vmul.f32 %v1888, %v2079
      %v2244 = vmul.f32 %v1892, %v2078
      %v2245 = vmul.f32 %v1892, %v2079
      %v2246 = vmul.f32 %v1896, %v2078
      %v2247 = vmul.f32 %v1896, %v2079
      %v2248 = vmul.f32 %v1900, %v2078
      %v2249 = vmul.f32 %v1900, %v2079
      %v2250 = vmul.f32 %v1904, %v2078
      %v2251 = vmul.f32 %v1904, %v2079
      %v2252 = vmul.f32 %v1908, %v2078
      %v2253 = vmul.f32 %v1908, %v2079
      %v2254 = vmul.f32 %v1912, %v2078
      %v2255 = vmul.f32 %v1912, %v2079
      %v2256 = vmul.f32 %v1916, %v2078
      %v2257 = vmul.f32 %v1916, %v2079
      %v2258 = vmul.f32 %v1920, %v2078
      %v2259 = vmul.f32 %v1920, %v2079
      %v2260 = vmul.f32 %v1924, %v2078
      %v2261 = vmul.f32 %v1924, %v2079
      %v2262 = vmul.f32 %v1928, %v2078
      %v2263 = vmul.f32 %v1928, %v2079
      %v2264 = vmul.f32 %v1932, %v2078
      %v2265 = vmul.f32 %v1932, %v2079
      %v2266 = vmul.f32 %v1936, %v2078
      %v2267 = vmul.f32 %v1936, %v2079
      %v2268 = vmul.f32 %v1940, %v2078
      %v2269 = vmul.f32 %v1940, %v2079
      %v2270 = vmul.f32 %v1944, %v2078
      %v2271 = vmul.f32 %v1944, %v2079
      %v2272 = vmul.f32 %v1948, %v2078
      %v2273 = vmul.f32 %v1948, %v2079
      %v2274 = vmul.f32 %v1952, %v2078
      %v2275 = vmul.f32 %v1952, %v2079
      %v2276 = vmul.f32 %v1956, %v2078
      %v2277 = vmul.f32 %v1956, %v2079
      %v2278 = vmul.f32 %v1960, %v2078
      %v2279 = vmul.f32 %v1960, %v2079
      %v2280 = vmul.f32 %v1964, %v2078
      %v2281 = vmul.f32 %v1964, %v2079
      %v2282 = vmul.f32 %v1968, %v2078
      %v2283 = vmul.f32 %v1968, %v2079
      %v2284 = vmul.f32 %v1972, %v2078
      %v2285 = vmul.f32 %v1972, %v2079
      %v2286 = vmul.f32 %v1976, %v2078
      %v2287 = vmul.f32 %v1976, %v2079
      %v2288 = vmul.f32 %v1980, %v2078
      %v2289 = vmul.f32 %v1980, %v2079
      %v2290 = vmul.f32 %v1984, %v2078
      %v2291 = vmul.f32 %v1984, %v2079
      %v2292 = vmul.f32 %v1988, %v2078
      %v2293 = vmul.f32 %v1988, %v2079
      %v2294 = vmul.f32 %v1992, %v2078
      %v2295 = vmul.f32 %v1992, %v2079
      %v2296 = vmul.f32 %v1996, %v2078
      %v2297 = vmul.f32 %v1996, %v2079
      %v2298 = vmul.f32 %v2000, %v2078
      %v2299 = vmul.f32 %v2000, %v2079
      %v2300 = vmul.f32 %v2004, %v2078
      %v2301 = vmul.f32 %v2004, %v2079
      %v2302 = vmul.f32 %v2008, %v2078
      %v2303 = vmul.f32 %v2008, %v2079
      %v2304 = vmul.f32 %v2012, %v2078
      %v2305 = vmul.f32 %v2012, %v2079
      %v2306 = vmul.f32 %v2016, %v2078
      %v2307 = vmul.f32 %v2016, %v2079
      %v2308 = vmul.f32 %v2020, %v2078
      %v2309 = vmul.f32 %v2020, %v2079
      %v2310 = vmul.f32 %v2024, %v2078
      %v2311 = vmul.f32 %v2024, %v2079
      %v2312 = vmul.f32 %v2028, %v2078
      %v2313 = vmul.f32 %v2028, %v2079
      %v2314 = vmul.f32 %v2032, %v2078
      %v2315 = vmul.f32 %v2032, %v2079
      %v2316 = vmul.f32 %v2036, %v2078
      %v2317 = vmul.f32 %v2036, %v2079
      %v2318 = vmul.f32 %v2040, %v2078
      %v2319 = vmul.f32 %v2040, %v2079
      %v2320 = vmul.f32 %v2044, %v2078
      %v2321 = vmul.f32 %v2044, %v2079
      %v2322 = vmul.f32 %v2048, %v2078
      %v2323 = vmul.f32 %v2048, %v2079
      %v2324 = vmul.f32 %v2052, %v2078
      %v2325 = vmul.f32 %v2052, %v2079
      %v2326 = vmul.f32 %v2056, %v2078
      %v2327 = vmul.f32 %v2056, %v2079
      %v2328 = vmul.f32 %v2060, %v2078
      %v2329 = vmul.f32 %v2060, %v2079
      %v2330 = vmul.f32 %v2064, %v2078
      %v2331 = vmul.f32 %v2064, %v2079
      %v2332 = vmul.f32 %v2068, %v2078
      %v2333 = vmul.f32 %v2068, %v2079
      %v2334 = vmul.f32 %v2072, %v2078
      %v2335 = vmul.f32 %v2072, %v2079
      %v2336 = vadd.f32 %v1306, %v2080
      %v2337 = vadd.f32 %v1307, %v2081
      %v2338 = vadd.f32 %v1308, %v2082
      %v2339 = vadd.f32 %v1309, %v2083
      %v2340 = vadd.f32 %v1310, %v2084
      %v2341 = vadd.f32 %v1311, %v2085
      %v2342 = vadd.f32 %v1312, %v2086
      %v2343 = vadd.f32 %v1313, %v2087
      %v2344 = vadd.f32 %v1314, %v2088
      %v2345 = vadd.f32 %v1315, %v2089
      %v2346 = vadd.f32 %v1316, %v2090
      %v2347 = vadd.f32 %v1317, %v2091
      %v2348 = vadd.f32 %v1318, %v2092
      %v2349 = vadd.f32 %v1319, %v2093
      %v2350 = vadd.f32 %v1320, %v2094
      %v2351 = vadd.f32 %v1321, %v2095
      %v2352 = vadd.f32 %v1322, %v2096
      %v2353 = vadd.f32 %v1323, %v2097
      %v2354 = vadd.f32 %v1324, %v2098
      %v2355 = vadd.f32 %v1325, %v2099
      %v2356 = vadd.f32 %v1326, %v2100
      %v2357 = vadd.f32 %v1327, %v2101
      %v2358 = vadd.f32 %v1328, %v2102
      %v2359 = vadd.f32 %v1329, %v2103
      %v2360 = vadd.f32 %v1330, %v2104
      %v2361 = vadd.f32 %v1331, %v2105
      %v2362 = vadd.f32 %v1332, %v2106
      %v2363 = vadd.f32 %v1333, %v2107
      %v2364 = vadd.f32 %v1334, %v2108
      %v2365 = vadd.f32 %v1335, %v2109
      %v2366 = vadd.f32 %v1336, %v2110
      %v2367 = vadd.f32 %v1337, %v2111
      %v2368 = vadd.f32 %v1338, %v2112
      %v2369 = vadd.f32 %v1339, %v2113
      %v2370 = vadd.f32 %v1340, %v2114
      %v2371 = vadd.f32 %v1341, %v2115
      %v2372 = vadd.f32 %v1342, %v2116
      %v2373 = vadd.f32 %v1343, %v2117
      %v2374 = vadd.f32 %v1344, %v2118
      %v2375 = vadd.f32 %v1345, %v2119
      %v2376 = vadd.f32 %v1346, %v2120
      %v2377 = vadd.f32 %v1347, %v2121
      %v2378 = vadd.f32 %v1348, %v2122
      %v2379 = vadd.f32 %v1349, %v2123
      %v2380 = vadd.f32 %v1350, %v2124
      %v2381 = vadd.f32 %v1351, %v2125
      %v2382 = vadd.f32 %v1352, %v2126
      %v2383 = vadd.f32 %v1353, %v2127
      %v2384 = vadd.f32 %v1354, %v2128
      %v2385 = vadd.f32 %v1355, %v2129
      %v2386 = vadd.f32 %v1356, %v2130
      %v2387 = vadd.f32 %v1357, %v2131
      %v2388 = vadd.f32 %v1358, %v2132
      %v2389 = vadd.f32 %v1359, %v2133
      %v2390 = vadd.f32 %v1360, %v2134
      %v2391 = vadd.f32 %v1361, %v2135
      %v2392 = vadd.f32 %v1362, %v2136
      %v2393 = vadd.f32 %v1363, %v2137
      %v2394 = vadd.f32 %v1364, %v2138
      %v2395 = vadd.f32 %v1365, %v2139
      %v2396 = vadd.f32 %v1366, %v2140
      %v2397 = vadd.f32 %v1367, %v2141
      %v2398 = vadd.f32 %v1368, %v2142
      %v2399 = vadd.f32 %v1369, %v2143
      %v2400 = vadd.f32 %v1370, %v2144
      %v2401 = vadd.f32 %v1371, %v2145
      %v2402 = vadd.f32 %v1372, %v2146
      %v2403 = vadd.f32 %v1373, %v2147
      %v2404 = vadd.f32 %v1374, %v2148
      %v2405 = vadd.f32 %v1375, %v2149
      %v2406 = vadd.f32 %v1376, %v2150
      %v2407 = vadd.f32 %v1377, %v2151
      %v2408 = vadd.f32 %v1378, %v2152
      %v2409 = vadd.f32 %v1379, %v2153
      %v2410 = vadd.f32 %v1380, %v2154
      %v2411 = vadd.f32 %v1381, %v2155
      %v2412 = vadd.f32 %v1382, %v2156
      %v2413 = vadd.f32 %v1383, %v2157
      %v2414 = vadd.f32 %v1384, %v2158
      %v2415 = vadd.f32 %v1385, %v2159
      %v2416 = vadd.f32 %v1386, %v2160
      %v2417 = vadd.f32 %v1387, %v2161
      %v2418 = vadd.f32 %v1388, %v2162
      %v2419 = vadd.f32 %v1389, %v2163
      %v2420 = vadd.f32 %v1390, %v2164
      %v2421 = vadd.f32 %v1391, %v2165
      %v2422 = vadd.f32 %v1392, %v2166
      %v2423 = vadd.f32 %v1393, %v2167
      %v2424 = vadd.f32 %v1394, %v2168
      %v2425 = vadd.f32 %v1395, %v2169
      %v2426 = vadd.f32 %v1396, %v2170
      %v2427 = vadd.f32 %v1397, %v2171
      %v2428 = vadd.f32 %v1398, %v2172
      %v2429 = vadd.f32 %v1399, %v2173
      %v2430 = vadd.f32 %v1400, %v2174
      %v2431 = vadd.f32 %v1401, %v2175
      %v2432 = vadd.f32 %v1402, %v2176
      %v2433 = vadd.f32 %v1403, %v2177
      %v2434 = vadd.f32 %v1404, %v2178
      %v2435 = vadd.f32 %v1405, %v2179
      %v2436 = vadd.f32 %v1406, %v2180
      %v2437 = vadd.f32 %v1407, %v2181
      %v2438 = vadd.f32 %v1408, %v2182
      %v2439 = vadd.f32 %v1409, %v2183
      %v2440 = vadd.f32 %v1410, %v2184
      %v2441 = vadd.f32 %v1411, %v2185
      %v2442 = vadd.f32 %v1412, %v2186
      %v2443 = vadd.f32 %v1413, %v2187
      %v2444 = vadd.f32 %v1414, %v2188
      %v2445 = vadd.f32 %v1415, %v2189
      %v2446 = vadd.f32 %v1416, %v2190
      %v2447 = vadd.f32 %v1417, %v2191
      %v2448 = vadd.f32 %v1418, %v2192
      %v2449 = vadd.f32 %v1419, %v2193
      %v2450 = vadd.f32 %v1420, %v2194
      %v2451 = vadd.f32 %v1421, %v2195
      %v2452 = vadd.f32 %v1422, %v2196
      %v2453 = vadd.f32 %v1423, %v2197
      %v2454 = vadd.f32 %v1424, %v2198
      %v2455 = vadd.f32 %v1425, %v2199
      %v2456 = vadd.f32 %v1426, %v2200
      %v2457 = vadd.f32 %v1427, %v2201
      %v2458 = vadd.f32 %v1428, %v2202
      %v2459 = vadd.f32 %v1429, %v2203
      %v2460 = vadd.f32 %v1430, %v2204
      %v2461 = vadd.f32 %v1431, %v2205
      %v2462 = vadd.f32 %v1432, %v2206
      %v2463 = vadd.f32 %v1433, %v2207
      %v2464 = vadd.f32 %v1434, %v2208
      %v2465 = vadd.f32 %v1435, %v2209
      %v2466 = vadd.f32 %v1436, %v2210
      %v2467 = vadd.f32 %v1437, %v2211
      %v2468 = vadd.f32 %v1438, %v2212
      %v2469 = vadd.f32 %v1439, %v2213
      %v2470 = vadd.f32 %v1440, %v2214
      %v2471 = vadd.f32 %v1441, %v2215
      %v2472 = vadd.f32 %v1442, %v2216
      %v2473 = vadd.f32 %v1443, %v2217
      %v2474 = vadd.f32 %v1444, %v2218
      %v2475 = vadd.f32 %v1445, %v2219
      %v2476 = vadd.f32 %v1446, %v2220
      %v2477 = vadd.f32 %v1447, %v2221
      %v2478 = vadd.f32 %v1448, %v2222
      %v2479 = vadd.f32 %v1449, %v2223
      %v2480 = vadd.f32 %v1450, %v2224
      %v2481 = vadd.f32 %v1451, %v2225
      %v2482 = vadd.f32 %v1452, %v2226
      %v2483 = vadd.f32 %v1453, %v2227
      %v2484 = vadd.f32 %v1454, %v2228
      %v2485 = vadd.f32 %v1455, %v2229
      %v2486 = vadd.f32 %v1456, %v2230
      %v2487 = vadd.f32 %v1457, %v2231
      %v2488 = vadd.f32 %v1458, %v2232
      %v2489 = vadd.f32 %v1459, %v2233
      %v2490 = vadd.f32 %v1460, %v2234
      %v2491 = vadd.f32 %v1461, %v2235
      %v2492 = vadd.f32 %v1462, %v2236
      %v2493 = vadd.f32 %v1463, %v2237
      %v2494 = vadd.f32 %v1464, %v2238
      %v2495 = vadd.f32 %v1465, %v2239
      %v2496 = vadd.f32 %v1466, %v2240
      %v2497 = vadd.f32 %v1467, %v2241
      %v2498 = vadd.f32 %v1468, %v2242
      %v2499 = vadd.f32 %v1469, %v2243
      %v2500 = vadd.f32 %v1470, %v2244
      %v2501 = vadd.f32 %v1471, %v2245
      %v2502 = vadd.f32 %v1472, %v2246
      %v2503 = vadd.f32 %v1473, %v2247
      %v2504 = vadd.f32 %v1474, %v2248
      %v2505 = vadd.f32 %v1475, %v2249
      %v2506 = vadd.f32 %v1476, %v2250
      %v2507 = vadd.f32 %v1477, %v2251
      %v2508 = vadd.f32 %v1478, %v2252
      %v2509 = vadd.f32 %v1479, %v2253
      %v2510 = vadd.f32 %v1480, %v2254
      %v2511 = vadd.f32 %v1481, %v2255
      %v2512 = vadd.f32 %v1482, %v2256
      %v2513 = vadd.f32 %v1483, %v2257
      %v2514 = vadd.f32 %v1484, %v2258
      %v2515 = vadd.f32 %v1485, %v2259
      %v2516 = vadd.f32 %v1486, %v2260
      %v2517 = vadd.f32 %v1487, %v2261
      %v2518 = vadd.f32 %v1488, %v2262
      %v2519 = vadd.f32 %v1489, %v2263
      %v2520 = vadd.f32 %v1490, %v2264
      %v2521 = vadd.f32 %v1491, %v2265
      %v2522 = vadd.f32 %v1492, %v2266
      %v2523 = vadd.f32 %v1493, %v2267
      %v2524 = vadd.f32 %v1494, %v2268
      %v2525 = vadd.f32 %v1495, %v2269
      %v2526 = vadd.f32 %v1496, %v2270
      %v2527 = vadd.f32 %v1497, %v2271
      %v2528 = vadd.f32 %v1498, %v2272
      %v2529 = vadd.f32 %v1499, %v2273
      %v2530 = vadd.f32 %v1500, %v2274
      %v2531 = vadd.f32 %v1501, %v2275
      %v2532 = vadd.f32 %v1502, %v2276
      %v2533 = vadd.f32 %v1503, %v2277
      %v2534 = vadd.f32 %v1504, %v2278
      %v2535 = vadd.f32 %v1505, %v2279
      %v2536 = vadd.f32 %v1506, %v2280
      %v2537 = vadd.f32 %v1507, %v2281
      %v2538 = vadd.f32 %v1508, %v2282
      %v2539 = vadd.f32 %v1509, %v2283
      %v2540 = vadd.f32 %v1510, %v2284
      %v2541 = vadd.f32 %v1511, %v2285
      %v2542 = vadd.f32 %v1512, %v2286
      %v2543 = vadd.f32 %v1513, %v2287
      %v2544 = vadd.f32 %v1514, %v2288
      %v2545 = vadd.f32 %v1515, %v2289
      %v2546 = vadd.f32 %v1516, %v2290
      %v2547 = vadd.f32 %v1517, %v2291
      %v2548 = vadd.f32 %v1518, %v2292
      %v2549 = vadd.f32 %v1519, %v2293
      %v2550 = vadd.f32 %v1520, %v2294
      %v2551 = vadd.f32 %v1521, %v2295
      %v2552 = vadd.f32 %v1522, %v2296
      %v2553 = vadd.f32 %v1523, %v2297
      %v2554 = vadd.f32 %v1524, %v2298
      %v2555 = vadd.f32 %v1525, %v2299
      %v2556 = vadd.f32 %v1526, %v2300
      %v2557 = vadd.f32 %v1527, %v2301
      %v2558 = vadd.f32 %v1528, %v2302
      %v2559 = vadd.f32 %v1529, %v2303
      %v2560 = vadd.f32 %v1530, %v2304
      %v2561 = vadd.f32 %v1531, %v2305
      %v2562 = vadd.f32 %v1532, %v2306
      %v2563 = vadd.f32 %v1533, %v2307
      %v2564 = vadd.f32 %v1534, %v2308
      %v2565 = vadd.f32 %v1535, %v2309
      %v2566 = vadd.f32 %v1536, %v2310
      %v2567 = vadd.f32 %v1537, %v2311
      %v2568 = vadd.f32 %v1538, %v2312
      %v2569 = vadd.f32 %v1539, %v2313
      %v2570 = vadd.f32 %v1540, %v2314
      %v2571 = vadd.f32 %v1541, %v2315
      %v2572 = vadd.f32 %v1542, %v2316
      %v2573 = vadd.f32 %v1543, %v2317
      %v2574 = vadd.f32 %v1544, %v2318
      %v2575 = vadd.f32 %v1545, %v2319
      %v2576 = vadd.f32 %v1546, %v2320
      %v2577 = vadd.f32 %v1547, %v2321
      %v2578 = vadd.f32 %v1548, %v2322
      %v2579 = vadd.f32 %v1549, %v2323
      %v2580 = vadd.f32 %v1550, %v2324
      %v2581 = vadd.f32 %v1551, %v2325
      %v2582 = vadd.f32 %v1552, %v2326
      %v2583 = vadd.f32 %v1553, %v2327
      %v2584 = vadd.f32 %v1554, %v2328
      %v2585 = vadd.f32 %v1555, %v2329
      %v2586 = vadd.f32 %v1556, %v2330
      %v2587 = vadd.f32 %v1557, %v2331
      %v2588 = vadd.f32 %v1558, %v2332
      %v2589 = vadd.f32 %v1559, %v2333
      %v2590 = vadd.f32 %v1560, %v2334
      %v2591 = vadd.f32 %v1561, %v2335
      %2592 = vset.pattern.permute.xlu0 2
      %2593 = vperm.xlu0 %2592, %v530
      %v2594 = vpop.permute.xlu0 %2593
      %2596 = vset.pattern.permute.xlu0 2
      %2597 = vperm.xlu0 %2596, %v531
      %v2598 = vpop.permute.xlu0 %2597
      %2600 = vset.pattern.permute.xlu0 2
      %2601 = vperm.xlu0 %2600, %v532
      %v2602 = vpop.permute.xlu0 %2601
      %2604 = vset.pattern.permute.xlu0 2
      %2605 = vperm.xlu0 %2604, %v533
      %v2606 = vpop.permute.xlu0 %2605
      %2608 = vset.pattern.permute.xlu0 2
      %2609 = vperm.xlu0 %2608, %v534
      %v2610 = vpop.permute.xlu0 %2609
      %2612 = vset.pattern.permute.xlu0 2
      %2613 = vperm.xlu0 %2612, %v535
      %v2614 = vpop.permute.xlu0 %2613
      %2616 = vset.pattern.permute.xlu0 2
      %2617 = vperm.xlu0 %2616, %v536
      %v2618 = vpop.permute.xlu0 %2617
      %2620 = vset.pattern.permute.xlu0 2
      %2621 = vperm.xlu0 %2620, %v537
      %v2622 = vpop.permute.xlu0 %2621
      %2624 = vset.pattern.permute.xlu0 2
      %2625 = vperm.xlu0 %2624, %v538
      %v2626 = vpop.permute.xlu0 %2625
      %2628 = vset.pattern.permute.xlu0 2
      %2629 = vperm.xlu0 %2628, %v539
      %v2630 = vpop.permute.xlu0 %2629
      %2632 = vset.pattern.permute.xlu0 2
      %2633 = vperm.xlu0 %2632, %v540
      %v2634 = vpop.permute.xlu0 %2633
      %2636 = vset.pattern.permute.xlu0 2
      %2637 = vperm.xlu0 %2636, %v541
      %v2638 = vpop.permute.xlu0 %2637
      %2640 = vset.pattern.permute.xlu0 2
      %2641 = vperm.xlu0 %2640, %v542
      %v2642 = vpop.permute.xlu0 %2641
      %2644 = vset.pattern.permute.xlu0 2
      %2645 = vperm.xlu0 %2644, %v543
      %v2646 = vpop.permute.xlu0 %2645
      %2648 = vset.pattern.permute.xlu0 2
      %2649 = vperm.xlu0 %2648, %v544
      %v2650 = vpop.permute.xlu0 %2649
      %2652 = vset.pattern.permute.xlu0 2
      %2653 = vperm.xlu0 %2652, %v545
      %v2654 = vpop.permute.xlu0 %2653
      %2656 = vset.pattern.permute.xlu0 2
      %2657 = vperm.xlu0 %2656, %v546
      %v2658 = vpop.permute.xlu0 %2657
      %2660 = vset.pattern.permute.xlu0 2
      %2661 = vperm.xlu0 %2660, %v547
      %v2662 = vpop.permute.xlu0 %2661
      %2664 = vset.pattern.permute.xlu0 2
      %2665 = vperm.xlu0 %2664, %v548
      %v2666 = vpop.permute.xlu0 %2665
      %2668 = vset.pattern.permute.xlu0 2
      %2669 = vperm.xlu0 %2668, %v549
      %v2670 = vpop.permute.xlu0 %2669
      %2672 = vset.pattern.permute.xlu0 2
      %2673 = vperm.xlu0 %2672, %v550
      %v2674 = vpop.permute.xlu0 %2673
      %2676 = vset.pattern.permute.xlu0 2
      %2677 = vperm.xlu0 %2676, %v551
      %v2678 = vpop.permute.xlu0 %2677
      %2680 = vset.pattern.permute.xlu0 2
      %2681 = vperm.xlu0 %2680, %v552
      %v2682 = vpop.permute.xlu0 %2681
      %2684 = vset.pattern.permute.xlu0 2
      %2685 = vperm.xlu0 %2684, %v553
      %v2686 = vpop.permute.xlu0 %2685
      %2688 = vset.pattern.permute.xlu0 2
      %2689 = vperm.xlu0 %2688, %v554
      %v2690 = vpop.permute.xlu0 %2689
      %2692 = vset.pattern.permute.xlu0 2
      %2693 = vperm.xlu0 %2692, %v555
      %v2694 = vpop.permute.xlu0 %2693
      %2696 = vset.pattern.permute.xlu0 2
      %2697 = vperm.xlu0 %2696, %v556
      %v2698 = vpop.permute.xlu0 %2697
      %2700 = vset.pattern.permute.xlu0 2
      %2701 = vperm.xlu0 %2700, %v557
      %v2702 = vpop.permute.xlu0 %2701
      %2704 = vset.pattern.permute.xlu0 2
      %2705 = vperm.xlu0 %2704, %v558
      %v2706 = vpop.permute.xlu0 %2705
      %2708 = vset.pattern.permute.xlu0 2
      %2709 = vperm.xlu0 %2708, %v559
      %v2710 = vpop.permute.xlu0 %2709
      %2712 = vset.pattern.permute.xlu0 2
      %2713 = vperm.xlu0 %2712, %v560
      %v2714 = vpop.permute.xlu0 %2713
      %2716 = vset.pattern.permute.xlu0 2
      %2717 = vperm.xlu0 %2716, %v561
      %v2718 = vpop.permute.xlu0 %2717
      %2720 = vset.pattern.permute.xlu0 2
      %2721 = vperm.xlu0 %2720, %v562
      %v2722 = vpop.permute.xlu0 %2721
      %2724 = vset.pattern.permute.xlu0 2
      %2725 = vperm.xlu0 %2724, %v563
      %v2726 = vpop.permute.xlu0 %2725
      %2728 = vset.pattern.permute.xlu0 2
      %2729 = vperm.xlu0 %2728, %v564
      %v2730 = vpop.permute.xlu0 %2729
      %2732 = vset.pattern.permute.xlu0 2
      %2733 = vperm.xlu0 %2732, %v565
      %v2734 = vpop.permute.xlu0 %2733
      %2736 = vset.pattern.permute.xlu0 2
      %2737 = vperm.xlu0 %2736, %v566
      %v2738 = vpop.permute.xlu0 %2737
      %2740 = vset.pattern.permute.xlu0 2
      %2741 = vperm.xlu0 %2740, %v567
      %v2742 = vpop.permute.xlu0 %2741
      %2744 = vset.pattern.permute.xlu0 2
      %2745 = vperm.xlu0 %2744, %v568
      %v2746 = vpop.permute.xlu0 %2745
      %2748 = vset.pattern.permute.xlu0 2
      %2749 = vperm.xlu0 %2748, %v569
      %v2750 = vpop.permute.xlu0 %2749
      %2752 = vset.pattern.permute.xlu0 2
      %2753 = vperm.xlu0 %2752, %v570
      %v2754 = vpop.permute.xlu0 %2753
      %2756 = vset.pattern.permute.xlu0 2
      %2757 = vperm.xlu0 %2756, %v571
      %v2758 = vpop.permute.xlu0 %2757
      %2760 = vset.pattern.permute.xlu0 2
      %2761 = vperm.xlu0 %2760, %v572
      %v2762 = vpop.permute.xlu0 %2761
      %2764 = vset.pattern.permute.xlu0 2
      %2765 = vperm.xlu0 %2764, %v573
      %v2766 = vpop.permute.xlu0 %2765
      %2768 = vset.pattern.permute.xlu0 2
      %2769 = vperm.xlu0 %2768, %v574
      %v2770 = vpop.permute.xlu0 %2769
      %2772 = vset.pattern.permute.xlu0 2
      %2773 = vperm.xlu0 %2772, %v575
      %v2774 = vpop.permute.xlu0 %2773
      %2776 = vset.pattern.permute.xlu0 2
      %2777 = vperm.xlu0 %2776, %v576
      %v2778 = vpop.permute.xlu0 %2777
      %2780 = vset.pattern.permute.xlu0 2
      %2781 = vperm.xlu0 %2780, %v577
      %v2782 = vpop.permute.xlu0 %2781
      %2784 = vset.pattern.permute.xlu0 2
      %2785 = vperm.xlu0 %2784, %v578
      %v2786 = vpop.permute.xlu0 %2785
      %2788 = vset.pattern.permute.xlu0 2
      %2789 = vperm.xlu0 %2788, %v579
      %v2790 = vpop.permute.xlu0 %2789
      %2792 = vset.pattern.permute.xlu0 2
      %2793 = vperm.xlu0 %2792, %v580
      %v2794 = vpop.permute.xlu0 %2793
      %2796 = vset.pattern.permute.xlu0 2
      %2797 = vperm.xlu0 %2796, %v581
      %v2798 = vpop.permute.xlu0 %2797
      %2800 = vset.pattern.permute.xlu0 2
      %2801 = vperm.xlu0 %2800, %v582
      %v2802 = vpop.permute.xlu0 %2801
      %2804 = vset.pattern.permute.xlu0 2
      %2805 = vperm.xlu0 %2804, %v583
      %v2806 = vpop.permute.xlu0 %2805
      %2808 = vset.pattern.permute.xlu0 2
      %2809 = vperm.xlu0 %2808, %v584
      %v2810 = vpop.permute.xlu0 %2809
      %2812 = vset.pattern.permute.xlu0 2
      %2813 = vperm.xlu0 %2812, %v585
      %v2814 = vpop.permute.xlu0 %2813
      %2816 = vset.pattern.permute.xlu0 2
      %2817 = vperm.xlu0 %2816, %v586
      %v2818 = vpop.permute.xlu0 %2817
      %2820 = vset.pattern.permute.xlu0 2
      %2821 = vperm.xlu0 %2820, %v587
      %v2822 = vpop.permute.xlu0 %2821
      %2824 = vset.pattern.permute.xlu0 2
      %2825 = vperm.xlu0 %2824, %v588
      %v2826 = vpop.permute.xlu0 %2825
      %2828 = vset.pattern.permute.xlu0 2
      %2829 = vperm.xlu0 %2828, %v589
      %v2830 = vpop.permute.xlu0 %2829
      %2832 = vset.pattern.permute.xlu0 2
      %2833 = vperm.xlu0 %2832, %v590
      %v2834 = vpop.permute.xlu0 %2833
      %2836 = vset.pattern.permute.xlu0 2
      %2837 = vperm.xlu0 %2836, %v591
      %v2838 = vpop.permute.xlu0 %2837
      %2840 = vset.pattern.permute.xlu0 2
      %2841 = vperm.xlu0 %2840, %v592
      %v2842 = vpop.permute.xlu0 %2841
      %2844 = vset.pattern.permute.xlu0 2
      %2845 = vperm.xlu0 %2844, %v593
      %v2846 = vpop.permute.xlu0 %2845
      %2848 = vset.pattern.permute.xlu0 2
      %2849 = vperm.xlu0 %2848, %v594
      %v2850 = vpop.permute.xlu0 %2849
      %2852 = vset.pattern.permute.xlu0 2
      %2853 = vperm.xlu0 %2852, %v595
      %v2854 = vpop.permute.xlu0 %2853
      %2856 = vset.pattern.permute.xlu0 2
      %2857 = vperm.xlu0 %2856, %v596
      %v2858 = vpop.permute.xlu0 %2857
      %2860 = vset.pattern.permute.xlu0 2
      %2861 = vperm.xlu0 %2860, %v597
      %v2862 = vpop.permute.xlu0 %2861
      %2864 = vset.pattern.permute.xlu0 2
      %2865 = vperm.xlu0 %2864, %v598
      %v2866 = vpop.permute.xlu0 %2865
      %2868 = vset.pattern.permute.xlu0 2
      %2869 = vperm.xlu0 %2868, %v599
      %v2870 = vpop.permute.xlu0 %2869
      %2872 = vset.pattern.permute.xlu0 2
      %2873 = vperm.xlu0 %2872, %v600
      %v2874 = vpop.permute.xlu0 %2873
      %2876 = vset.pattern.permute.xlu0 2
      %2877 = vperm.xlu0 %2876, %v601
      %v2878 = vpop.permute.xlu0 %2877
      %2880 = vset.pattern.permute.xlu0 2
      %2881 = vperm.xlu0 %2880, %v602
      %v2882 = vpop.permute.xlu0 %2881
      %2884 = vset.pattern.permute.xlu0 2
      %2885 = vperm.xlu0 %2884, %v603
      %v2886 = vpop.permute.xlu0 %2885
      %2888 = vset.pattern.permute.xlu0 2
      %2889 = vperm.xlu0 %2888, %v604
      %v2890 = vpop.permute.xlu0 %2889
      %2892 = vset.pattern.permute.xlu0 2
      %2893 = vperm.xlu0 %2892, %v605
      %v2894 = vpop.permute.xlu0 %2893
      %2896 = vset.pattern.permute.xlu0 2
      %2897 = vperm.xlu0 %2896, %v606
      %v2898 = vpop.permute.xlu0 %2897
      %2900 = vset.pattern.permute.xlu0 2
      %2901 = vperm.xlu0 %2900, %v607
      %v2902 = vpop.permute.xlu0 %2901
      %2904 = vset.pattern.permute.xlu0 2
      %2905 = vperm.xlu0 %2904, %v608
      %v2906 = vpop.permute.xlu0 %2905
      %2908 = vset.pattern.permute.xlu0 2
      %2909 = vperm.xlu0 %2908, %v609
      %v2910 = vpop.permute.xlu0 %2909
      %2912 = vset.pattern.permute.xlu0 2
      %2913 = vperm.xlu0 %2912, %v610
      %v2914 = vpop.permute.xlu0 %2913
      %2916 = vset.pattern.permute.xlu0 2
      %2917 = vperm.xlu0 %2916, %v611
      %v2918 = vpop.permute.xlu0 %2917
      %2920 = vset.pattern.permute.xlu0 2
      %2921 = vperm.xlu0 %2920, %v612
      %v2922 = vpop.permute.xlu0 %2921
      %2924 = vset.pattern.permute.xlu0 2
      %2925 = vperm.xlu0 %2924, %v613
      %v2926 = vpop.permute.xlu0 %2925
      %2928 = vset.pattern.permute.xlu0 2
      %2929 = vperm.xlu0 %2928, %v614
      %v2930 = vpop.permute.xlu0 %2929
      %2932 = vset.pattern.permute.xlu0 2
      %2933 = vperm.xlu0 %2932, %v615
      %v2934 = vpop.permute.xlu0 %2933
      %2936 = vset.pattern.permute.xlu0 2
      %2937 = vperm.xlu0 %2936, %v616
      %v2938 = vpop.permute.xlu0 %2937
      %2940 = vset.pattern.permute.xlu0 2
      %2941 = vperm.xlu0 %2940, %v617
      %v2942 = vpop.permute.xlu0 %2941
      %2944 = vset.pattern.permute.xlu0 2
      %2945 = vperm.xlu0 %2944, %v618
      %v2946 = vpop.permute.xlu0 %2945
      %2948 = vset.pattern.permute.xlu0 2
      %2949 = vperm.xlu0 %2948, %v619
      %v2950 = vpop.permute.xlu0 %2949
      %2952 = vset.pattern.permute.xlu0 2
      %2953 = vperm.xlu0 %2952, %v620
      %v2954 = vpop.permute.xlu0 %2953
      %2956 = vset.pattern.permute.xlu0 2
      %2957 = vperm.xlu0 %2956, %v621
      %v2958 = vpop.permute.xlu0 %2957
      %2960 = vset.pattern.permute.xlu0 2
      %2961 = vperm.xlu0 %2960, %v622
      %v2962 = vpop.permute.xlu0 %2961
      %2964 = vset.pattern.permute.xlu0 2
      %2965 = vperm.xlu0 %2964, %v623
      %v2966 = vpop.permute.xlu0 %2965
      %2968 = vset.pattern.permute.xlu0 2
      %2969 = vperm.xlu0 %2968, %v624
      %v2970 = vpop.permute.xlu0 %2969
      %2972 = vset.pattern.permute.xlu0 2
      %2973 = vperm.xlu0 %2972, %v625
      %v2974 = vpop.permute.xlu0 %2973
      %2976 = vset.pattern.permute.xlu0 2
      %2977 = vperm.xlu0 %2976, %v626
      %v2978 = vpop.permute.xlu0 %2977
      %2980 = vset.pattern.permute.xlu0 2
      %2981 = vperm.xlu0 %2980, %v627
      %v2982 = vpop.permute.xlu0 %2981
      %2984 = vset.pattern.permute.xlu0 2
      %2985 = vperm.xlu0 %2984, %v628
      %v2986 = vpop.permute.xlu0 %2985
      %2988 = vset.pattern.permute.xlu0 2
      %2989 = vperm.xlu0 %2988, %v629
      %v2990 = vpop.permute.xlu0 %2989
      %2992 = vset.pattern.permute.xlu0 2
      %2993 = vperm.xlu0 %2992, %v630
      %v2994 = vpop.permute.xlu0 %2993
      %2996 = vset.pattern.permute.xlu0 2
      %2997 = vperm.xlu0 %2996, %v631
      %v2998 = vpop.permute.xlu0 %2997
      %3000 = vset.pattern.permute.xlu0 2
      %3001 = vperm.xlu0 %3000, %v632
      %v3002 = vpop.permute.xlu0 %3001
      %3004 = vset.pattern.permute.xlu0 2
      %3005 = vperm.xlu0 %3004, %v633
      %v3006 = vpop.permute.xlu0 %3005
      %3008 = vset.pattern.permute.xlu0 2
      %3009 = vperm.xlu0 %3008, %v634
      %v3010 = vpop.permute.xlu0 %3009
      %3012 = vset.pattern.permute.xlu0 2
      %3013 = vperm.xlu0 %3012, %v635
      %v3014 = vpop.permute.xlu0 %3013
      %3016 = vset.pattern.permute.xlu0 2
      %3017 = vperm.xlu0 %3016, %v636
      %v3018 = vpop.permute.xlu0 %3017
      %3020 = vset.pattern.permute.xlu0 2
      %3021 = vperm.xlu0 %3020, %v637
      %v3022 = vpop.permute.xlu0 %3021
      %3024 = vset.pattern.permute.xlu0 2
      %3025 = vperm.xlu0 %3024, %v638
      %v3026 = vpop.permute.xlu0 %3025
      %3028 = vset.pattern.permute.xlu0 2
      %3029 = vperm.xlu0 %3028, %v639
      %v3030 = vpop.permute.xlu0 %3029
      %3032 = vset.pattern.permute.xlu0 2
      %3033 = vperm.xlu0 %3032, %v640
      %v3034 = vpop.permute.xlu0 %3033
      %3036 = vset.pattern.permute.xlu0 2
      %3037 = vperm.xlu0 %3036, %v641
      %v3038 = vpop.permute.xlu0 %3037
      %3040 = vset.pattern.permute.xlu0 2
      %3041 = vperm.xlu0 %3040, %v642
      %v3042 = vpop.permute.xlu0 %3041
      %3044 = vset.pattern.permute.xlu0 2
      %3045 = vperm.xlu0 %3044, %v643
      %v3046 = vpop.permute.xlu0 %3045
      %3048 = vset.pattern.permute.xlu0 2
      %3049 = vperm.xlu0 %3048, %v644
      %v3050 = vpop.permute.xlu0 %3049
      %3052 = vset.pattern.permute.xlu0 2
      %3053 = vperm.xlu0 %3052, %v645
      %v3054 = vpop.permute.xlu0 %3053
      %3056 = vset.pattern.permute.xlu0 2
      %3057 = vperm.xlu0 %3056, %v646
      %v3058 = vpop.permute.xlu0 %3057
      %3060 = vset.pattern.permute.xlu0 2
      %3061 = vperm.xlu0 %3060, %v647
      %v3062 = vpop.permute.xlu0 %3061
      %3064 = vset.pattern.permute.xlu0 2
      %3065 = vperm.xlu0 %3064, %v648
      %v3066 = vpop.permute.xlu0 %3065
      %3068 = vset.pattern.permute.xlu0 2
      %3069 = vperm.xlu0 %3068, %v649
      %v3070 = vpop.permute.xlu0 %3069
      %3072 = vset.pattern.permute.xlu0 2
      %3073 = vperm.xlu0 %3072, %v650
      %v3074 = vpop.permute.xlu0 %3073
      %3076 = vset.pattern.permute.xlu0 2
      %3077 = vperm.xlu0 %3076, %v651
      %v3078 = vpop.permute.xlu0 %3077
      %3080 = vset.pattern.permute.xlu0 2
      %3081 = vperm.xlu0 %3080, %v652
      %v3082 = vpop.permute.xlu0 %3081
      %3084 = vset.pattern.permute.xlu0 2
      %3085 = vperm.xlu0 %3084, %v653
      %v3086 = vpop.permute.xlu0 %3085
      %3088 = vset.pattern.permute.xlu0 2
      %3089 = vperm.xlu0 %3088, %v654
      %v3090 = vpop.permute.xlu0 %3089
      %3092 = vset.pattern.permute.xlu0 2
      %3093 = vperm.xlu0 %3092, %v655
      %v3094 = vpop.permute.xlu0 %3093
      %3096 = vset.pattern.permute.xlu0 2
      %3097 = vperm.xlu0 %3096, %v656
      %v3098 = vpop.permute.xlu0 %3097
      %3100 = vset.pattern.permute.xlu0 2
      %3101 = vperm.xlu0 %3100, %v657
      %v3102 = vpop.permute.xlu0 %3101
      %v3104 = vperm.slane %v658, 2
      %v3105 = vperm.slane %v658, 6
      %v3108 = vperm.slane %v3104, 2
      %v3109 = vperm.slane %v3105, 2
      %v3110 = vmul.f32 %v2594, %v3108
      %v3111 = vmul.f32 %v2594, %v3109
      %v3112 = vmul.f32 %v2598, %v3108
      %v3113 = vmul.f32 %v2598, %v3109
      %v3114 = vmul.f32 %v2602, %v3108
      %v3115 = vmul.f32 %v2602, %v3109
      %v3116 = vmul.f32 %v2606, %v3108
      %v3117 = vmul.f32 %v2606, %v3109
      %v3118 = vmul.f32 %v2610, %v3108
      %v3119 = vmul.f32 %v2610, %v3109
      %v3120 = vmul.f32 %v2614, %v3108
      %v3121 = vmul.f32 %v2614, %v3109
      %v3122 = vmul.f32 %v2618, %v3108
      %v3123 = vmul.f32 %v2618, %v3109
      %v3124 = vmul.f32 %v2622, %v3108
      %v3125 = vmul.f32 %v2622, %v3109
      %v3126 = vmul.f32 %v2626, %v3108
      %v3127 = vmul.f32 %v2626, %v3109
      %v3128 = vmul.f32 %v2630, %v3108
      %v3129 = vmul.f32 %v2630, %v3109
      %v3130 = vmul.f32 %v2634, %v3108
      %v3131 = vmul.f32 %v2634, %v3109
      %v3132 = vmul.f32 %v2638, %v3108
      %v3133 = vmul.f32 %v2638, %v3109
      %v3134 = vmul.f32 %v2642, %v3108
      %v3135 = vmul.f32 %v2642, %v3109
      %v3136 = vmul.f32 %v2646, %v3108
      %v3137 = vmul.f32 %v2646, %v3109
      %v3138 = vmul.f32 %v2650, %v3108
      %v3139 = vmul.f32 %v2650, %v3109
      %v3140 = vmul.f32 %v2654, %v3108
      %v3141 = vmul.f32 %v2654, %v3109
      %v3142 = vmul.f32 %v2658, %v3108
      %v3143 = vmul.f32 %v2658, %v3109
      %v3144 = vmul.f32 %v2662, %v3108
      %v3145 = vmul.f32 %v2662, %v3109
      %v3146 = vmul.f32 %v2666, %v3108
      %v3147 = vmul.f32 %v2666, %v3109
      %v3148 = vmul.f32 %v2670, %v3108
      %v3149 = vmul.f32 %v2670, %v3109
      %v3150 = vmul.f32 %v2674, %v3108
      %v3151 = vmul.f32 %v2674, %v3109
      %v3152 = vmul.f32 %v2678, %v3108
      %v3153 = vmul.f32 %v2678, %v3109
      %v3154 = vmul.f32 %v2682, %v3108
      %v3155 = vmul.f32 %v2682, %v3109
      %v3156 = vmul.f32 %v2686, %v3108
      %v3157 = vmul.f32 %v2686, %v3109
      %v3158 = vmul.f32 %v2690, %v3108
      %v3159 = vmul.f32 %v2690, %v3109
      %v3160 = vmul.f32 %v2694, %v3108
      %v3161 = vmul.f32 %v2694, %v3109
      %v3162 = vmul.f32 %v2698, %v3108
      %v3163 = vmul.f32 %v2698, %v3109
      %v3164 = vmul.f32 %v2702, %v3108
      %v3165 = vmul.f32 %v2702, %v3109
      %v3166 = vmul.f32 %v2706, %v3108
      %v3167 = vmul.f32 %v2706, %v3109
      %v3168 = vmul.f32 %v2710, %v3108
      %v3169 = vmul.f32 %v2710, %v3109
      %v3170 = vmul.f32 %v2714, %v3108
      %v3171 = vmul.f32 %v2714, %v3109
      %v3172 = vmul.f32 %v2718, %v3108
      %v3173 = vmul.f32 %v2718, %v3109
      %v3174 = vmul.f32 %v2722, %v3108
      %v3175 = vmul.f32 %v2722, %v3109
      %v3176 = vmul.f32 %v2726, %v3108
      %v3177 = vmul.f32 %v2726, %v3109
      %v3178 = vmul.f32 %v2730, %v3108
      %v3179 = vmul.f32 %v2730, %v3109
      %v3180 = vmul.f32 %v2734, %v3108
      %v3181 = vmul.f32 %v2734, %v3109
      %v3182 = vmul.f32 %v2738, %v3108
      %v3183 = vmul.f32 %v2738, %v3109
      %v3184 = vmul.f32 %v2742, %v3108
      %v3185 = vmul.f32 %v2742, %v3109
      %v3186 = vmul.f32 %v2746, %v3108
      %v3187 = vmul.f32 %v2746, %v3109
      %v3188 = vmul.f32 %v2750, %v3108
      %v3189 = vmul.f32 %v2750, %v3109
      %v3190 = vmul.f32 %v2754, %v3108
      %v3191 = vmul.f32 %v2754, %v3109
      %v3192 = vmul.f32 %v2758, %v3108
      %v3193 = vmul.f32 %v2758, %v3109
      %v3194 = vmul.f32 %v2762, %v3108
      %v3195 = vmul.f32 %v2762, %v3109
      %v3196 = vmul.f32 %v2766, %v3108
      %v3197 = vmul.f32 %v2766, %v3109
      %v3198 = vmul.f32 %v2770, %v3108
      %v3199 = vmul.f32 %v2770, %v3109
      %v3200 = vmul.f32 %v2774, %v3108
      %v3201 = vmul.f32 %v2774, %v3109
      %v3202 = vmul.f32 %v2778, %v3108
      %v3203 = vmul.f32 %v2778, %v3109
      %v3204 = vmul.f32 %v2782, %v3108
      %v3205 = vmul.f32 %v2782, %v3109
      %v3206 = vmul.f32 %v2786, %v3108
      %v3207 = vmul.f32 %v2786, %v3109
      %v3208 = vmul.f32 %v2790, %v3108
      %v3209 = vmul.f32 %v2790, %v3109
      %v3210 = vmul.f32 %v2794, %v3108
      %v3211 = vmul.f32 %v2794, %v3109
      %v3212 = vmul.f32 %v2798, %v3108
      %v3213 = vmul.f32 %v2798, %v3109
      %v3214 = vmul.f32 %v2802, %v3108
      %v3215 = vmul.f32 %v2802, %v3109
      %v3216 = vmul.f32 %v2806, %v3108
      %v3217 = vmul.f32 %v2806, %v3109
      %v3218 = vmul.f32 %v2810, %v3108
      %v3219 = vmul.f32 %v2810, %v3109
      %v3220 = vmul.f32 %v2814, %v3108
      %v3221 = vmul.f32 %v2814, %v3109
      %v3222 = vmul.f32 %v2818, %v3108
      %v3223 = vmul.f32 %v2818, %v3109
      %v3224 = vmul.f32 %v2822, %v3108
      %v3225 = vmul.f32 %v2822, %v3109
      %v3226 = vmul.f32 %v2826, %v3108
      %v3227 = vmul.f32 %v2826, %v3109
      %v3228 = vmul.f32 %v2830, %v3108
      %v3229 = vmul.f32 %v2830, %v3109
      %v3230 = vmul.f32 %v2834, %v3108
      %v3231 = vmul.f32 %v2834, %v3109
      %v3232 = vmul.f32 %v2838, %v3108
      %v3233 = vmul.f32 %v2838, %v3109
      %v3234 = vmul.f32 %v2842, %v3108
      %v3235 = vmul.f32 %v2842, %v3109
      %v3236 = vmul.f32 %v2846, %v3108
      %v3237 = vmul.f32 %v2846, %v3109
      %v3238 = vmul.f32 %v2850, %v3108
      %v3239 = vmul.f32 %v2850, %v3109
      %v3240 = vmul.f32 %v2854, %v3108
      %v3241 = vmul.f32 %v2854, %v3109
      %v3242 = vmul.f32 %v2858, %v3108
      %v3243 = vmul.f32 %v2858, %v3109
      %v3244 = vmul.f32 %v2862, %v3108
      %v3245 = vmul.f32 %v2862, %v3109
      %v3246 = vmul.f32 %v2866, %v3108
      %v3247 = vmul.f32 %v2866, %v3109
      %v3248 = vmul.f32 %v2870, %v3108
      %v3249 = vmul.f32 %v2870, %v3109
      %v3250 = vmul.f32 %v2874, %v3108
      %v3251 = vmul.f32 %v2874, %v3109
      %v3252 = vmul.f32 %v2878, %v3108
      %v3253 = vmul.f32 %v2878, %v3109
      %v3254 = vmul.f32 %v2882, %v3108
      %v3255 = vmul.f32 %v2882, %v3109
      %v3256 = vmul.f32 %v2886, %v3108
      %v3257 = vmul.f32 %v2886, %v3109
      %v3258 = vmul.f32 %v2890, %v3108
      %v3259 = vmul.f32 %v2890, %v3109
      %v3260 = vmul.f32 %v2894, %v3108
      %v3261 = vmul.f32 %v2894, %v3109
      %v3262 = vmul.f32 %v2898, %v3108
      %v3263 = vmul.f32 %v2898, %v3109
      %v3264 = vmul.f32 %v2902, %v3108
      %v3265 = vmul.f32 %v2902, %v3109
      %v3266 = vmul.f32 %v2906, %v3108
      %v3267 = vmul.f32 %v2906, %v3109
      %v3268 = vmul.f32 %v2910, %v3108
      %v3269 = vmul.f32 %v2910, %v3109
      %v3270 = vmul.f32 %v2914, %v3108
      %v3271 = vmul.f32 %v2914, %v3109
      %v3272 = vmul.f32 %v2918, %v3108
      %v3273 = vmul.f32 %v2918, %v3109
      %v3274 = vmul.f32 %v2922, %v3108
      %v3275 = vmul.f32 %v2922, %v3109
      %v3276 = vmul.f32 %v2926, %v3108
      %v3277 = vmul.f32 %v2926, %v3109
      %v3278 = vmul.f32 %v2930, %v3108
      %v3279 = vmul.f32 %v2930, %v3109
      %v3280 = vmul.f32 %v2934, %v3108
      %v3281 = vmul.f32 %v2934, %v3109
      %v3282 = vmul.f32 %v2938, %v3108
      %v3283 = vmul.f32 %v2938, %v3109
      %v3284 = vmul.f32 %v2942, %v3108
      %v3285 = vmul.f32 %v2942, %v3109
      %v3286 = vmul.f32 %v2946, %v3108
      %v3287 = vmul.f32 %v2946, %v3109
      %v3288 = vmul.f32 %v2950, %v3108
      %v3289 = vmul.f32 %v2950, %v3109
      %v3290 = vmul.f32 %v2954, %v3108
      %v3291 = vmul.f32 %v2954, %v3109
      %v3292 = vmul.f32 %v2958, %v3108
      %v3293 = vmul.f32 %v2958, %v3109
      %v3294 = vmul.f32 %v2962, %v3108
      %v3295 = vmul.f32 %v2962, %v3109
      %v3296 = vmul.f32 %v2966, %v3108
      %v3297 = vmul.f32 %v2966, %v3109
      %v3298 = vmul.f32 %v2970, %v3108
      %v3299 = vmul.f32 %v2970, %v3109
      %v3300 = vmul.f32 %v2974, %v3108
      %v3301 = vmul.f32 %v2974, %v3109
      %v3302 = vmul.f32 %v2978, %v3108
      %v3303 = vmul.f32 %v2978, %v3109
      %v3304 = vmul.f32 %v2982, %v3108
      %v3305 = vmul.f32 %v2982, %v3109
      %v3306 = vmul.f32 %v2986, %v3108
      %v3307 = vmul.f32 %v2986, %v3109
      %v3308 = vmul.f32 %v2990, %v3108
      %v3309 = vmul.f32 %v2990, %v3109
      %v3310 = vmul.f32 %v2994, %v3108
      %v3311 = vmul.f32 %v2994, %v3109
      %v3312 = vmul.f32 %v2998, %v3108
      %v3313 = vmul.f32 %v2998, %v3109
      %v3314 = vmul.f32 %v3002, %v3108
      %v3315 = vmul.f32 %v3002, %v3109
      %v3316 = vmul.f32 %v3006, %v3108
      %v3317 = vmul.f32 %v3006, %v3109
      %v3318 = vmul.f32 %v3010, %v3108
      %v3319 = vmul.f32 %v3010, %v3109
      %v3320 = vmul.f32 %v3014, %v3108
      %v3321 = vmul.f32 %v3014, %v3109
      %v3322 = vmul.f32 %v3018, %v3108
      %v3323 = vmul.f32 %v3018, %v3109
      %v3324 = vmul.f32 %v3022, %v3108
      %v3325 = vmul.f32 %v3022, %v3109
      %v3326 = vmul.f32 %v3026, %v3108
      %v3327 = vmul.f32 %v3026, %v3109
      %v3328 = vmul.f32 %v3030, %v3108
      %v3329 = vmul.f32 %v3030, %v3109
      %v3330 = vmul.f32 %v3034, %v3108
      %v3331 = vmul.f32 %v3034, %v3109
      %v3332 = vmul.f32 %v3038, %v3108
      %v3333 = vmul.f32 %v3038, %v3109
      %v3334 = vmul.f32 %v3042, %v3108
      %v3335 = vmul.f32 %v3042, %v3109
      %v3336 = vmul.f32 %v3046, %v3108
      %v3337 = vmul.f32 %v3046, %v3109
      %v3338 = vmul.f32 %v3050, %v3108
      %v3339 = vmul.f32 %v3050, %v3109
      %v3340 = vmul.f32 %v3054, %v3108
      %v3341 = vmul.f32 %v3054, %v3109
      %v3342 = vmul.f32 %v3058, %v3108
      %v3343 = vmul.f32 %v3058, %v3109
      %v3344 = vmul.f32 %v3062, %v3108
      %v3345 = vmul.f32 %v3062, %v3109
      %v3346 = vmul.f32 %v3066, %v3108
      %v3347 = vmul.f32 %v3066, %v3109
      %v3348 = vmul.f32 %v3070, %v3108
      %v3349 = vmul.f32 %v3070, %v3109
      %v3350 = vmul.f32 %v3074, %v3108
      %v3351 = vmul.f32 %v3074, %v3109
      %v3352 = vmul.f32 %v3078, %v3108
      %v3353 = vmul.f32 %v3078, %v3109
      %v3354 = vmul.f32 %v3082, %v3108
      %v3355 = vmul.f32 %v3082, %v3109
      %v3356 = vmul.f32 %v3086, %v3108
      %v3357 = vmul.f32 %v3086, %v3109
      %v3358 = vmul.f32 %v3090, %v3108
      %v3359 = vmul.f32 %v3090, %v3109
      %v3360 = vmul.f32 %v3094, %v3108
      %v3361 = vmul.f32 %v3094, %v3109
      %v3362 = vmul.f32 %v3098, %v3108
      %v3363 = vmul.f32 %v3098, %v3109
      %v3364 = vmul.f32 %v3102, %v3108
      %v3365 = vmul.f32 %v3102, %v3109
      %v3366 = vadd.f32 %v2336, %v3110
      %v3367 = vadd.f32 %v2337, %v3111
      %v3368 = vadd.f32 %v2338, %v3112
      %v3369 = vadd.f32 %v2339, %v3113
      %v3370 = vadd.f32 %v2340, %v3114
      %v3371 = vadd.f32 %v2341, %v3115
      %v3372 = vadd.f32 %v2342, %v3116
      %v3373 = vadd.f32 %v2343, %v3117
      %v3374 = vadd.f32 %v2344, %v3118
      %v3375 = vadd.f32 %v2345, %v3119
      %v3376 = vadd.f32 %v2346, %v3120
      %v3377 = vadd.f32 %v2347, %v3121
      %v3378 = vadd.f32 %v2348, %v3122
      %v3379 = vadd.f32 %v2349, %v3123
      %v3380 = vadd.f32 %v2350, %v3124
      %v3381 = vadd.f32 %v2351, %v3125
      %v3382 = vadd.f32 %v2352, %v3126
      %v3383 = vadd.f32 %v2353, %v3127
      %v3384 = vadd.f32 %v2354, %v3128
      %v3385 = vadd.f32 %v2355, %v3129
      %v3386 = vadd.f32 %v2356, %v3130
      %v3387 = vadd.f32 %v2357, %v3131
      %v3388 = vadd.f32 %v2358, %v3132
      %v3389 = vadd.f32 %v2359, %v3133
      %v3390 = vadd.f32 %v2360, %v3134
      %v3391 = vadd.f32 %v2361, %v3135
      %v3392 = vadd.f32 %v2362, %v3136
      %v3393 = vadd.f32 %v2363, %v3137
      %v3394 = vadd.f32 %v2364, %v3138
      %v3395 = vadd.f32 %v2365, %v3139
      %v3396 = vadd.f32 %v2366, %v3140
      %v3397 = vadd.f32 %v2367, %v3141
      %v3398 = vadd.f32 %v2368, %v3142
      %v3399 = vadd.f32 %v2369, %v3143
      %v3400 = vadd.f32 %v2370, %v3144
      %v3401 = vadd.f32 %v2371, %v3145
      %v3402 = vadd.f32 %v2372, %v3146
      %v3403 = vadd.f32 %v2373, %v3147
      %v3404 = vadd.f32 %v2374, %v3148
      %v3405 = vadd.f32 %v2375, %v3149
      %v3406 = vadd.f32 %v2376, %v3150
      %v3407 = vadd.f32 %v2377, %v3151
      %v3408 = vadd.f32 %v2378, %v3152
      %v3409 = vadd.f32 %v2379, %v3153
      %v3410 = vadd.f32 %v2380, %v3154
      %v3411 = vadd.f32 %v2381, %v3155
      %v3412 = vadd.f32 %v2382, %v3156
      %v3413 = vadd.f32 %v2383, %v3157
      %v3414 = vadd.f32 %v2384, %v3158
      %v3415 = vadd.f32 %v2385, %v3159
      %v3416 = vadd.f32 %v2386, %v3160
      %v3417 = vadd.f32 %v2387, %v3161
      %v3418 = vadd.f32 %v2388, %v3162
      %v3419 = vadd.f32 %v2389, %v3163
      %v3420 = vadd.f32 %v2390, %v3164
      %v3421 = vadd.f32 %v2391, %v3165
      %v3422 = vadd.f32 %v2392, %v3166
      %v3423 = vadd.f32 %v2393, %v3167
      %v3424 = vadd.f32 %v2394, %v3168
      %v3425 = vadd.f32 %v2395, %v3169
      %v3426 = vadd.f32 %v2396, %v3170
      %v3427 = vadd.f32 %v2397, %v3171
      %v3428 = vadd.f32 %v2398, %v3172
      %v3429 = vadd.f32 %v2399, %v3173
      %v3430 = vadd.f32 %v2400, %v3174
      %v3431 = vadd.f32 %v2401, %v3175
      %v3432 = vadd.f32 %v2402, %v3176
      %v3433 = vadd.f32 %v2403, %v3177
      %v3434 = vadd.f32 %v2404, %v3178
      %v3435 = vadd.f32 %v2405, %v3179
      %v3436 = vadd.f32 %v2406, %v3180
      %v3437 = vadd.f32 %v2407, %v3181
      %v3438 = vadd.f32 %v2408, %v3182
      %v3439 = vadd.f32 %v2409, %v3183
      %v3440 = vadd.f32 %v2410, %v3184
      %v3441 = vadd.f32 %v2411, %v3185
      %v3442 = vadd.f32 %v2412, %v3186
      %v3443 = vadd.f32 %v2413, %v3187
      %v3444 = vadd.f32 %v2414, %v3188
      %v3445 = vadd.f32 %v2415, %v3189
      %v3446 = vadd.f32 %v2416, %v3190
      %v3447 = vadd.f32 %v2417, %v3191
      %v3448 = vadd.f32 %v2418, %v3192
      %v3449 = vadd.f32 %v2419, %v3193
      %v3450 = vadd.f32 %v2420, %v3194
      %v3451 = vadd.f32 %v2421, %v3195
      %v3452 = vadd.f32 %v2422, %v3196
      %v3453 = vadd.f32 %v2423, %v3197
      %v3454 = vadd.f32 %v2424, %v3198
      %v3455 = vadd.f32 %v2425, %v3199
      %v3456 = vadd.f32 %v2426, %v3200
      %v3457 = vadd.f32 %v2427, %v3201
      %v3458 = vadd.f32 %v2428, %v3202
      %v3459 = vadd.f32 %v2429, %v3203
      %v3460 = vadd.f32 %v2430, %v3204
      %v3461 = vadd.f32 %v2431, %v3205
      %v3462 = vadd.f32 %v2432, %v3206
      %v3463 = vadd.f32 %v2433, %v3207
      %v3464 = vadd.f32 %v2434, %v3208
      %v3465 = vadd.f32 %v2435, %v3209
      %v3466 = vadd.f32 %v2436, %v3210
      %v3467 = vadd.f32 %v2437, %v3211
      %v3468 = vadd.f32 %v2438, %v3212
      %v3469 = vadd.f32 %v2439, %v3213
      %v3470 = vadd.f32 %v2440, %v3214
      %v3471 = vadd.f32 %v2441, %v3215
      %v3472 = vadd.f32 %v2442, %v3216
      %v3473 = vadd.f32 %v2443, %v3217
      %v3474 = vadd.f32 %v2444, %v3218
      %v3475 = vadd.f32 %v2445, %v3219
      %v3476 = vadd.f32 %v2446, %v3220
      %v3477 = vadd.f32 %v2447, %v3221
      %v3478 = vadd.f32 %v2448, %v3222
      %v3479 = vadd.f32 %v2449, %v3223
      %v3480 = vadd.f32 %v2450, %v3224
      %v3481 = vadd.f32 %v2451, %v3225
      %v3482 = vadd.f32 %v2452, %v3226
      %v3483 = vadd.f32 %v2453, %v3227
      %v3484 = vadd.f32 %v2454, %v3228
      %v3485 = vadd.f32 %v2455, %v3229
      %v3486 = vadd.f32 %v2456, %v3230
      %v3487 = vadd.f32 %v2457, %v3231
      %v3488 = vadd.f32 %v2458, %v3232
      %v3489 = vadd.f32 %v2459, %v3233
      %v3490 = vadd.f32 %v2460, %v3234
      %v3491 = vadd.f32 %v2461, %v3235
      %v3492 = vadd.f32 %v2462, %v3236
      %v3493 = vadd.f32 %v2463, %v3237
      %v3494 = vadd.f32 %v2464, %v3238
      %v3495 = vadd.f32 %v2465, %v3239
      %v3496 = vadd.f32 %v2466, %v3240
      %v3497 = vadd.f32 %v2467, %v3241
      %v3498 = vadd.f32 %v2468, %v3242
      %v3499 = vadd.f32 %v2469, %v3243
      %v3500 = vadd.f32 %v2470, %v3244
      %v3501 = vadd.f32 %v2471, %v3245
      %v3502 = vadd.f32 %v2472, %v3246
      %v3503 = vadd.f32 %v2473, %v3247
      %v3504 = vadd.f32 %v2474, %v3248
      %v3505 = vadd.f32 %v2475, %v3249
      %v3506 = vadd.f32 %v2476, %v3250
      %v3507 = vadd.f32 %v2477, %v3251
      %v3508 = vadd.f32 %v2478, %v3252
      %v3509 = vadd.f32 %v2479, %v3253
      %v3510 = vadd.f32 %v2480, %v3254
      %v3511 = vadd.f32 %v2481, %v3255
      %v3512 = vadd.f32 %v2482, %v3256
      %v3513 = vadd.f32 %v2483, %v3257
      %v3514 = vadd.f32 %v2484, %v3258
      %v3515 = vadd.f32 %v2485, %v3259
      %v3516 = vadd.f32 %v2486, %v3260
      %v3517 = vadd.f32 %v2487, %v3261
      %v3518 = vadd.f32 %v2488, %v3262
      %v3519 = vadd.f32 %v2489, %v3263
      %v3520 = vadd.f32 %v2490, %v3264
      %v3521 = vadd.f32 %v2491, %v3265
      %v3522 = vadd.f32 %v2492, %v3266
      %v3523 = vadd.f32 %v2493, %v3267
      %v3524 = vadd.f32 %v2494, %v3268
      %v3525 = vadd.f32 %v2495, %v3269
      %v3526 = vadd.f32 %v2496, %v3270
      %v3527 = vadd.f32 %v2497, %v3271
      %v3528 = vadd.f32 %v2498, %v3272
      %v3529 = vadd.f32 %v2499, %v3273
      %v3530 = vadd.f32 %v2500, %v3274
      %v3531 = vadd.f32 %v2501, %v3275
      %v3532 = vadd.f32 %v2502, %v3276
      %v3533 = vadd.f32 %v2503, %v3277
      %v3534 = vadd.f32 %v2504, %v3278
      %v3535 = vadd.f32 %v2505, %v3279
      %v3536 = vadd.f32 %v2506, %v3280
      %v3537 = vadd.f32 %v2507, %v3281
      %v3538 = vadd.f32 %v2508, %v3282
      %v3539 = vadd.f32 %v2509, %v3283
      %v3540 = vadd.f32 %v2510, %v3284
      %v3541 = vadd.f32 %v2511, %v3285
      %v3542 = vadd.f32 %v2512, %v3286
      %v3543 = vadd.f32 %v2513, %v3287
      %v3544 = vadd.f32 %v2514, %v3288
      %v3545 = vadd.f32 %v2515, %v3289
      %v3546 = vadd.f32 %v2516, %v3290
      %v3547 = vadd.f32 %v2517, %v3291
      %v3548 = vadd.f32 %v2518, %v3292
      %v3549 = vadd.f32 %v2519, %v3293
      %v3550 = vadd.f32 %v2520, %v3294
      %v3551 = vadd.f32 %v2521, %v3295
      %v3552 = vadd.f32 %v2522, %v3296
      %v3553 = vadd.f32 %v2523, %v3297
      %v3554 = vadd.f32 %v2524, %v3298
      %v3555 = vadd.f32 %v2525, %v3299
      %v3556 = vadd.f32 %v2526, %v3300
      %v3557 = vadd.f32 %v2527, %v3301
      %v3558 = vadd.f32 %v2528, %v3302
      %v3559 = vadd.f32 %v2529, %v3303
      %v3560 = vadd.f32 %v2530, %v3304
      %v3561 = vadd.f32 %v2531, %v3305
      %v3562 = vadd.f32 %v2532, %v3306
      %v3563 = vadd.f32 %v2533, %v3307
      %v3564 = vadd.f32 %v2534, %v3308
      %v3565 = vadd.f32 %v2535, %v3309
      %v3566 = vadd.f32 %v2536, %v3310
      %v3567 = vadd.f32 %v2537, %v3311
      %v3568 = vadd.f32 %v2538, %v3312
      %v3569 = vadd.f32 %v2539, %v3313
      %v3570 = vadd.f32 %v2540, %v3314
      %v3571 = vadd.f32 %v2541, %v3315
      %v3572 = vadd.f32 %v2542, %v3316
      %v3573 = vadd.f32 %v2543, %v3317
      %v3574 = vadd.f32 %v2544, %v3318
      %v3575 = vadd.f32 %v2545, %v3319
      %v3576 = vadd.f32 %v2546, %v3320
      %v3577 = vadd.f32 %v2547, %v3321
      %v3578 = vadd.f32 %v2548, %v3322
      %v3579 = vadd.f32 %v2549, %v3323
      %v3580 = vadd.f32 %v2550, %v3324
      %v3581 = vadd.f32 %v2551, %v3325
      %v3582 = vadd.f32 %v2552, %v3326
      %v3583 = vadd.f32 %v2553, %v3327
      %v3584 = vadd.f32 %v2554, %v3328
      %v3585 = vadd.f32 %v2555, %v3329
      %v3586 = vadd.f32 %v2556, %v3330
      %v3587 = vadd.f32 %v2557, %v3331
      %v3588 = vadd.f32 %v2558, %v3332
      %v3589 = vadd.f32 %v2559, %v3333
      %v3590 = vadd.f32 %v2560, %v3334
      %v3591 = vadd.f32 %v2561, %v3335
      %v3592 = vadd.f32 %v2562, %v3336
      %v3593 = vadd.f32 %v2563, %v3337
      %v3594 = vadd.f32 %v2564, %v3338
      %v3595 = vadd.f32 %v2565, %v3339
      %v3596 = vadd.f32 %v2566, %v3340
      %v3597 = vadd.f32 %v2567, %v3341
      %v3598 = vadd.f32 %v2568, %v3342
      %v3599 = vadd.f32 %v2569, %v3343
      %v3600 = vadd.f32 %v2570, %v3344
      %v3601 = vadd.f32 %v2571, %v3345
      %v3602 = vadd.f32 %v2572, %v3346
      %v3603 = vadd.f32 %v2573, %v3347
      %v3604 = vadd.f32 %v2574, %v3348
      %v3605 = vadd.f32 %v2575, %v3349
      %v3606 = vadd.f32 %v2576, %v3350
      %v3607 = vadd.f32 %v2577, %v3351
      %v3608 = vadd.f32 %v2578, %v3352
      %v3609 = vadd.f32 %v2579, %v3353
      %v3610 = vadd.f32 %v2580, %v3354
      %v3611 = vadd.f32 %v2581, %v3355
      %v3612 = vadd.f32 %v2582, %v3356
      %v3613 = vadd.f32 %v2583, %v3357
      %v3614 = vadd.f32 %v2584, %v3358
      %v3615 = vadd.f32 %v2585, %v3359
      %v3616 = vadd.f32 %v2586, %v3360
      %v3617 = vadd.f32 %v2587, %v3361
      %v3618 = vadd.f32 %v2588, %v3362
      %v3619 = vadd.f32 %v2589, %v3363
      %v3620 = vadd.f32 %v2590, %v3364
      %v3621 = vadd.f32 %v2591, %v3365
      %v3622 = vld [vmem:[%s493] sm:$0x3]
      %v3624 = vperm.slane %v3622, 0
      %v3625 = vperm.slane %v3622, 1
      %v3628 = vadd.f32 %v3366, %v3624
      %v3629 = vadd.f32 %v3367, %v3625
      %v3630 = vadd.f32 %v3368, %v3624
      %v3631 = vadd.f32 %v3369, %v3625
      %v3632 = vadd.f32 %v3370, %v3624
      %v3633 = vadd.f32 %v3371, %v3625
      %v3634 = vadd.f32 %v3372, %v3624
      %v3635 = vadd.f32 %v3373, %v3625
      %v3636 = vadd.f32 %v3374, %v3624
      %v3637 = vadd.f32 %v3375, %v3625
      %v3638 = vadd.f32 %v3376, %v3624
      %v3639 = vadd.f32 %v3377, %v3625
      %v3640 = vadd.f32 %v3378, %v3624
      %v3641 = vadd.f32 %v3379, %v3625
      %v3642 = vadd.f32 %v3380, %v3624
      %v3643 = vadd.f32 %v3381, %v3625
      %v3644 = vadd.f32 %v3382, %v3624
      %v3645 = vadd.f32 %v3383, %v3625
      %v3646 = vadd.f32 %v3384, %v3624
      %v3647 = vadd.f32 %v3385, %v3625
      %v3648 = vadd.f32 %v3386, %v3624
      %v3649 = vadd.f32 %v3387, %v3625
      %v3650 = vadd.f32 %v3388, %v3624
      %v3651 = vadd.f32 %v3389, %v3625
      %v3652 = vadd.f32 %v3390, %v3624
      %v3653 = vadd.f32 %v3391, %v3625
      %v3654 = vadd.f32 %v3392, %v3624
      %v3655 = vadd.f32 %v3393, %v3625
      %v3656 = vadd.f32 %v3394, %v3624
      %v3657 = vadd.f32 %v3395, %v3625
      %v3658 = vadd.f32 %v3396, %v3624
      %v3659 = vadd.f32 %v3397, %v3625
      %v3660 = vadd.f32 %v3398, %v3624
      %v3661 = vadd.f32 %v3399, %v3625
      %v3662 = vadd.f32 %v3400, %v3624
      %v3663 = vadd.f32 %v3401, %v3625
      %v3664 = vadd.f32 %v3402, %v3624
      %v3665 = vadd.f32 %v3403, %v3625
      %v3666 = vadd.f32 %v3404, %v3624
      %v3667 = vadd.f32 %v3405, %v3625
      %v3668 = vadd.f32 %v3406, %v3624
      %v3669 = vadd.f32 %v3407, %v3625
      %v3670 = vadd.f32 %v3408, %v3624
      %v3671 = vadd.f32 %v3409, %v3625
      %v3672 = vadd.f32 %v3410, %v3624
      %v3673 = vadd.f32 %v3411, %v3625
      %v3674 = vadd.f32 %v3412, %v3624
      %v3675 = vadd.f32 %v3413, %v3625
      %v3676 = vadd.f32 %v3414, %v3624
      %v3677 = vadd.f32 %v3415, %v3625
      %v3678 = vadd.f32 %v3416, %v3624
      %v3679 = vadd.f32 %v3417, %v3625
      %v3680 = vadd.f32 %v3418, %v3624
      %v3681 = vadd.f32 %v3419, %v3625
      %v3682 = vadd.f32 %v3420, %v3624
      %v3683 = vadd.f32 %v3421, %v3625
      %v3684 = vadd.f32 %v3422, %v3624
      %v3685 = vadd.f32 %v3423, %v3625
      %v3686 = vadd.f32 %v3424, %v3624
      %v3687 = vadd.f32 %v3425, %v3625
      %v3688 = vadd.f32 %v3426, %v3624
      %v3689 = vadd.f32 %v3427, %v3625
      %v3690 = vadd.f32 %v3428, %v3624
      %v3691 = vadd.f32 %v3429, %v3625
      %v3692 = vadd.f32 %v3430, %v3624
      %v3693 = vadd.f32 %v3431, %v3625
      %v3694 = vadd.f32 %v3432, %v3624
      %v3695 = vadd.f32 %v3433, %v3625
      %v3696 = vadd.f32 %v3434, %v3624
      %v3697 = vadd.f32 %v3435, %v3625
      %v3698 = vadd.f32 %v3436, %v3624
      %v3699 = vadd.f32 %v3437, %v3625
      %v3700 = vadd.f32 %v3438, %v3624
      %v3701 = vadd.f32 %v3439, %v3625
      %v3702 = vadd.f32 %v3440, %v3624
      %v3703 = vadd.f32 %v3441, %v3625
      %v3704 = vadd.f32 %v3442, %v3624
      %v3705 = vadd.f32 %v3443, %v3625
      %v3706 = vadd.f32 %v3444, %v3624
      %v3707 = vadd.f32 %v3445, %v3625
      %v3708 = vadd.f32 %v3446, %v3624
      %v3709 = vadd.f32 %v3447, %v3625
      %v3710 = vadd.f32 %v3448, %v3624
      %v3711 = vadd.f32 %v3449, %v3625
      %v3712 = vadd.f32 %v3450, %v3624
      %v3713 = vadd.f32 %v3451, %v3625
      %v3714 = vadd.f32 %v3452, %v3624
      %v3715 = vadd.f32 %v3453, %v3625
      %v3716 = vadd.f32 %v3454, %v3624
      %v3717 = vadd.f32 %v3455, %v3625
      %v3718 = vadd.f32 %v3456, %v3624
      %v3719 = vadd.f32 %v3457, %v3625
      %v3720 = vadd.f32 %v3458, %v3624
      %v3721 = vadd.f32 %v3459, %v3625
      %v3722 = vadd.f32 %v3460, %v3624
      %v3723 = vadd.f32 %v3461, %v3625
      %v3724 = vadd.f32 %v3462, %v3624
      %v3725 = vadd.f32 %v3463, %v3625
      %v3726 = vadd.f32 %v3464, %v3624
      %v3727 = vadd.f32 %v3465, %v3625
      %v3728 = vadd.f32 %v3466, %v3624
      %v3729 = vadd.f32 %v3467, %v3625
      %v3730 = vadd.f32 %v3468, %v3624
      %v3731 = vadd.f32 %v3469, %v3625
      %v3732 = vadd.f32 %v3470, %v3624
      %v3733 = vadd.f32 %v3471, %v3625
      %v3734 = vadd.f32 %v3472, %v3624
      %v3735 = vadd.f32 %v3473, %v3625
      %v3736 = vadd.f32 %v3474, %v3624
      %v3737 = vadd.f32 %v3475, %v3625
      %v3738 = vadd.f32 %v3476, %v3624
      %v3739 = vadd.f32 %v3477, %v3625
      %v3740 = vadd.f32 %v3478, %v3624
      %v3741 = vadd.f32 %v3479, %v3625
      %v3742 = vadd.f32 %v3480, %v3624
      %v3743 = vadd.f32 %v3481, %v3625
      %v3744 = vadd.f32 %v3482, %v3624
      %v3745 = vadd.f32 %v3483, %v3625
      %v3746 = vadd.f32 %v3484, %v3624
      %v3747 = vadd.f32 %v3485, %v3625
      %v3748 = vadd.f32 %v3486, %v3624
      %v3749 = vadd.f32 %v3487, %v3625
      %v3750 = vadd.f32 %v3488, %v3624
      %v3751 = vadd.f32 %v3489, %v3625
      %v3752 = vadd.f32 %v3490, %v3624
      %v3753 = vadd.f32 %v3491, %v3625
      %v3754 = vadd.f32 %v3492, %v3624
      %v3755 = vadd.f32 %v3493, %v3625
      %v3756 = vadd.f32 %v3494, %v3624
      %v3757 = vadd.f32 %v3495, %v3625
      %v3758 = vadd.f32 %v3496, %v3624
      %v3759 = vadd.f32 %v3497, %v3625
      %v3760 = vadd.f32 %v3498, %v3624
      %v3761 = vadd.f32 %v3499, %v3625
      %v3762 = vadd.f32 %v3500, %v3624
      %v3763 = vadd.f32 %v3501, %v3625
      %v3764 = vadd.f32 %v3502, %v3624
      %v3765 = vadd.f32 %v3503, %v3625
      %v3766 = vadd.f32 %v3504, %v3624
      %v3767 = vadd.f32 %v3505, %v3625
      %v3768 = vadd.f32 %v3506, %v3624
      %v3769 = vadd.f32 %v3507, %v3625
      %v3770 = vadd.f32 %v3508, %v3624
      %v3771 = vadd.f32 %v3509, %v3625
      %v3772 = vadd.f32 %v3510, %v3624
      %v3773 = vadd.f32 %v3511, %v3625
      %v3774 = vadd.f32 %v3512, %v3624
      %v3775 = vadd.f32 %v3513, %v3625
      %v3776 = vadd.f32 %v3514, %v3624
      %v3777 = vadd.f32 %v3515, %v3625
      %v3778 = vadd.f32 %v3516, %v3624
      %v3779 = vadd.f32 %v3517, %v3625
      %v3780 = vadd.f32 %v3518, %v3624
      %v3781 = vadd.f32 %v3519, %v3625
      %v3782 = vadd.f32 %v3520, %v3624
      %v3783 = vadd.f32 %v3521, %v3625
      %v3784 = vadd.f32 %v3522, %v3624
      %v3785 = vadd.f32 %v3523, %v3625
      %v3786 = vadd.f32 %v3524, %v3624
      %v3787 = vadd.f32 %v3525, %v3625
      %v3788 = vadd.f32 %v3526, %v3624
      %v3789 = vadd.f32 %v3527, %v3625
      %v3790 = vadd.f32 %v3528, %v3624
      %v3791 = vadd.f32 %v3529, %v3625
      %v3792 = vadd.f32 %v3530, %v3624
      %v3793 = vadd.f32 %v3531, %v3625
      %v3794 = vadd.f32 %v3532, %v3624
      %v3795 = vadd.f32 %v3533, %v3625
      %v3796 = vadd.f32 %v3534, %v3624
      %v3797 = vadd.f32 %v3535, %v3625
      %v3798 = vadd.f32 %v3536, %v3624
      %v3799 = vadd.f32 %v3537, %v3625
      %v3800 = vadd.f32 %v3538, %v3624
      %v3801 = vadd.f32 %v3539, %v3625
      %v3802 = vadd.f32 %v3540, %v3624
      %v3803 = vadd.f32 %v3541, %v3625
      %v3804 = vadd.f32 %v3542, %v3624
      %v3805 = vadd.f32 %v3543, %v3625
      %v3806 = vadd.f32 %v3544, %v3624
      %v3807 = vadd.f32 %v3545, %v3625
      %v3808 = vadd.f32 %v3546, %v3624
      %v3809 = vadd.f32 %v3547, %v3625
      %v3810 = vadd.f32 %v3548, %v3624
      %v3811 = vadd.f32 %v3549, %v3625
      %v3812 = vadd.f32 %v3550, %v3624
      %v3813 = vadd.f32 %v3551, %v3625
      %v3814 = vadd.f32 %v3552, %v3624
      %v3815 = vadd.f32 %v3553, %v3625
      %v3816 = vadd.f32 %v3554, %v3624
      %v3817 = vadd.f32 %v3555, %v3625
      %v3818 = vadd.f32 %v3556, %v3624
      %v3819 = vadd.f32 %v3557, %v3625
      %v3820 = vadd.f32 %v3558, %v3624
      %v3821 = vadd.f32 %v3559, %v3625
      %v3822 = vadd.f32 %v3560, %v3624
      %v3823 = vadd.f32 %v3561, %v3625
      %v3824 = vadd.f32 %v3562, %v3624
      %v3825 = vadd.f32 %v3563, %v3625
      %v3826 = vadd.f32 %v3564, %v3624
      %v3827 = vadd.f32 %v3565, %v3625
      %v3828 = vadd.f32 %v3566, %v3624
      %v3829 = vadd.f32 %v3567, %v3625
      %v3830 = vadd.f32 %v3568, %v3624
      %v3831 = vadd.f32 %v3569, %v3625
      %v3832 = vadd.f32 %v3570, %v3624
      %v3833 = vadd.f32 %v3571, %v3625
      %v3834 = vadd.f32 %v3572, %v3624
      %v3835 = vadd.f32 %v3573, %v3625
      %v3836 = vadd.f32 %v3574, %v3624
      %v3837 = vadd.f32 %v3575, %v3625
      %v3838 = vadd.f32 %v3576, %v3624
      %v3839 = vadd.f32 %v3577, %v3625
      %v3840 = vadd.f32 %v3578, %v3624
      %v3841 = vadd.f32 %v3579, %v3625
      %v3842 = vadd.f32 %v3580, %v3624
      %v3843 = vadd.f32 %v3581, %v3625
      %v3844 = vadd.f32 %v3582, %v3624
      %v3845 = vadd.f32 %v3583, %v3625
      %v3846 = vadd.f32 %v3584, %v3624
      %v3847 = vadd.f32 %v3585, %v3625
      %v3848 = vadd.f32 %v3586, %v3624
      %v3849 = vadd.f32 %v3587, %v3625
      %v3850 = vadd.f32 %v3588, %v3624
      %v3851 = vadd.f32 %v3589, %v3625
      %v3852 = vadd.f32 %v3590, %v3624
      %v3853 = vadd.f32 %v3591, %v3625
      %v3854 = vadd.f32 %v3592, %v3624
      %v3855 = vadd.f32 %v3593, %v3625
      %v3856 = vadd.f32 %v3594, %v3624
      %v3857 = vadd.f32 %v3595, %v3625
      %v3858 = vadd.f32 %v3596, %v3624
      %v3859 = vadd.f32 %v3597, %v3625
      %v3860 = vadd.f32 %v3598, %v3624
      %v3861 = vadd.f32 %v3599, %v3625
      %v3862 = vadd.f32 %v3600, %v3624
      %v3863 = vadd.f32 %v3601, %v3625
      %v3864 = vadd.f32 %v3602, %v3624
      %v3865 = vadd.f32 %v3603, %v3625
      %v3866 = vadd.f32 %v3604, %v3624
      %v3867 = vadd.f32 %v3605, %v3625
      %v3868 = vadd.f32 %v3606, %v3624
      %v3869 = vadd.f32 %v3607, %v3625
      %v3870 = vadd.f32 %v3608, %v3624
      %v3871 = vadd.f32 %v3609, %v3625
      %v3872 = vadd.f32 %v3610, %v3624
      %v3873 = vadd.f32 %v3611, %v3625
      %v3874 = vadd.f32 %v3612, %v3624
      %v3875 = vadd.f32 %v3613, %v3625
      %v3876 = vadd.f32 %v3614, %v3624
      %v3877 = vadd.f32 %v3615, %v3625
      %v3878 = vadd.f32 %v3616, %v3624
      %v3879 = vadd.f32 %v3617, %v3625
      %v3880 = vadd.f32 %v3618, %v3624
      %v3881 = vadd.f32 %v3619, %v3625
      %v3882 = vadd.f32 %v3620, %v3624
      %v3883 = vadd.f32 %v3621, %v3625
      %v3884 = vmax.f32 %v3628, 0.0
      %v3885 = vmax.f32 %v3629, 0.0
      %v3886 = vmax.f32 %v3630, 0.0
      %v3887 = vmax.f32 %v3631, 0.0
      %v3888 = vmax.f32 %v3632, 0.0
      %v3889 = vmax.f32 %v3633, 0.0
      %v3890 = vmax.f32 %v3634, 0.0
      %v3891 = vmax.f32 %v3635, 0.0
      %v3892 = vmax.f32 %v3636, 0.0
      %v3893 = vmax.f32 %v3637, 0.0
      %v3894 = vmax.f32 %v3638, 0.0
      %v3895 = vmax.f32 %v3639, 0.0
      %v3896 = vmax.f32 %v3640, 0.0
      %v3897 = vmax.f32 %v3641, 0.0
      %v3898 = vmax.f32 %v3642, 0.0
      %v3899 = vmax.f32 %v3643, 0.0
      %v3900 = vmax.f32 %v3644, 0.0
      %v3901 = vmax.f32 %v3645, 0.0
      %v3902 = vmax.f32 %v3646, 0.0
      %v3903 = vmax.f32 %v3647, 0.0
      %v3904 = vmax.f32 %v3648, 0.0
      %v3905 = vmax.f32 %v3649, 0.0
      %v3906 = vmax.f32 %v3650, 0.0
      %v3907 = vmax.f32 %v3651, 0.0
      %v3908 = vmax.f32 %v3652, 0.0
      %v3909 = vmax.f32 %v3653, 0.0
      %v3910 = vmax.f32 %v3654, 0.0
      %v3911 = vmax.f32 %v3655, 0.0
      %v3912 = vmax.f32 %v3656, 0.0
      %v3913 = vmax.f32 %v3657, 0.0
      %v3914 = vmax.f32 %v3658, 0.0
      %v3915 = vmax.f32 %v3659, 0.0
      %v3916 = vmax.f32 %v3660, 0.0
      %v3917 = vmax.f32 %v3661, 0.0
      %v3918 = vmax.f32 %v3662, 0.0
      %v3919 = vmax.f32 %v3663, 0.0
      %v3920 = vmax.f32 %v3664, 0.0
      %v3921 = vmax.f32 %v3665, 0.0
      %v3922 = vmax.f32 %v3666, 0.0
      %v3923 = vmax.f32 %v3667, 0.0
      %v3924 = vmax.f32 %v3668, 0.0
      %v3925 = vmax.f32 %v3669, 0.0
      %v3926 = vmax.f32 %v3670, 0.0
      %v3927 = vmax.f32 %v3671, 0.0
      %v3928 = vmax.f32 %v3672, 0.0
      %v3929 = vmax.f32 %v3673, 0.0
      %v3930 = vmax.f32 %v3674, 0.0
      %v3931 = vmax.f32 %v3675, 0.0
      %v3932 = vmax.f32 %v3676, 0.0
      %v3933 = vmax.f32 %v3677, 0.0
      %v3934 = vmax.f32 %v3678, 0.0
      %v3935 = vmax.f32 %v3679, 0.0
      %v3936 = vmax.f32 %v3680, 0.0
      %v3937 = vmax.f32 %v3681, 0.0
      %v3938 = vmax.f32 %v3682, 0.0
      %v3939 = vmax.f32 %v3683, 0.0
      %v3940 = vmax.f32 %v3684, 0.0
      %v3941 = vmax.f32 %v3685, 0.0
      %v3942 = vmax.f32 %v3686, 0.0
      %v3943 = vmax.f32 %v3687, 0.0
      %v3944 = vmax.f32 %v3688, 0.0
      %v3945 = vmax.f32 %v3689, 0.0
      %v3946 = vmax.f32 %v3690, 0.0
      %v3947 = vmax.f32 %v3691, 0.0
      %v3948 = vmax.f32 %v3692, 0.0
      %v3949 = vmax.f32 %v3693, 0.0
      %v3950 = vmax.f32 %v3694, 0.0
      %v3951 = vmax.f32 %v3695, 0.0
      %v3952 = vmax.f32 %v3696, 0.0
      %v3953 = vmax.f32 %v3697, 0.0
      %v3954 = vmax.f32 %v3698, 0.0
      %v3955 = vmax.f32 %v3699, 0.0
      %v3956 = vmax.f32 %v3700, 0.0
      %v3957 = vmax.f32 %v3701, 0.0
      %v3958 = vmax.f32 %v3702, 0.0
      %v3959 = vmax.f32 %v3703, 0.0
      %v3960 = vmax.f32 %v3704, 0.0
      %v3961 = vmax.f32 %v3705, 0.0
      %v3962 = vmax.f32 %v3706, 0.0
      %v3963 = vmax.f32 %v3707, 0.0
      %v3964 = vmax.f32 %v3708, 0.0
      %v3965 = vmax.f32 %v3709, 0.0
      %v3966 = vmax.f32 %v3710, 0.0
      %v3967 = vmax.f32 %v3711, 0.0
      %v3968 = vmax.f32 %v3712, 0.0
      %v3969 = vmax.f32 %v3713, 0.0
      %v3970 = vmax.f32 %v3714, 0.0
      %v3971 = vmax.f32 %v3715, 0.0
      %v3972 = vmax.f32 %v3716, 0.0
      %v3973 = vmax.f32 %v3717, 0.0
      %v3974 = vmax.f32 %v3718, 0.0
      %v3975 = vmax.f32 %v3719, 0.0
      %v3976 = vmax.f32 %v3720, 0.0
      %v3977 = vmax.f32 %v3721, 0.0
      %v3978 = vmax.f32 %v3722, 0.0
      %v3979 = vmax.f32 %v3723, 0.0
      %v3980 = vmax.f32 %v3724, 0.0
      %v3981 = vmax.f32 %v3725, 0.0
      %v3982 = vmax.f32 %v3726, 0.0
      %v3983 = vmax.f32 %v3727, 0.0
      %v3984 = vmax.f32 %v3728, 0.0
      %v3985 = vmax.f32 %v3729, 0.0
      %v3986 = vmax.f32 %v3730, 0.0
      %v3987 = vmax.f32 %v3731, 0.0
      %v3988 = vmax.f32 %v3732, 0.0
      %v3989 = vmax.f32 %v3733, 0.0
      %v3990 = vmax.f32 %v3734, 0.0
      %v3991 = vmax.f32 %v3735, 0.0
      %v3992 = vmax.f32 %v3736, 0.0
      %v3993 = vmax.f32 %v3737, 0.0
      %v3994 = vmax.f32 %v3738, 0.0
      %v3995 = vmax.f32 %v3739, 0.0
      %v3996 = vmax.f32 %v3740, 0.0
      %v3997 = vmax.f32 %v3741, 0.0
      %v3998 = vmax.f32 %v3742, 0.0
      %v3999 = vmax.f32 %v3743, 0.0
      %v4000 = vmax.f32 %v3744, 0.0
      %v4001 = vmax.f32 %v3745, 0.0
      %v4002 = vmax.f32 %v3746, 0.0
      %v4003 = vmax.f32 %v3747, 0.0
      %v4004 = vmax.f32 %v3748, 0.0
      %v4005 = vmax.f32 %v3749, 0.0
      %v4006 = vmax.f32 %v3750, 0.0
      %v4007 = vmax.f32 %v3751, 0.0
      %v4008 = vmax.f32 %v3752, 0.0
      %v4009 = vmax.f32 %v3753, 0.0
      %v4010 = vmax.f32 %v3754, 0.0
      %v4011 = vmax.f32 %v3755, 0.0
      %v4012 = vmax.f32 %v3756, 0.0
      %v4013 = vmax.f32 %v3757, 0.0
      %v4014 = vmax.f32 %v3758, 0.0
      %v4015 = vmax.f32 %v3759, 0.0
      %v4016 = vmax.f32 %v3760, 0.0
      %v4017 = vmax.f32 %v3761, 0.0
      %v4018 = vmax.f32 %v3762, 0.0
      %v4019 = vmax.f32 %v3763, 0.0
      %v4020 = vmax.f32 %v3764, 0.0
      %v4021 = vmax.f32 %v3765, 0.0
      %v4022 = vmax.f32 %v3766, 0.0
      %v4023 = vmax.f32 %v3767, 0.0
      %v4024 = vmax.f32 %v3768, 0.0
      %v4025 = vmax.f32 %v3769, 0.0
      %v4026 = vmax.f32 %v3770, 0.0
      %v4027 = vmax.f32 %v3771, 0.0
      %v4028 = vmax.f32 %v3772, 0.0
      %v4029 = vmax.f32 %v3773, 0.0
      %v4030 = vmax.f32 %v3774, 0.0
      %v4031 = vmax.f32 %v3775, 0.0
      %v4032 = vmax.f32 %v3776, 0.0
      %v4033 = vmax.f32 %v3777, 0.0
      %v4034 = vmax.f32 %v3778, 0.0
      %v4035 = vmax.f32 %v3779, 0.0
      %v4036 = vmax.f32 %v3780, 0.0
      %v4037 = vmax.f32 %v3781, 0.0
      %v4038 = vmax.f32 %v3782, 0.0
      %v4039 = vmax.f32 %v3783, 0.0
      %v4040 = vmax.f32 %v3784, 0.0
      %v4041 = vmax.f32 %v3785, 0.0
      %v4042 = vmax.f32 %v3786, 0.0
      %v4043 = vmax.f32 %v3787, 0.0
      %v4044 = vmax.f32 %v3788, 0.0
      %v4045 = vmax.f32 %v3789, 0.0
      %v4046 = vmax.f32 %v3790, 0.0
      %v4047 = vmax.f32 %v3791, 0.0
      %v4048 = vmax.f32 %v3792, 0.0
      %v4049 = vmax.f32 %v3793, 0.0
      %v4050 = vmax.f32 %v3794, 0.0
      %v4051 = vmax.f32 %v3795, 0.0
      %v4052 = vmax.f32 %v3796, 0.0
      %v4053 = vmax.f32 %v3797, 0.0
      %v4054 = vmax.f32 %v3798, 0.0
      %v4055 = vmax.f32 %v3799, 0.0
      %v4056 = vmax.f32 %v3800, 0.0
      %v4057 = vmax.f32 %v3801, 0.0
      %v4058 = vmax.f32 %v3802, 0.0
      %v4059 = vmax.f32 %v3803, 0.0
      %v4060 = vmax.f32 %v3804, 0.0
      %v4061 = vmax.f32 %v3805, 0.0
      %v4062 = vmax.f32 %v3806, 0.0
      %v4063 = vmax.f32 %v3807, 0.0
      %v4064 = vmax.f32 %v3808, 0.0
      %v4065 = vmax.f32 %v3809, 0.0
      %v4066 = vmax.f32 %v3810, 0.0
      %v4067 = vmax.f32 %v3811, 0.0
      %v4068 = vmax.f32 %v3812, 0.0
      %v4069 = vmax.f32 %v3813, 0.0
      %v4070 = vmax.f32 %v3814, 0.0
      %v4071 = vmax.f32 %v3815, 0.0
      %v4072 = vmax.f32 %v3816, 0.0
      %v4073 = vmax.f32 %v3817, 0.0
      %v4074 = vmax.f32 %v3818, 0.0
      %v4075 = vmax.f32 %v3819, 0.0
      %v4076 = vmax.f32 %v3820, 0.0
      %v4077 = vmax.f32 %v3821, 0.0
      %v4078 = vmax.f32 %v3822, 0.0
      %v4079 = vmax.f32 %v3823, 0.0
      %v4080 = vmax.f32 %v3824, 0.0
      %v4081 = vmax.f32 %v3825, 0.0
      %v4082 = vmax.f32 %v3826, 0.0
      %v4083 = vmax.f32 %v3827, 0.0
      %v4084 = vmax.f32 %v3828, 0.0
      %v4085 = vmax.f32 %v3829, 0.0
      %v4086 = vmax.f32 %v3830, 0.0
      %v4087 = vmax.f32 %v3831, 0.0
      %v4088 = vmax.f32 %v3832, 0.0
      %v4089 = vmax.f32 %v3833, 0.0
      %v4090 = vmax.f32 %v3834, 0.0
      %v4091 = vmax.f32 %v3835, 0.0
      %v4092 = vmax.f32 %v3836, 0.0
      %v4093 = vmax.f32 %v3837, 0.0
      %v4094 = vmax.f32 %v3838, 0.0
      %v4095 = vmax.f32 %v3839, 0.0
      %v4096 = vmax.f32 %v3840, 0.0
      %v4097 = vmax.f32 %v3841, 0.0
      %v4098 = vmax.f32 %v3842, 0.0
      %v4099 = vmax.f32 %v3843, 0.0
      %v4100 = vmax.f32 %v3844, 0.0
      %v4101 = vmax.f32 %v3845, 0.0
      %v4102 = vmax.f32 %v3846, 0.0
      %v4103 = vmax.f32 %v3847, 0.0
      %v4104 = vmax.f32 %v3848, 0.0
      %v4105 = vmax.f32 %v3849, 0.0
      %v4106 = vmax.f32 %v3850, 0.0
      %v4107 = vmax.f32 %v3851, 0.0
      %v4108 = vmax.f32 %v3852, 0.0
      %v4109 = vmax.f32 %v3853, 0.0
      %v4110 = vmax.f32 %v3854, 0.0
      %v4111 = vmax.f32 %v3855, 0.0
      %v4112 = vmax.f32 %v3856, 0.0
      %v4113 = vmax.f32 %v3857, 0.0
      %v4114 = vmax.f32 %v3858, 0.0
      %v4115 = vmax.f32 %v3859, 0.0
      %v4116 = vmax.f32 %v3860, 0.0
      %v4117 = vmax.f32 %v3861, 0.0
      %v4118 = vmax.f32 %v3862, 0.0
      %v4119 = vmax.f32 %v3863, 0.0
      %v4120 = vmax.f32 %v3864, 0.0
      %v4121 = vmax.f32 %v3865, 0.0
      %v4122 = vmax.f32 %v3866, 0.0
      %v4123 = vmax.f32 %v3867, 0.0
      %v4124 = vmax.f32 %v3868, 0.0
      %v4125 = vmax.f32 %v3869, 0.0
      %v4126 = vmax.f32 %v3870, 0.0
      %v4127 = vmax.f32 %v3871, 0.0
      %v4128 = vmax.f32 %v3872, 0.0
      %v4129 = vmax.f32 %v3873, 0.0
      %v4130 = vmax.f32 %v3874, 0.0
      %v4131 = vmax.f32 %v3875, 0.0
      %v4132 = vmax.f32 %v3876, 0.0
      %v4133 = vmax.f32 %v3877, 0.0
      %v4134 = vmax.f32 %v3878, 0.0
      %v4135 = vmax.f32 %v3879, 0.0
      %v4136 = vmax.f32 %v3880, 0.0
      %v4137 = vmax.f32 %v3881, 0.0
      %v4138 = vmax.f32 %v3882, 0.0
      %v4139 = vmax.f32 %v3883, 0.0
      %v4140 = vpack.c.bf16 %v3886, %v3884
      %v4141 = vpack.c.bf16 %v3887, %v3885
      %v4142 = vpack.c.bf16 %v3890, %v3888
      %v4143 = vpack.c.bf16 %v3891, %v3889
      %v4144 = vpack.c.bf16 %v3894, %v3892
      %v4145 = vpack.c.bf16 %v3895, %v3893
      %v4146 = vpack.c.bf16 %v3898, %v3896
      %v4147 = vpack.c.bf16 %v3899, %v3897
      %v4148 = vpack.c.bf16 %v3902, %v3900
      %v4149 = vpack.c.bf16 %v3903, %v3901
      %v4150 = vpack.c.bf16 %v3906, %v3904
      %v4151 = vpack.c.bf16 %v3907, %v3905
      %v4152 = vpack.c.bf16 %v3910, %v3908
      %v4153 = vpack.c.bf16 %v3911, %v3909
      %v4154 = vpack.c.bf16 %v3914, %v3912
      %v4155 = vpack.c.bf16 %v3915, %v3913
      %v4156 = vpack.c.bf16 %v3918, %v3916
      %v4157 = vpack.c.bf16 %v3919, %v3917
      %v4158 = vpack.c.bf16 %v3922, %v3920
      %v4159 = vpack.c.bf16 %v3923, %v3921
      %v4160 = vpack.c.bf16 %v3926, %v3924
      %v4161 = vpack.c.bf16 %v3927, %v3925
      %v4162 = vpack.c.bf16 %v3930, %v3928
      %v4163 = vpack.c.bf16 %v3931, %v3929
      %v4164 = vpack.c.bf16 %v3934, %v3932
      %v4165 = vpack.c.bf16 %v3935, %v3933
      %v4166 = vpack.c.bf16 %v3938, %v3936
      %v4167 = vpack.c.bf16 %v3939, %v3937
      %v4168 = vpack.c.bf16 %v3942, %v3940
      %v4169 = vpack.c.bf16 %v3943, %v3941
      %v4170 = vpack.c.bf16 %v3946, %v3944
      %v4171 = vpack.c.bf16 %v3947, %v3945
      %v4172 = vpack.c.bf16 %v3950, %v3948
      %v4173 = vpack.c.bf16 %v3951, %v3949
      %v4174 = vpack.c.bf16 %v3954, %v3952
      %v4175 = vpack.c.bf16 %v3955, %v3953
      %v4176 = vpack.c.bf16 %v3958, %v3956
      %v4177 = vpack.c.bf16 %v3959, %v3957
      %v4178 = vpack.c.bf16 %v3962, %v3960
      %v4179 = vpack.c.bf16 %v3963, %v3961
      %v4180 = vpack.c.bf16 %v3966, %v3964
      %v4181 = vpack.c.bf16 %v3967, %v3965
      %v4182 = vpack.c.bf16 %v3970, %v3968
      %v4183 = vpack.c.bf16 %v3971, %v3969
      %v4184 = vpack.c.bf16 %v3974, %v3972
      %v4185 = vpack.c.bf16 %v3975, %v3973
      %v4186 = vpack.c.bf16 %v3978, %v3976
      %v4187 = vpack.c.bf16 %v3979, %v3977
      %v4188 = vpack.c.bf16 %v3982, %v3980
      %v4189 = vpack.c.bf16 %v3983, %v3981
      %v4190 = vpack.c.bf16 %v3986, %v3984
      %v4191 = vpack.c.bf16 %v3987, %v3985
      %v4192 = vpack.c.bf16 %v3990, %v3988
      %v4193 = vpack.c.bf16 %v3991, %v3989
      %v4194 = vpack.c.bf16 %v3994, %v3992
      %v4195 = vpack.c.bf16 %v3995, %v3993
      %v4196 = vpack.c.bf16 %v3998, %v3996
      %v4197 = vpack.c.bf16 %v3999, %v3997
      %v4198 = vpack.c.bf16 %v4002, %v4000
      %v4199 = vpack.c.bf16 %v4003, %v4001
      %v4200 = vpack.c.bf16 %v4006, %v4004
      %v4201 = vpack.c.bf16 %v4007, %v4005
      %v4202 = vpack.c.bf16 %v4010, %v4008
      %v4203 = vpack.c.bf16 %v4011, %v4009
      %v4204 = vpack.c.bf16 %v4014, %v4012
      %v4205 = vpack.c.bf16 %v4015, %v4013
      %v4206 = vpack.c.bf16 %v4018, %v4016
      %v4207 = vpack.c.bf16 %v4019, %v4017
      %v4208 = vpack.c.bf16 %v4022, %v4020
      %v4209 = vpack.c.bf16 %v4023, %v4021
      %v4210 = vpack.c.bf16 %v4026, %v4024
      %v4211 = vpack.c.bf16 %v4027, %v4025
      %v4212 = vpack.c.bf16 %v4030, %v4028
      %v4213 = vpack.c.bf16 %v4031, %v4029
      %v4214 = vpack.c.bf16 %v4034, %v4032
      %v4215 = vpack.c.bf16 %v4035, %v4033
      %v4216 = vpack.c.bf16 %v4038, %v4036
      %v4217 = vpack.c.bf16 %v4039, %v4037
      %v4218 = vpack.c.bf16 %v4042, %v4040
      %v4219 = vpack.c.bf16 %v4043, %v4041
      %v4220 = vpack.c.bf16 %v4046, %v4044
      %v4221 = vpack.c.bf16 %v4047, %v4045
      %v4222 = vpack.c.bf16 %v4050, %v4048
      %v4223 = vpack.c.bf16 %v4051, %v4049
      %v4224 = vpack.c.bf16 %v4054, %v4052
      %v4225 = vpack.c.bf16 %v4055, %v4053
      %v4226 = vpack.c.bf16 %v4058, %v4056
      %v4227 = vpack.c.bf16 %v4059, %v4057
      %v4228 = vpack.c.bf16 %v4062, %v4060
      %v4229 = vpack.c.bf16 %v4063, %v4061
      %v4230 = vpack.c.bf16 %v4066, %v4064
      %v4231 = vpack.c.bf16 %v4067, %v4065
      %v4232 = vpack.c.bf16 %v4070, %v4068
      %v4233 = vpack.c.bf16 %v4071, %v4069
      %v4234 = vpack.c.bf16 %v4074, %v4072
      %v4235 = vpack.c.bf16 %v4075, %v4073
      %v4236 = vpack.c.bf16 %v4078, %v4076
      %v4237 = vpack.c.bf16 %v4079, %v4077
      %v4238 = vpack.c.bf16 %v4082, %v4080
      %v4239 = vpack.c.bf16 %v4083, %v4081
      %v4240 = vpack.c.bf16 %v4086, %v4084
      %v4241 = vpack.c.bf16 %v4087, %v4085
      %v4242 = vpack.c.bf16 %v4090, %v4088
      %v4243 = vpack.c.bf16 %v4091, %v4089
      %v4244 = vpack.c.bf16 %v4094, %v4092
      %v4245 = vpack.c.bf16 %v4095, %v4093
      %v4246 = vpack.c.bf16 %v4098, %v4096
      %v4247 = vpack.c.bf16 %v4099, %v4097
      %v4248 = vpack.c.bf16 %v4102, %v4100
      %v4249 = vpack.c.bf16 %v4103, %v4101
      %v4250 = vpack.c.bf16 %v4106, %v4104
      %v4251 = vpack.c.bf16 %v4107, %v4105
      %v4252 = vpack.c.bf16 %v4110, %v4108
      %v4253 = vpack.c.bf16 %v4111, %v4109
      %v4254 = vpack.c.bf16 %v4114, %v4112
      %v4255 = vpack.c.bf16 %v4115, %v4113
      %v4256 = vpack.c.bf16 %v4118, %v4116
      %v4257 = vpack.c.bf16 %v4119, %v4117
      %v4258 = vpack.c.bf16 %v4122, %v4120
      %v4259 = vpack.c.bf16 %v4123, %v4121
      %v4260 = vpack.c.bf16 %v4126, %v4124
      %v4261 = vpack.c.bf16 %v4127, %v4125
      %v4262 = vpack.c.bf16 %v4130, %v4128
      %v4263 = vpack.c.bf16 %v4131, %v4129
      %v4264 = vpack.c.bf16 %v4134, %v4132
      %v4265 = vpack.c.bf16 %v4135, %v4133
      %v4266 = vpack.c.bf16 %v4138, %v4136
      %v4267 = vpack.c.bf16 %v4139, %v4137
      %v4268 = vld [vmem:[%s498] sm:$0xff]
      %v4269 = vld [vmem:[%s498 + $0x8] sm:$0xff]
      %v4270 = vld [vmem:[%s498 + $0x10] sm:$0xff]
      %v4271 = vld [vmem:[%s498 + $0x18] sm:$0xff]
      %v4272 = vld [vmem:[%s498 + $0x20] sm:$0xff]
      %v4273 = vld [vmem:[%s498 + $0x28] sm:$0xff]
      %v4274 = vld [vmem:[%s498 + $0x30] sm:$0xff]
      %v4275 = vld [vmem:[%s498 + $0x38] sm:$0xff]
      %v4276 = vld [vmem:[%s498 + $0x40] sm:$0xff]
      %v4277 = vld [vmem:[%s498 + $0x48] sm:$0xff]
      %v4278 = vld [vmem:[%s498 + $0x50] sm:$0xff]
      %v4279 = vld [vmem:[%s498 + $0x58] sm:$0xff]
      %v4280 = vld [vmem:[%s498 + $0x60] sm:$0xff]
      %v4281 = vld [vmem:[%s498 + $0x68] sm:$0xff]
      %v4282 = vld [vmem:[%s498 + $0x70] sm:$0xff]
      %v4283 = vld [vmem:[%s498 + $0x78] sm:$0xff]
      %v4284 = vld [vmem:[%s498 + $0x80] sm:$0xff]
      %v4285 = vld [vmem:[%s498 + $0x88] sm:$0xff]
      %v4286 = vld [vmem:[%s498 + $0x90] sm:$0xff]
      %v4287 = vld [vmem:[%s498 + $0x98] sm:$0xff]
      %v4288 = vld [vmem:[%s498 + $0xa0] sm:$0xff]
      %v4289 = vld [vmem:[%s498 + $0xa8] sm:$0xff]
      %v4290 = vld [vmem:[%s498 + $0xb0] sm:$0xff]
      %v4291 = vld [vmem:[%s498 + $0xb8] sm:$0xff]
      %v4292 = vld [vmem:[%s498 + $0xc0] sm:$0xff]
      %v4293 = vld [vmem:[%s498 + $0xc8] sm:$0xff]
      %v4294 = vld [vmem:[%s498 + $0xd0] sm:$0xff]
      %v4295 = vld [vmem:[%s498 + $0xd8] sm:$0xff]
      %v4296 = vld [vmem:[%s498 + $0xe0] sm:$0xff]
      %v4297 = vld [vmem:[%s498 + $0xe8] sm:$0xff]
      %v4298 = vld [vmem:[%s498 + $0xf0] sm:$0xff]
      %v4299 = vld [vmem:[%s498 + $0xf8] sm:$0xff]
      %v4300 = vld [vmem:[%s502] sm:$0x3]
      %v4302 = vperm.slane %v4300, 0
      %v4303 = vperm.slane %v4300, 1
      %v4338 = vunpack.c.l.b16 %v4268
      %v4339 = vunpack.c.h.b16 %v4268
      %v4340 = vunpack.c.l.b16 %v4269
      %v4341 = vunpack.c.h.b16 %v4269
      %v4342 = vunpack.c.l.b16 %v4270
      %v4343 = vunpack.c.h.b16 %v4270
      %v4344 = vunpack.c.l.b16 %v4271
      %v4345 = vunpack.c.h.b16 %v4271
      %v4346 = vunpack.c.l.b16 %v4272
      %v4347 = vunpack.c.h.b16 %v4272
      %v4348 = vunpack.c.l.b16 %v4273
      %v4349 = vunpack.c.h.b16 %v4273
      %v4350 = vunpack.c.l.b16 %v4274
      %v4351 = vunpack.c.h.b16 %v4274
      %v4352 = vunpack.c.l.b16 %v4275
      %v4353 = vunpack.c.h.b16 %v4275
      %v4354 = vunpack.c.l.b16 %v4276
      %v4355 = vunpack.c.h.b16 %v4276
      %v4356 = vunpack.c.l.b16 %v4277
      %v4357 = vunpack.c.h.b16 %v4277
      %v4358 = vunpack.c.l.b16 %v4278
      %v4359 = vunpack.c.h.b16 %v4278
      %v4360 = vunpack.c.l.b16 %v4279
      %v4361 = vunpack.c.h.b16 %v4279
      %v4362 = vunpack.c.l.b16 %v4280
      %v4363 = vunpack.c.h.b16 %v4280
      %v4364 = vunpack.c.l.b16 %v4281
      %v4365 = vunpack.c.h.b16 %v4281
      %v4366 = vunpack.c.l.b16 %v4282
      %v4367 = vunpack.c.h.b16 %v4282
      %v4368 = vunpack.c.l.b16 %v4283
      %v4369 = vunpack.c.h.b16 %v4283
      %v4370 = vunpack.c.l.b16 %v4284
      %v4371 = vunpack.c.h.b16 %v4284
      %v4372 = vunpack.c.l.b16 %v4285
      %v4373 = vunpack.c.h.b16 %v4285
      %v4374 = vunpack.c.l.b16 %v4286
      %v4375 = vunpack.c.h.b16 %v4286
      %v4376 = vunpack.c.l.b16 %v4287
      %v4377 = vunpack.c.h.b16 %v4287
      %v4378 = vunpack.c.l.b16 %v4288
      %v4379 = vunpack.c.h.b16 %v4288
      %v4380 = vunpack.c.l.b16 %v4289
      %v4381 = vunpack.c.h.b16 %v4289
      %v4382 = vunpack.c.l.b16 %v4290
      %v4383 = vunpack.c.h.b16 %v4290
      %v4384 = vunpack.c.l.b16 %v4291
      %v4385 = vunpack.c.h.b16 %v4291
      %v4386 = vunpack.c.l.b16 %v4292
      %v4387 = vunpack.c.h.b16 %v4292
      %v4388 = vunpack.c.l.b16 %v4293
      %v4389 = vunpack.c.h.b16 %v4293
      %v4390 = vunpack.c.l.b16 %v4294
      %v4391 = vunpack.c.h.b16 %v4294
      %v4392 = vunpack.c.l.b16 %v4295
      %v4393 = vunpack.c.h.b16 %v4295
      %v4394 = vunpack.c.l.b16 %v4296
      %v4395 = vunpack.c.h.b16 %v4296
      %v4396 = vunpack.c.l.b16 %v4297
      %v4397 = vunpack.c.h.b16 %v4297
      %v4398 = vunpack.c.l.b16 %v4298
      %v4399 = vunpack.c.h.b16 %v4298
      %v4400 = vunpack.c.l.b16 %v4299
      %v4401 = vunpack.c.h.b16 %v4299
      %v4402 = vpack.c.b16 %v4340, %v4338
      %v4403 = vpack.c.b16 %v4341, %v4339
      %v4404 = vpack.c.b16 %v4344, %v4342
      %v4405 = vpack.c.b16 %v4345, %v4343
      %v4406 = vpack.c.b16 %v4348, %v4346
      %v4407 = vpack.c.b16 %v4349, %v4347
      %v4408 = vpack.c.b16 %v4352, %v4350
      %v4409 = vpack.c.b16 %v4353, %v4351
      %v4410 = vpack.c.b16 %v4356, %v4354
      %v4411 = vpack.c.b16 %v4357, %v4355
      %v4412 = vpack.c.b16 %v4360, %v4358
      %v4413 = vpack.c.b16 %v4361, %v4359
      %v4414 = vpack.c.b16 %v4364, %v4362
      %v4415 = vpack.c.b16 %v4365, %v4363
      %v4416 = vpack.c.b16 %v4368, %v4366
      %v4417 = vpack.c.b16 %v4369, %v4367
      %v4418 = vpack.c.b16 %v4372, %v4370
      %v4419 = vpack.c.b16 %v4373, %v4371
      %v4420 = vpack.c.b16 %v4376, %v4374
      %v4421 = vpack.c.b16 %v4377, %v4375
      %v4422 = vpack.c.b16 %v4380, %v4378
      %v4423 = vpack.c.b16 %v4381, %v4379
      %v4424 = vpack.c.b16 %v4384, %v4382
      %v4425 = vpack.c.b16 %v4385, %v4383
      %v4426 = vpack.c.b16 %v4388, %v4386
      %v4427 = vpack.c.b16 %v4389, %v4387
      %v4428 = vpack.c.b16 %v4392, %v4390
      %v4429 = vpack.c.b16 %v4393, %v4391
      %v4430 = vpack.c.b16 %v4396, %v4394
      %v4431 = vpack.c.b16 %v4397, %v4395
      %v4432 = vpack.c.b16 %v4400, %v4398
      %v4433 = vpack.c.b16 %v4401, %v4399
      %4466 = vmatpush.bf16.msra.mxu0 %v4416
      %4467 = vmatpush.bf16.msra.mxu0 %v4414
      %4468 = vmatpush.bf16.msra.mxu0 %v4412
      %4469 = vmatpush.bf16.msra.mxu0 %v4410
      %4470 = vmatpush.bf16.msra.mxu0 %v4408
      %4471 = vmatpush.bf16.msra.mxu0 %v4406
      %4472 = vmatpush.bf16.msra.mxu0 %v4404
      %4473 = vmatpush.bf16.msra.mxu0 %v4402
      %4474 = vmatmul.bf16.gmra.mxu0 %v4140
      %v4475 = vpop.f32.mrf.mxu0
      %v4476 = vadd.f32 %v4302, %v4475
      %v4477 = vpop.f32.mrf.mxu0
      %v4478 = vadd.f32 %v4302, %v4477
      %4479 = vmatmul.bf16.gmra.mxu0 %v4142
      %v4480 = vpop.f32.mrf.mxu0
      %v4481 = vadd.f32 %v4302, %v4480
      %v4482 = vpop.f32.mrf.mxu0
      %v4483 = vadd.f32 %v4302, %v4482
      %4484 = vmatmul.bf16.gmra.mxu0 %v4144
      %v4485 = vpop.f32.mrf.mxu0
      %v4486 = vadd.f32 %v4302, %v4485
      %v4487 = vpop.f32.mrf.mxu0
      %v4488 = vadd.f32 %v4302, %v4487
      %4489 = vmatmul.bf16.gmra.mxu0 %v4146
      %v4490 = vpop.f32.mrf.mxu0
      %v4491 = vadd.f32 %v4302, %v4490
      %v4492 = vpop.f32.mrf.mxu0
      %v4493 = vadd.f32 %v4302, %v4492
      %4494 = vmatmul.bf16.gmra.mxu0 %v4148
      %v4495 = vpop.f32.mrf.mxu0
      %v4496 = vadd.f32 %v4302, %v4495
      %v4497 = vpop.f32.mrf.mxu0
      %v4498 = vadd.f32 %v4302, %v4497
      %4499 = vmatmul.bf16.gmra.mxu0 %v4150
      %v4500 = vpop.f32.mrf.mxu0
      %v4501 = vadd.f32 %v4302, %v4500
      %v4502 = vpop.f32.mrf.mxu0
      %v4503 = vadd.f32 %v4302, %v4502
      %4504 = vmatmul.bf16.gmra.mxu0 %v4152
      %v4505 = vpop.f32.mrf.mxu0
      %v4506 = vadd.f32 %v4302, %v4505
      %v4507 = vpop.f32.mrf.mxu0
      %v4508 = vadd.f32 %v4302, %v4507
      %4509 = vmatmul.bf16.gmra.mxu0 %v4154
      %v4510 = vpop.f32.mrf.mxu0
      %v4511 = vadd.f32 %v4302, %v4510
      %v4512 = vpop.f32.mrf.mxu0
      %v4513 = vadd.f32 %v4302, %v4512
      %4514 = vmatmul.bf16.gmra.mxu0 %v4156
      %v4515 = vpop.f32.mrf.mxu0
      %v4516 = vadd.f32 %v4302, %v4515
      %v4517 = vpop.f32.mrf.mxu0
      %v4518 = vadd.f32 %v4302, %v4517
      %4519 = vmatmul.bf16.gmra.mxu0 %v4158
      %v4520 = vpop.f32.mrf.mxu0
      %v4521 = vadd.f32 %v4302, %v4520
      %v4522 = vpop.f32.mrf.mxu0
      %v4523 = vadd.f32 %v4302, %v4522
      %4524 = vmatmul.bf16.gmra.mxu0 %v4160
      %v4525 = vpop.f32.mrf.mxu0
      %v4526 = vadd.f32 %v4302, %v4525
      %v4527 = vpop.f32.mrf.mxu0
      %v4528 = vadd.f32 %v4302, %v4527
      %4529 = vmatmul.bf16.gmra.mxu0 %v4162
      %v4530 = vpop.f32.mrf.mxu0
      %v4531 = vadd.f32 %v4302, %v4530
      %v4532 = vpop.f32.mrf.mxu0
      %v4533 = vadd.f32 %v4302, %v4532
      %4534 = vmatmul.bf16.gmra.mxu0 %v4164
      %v4535 = vpop.f32.mrf.mxu0
      %v4536 = vadd.f32 %v4302, %v4535
      %v4537 = vpop.f32.mrf.mxu0
      %v4538 = vadd.f32 %v4302, %v4537
      %4539 = vmatmul.bf16.gmra.mxu0 %v4166
      %v4540 = vpop.f32.mrf.mxu0
      %v4541 = vadd.f32 %v4302, %v4540
      %v4542 = vpop.f32.mrf.mxu0
      %v4543 = vadd.f32 %v4302, %v4542
      %4544 = vmatmul.bf16.gmra.mxu0 %v4168
      %v4545 = vpop.f32.mrf.mxu0
      %v4546 = vadd.f32 %v4302, %v4545
      %v4547 = vpop.f32.mrf.mxu0
      %v4548 = vadd.f32 %v4302, %v4547
      %4549 = vmatmul.bf16.gmra.mxu0 %v4170
      %v4550 = vpop.f32.mrf.mxu0
      %v4551 = vadd.f32 %v4302, %v4550
      %v4552 = vpop.f32.mrf.mxu0
      %v4553 = vadd.f32 %v4302, %v4552
      %4554 = vmatmul.bf16.gmra.mxu0 %v4172
      %v4555 = vpop.f32.mrf.mxu0
      %v4556 = vadd.f32 %v4302, %v4555
      %v4557 = vpop.f32.mrf.mxu0
      %v4558 = vadd.f32 %v4302, %v4557
      %4559 = vmatmul.bf16.gmra.mxu0 %v4174
      %v4560 = vpop.f32.mrf.mxu0
      %v4561 = vadd.f32 %v4302, %v4560
      %v4562 = vpop.f32.mrf.mxu0
      %v4563 = vadd.f32 %v4302, %v4562
      %4564 = vmatmul.bf16.gmra.mxu0 %v4176
      %v4565 = vpop.f32.mrf.mxu0
      %v4566 = vadd.f32 %v4302, %v4565
      %v4567 = vpop.f32.mrf.mxu0
      %v4568 = vadd.f32 %v4302, %v4567
      %4569 = vmatmul.bf16.gmra.mxu0 %v4178
      %v4570 = vpop.f32.mrf.mxu0
      %v4571 = vadd.f32 %v4302, %v4570
      %v4572 = vpop.f32.mrf.mxu0
      %v4573 = vadd.f32 %v4302, %v4572
      %4574 = vmatmul.bf16.gmra.mxu0 %v4180
      %v4575 = vpop.f32.mrf.mxu0
      %v4576 = vadd.f32 %v4302, %v4575
      %v4577 = vpop.f32.mrf.mxu0
      %v4578 = vadd.f32 %v4302, %v4577
      %4579 = vmatmul.bf16.gmra.mxu0 %v4182
      %v4580 = vpop.f32.mrf.mxu0
      %v4581 = vadd.f32 %v4302, %v4580
      %v4582 = vpop.f32.mrf.mxu0
      %v4583 = vadd.f32 %v4302, %v4582
      %4584 = vmatmul.bf16.gmra.mxu0 %v4184
      %v4585 = vpop.f32.mrf.mxu0
      %v4586 = vadd.f32 %v4302, %v4585
      %v4587 = vpop.f32.mrf.mxu0
      %v4588 = vadd.f32 %v4302, %v4587
      %4589 = vmatmul.bf16.gmra.mxu0 %v4186
      %v4590 = vpop.f32.mrf.mxu0
      %v4591 = vadd.f32 %v4302, %v4590
      %v4592 = vpop.f32.mrf.mxu0
      %v4593 = vadd.f32 %v4302, %v4592
      %4594 = vmatmul.bf16.gmra.mxu0 %v4188
      %v4595 = vpop.f32.mrf.mxu0
      %v4596 = vadd.f32 %v4302, %v4595
      %v4597 = vpop.f32.mrf.mxu0
      %v4598 = vadd.f32 %v4302, %v4597
      %4599 = vmatmul.bf16.gmra.mxu0 %v4190
      %v4600 = vpop.f32.mrf.mxu0
      %v4601 = vadd.f32 %v4302, %v4600
      %v4602 = vpop.f32.mrf.mxu0
      %v4603 = vadd.f32 %v4302, %v4602
      %4604 = vmatmul.bf16.gmra.mxu0 %v4192
      %v4605 = vpop.f32.mrf.mxu0
      %v4606 = vadd.f32 %v4302, %v4605
      %v4607 = vpop.f32.mrf.mxu0
      %v4608 = vadd.f32 %v4302, %v4607
      %4609 = vmatmul.bf16.gmra.mxu0 %v4194
      %v4610 = vpop.f32.mrf.mxu0
      %v4611 = vadd.f32 %v4302, %v4610
      %v4612 = vpop.f32.mrf.mxu0
      %v4613 = vadd.f32 %v4302, %v4612
      %4614 = vmatmul.bf16.gmra.mxu0 %v4196
      %v4615 = vpop.f32.mrf.mxu0
      %v4616 = vadd.f32 %v4302, %v4615
      %v4617 = vpop.f32.mrf.mxu0
      %v4618 = vadd.f32 %v4302, %v4617
      %4619 = vmatmul.bf16.gmra.mxu0 %v4198
      %v4620 = vpop.f32.mrf.mxu0
      %v4621 = vadd.f32 %v4302, %v4620
      %v4622 = vpop.f32.mrf.mxu0
      %v4623 = vadd.f32 %v4302, %v4622
      %4624 = vmatmul.bf16.gmra.mxu0 %v4200
      %v4625 = vpop.f32.mrf.mxu0
      %v4626 = vadd.f32 %v4302, %v4625
      %v4627 = vpop.f32.mrf.mxu0
      %v4628 = vadd.f32 %v4302, %v4627
      %4629 = vmatmul.bf16.gmra.mxu0 %v4202
      %v4630 = vpop.f32.mrf.mxu0
      %v4631 = vadd.f32 %v4302, %v4630
      %v4632 = vpop.f32.mrf.mxu0
      %v4633 = vadd.f32 %v4302, %v4632
      %4634 = vmatmul.bf16.gmra.mxu0 %v4204
      %v4635 = vpop.f32.mrf.mxu0
      %v4636 = vadd.f32 %v4302, %v4635
      %v4637 = vpop.f32.mrf.mxu0
      %v4638 = vadd.f32 %v4302, %v4637
      %4639 = vmatmul.bf16.gmra.mxu0 %v4206
      %v4640 = vpop.f32.mrf.mxu0
      %v4641 = vadd.f32 %v4302, %v4640
      %v4642 = vpop.f32.mrf.mxu0
      %v4643 = vadd.f32 %v4302, %v4642
      %4644 = vmatmul.bf16.gmra.mxu0 %v4208
      %v4645 = vpop.f32.mrf.mxu0
      %v4646 = vadd.f32 %v4302, %v4645
      %v4647 = vpop.f32.mrf.mxu0
      %v4648 = vadd.f32 %v4302, %v4647
      %4649 = vmatmul.bf16.gmra.mxu0 %v4210
      %v4650 = vpop.f32.mrf.mxu0
      %v4651 = vadd.f32 %v4302, %v4650
      %v4652 = vpop.f32.mrf.mxu0
      %v4653 = vadd.f32 %v4302, %v4652
      %4654 = vmatmul.bf16.gmra.mxu0 %v4212
      %v4655 = vpop.f32.mrf.mxu0
      %v4656 = vadd.f32 %v4302, %v4655
      %v4657 = vpop.f32.mrf.mxu0
      %v4658 = vadd.f32 %v4302, %v4657
      %4659 = vmatmul.bf16.gmra.mxu0 %v4214
      %v4660 = vpop.f32.mrf.mxu0
      %v4661 = vadd.f32 %v4302, %v4660
      %v4662 = vpop.f32.mrf.mxu0
      %v4663 = vadd.f32 %v4302, %v4662
      %4664 = vmatmul.bf16.gmra.mxu0 %v4216
      %v4665 = vpop.f32.mrf.mxu0
      %v4666 = vadd.f32 %v4302, %v4665
      %v4667 = vpop.f32.mrf.mxu0
      %v4668 = vadd.f32 %v4302, %v4667
      %4669 = vmatmul.bf16.gmra.mxu0 %v4218
      %v4670 = vpop.f32.mrf.mxu0
      %v4671 = vadd.f32 %v4302, %v4670
      %v4672 = vpop.f32.mrf.mxu0
      %v4673 = vadd.f32 %v4302, %v4672
      %4674 = vmatmul.bf16.gmra.mxu0 %v4220
      %v4675 = vpop.f32.mrf.mxu0
      %v4676 = vadd.f32 %v4302, %v4675
      %v4677 = vpop.f32.mrf.mxu0
      %v4678 = vadd.f32 %v4302, %v4677
      %4679 = vmatmul.bf16.gmra.mxu0 %v4222
      %v4680 = vpop.f32.mrf.mxu0
      %v4681 = vadd.f32 %v4302, %v4680
      %v4682 = vpop.f32.mrf.mxu0
      %v4683 = vadd.f32 %v4302, %v4682
      %4684 = vmatmul.bf16.gmra.mxu0 %v4224
      %v4685 = vpop.f32.mrf.mxu0
      %v4686 = vadd.f32 %v4302, %v4685
      %v4687 = vpop.f32.mrf.mxu0
      %v4688 = vadd.f32 %v4302, %v4687
      %4689 = vmatmul.bf16.gmra.mxu0 %v4226
      %v4690 = vpop.f32.mrf.mxu0
      %v4691 = vadd.f32 %v4302, %v4690
      %v4692 = vpop.f32.mrf.mxu0
      %v4693 = vadd.f32 %v4302, %v4692
      %4694 = vmatmul.bf16.gmra.mxu0 %v4228
      %v4695 = vpop.f32.mrf.mxu0
      %v4696 = vadd.f32 %v4302, %v4695
      %v4697 = vpop.f32.mrf.mxu0
      %v4698 = vadd.f32 %v4302, %v4697
      %4699 = vmatmul.bf16.gmra.mxu0 %v4230
      %v4700 = vpop.f32.mrf.mxu0
      %v4701 = vadd.f32 %v4302, %v4700
      %v4702 = vpop.f32.mrf.mxu0
      %v4703 = vadd.f32 %v4302, %v4702
      %4704 = vmatmul.bf16.gmra.mxu0 %v4232
      %v4705 = vpop.f32.mrf.mxu0
      %v4706 = vadd.f32 %v4302, %v4705
      %v4707 = vpop.f32.mrf.mxu0
      %v4708 = vadd.f32 %v4302, %v4707
      %4709 = vmatmul.bf16.gmra.mxu0 %v4234
      %v4710 = vpop.f32.mrf.mxu0
      %v4711 = vadd.f32 %v4302, %v4710
      %v4712 = vpop.f32.mrf.mxu0
      %v4713 = vadd.f32 %v4302, %v4712
      %4714 = vmatmul.bf16.gmra.mxu0 %v4236
      %v4715 = vpop.f32.mrf.mxu0
      %v4716 = vadd.f32 %v4302, %v4715
      %v4717 = vpop.f32.mrf.mxu0
      %v4718 = vadd.f32 %v4302, %v4717
      %4719 = vmatmul.bf16.gmra.mxu0 %v4238
      %v4720 = vpop.f32.mrf.mxu0
      %v4721 = vadd.f32 %v4302, %v4720
      %v4722 = vpop.f32.mrf.mxu0
      %v4723 = vadd.f32 %v4302, %v4722
      %4724 = vmatmul.bf16.gmra.mxu0 %v4240
      %v4725 = vpop.f32.mrf.mxu0
      %v4726 = vadd.f32 %v4302, %v4725
      %v4727 = vpop.f32.mrf.mxu0
      %v4728 = vadd.f32 %v4302, %v4727
      %4729 = vmatmul.bf16.gmra.mxu0 %v4242
      %v4730 = vpop.f32.mrf.mxu0
      %v4731 = vadd.f32 %v4302, %v4730
      %v4732 = vpop.f32.mrf.mxu0
      %v4733 = vadd.f32 %v4302, %v4732
      %4734 = vmatmul.bf16.gmra.mxu0 %v4244
      %v4735 = vpop.f32.mrf.mxu0
      %v4736 = vadd.f32 %v4302, %v4735
      %v4737 = vpop.f32.mrf.mxu0
      %v4738 = vadd.f32 %v4302, %v4737
      %4739 = vmatmul.bf16.gmra.mxu0 %v4246
      %v4740 = vpop.f32.mrf.mxu0
      %v4741 = vadd.f32 %v4302, %v4740
      %v4742 = vpop.f32.mrf.mxu0
      %v4743 = vadd.f32 %v4302, %v4742
      %4744 = vmatmul.bf16.gmra.mxu0 %v4248
      %v4745 = vpop.f32.mrf.mxu0
      %v4746 = vadd.f32 %v4302, %v4745
      %v4747 = vpop.f32.mrf.mxu0
      %v4748 = vadd.f32 %v4302, %v4747
      %4749 = vmatmul.bf16.gmra.mxu0 %v4250
      %v4750 = vpop.f32.mrf.mxu0
      %v4751 = vadd.f32 %v4302, %v4750
      %v4752 = vpop.f32.mrf.mxu0
      %v4753 = vadd.f32 %v4302, %v4752
      %4754 = vmatmul.bf16.gmra.mxu0 %v4252
      %v4755 = vpop.f32.mrf.mxu0
      %v4756 = vadd.f32 %v4302, %v4755
      %v4757 = vpop.f32.mrf.mxu0
      %v4758 = vadd.f32 %v4302, %v4757
      %4759 = vmatmul.bf16.gmra.mxu0 %v4254
      %v4760 = vpop.f32.mrf.mxu0
      %v4761 = vadd.f32 %v4302, %v4760
      %v4762 = vpop.f32.mrf.mxu0
      %v4763 = vadd.f32 %v4302, %v4762
      %4764 = vmatmul.bf16.gmra.mxu0 %v4256
      %v4765 = vpop.f32.mrf.mxu0
      %v4766 = vadd.f32 %v4302, %v4765
      %v4767 = vpop.f32.mrf.mxu0
      %v4768 = vadd.f32 %v4302, %v4767
      %4769 = vmatmul.bf16.gmra.mxu0 %v4258
      %v4770 = vpop.f32.mrf.mxu0
      %v4771 = vadd.f32 %v4302, %v4770
      %v4772 = vpop.f32.mrf.mxu0
      %v4773 = vadd.f32 %v4302, %v4772
      %4774 = vmatmul.bf16.gmra.mxu0 %v4260
      %v4775 = vpop.f32.mrf.mxu0
      %v4776 = vadd.f32 %v4302, %v4775
      %v4777 = vpop.f32.mrf.mxu0
      %v4778 = vadd.f32 %v4302, %v4777
      %4779 = vmatmul.bf16.gmra.mxu0 %v4262
      %v4780 = vpop.f32.mrf.mxu0
      %v4781 = vadd.f32 %v4302, %v4780
      %v4782 = vpop.f32.mrf.mxu0
      %v4783 = vadd.f32 %v4302, %v4782
      %4784 = vmatmul.bf16.gmra.mxu0 %v4264
      %v4785 = vpop.f32.mrf.mxu0
      %v4786 = vadd.f32 %v4302, %v4785
      %v4787 = vpop.f32.mrf.mxu0
      %v4788 = vadd.f32 %v4302, %v4787
      %4789 = vmatmul.bf16.gmra.mxu0 %v4266
      %v4790 = vpop.f32.mrf.mxu0
      %v4791 = vadd.f32 %v4302, %v4790
      %v4792 = vpop.f32.mrf.mxu0
      %v4793 = vadd.f32 %v4302, %v4792
      %4794 = vdwg.mxu0
      %4795 = vmatpush.bf16.msra.mxu0 %v4432
      %4796 = vmatpush.bf16.msra.mxu0 %v4430
      %4797 = vmatpush.bf16.msra.mxu0 %v4428
      %4798 = vmatpush.bf16.msra.mxu0 %v4426
      %4799 = vmatpush.bf16.msra.mxu0 %v4424
      %4800 = vmatpush.bf16.msra.mxu0 %v4422
      %4801 = vmatpush.bf16.msra.mxu0 %v4420
      %4802 = vmatpush.bf16.msra.mxu0 %v4418
      %4803 = vmatmul.bf16.gmra.mxu0 %v4141
      %v4804 = vpop.f32.mrf.mxu0
      %v4805 = vadd.f32 %v4476, %v4804
      %v4806 = vpop.f32.mrf.mxu0
      %v4807 = vadd.f32 %v4478, %v4806
      %4808 = vmatmul.bf16.gmra.mxu0 %v4143
      %v4809 = vpop.f32.mrf.mxu0
      %v4810 = vadd.f32 %v4481, %v4809
      %v4811 = vpop.f32.mrf.mxu0
      %v4812 = vadd.f32 %v4483, %v4811
      %4813 = vmatmul.bf16.gmra.mxu0 %v4145
      %v4814 = vpop.f32.mrf.mxu0
      %v4815 = vadd.f32 %v4486, %v4814
      %v4816 = vpop.f32.mrf.mxu0
      %v4817 = vadd.f32 %v4488, %v4816
      %4818 = vmatmul.bf16.gmra.mxu0 %v4147
      %v4819 = vpop.f32.mrf.mxu0
      %v4820 = vadd.f32 %v4491, %v4819
      %v4821 = vpop.f32.mrf.mxu0
      %v4822 = vadd.f32 %v4493, %v4821
      %4823 = vmatmul.bf16.gmra.mxu0 %v4149
      %v4824 = vpop.f32.mrf.mxu0
      %v4825 = vadd.f32 %v4496, %v4824
      %v4826 = vpop.f32.mrf.mxu0
      %v4827 = vadd.f32 %v4498, %v4826
      %4828 = vmatmul.bf16.gmra.mxu0 %v4151
      %v4829 = vpop.f32.mrf.mxu0
      %v4830 = vadd.f32 %v4501, %v4829
      %v4831 = vpop.f32.mrf.mxu0
      %v4832 = vadd.f32 %v4503, %v4831
      %4833 = vmatmul.bf16.gmra.mxu0 %v4153
      %v4834 = vpop.f32.mrf.mxu0
      %v4835 = vadd.f32 %v4506, %v4834
      %v4836 = vpop.f32.mrf.mxu0
      %v4837 = vadd.f32 %v4508, %v4836
      %4838 = vmatmul.bf16.gmra.mxu0 %v4155
      %v4839 = vpop.f32.mrf.mxu0
      %v4840 = vadd.f32 %v4511, %v4839
      %v4841 = vpop.f32.mrf.mxu0
      %v4842 = vadd.f32 %v4513, %v4841
      %4843 = vmatmul.bf16.gmra.mxu0 %v4157
      %v4844 = vpop.f32.mrf.mxu0
      %v4845 = vadd.f32 %v4516, %v4844
      %v4846 = vpop.f32.mrf.mxu0
      %v4847 = vadd.f32 %v4518, %v4846
      %4848 = vmatmul.bf16.gmra.mxu0 %v4159
      %v4849 = vpop.f32.mrf.mxu0
      %v4850 = vadd.f32 %v4521, %v4849
      %v4851 = vpop.f32.mrf.mxu0
      %v4852 = vadd.f32 %v4523, %v4851
      %4853 = vmatmul.bf16.gmra.mxu0 %v4161
      %v4854 = vpop.f32.mrf.mxu0
      %v4855 = vadd.f32 %v4526, %v4854
      %v4856 = vpop.f32.mrf.mxu0
      %v4857 = vadd.f32 %v4528, %v4856
      %4858 = vmatmul.bf16.gmra.mxu0 %v4163
      %v4859 = vpop.f32.mrf.mxu0
      %v4860 = vadd.f32 %v4531, %v4859
      %v4861 = vpop.f32.mrf.mxu0
      %v4862 = vadd.f32 %v4533, %v4861
      %4863 = vmatmul.bf16.gmra.mxu0 %v4165
      %v4864 = vpop.f32.mrf.mxu0
      %v4865 = vadd.f32 %v4536, %v4864
      %v4866 = vpop.f32.mrf.mxu0
      %v4867 = vadd.f32 %v4538, %v4866
      %4868 = vmatmul.bf16.gmra.mxu0 %v4167
      %v4869 = vpop.f32.mrf.mxu0
      %v4870 = vadd.f32 %v4541, %v4869
      %v4871 = vpop.f32.mrf.mxu0
      %v4872 = vadd.f32 %v4543, %v4871
      %4873 = vmatmul.bf16.gmra.mxu0 %v4169
      %v4874 = vpop.f32.mrf.mxu0
      %v4875 = vadd.f32 %v4546, %v4874
      %v4876 = vpop.f32.mrf.mxu0
      %v4877 = vadd.f32 %v4548, %v4876
      %4878 = vmatmul.bf16.gmra.mxu0 %v4171
      %v4879 = vpop.f32.mrf.mxu0
      %v4880 = vadd.f32 %v4551, %v4879
      %v4881 = vpop.f32.mrf.mxu0
      %v4882 = vadd.f32 %v4553, %v4881
      %4883 = vmatmul.bf16.gmra.mxu0 %v4173
      %v4884 = vpop.f32.mrf.mxu0
      %v4885 = vadd.f32 %v4556, %v4884
      %v4886 = vpop.f32.mrf.mxu0
      %v4887 = vadd.f32 %v4558, %v4886
      %4888 = vmatmul.bf16.gmra.mxu0 %v4175
      %v4889 = vpop.f32.mrf.mxu0
      %v4890 = vadd.f32 %v4561, %v4889
      %v4891 = vpop.f32.mrf.mxu0
      %v4892 = vadd.f32 %v4563, %v4891
      %4893 = vmatmul.bf16.gmra.mxu0 %v4177
      %v4894 = vpop.f32.mrf.mxu0
      %v4895 = vadd.f32 %v4566, %v4894
      %v4896 = vpop.f32.mrf.mxu0
      %v4897 = vadd.f32 %v4568, %v4896
      %4898 = vmatmul.bf16.gmra.mxu0 %v4179
      %v4899 = vpop.f32.mrf.mxu0
      %v4900 = vadd.f32 %v4571, %v4899
      %v4901 = vpop.f32.mrf.mxu0
      %v4902 = vadd.f32 %v4573, %v4901
      %4903 = vmatmul.bf16.gmra.mxu0 %v4181
      %v4904 = vpop.f32.mrf.mxu0
      %v4905 = vadd.f32 %v4576, %v4904
      %v4906 = vpop.f32.mrf.mxu0
      %v4907 = vadd.f32 %v4578, %v4906
      %4908 = vmatmul.bf16.gmra.mxu0 %v4183
      %v4909 = vpop.f32.mrf.mxu0
      %v4910 = vadd.f32 %v4581, %v4909
      %v4911 = vpop.f32.mrf.mxu0
      %v4912 = vadd.f32 %v4583, %v4911
      %4913 = vmatmul.bf16.gmra.mxu0 %v4185
      %v4914 = vpop.f32.mrf.mxu0
      %v4915 = vadd.f32 %v4586, %v4914
      %v4916 = vpop.f32.mrf.mxu0
      %v4917 = vadd.f32 %v4588, %v4916
      %4918 = vmatmul.bf16.gmra.mxu0 %v4187
      %v4919 = vpop.f32.mrf.mxu0
      %v4920 = vadd.f32 %v4591, %v4919
      %v4921 = vpop.f32.mrf.mxu0
      %v4922 = vadd.f32 %v4593, %v4921
      %4923 = vmatmul.bf16.gmra.mxu0 %v4189
      %v4924 = vpop.f32.mrf.mxu0
      %v4925 = vadd.f32 %v4596, %v4924
      %v4926 = vpop.f32.mrf.mxu0
      %v4927 = vadd.f32 %v4598, %v4926
      %4928 = vmatmul.bf16.gmra.mxu0 %v4191
      %v4929 = vpop.f32.mrf.mxu0
      %v4930 = vadd.f32 %v4601, %v4929
      %v4931 = vpop.f32.mrf.mxu0
      %v4932 = vadd.f32 %v4603, %v4931
      %4933 = vmatmul.bf16.gmra.mxu0 %v4193
      %v4934 = vpop.f32.mrf.mxu0
      %v4935 = vadd.f32 %v4606, %v4934
      %v4936 = vpop.f32.mrf.mxu0
      %v4937 = vadd.f32 %v4608, %v4936
      %4938 = vmatmul.bf16.gmra.mxu0 %v4195
      %v4939 = vpop.f32.mrf.mxu0
      %v4940 = vadd.f32 %v4611, %v4939
      %v4941 = vpop.f32.mrf.mxu0
      %v4942 = vadd.f32 %v4613, %v4941
      %4943 = vmatmul.bf16.gmra.mxu0 %v4197
      %v4944 = vpop.f32.mrf.mxu0
      %v4945 = vadd.f32 %v4616, %v4944
      %v4946 = vpop.f32.mrf.mxu0
      %v4947 = vadd.f32 %v4618, %v4946
      %4948 = vmatmul.bf16.gmra.mxu0 %v4199
      %v4949 = vpop.f32.mrf.mxu0
      %v4950 = vadd.f32 %v4621, %v4949
      %v4951 = vpop.f32.mrf.mxu0
      %v4952 = vadd.f32 %v4623, %v4951
      %4953 = vmatmul.bf16.gmra.mxu0 %v4201
      %v4954 = vpop.f32.mrf.mxu0
      %v4955 = vadd.f32 %v4626, %v4954
      %v4956 = vpop.f32.mrf.mxu0
      %v4957 = vadd.f32 %v4628, %v4956
      %4958 = vmatmul.bf16.gmra.mxu0 %v4203
      %v4959 = vpop.f32.mrf.mxu0
      %v4960 = vadd.f32 %v4631, %v4959
      %v4961 = vpop.f32.mrf.mxu0
      %v4962 = vadd.f32 %v4633, %v4961
      %4963 = vmatmul.bf16.gmra.mxu0 %v4205
      %v4964 = vpop.f32.mrf.mxu0
      %v4965 = vadd.f32 %v4636, %v4964
      %v4966 = vpop.f32.mrf.mxu0
      %v4967 = vadd.f32 %v4638, %v4966
      %4968 = vmatmul.bf16.gmra.mxu0 %v4207
      %v4969 = vpop.f32.mrf.mxu0
      %v4970 = vadd.f32 %v4641, %v4969
      %v4971 = vpop.f32.mrf.mxu0
      %v4972 = vadd.f32 %v4643, %v4971
      %4973 = vmatmul.bf16.gmra.mxu0 %v4209
      %v4974 = vpop.f32.mrf.mxu0
      %v4975 = vadd.f32 %v4646, %v4974
      %v4976 = vpop.f32.mrf.mxu0
      %v4977 = vadd.f32 %v4648, %v4976
      %4978 = vmatmul.bf16.gmra.mxu0 %v4211
      %v4979 = vpop.f32.mrf.mxu0
      %v4980 = vadd.f32 %v4651, %v4979
      %v4981 = vpop.f32.mrf.mxu0
      %v4982 = vadd.f32 %v4653, %v4981
      %4983 = vmatmul.bf16.gmra.mxu0 %v4213
      %v4984 = vpop.f32.mrf.mxu0
      %v4985 = vadd.f32 %v4656, %v4984
      %v4986 = vpop.f32.mrf.mxu0
      %v4987 = vadd.f32 %v4658, %v4986
      %4988 = vmatmul.bf16.gmra.mxu0 %v4215
      %v4989 = vpop.f32.mrf.mxu0
      %v4990 = vadd.f32 %v4661, %v4989
      %v4991 = vpop.f32.mrf.mxu0
      %v4992 = vadd.f32 %v4663, %v4991
      %4993 = vmatmul.bf16.gmra.mxu0 %v4217
      %v4994 = vpop.f32.mrf.mxu0
      %v4995 = vadd.f32 %v4666, %v4994
      %v4996 = vpop.f32.mrf.mxu0
      %v4997 = vadd.f32 %v4668, %v4996
      %4998 = vmatmul.bf16.gmra.mxu0 %v4219
      %v4999 = vpop.f32.mrf.mxu0
      %v5000 = vadd.f32 %v4671, %v4999
      %v5001 = vpop.f32.mrf.mxu0
      %v5002 = vadd.f32 %v4673, %v5001
      %5003 = vmatmul.bf16.gmra.mxu0 %v4221
      %v5004 = vpop.f32.mrf.mxu0
      %v5005 = vadd.f32 %v4676, %v5004
      %v5006 = vpop.f32.mrf.mxu0
      %v5007 = vadd.f32 %v4678, %v5006
      %5008 = vmatmul.bf16.gmra.mxu0 %v4223
      %v5009 = vpop.f32.mrf.mxu0
      %v5010 = vadd.f32 %v4681, %v5009
      %v5011 = vpop.f32.mrf.mxu0
      %v5012 = vadd.f32 %v4683, %v5011
      %5013 = vmatmul.bf16.gmra.mxu0 %v4225
      %v5014 = vpop.f32.mrf.mxu0
      %v5015 = vadd.f32 %v4686, %v5014
      %v5016 = vpop.f32.mrf.mxu0
      %v5017 = vadd.f32 %v4688, %v5016
      %5018 = vmatmul.bf16.gmra.mxu0 %v4227
      %v5019 = vpop.f32.mrf.mxu0
      %v5020 = vadd.f32 %v4691, %v5019
      %v5021 = vpop.f32.mrf.mxu0
      %v5022 = vadd.f32 %v4693, %v5021
      %5023 = vmatmul.bf16.gmra.mxu0 %v4229
      %v5024 = vpop.f32.mrf.mxu0
      %v5025 = vadd.f32 %v4696, %v5024
      %v5026 = vpop.f32.mrf.mxu0
      %v5027 = vadd.f32 %v4698, %v5026
      %5028 = vmatmul.bf16.gmra.mxu0 %v4231
      %v5029 = vpop.f32.mrf.mxu0
      %v5030 = vadd.f32 %v4701, %v5029
      %v5031 = vpop.f32.mrf.mxu0
      %v5032 = vadd.f32 %v4703, %v5031
      %5033 = vmatmul.bf16.gmra.mxu0 %v4233
      %v5034 = vpop.f32.mrf.mxu0
      %v5035 = vadd.f32 %v4706, %v5034
      %v5036 = vpop.f32.mrf.mxu0
      %v5037 = vadd.f32 %v4708, %v5036
      %5038 = vmatmul.bf16.gmra.mxu0 %v4235
      %v5039 = vpop.f32.mrf.mxu0
      %v5040 = vadd.f32 %v4711, %v5039
      %v5041 = vpop.f32.mrf.mxu0
      %v5042 = vadd.f32 %v4713, %v5041
      %5043 = vmatmul.bf16.gmra.mxu0 %v4237
      %v5044 = vpop.f32.mrf.mxu0
      %v5045 = vadd.f32 %v4716, %v5044
      %v5046 = vpop.f32.mrf.mxu0
      %v5047 = vadd.f32 %v4718, %v5046
      %5048 = vmatmul.bf16.gmra.mxu0 %v4239
      %v5049 = vpop.f32.mrf.mxu0
      %v5050 = vadd.f32 %v4721, %v5049
      %v5051 = vpop.f32.mrf.mxu0
      %v5052 = vadd.f32 %v4723, %v5051
      %5053 = vmatmul.bf16.gmra.mxu0 %v4241
      %v5054 = vpop.f32.mrf.mxu0
      %v5055 = vadd.f32 %v4726, %v5054
      %v5056 = vpop.f32.mrf.mxu0
      %v5057 = vadd.f32 %v4728, %v5056
      %5058 = vmatmul.bf16.gmra.mxu0 %v4243
      %v5059 = vpop.f32.mrf.mxu0
      %v5060 = vadd.f32 %v4731, %v5059
      %v5061 = vpop.f32.mrf.mxu0
      %v5062 = vadd.f32 %v4733, %v5061
      %5063 = vmatmul.bf16.gmra.mxu0 %v4245
      %v5064 = vpop.f32.mrf.mxu0
      %v5065 = vadd.f32 %v4736, %v5064
      %v5066 = vpop.f32.mrf.mxu0
      %v5067 = vadd.f32 %v4738, %v5066
      %5068 = vmatmul.bf16.gmra.mxu0 %v4247
      %v5069 = vpop.f32.mrf.mxu0
      %v5070 = vadd.f32 %v4741, %v5069
      %v5071 = vpop.f32.mrf.mxu0
      %v5072 = vadd.f32 %v4743, %v5071
      %5073 = vmatmul.bf16.gmra.mxu0 %v4249
      %v5074 = vpop.f32.mrf.mxu0
      %v5075 = vadd.f32 %v4746, %v5074
      %v5076 = vpop.f32.mrf.mxu0
      %v5077 = vadd.f32 %v4748, %v5076
      %5078 = vmatmul.bf16.gmra.mxu0 %v4251
      %v5079 = vpop.f32.mrf.mxu0
      %v5080 = vadd.f32 %v4751, %v5079
      %v5081 = vpop.f32.mrf.mxu0
      %v5082 = vadd.f32 %v4753, %v5081
      %5083 = vmatmul.bf16.gmra.mxu0 %v4253
      %v5084 = vpop.f32.mrf.mxu0
      %v5085 = vadd.f32 %v4756, %v5084
      %v5086 = vpop.f32.mrf.mxu0
      %v5087 = vadd.f32 %v4758, %v5086
      %5088 = vmatmul.bf16.gmra.mxu0 %v4255
      %v5089 = vpop.f32.mrf.mxu0
      %v5090 = vadd.f32 %v4761, %v5089
      %v5091 = vpop.f32.mrf.mxu0
      %v5092 = vadd.f32 %v4763, %v5091
      %5093 = vmatmul.bf16.gmra.mxu0 %v4257
      %v5094 = vpop.f32.mrf.mxu0
      %v5095 = vadd.f32 %v4766, %v5094
      %v5096 = vpop.f32.mrf.mxu0
      %v5097 = vadd.f32 %v4768, %v5096
      %5098 = vmatmul.bf16.gmra.mxu0 %v4259
      %v5099 = vpop.f32.mrf.mxu0
      %v5100 = vadd.f32 %v4771, %v5099
      %v5101 = vpop.f32.mrf.mxu0
      %v5102 = vadd.f32 %v4773, %v5101
      %5103 = vmatmul.bf16.gmra.mxu0 %v4261
      %v5104 = vpop.f32.mrf.mxu0
      %v5105 = vadd.f32 %v4776, %v5104
      %v5106 = vpop.f32.mrf.mxu0
      %v5107 = vadd.f32 %v4778, %v5106
      %5108 = vmatmul.bf16.gmra.mxu0 %v4263
      %v5109 = vpop.f32.mrf.mxu0
      %v5110 = vadd.f32 %v4781, %v5109
      %v5111 = vpop.f32.mrf.mxu0
      %v5112 = vadd.f32 %v4783, %v5111
      %5113 = vmatmul.bf16.gmra.mxu0 %v4265
      %v5114 = vpop.f32.mrf.mxu0
      %v5115 = vadd.f32 %v4786, %v5114
      %v5116 = vpop.f32.mrf.mxu0
      %v5117 = vadd.f32 %v4788, %v5116
      %5118 = vmatmul.bf16.gmra.mxu0 %v4267
      %v5119 = vpop.f32.mrf.mxu0
      %v5120 = vadd.f32 %v4791, %v5119
      %v5121 = vpop.f32.mrf.mxu0
      %v5122 = vadd.f32 %v4793, %v5121
      %5123 = vdwg.mxu0
      %5124 = vmatpush.bf16.msra.mxu0 %v4417
      %5125 = vmatpush.bf16.msra.mxu0 %v4415
      %5126 = vmatpush.bf16.msra.mxu0 %v4413
      %5127 = vmatpush.bf16.msra.mxu0 %v4411
      %5128 = vmatpush.bf16.msra.mxu0 %v4409
      %5129 = vmatpush.bf16.msra.mxu0 %v4407
      %5130 = vmatpush.bf16.msra.mxu0 %v4405
      %5131 = vmatpush.bf16.msra.mxu0 %v4403
      %5132 = vmatmul.bf16.gmra.mxu0 %v4140
      %v5133 = vpop.f32.mrf.mxu0
      %v5134 = vadd.f32 %v4303, %v5133
      %v5135 = vpop.f32.mrf.mxu0
      %v5136 = vadd.f32 %v4303, %v5135
      %5137 = vmatmul.bf16.gmra.mxu0 %v4142
      %v5138 = vpop.f32.mrf.mxu0
      %v5139 = vadd.f32 %v4303, %v5138
      %v5140 = vpop.f32.mrf.mxu0
      %v5141 = vadd.f32 %v4303, %v5140
      %5142 = vmatmul.bf16.gmra.mxu0 %v4144
      %v5143 = vpop.f32.mrf.mxu0
      %v5144 = vadd.f32 %v4303, %v5143
      %v5145 = vpop.f32.mrf.mxu0
      %v5146 = vadd.f32 %v4303, %v5145
      %5147 = vmatmul.bf16.gmra.mxu0 %v4146
      %v5148 = vpop.f32.mrf.mxu0
      %v5149 = vadd.f32 %v4303, %v5148
      %v5150 = vpop.f32.mrf.mxu0
      %v5151 = vadd.f32 %v4303, %v5150
      %5152 = vmatmul.bf16.gmra.mxu0 %v4148
      %v5153 = vpop.f32.mrf.mxu0
      %v5154 = vadd.f32 %v4303, %v5153
      %v5155 = vpop.f32.mrf.mxu0
      %v5156 = vadd.f32 %v4303, %v5155
      %5157 = vmatmul.bf16.gmra.mxu0 %v4150
      %v5158 = vpop.f32.mrf.mxu0
      %v5159 = vadd.f32 %v4303, %v5158
      %v5160 = vpop.f32.mrf.mxu0
      %v5161 = vadd.f32 %v4303, %v5160
      %5162 = vmatmul.bf16.gmra.mxu0 %v4152
      %v5163 = vpop.f32.mrf.mxu0
      %v5164 = vadd.f32 %v4303, %v5163
      %v5165 = vpop.f32.mrf.mxu0
      %v5166 = vadd.f32 %v4303, %v5165
      %5167 = vmatmul.bf16.gmra.mxu0 %v4154
      %v5168 = vpop.f32.mrf.mxu0
      %v5169 = vadd.f32 %v4303, %v5168
      %v5170 = vpop.f32.mrf.mxu0
      %v5171 = vadd.f32 %v4303, %v5170
      %5172 = vmatmul.bf16.gmra.mxu0 %v4156
      %v5173 = vpop.f32.mrf.mxu0
      %v5174 = vadd.f32 %v4303, %v5173
      %v5175 = vpop.f32.mrf.mxu0
      %v5176 = vadd.f32 %v4303, %v5175
      %5177 = vmatmul.bf16.gmra.mxu0 %v4158
      %v5178 = vpop.f32.mrf.mxu0
      %v5179 = vadd.f32 %v4303, %v5178
      %v5180 = vpop.f32.mrf.mxu0
      %v5181 = vadd.f32 %v4303, %v5180
      %5182 = vmatmul.bf16.gmra.mxu0 %v4160
      %v5183 = vpop.f32.mrf.mxu0
      %v5184 = vadd.f32 %v4303, %v5183
      %v5185 = vpop.f32.mrf.mxu0
      %v5186 = vadd.f32 %v4303, %v5185
      %5187 = vmatmul.bf16.gmra.mxu0 %v4162
      %v5188 = vpop.f32.mrf.mxu0
      %v5189 = vadd.f32 %v4303, %v5188
      %v5190 = vpop.f32.mrf.mxu0
      %v5191 = vadd.f32 %v4303, %v5190
      %5192 = vmatmul.bf16.gmra.mxu0 %v4164
      %v5193 = vpop.f32.mrf.mxu0
      %v5194 = vadd.f32 %v4303, %v5193
      %v5195 = vpop.f32.mrf.mxu0
      %v5196 = vadd.f32 %v4303, %v5195
      %5197 = vmatmul.bf16.gmra.mxu0 %v4166
      %v5198 = vpop.f32.mrf.mxu0
      %v5199 = vadd.f32 %v4303, %v5198
      %v5200 = vpop.f32.mrf.mxu0
      %v5201 = vadd.f32 %v4303, %v5200
      %5202 = vmatmul.bf16.gmra.mxu0 %v4168
      %v5203 = vpop.f32.mrf.mxu0
      %v5204 = vadd.f32 %v4303, %v5203
      %v5205 = vpop.f32.mrf.mxu0
      %v5206 = vadd.f32 %v4303, %v5205
      %5207 = vmatmul.bf16.gmra.mxu0 %v4170
      %v5208 = vpop.f32.mrf.mxu0
      %v5209 = vadd.f32 %v4303, %v5208
      %v5210 = vpop.f32.mrf.mxu0
      %v5211 = vadd.f32 %v4303, %v5210
      %5212 = vmatmul.bf16.gmra.mxu0 %v4172
      %v5213 = vpop.f32.mrf.mxu0
      %v5214 = vadd.f32 %v4303, %v5213
      %v5215 = vpop.f32.mrf.mxu0
      %v5216 = vadd.f32 %v4303, %v5215
      %5217 = vmatmul.bf16.gmra.mxu0 %v4174
      %v5218 = vpop.f32.mrf.mxu0
      %v5219 = vadd.f32 %v4303, %v5218
      %v5220 = vpop.f32.mrf.mxu0
      %v5221 = vadd.f32 %v4303, %v5220
      %5222 = vmatmul.bf16.gmra.mxu0 %v4176
      %v5223 = vpop.f32.mrf.mxu0
      %v5224 = vadd.f32 %v4303, %v5223
      %v5225 = vpop.f32.mrf.mxu0
      %v5226 = vadd.f32 %v4303, %v5225
      %5227 = vmatmul.bf16.gmra.mxu0 %v4178
      %v5228 = vpop.f32.mrf.mxu0
      %v5229 = vadd.f32 %v4303, %v5228
      %v5230 = vpop.f32.mrf.mxu0
      %v5231 = vadd.f32 %v4303, %v5230
      %5232 = vmatmul.bf16.gmra.mxu0 %v4180
      %v5233 = vpop.f32.mrf.mxu0
      %v5234 = vadd.f32 %v4303, %v5233
      %v5235 = vpop.f32.mrf.mxu0
      %v5236 = vadd.f32 %v4303, %v5235
      %5237 = vmatmul.bf16.gmra.mxu0 %v4182
      %v5238 = vpop.f32.mrf.mxu0
      %v5239 = vadd.f32 %v4303, %v5238
      %v5240 = vpop.f32.mrf.mxu0
      %v5241 = vadd.f32 %v4303, %v5240
      %5242 = vmatmul.bf16.gmra.mxu0 %v4184
      %v5243 = vpop.f32.mrf.mxu0
      %v5244 = vadd.f32 %v4303, %v5243
      %v5245 = vpop.f32.mrf.mxu0
      %v5246 = vadd.f32 %v4303, %v5245
      %5247 = vmatmul.bf16.gmra.mxu0 %v4186
      %v5248 = vpop.f32.mrf.mxu0
      %v5249 = vadd.f32 %v4303, %v5248
      %v5250 = vpop.f32.mrf.mxu0
      %v5251 = vadd.f32 %v4303, %v5250
      %5252 = vmatmul.bf16.gmra.mxu0 %v4188
      %v5253 = vpop.f32.mrf.mxu0
      %v5254 = vadd.f32 %v4303, %v5253
      %v5255 = vpop.f32.mrf.mxu0
      %v5256 = vadd.f32 %v4303, %v5255
      %5257 = vmatmul.bf16.gmra.mxu0 %v4190
      %v5258 = vpop.f32.mrf.mxu0
      %v5259 = vadd.f32 %v4303, %v5258
      %v5260 = vpop.f32.mrf.mxu0
      %v5261 = vadd.f32 %v4303, %v5260
      %5262 = vmatmul.bf16.gmra.mxu0 %v4192
      %v5263 = vpop.f32.mrf.mxu0
      %v5264 = vadd.f32 %v4303, %v5263
      %v5265 = vpop.f32.mrf.mxu0
      %v5266 = vadd.f32 %v4303, %v5265
      %5267 = vmatmul.bf16.gmra.mxu0 %v4194
      %v5268 = vpop.f32.mrf.mxu0
      %v5269 = vadd.f32 %v4303, %v5268
      %v5270 = vpop.f32.mrf.mxu0
      %v5271 = vadd.f32 %v4303, %v5270
      %5272 = vmatmul.bf16.gmra.mxu0 %v4196
      %v5273 = vpop.f32.mrf.mxu0
      %v5274 = vadd.f32 %v4303, %v5273
      %v5275 = vpop.f32.mrf.mxu0
      %v5276 = vadd.f32 %v4303, %v5275
      %5277 = vmatmul.bf16.gmra.mxu0 %v4198
      %v5278 = vpop.f32.mrf.mxu0
      %v5279 = vadd.f32 %v4303, %v5278
      %v5280 = vpop.f32.mrf.mxu0
      %v5281 = vadd.f32 %v4303, %v5280
      %5282 = vmatmul.bf16.gmra.mxu0 %v4200
      %v5283 = vpop.f32.mrf.mxu0
      %v5284 = vadd.f32 %v4303, %v5283
      %v5285 = vpop.f32.mrf.mxu0
      %v5286 = vadd.f32 %v4303, %v5285
      %5287 = vmatmul.bf16.gmra.mxu0 %v4202
      %v5288 = vpop.f32.mrf.mxu0
      %v5289 = vadd.f32 %v4303, %v5288
      %v5290 = vpop.f32.mrf.mxu0
      %v5291 = vadd.f32 %v4303, %v5290
      %5292 = vmatmul.bf16.gmra.mxu0 %v4204
      %v5293 = vpop.f32.mrf.mxu0
      %v5294 = vadd.f32 %v4303, %v5293
      %v5295 = vpop.f32.mrf.mxu0
      %v5296 = vadd.f32 %v4303, %v5295
      %5297 = vmatmul.bf16.gmra.mxu0 %v4206
      %v5298 = vpop.f32.mrf.mxu0
      %v5299 = vadd.f32 %v4303, %v5298
      %v5300 = vpop.f32.mrf.mxu0
      %v5301 = vadd.f32 %v4303, %v5300
      %5302 = vmatmul.bf16.gmra.mxu0 %v4208
      %v5303 = vpop.f32.mrf.mxu0
      %v5304 = vadd.f32 %v4303, %v5303
      %v5305 = vpop.f32.mrf.mxu0
      %v5306 = vadd.f32 %v4303, %v5305
      %5307 = vmatmul.bf16.gmra.mxu0 %v4210
      %v5308 = vpop.f32.mrf.mxu0
      %v5309 = vadd.f32 %v4303, %v5308
      %v5310 = vpop.f32.mrf.mxu0
      %v5311 = vadd.f32 %v4303, %v5310
      %5312 = vmatmul.bf16.gmra.mxu0 %v4212
      %v5313 = vpop.f32.mrf.mxu0
      %v5314 = vadd.f32 %v4303, %v5313
      %v5315 = vpop.f32.mrf.mxu0
      %v5316 = vadd.f32 %v4303, %v5315
      %5317 = vmatmul.bf16.gmra.mxu0 %v4214
      %v5318 = vpop.f32.mrf.mxu0
      %v5319 = vadd.f32 %v4303, %v5318
      %v5320 = vpop.f32.mrf.mxu0
      %v5321 = vadd.f32 %v4303, %v5320
      %5322 = vmatmul.bf16.gmra.mxu0 %v4216
      %v5323 = vpop.f32.mrf.mxu0
      %v5324 = vadd.f32 %v4303, %v5323
      %v5325 = vpop.f32.mrf.mxu0
      %v5326 = vadd.f32 %v4303, %v5325
      %5327 = vmatmul.bf16.gmra.mxu0 %v4218
      %v5328 = vpop.f32.mrf.mxu0
      %v5329 = vadd.f32 %v4303, %v5328
      %v5330 = vpop.f32.mrf.mxu0
      %v5331 = vadd.f32 %v4303, %v5330
      %5332 = vmatmul.bf16.gmra.mxu0 %v4220
      %v5333 = vpop.f32.mrf.mxu0
      %v5334 = vadd.f32 %v4303, %v5333
      %v5335 = vpop.f32.mrf.mxu0
      %v5336 = vadd.f32 %v4303, %v5335
      %5337 = vmatmul.bf16.gmra.mxu0 %v4222
      %v5338 = vpop.f32.mrf.mxu0
      %v5339 = vadd.f32 %v4303, %v5338
      %v5340 = vpop.f32.mrf.mxu0
      %v5341 = vadd.f32 %v4303, %v5340
      %5342 = vmatmul.bf16.gmra.mxu0 %v4224
      %v5343 = vpop.f32.mrf.mxu0
      %v5344 = vadd.f32 %v4303, %v5343
      %v5345 = vpop.f32.mrf.mxu0
      %v5346 = vadd.f32 %v4303, %v5345
      %5347 = vmatmul.bf16.gmra.mxu0 %v4226
      %v5348 = vpop.f32.mrf.mxu0
      %v5349 = vadd.f32 %v4303, %v5348
      %v5350 = vpop.f32.mrf.mxu0
      %v5351 = vadd.f32 %v4303, %v5350
      %5352 = vmatmul.bf16.gmra.mxu0 %v4228
      %v5353 = vpop.f32.mrf.mxu0
      %v5354 = vadd.f32 %v4303, %v5353
      %v5355 = vpop.f32.mrf.mxu0
      %v5356 = vadd.f32 %v4303, %v5355
      %5357 = vmatmul.bf16.gmra.mxu0 %v4230
      %v5358 = vpop.f32.mrf.mxu0
      %v5359 = vadd.f32 %v4303, %v5358
      %v5360 = vpop.f32.mrf.mxu0
      %v5361 = vadd.f32 %v4303, %v5360
      %5362 = vmatmul.bf16.gmra.mxu0 %v4232
      %v5363 = vpop.f32.mrf.mxu0
      %v5364 = vadd.f32 %v4303, %v5363
      %v5365 = vpop.f32.mrf.mxu0
      %v5366 = vadd.f32 %v4303, %v5365
      %5367 = vmatmul.bf16.gmra.mxu0 %v4234
      %v5368 = vpop.f32.mrf.mxu0
      %v5369 = vadd.f32 %v4303, %v5368
      %v5370 = vpop.f32.mrf.mxu0
      %v5371 = vadd.f32 %v4303, %v5370
      %5372 = vmatmul.bf16.gmra.mxu0 %v4236
      %v5373 = vpop.f32.mrf.mxu0
      %v5374 = vadd.f32 %v4303, %v5373
      %v5375 = vpop.f32.mrf.mxu0
      %v5376 = vadd.f32 %v4303, %v5375
      %5377 = vmatmul.bf16.gmra.mxu0 %v4238
      %v5378 = vpop.f32.mrf.mxu0
      %v5379 = vadd.f32 %v4303, %v5378
      %v5380 = vpop.f32.mrf.mxu0
      %v5381 = vadd.f32 %v4303, %v5380
      %5382 = vmatmul.bf16.gmra.mxu0 %v4240
      %v5383 = vpop.f32.mrf.mxu0
      %v5384 = vadd.f32 %v4303, %v5383
      %v5385 = vpop.f32.mrf.mxu0
      %v5386 = vadd.f32 %v4303, %v5385
      %5387 = vmatmul.bf16.gmra.mxu0 %v4242
      %v5388 = vpop.f32.mrf.mxu0
      %v5389 = vadd.f32 %v4303, %v5388
      %v5390 = vpop.f32.mrf.mxu0
      %v5391 = vadd.f32 %v4303, %v5390
      %5392 = vmatmul.bf16.gmra.mxu0 %v4244
      %v5393 = vpop.f32.mrf.mxu0
      %v5394 = vadd.f32 %v4303, %v5393
      %v5395 = vpop.f32.mrf.mxu0
      %v5396 = vadd.f32 %v4303, %v5395
      %5397 = vmatmul.bf16.gmra.mxu0 %v4246
      %v5398 = vpop.f32.mrf.mxu0
      %v5399 = vadd.f32 %v4303, %v5398
      %v5400 = vpop.f32.mrf.mxu0
      %v5401 = vadd.f32 %v4303, %v5400
      %5402 = vmatmul.bf16.gmra.mxu0 %v4248
      %v5403 = vpop.f32.mrf.mxu0
      %v5404 = vadd.f32 %v4303, %v5403
      %v5405 = vpop.f32.mrf.mxu0
      %v5406 = vadd.f32 %v4303, %v5405
      %5407 = vmatmul.bf16.gmra.mxu0 %v4250
      %v5408 = vpop.f32.mrf.mxu0
      %v5409 = vadd.f32 %v4303, %v5408
      %v5410 = vpop.f32.mrf.mxu0
      %v5411 = vadd.f32 %v4303, %v5410
      %5412 = vmatmul.bf16.gmra.mxu0 %v4252
      %v5413 = vpop.f32.mrf.mxu0
      %v5414 = vadd.f32 %v4303, %v5413
      %v5415 = vpop.f32.mrf.mxu0
      %v5416 = vadd.f32 %v4303, %v5415
      %5417 = vmatmul.bf16.gmra.mxu0 %v4254
      %v5418 = vpop.f32.mrf.mxu0
      %v5419 = vadd.f32 %v4303, %v5418
      %v5420 = vpop.f32.mrf.mxu0
      %v5421 = vadd.f32 %v4303, %v5420
      %5422 = vmatmul.bf16.gmra.mxu0 %v4256
      %v5423 = vpop.f32.mrf.mxu0
      %v5424 = vadd.f32 %v4303, %v5423
      %v5425 = vpop.f32.mrf.mxu0
      %v5426 = vadd.f32 %v4303, %v5425
      %5427 = vmatmul.bf16.gmra.mxu0 %v4258
      %v5428 = vpop.f32.mrf.mxu0
      %v5429 = vadd.f32 %v4303, %v5428
      %v5430 = vpop.f32.mrf.mxu0
      %v5431 = vadd.f32 %v4303, %v5430
      %5432 = vmatmul.bf16.gmra.mxu0 %v4260
      %v5433 = vpop.f32.mrf.mxu0
      %v5434 = vadd.f32 %v4303, %v5433
      %v5435 = vpop.f32.mrf.mxu0
      %v5436 = vadd.f32 %v4303, %v5435
      %5437 = vmatmul.bf16.gmra.mxu0 %v4262
      %v5438 = vpop.f32.mrf.mxu0
      %v5439 = vadd.f32 %v4303, %v5438
      %v5440 = vpop.f32.mrf.mxu0
      %v5441 = vadd.f32 %v4303, %v5440
      %5442 = vmatmul.bf16.gmra.mxu0 %v4264
      %v5443 = vpop.f32.mrf.mxu0
      %v5444 = vadd.f32 %v4303, %v5443
      %v5445 = vpop.f32.mrf.mxu0
      %v5446 = vadd.f32 %v4303, %v5445
      %5447 = vmatmul.bf16.gmra.mxu0 %v4266
      %v5448 = vpop.f32.mrf.mxu0
      %v5449 = vadd.f32 %v4303, %v5448
      %v5450 = vpop.f32.mrf.mxu0
      %v5451 = vadd.f32 %v4303, %v5450
      %5452 = vdwg.mxu0
      %5453 = vmatpush.bf16.msra.mxu0 %v4433
      %5454 = vmatpush.bf16.msra.mxu0 %v4431
      %5455 = vmatpush.bf16.msra.mxu0 %v4429
      %5456 = vmatpush.bf16.msra.mxu0 %v4427
      %5457 = vmatpush.bf16.msra.mxu0 %v4425
      %5458 = vmatpush.bf16.msra.mxu0 %v4423
      %5459 = vmatpush.bf16.msra.mxu0 %v4421
      %5460 = vmatpush.bf16.msra.mxu0 %v4419
      %5461 = vmatmul.bf16.gmra.mxu0 %v4141
      %v5462 = vpop.f32.mrf.mxu0
      %v5463 = vadd.f32 %v5134, %v5462
      %v5464 = vpop.f32.mrf.mxu0
      %v5465 = vadd.f32 %v5136, %v5464
      %5466 = vmatmul.bf16.gmra.mxu0 %v4143
      %v5467 = vpop.f32.mrf.mxu0
      %v5468 = vadd.f32 %v5139, %v5467
      %v5469 = vpop.f32.mrf.mxu0
      %v5470 = vadd.f32 %v5141, %v5469
      %5471 = vmatmul.bf16.gmra.mxu0 %v4145
      %v5472 = vpop.f32.mrf.mxu0
      %v5473 = vadd.f32 %v5144, %v5472
      %v5474 = vpop.f32.mrf.mxu0
      %v5475 = vadd.f32 %v5146, %v5474
      %5476 = vmatmul.bf16.gmra.mxu0 %v4147
      %v5477 = vpop.f32.mrf.mxu0
      %v5478 = vadd.f32 %v5149, %v5477
      %v5479 = vpop.f32.mrf.mxu0
      %v5480 = vadd.f32 %v5151, %v5479
      %5481 = vmatmul.bf16.gmra.mxu0 %v4149
      %v5482 = vpop.f32.mrf.mxu0
      %v5483 = vadd.f32 %v5154, %v5482
      %v5484 = vpop.f32.mrf.mxu0
      %v5485 = vadd.f32 %v5156, %v5484
      %5486 = vmatmul.bf16.gmra.mxu0 %v4151
      %v5487 = vpop.f32.mrf.mxu0
      %v5488 = vadd.f32 %v5159, %v5487
      %v5489 = vpop.f32.mrf.mxu0
      %v5490 = vadd.f32 %v5161, %v5489
      %5491 = vmatmul.bf16.gmra.mxu0 %v4153
      %v5492 = vpop.f32.mrf.mxu0
      %v5493 = vadd.f32 %v5164, %v5492
      %v5494 = vpop.f32.mrf.mxu0
      %v5495 = vadd.f32 %v5166, %v5494
      %5496 = vmatmul.bf16.gmra.mxu0 %v4155
      %v5497 = vpop.f32.mrf.mxu0
      %v5498 = vadd.f32 %v5169, %v5497
      %v5499 = vpop.f32.mrf.mxu0
      %v5500 = vadd.f32 %v5171, %v5499
      %5501 = vmatmul.bf16.gmra.mxu0 %v4157
      %v5502 = vpop.f32.mrf.mxu0
      %v5503 = vadd.f32 %v5174, %v5502
      %v5504 = vpop.f32.mrf.mxu0
      %v5505 = vadd.f32 %v5176, %v5504
      %5506 = vmatmul.bf16.gmra.mxu0 %v4159
      %v5507 = vpop.f32.mrf.mxu0
      %v5508 = vadd.f32 %v5179, %v5507
      %v5509 = vpop.f32.mrf.mxu0
      %v5510 = vadd.f32 %v5181, %v5509
      %5511 = vmatmul.bf16.gmra.mxu0 %v4161
      %v5512 = vpop.f32.mrf.mxu0
      %v5513 = vadd.f32 %v5184, %v5512
      %v5514 = vpop.f32.mrf.mxu0
      %v5515 = vadd.f32 %v5186, %v5514
      %5516 = vmatmul.bf16.gmra.mxu0 %v4163
      %v5517 = vpop.f32.mrf.mxu0
      %v5518 = vadd.f32 %v5189, %v5517
      %v5519 = vpop.f32.mrf.mxu0
      %v5520 = vadd.f32 %v5191, %v5519
      %5521 = vmatmul.bf16.gmra.mxu0 %v4165
      %v5522 = vpop.f32.mrf.mxu0
      %v5523 = vadd.f32 %v5194, %v5522
      %v5524 = vpop.f32.mrf.mxu0
      %v5525 = vadd.f32 %v5196, %v5524
      %5526 = vmatmul.bf16.gmra.mxu0 %v4167
      %v5527 = vpop.f32.mrf.mxu0
      %v5528 = vadd.f32 %v5199, %v5527
      %v5529 = vpop.f32.mrf.mxu0
      %v5530 = vadd.f32 %v5201, %v5529
      %5531 = vmatmul.bf16.gmra.mxu0 %v4169
      %v5532 = vpop.f32.mrf.mxu0
      %v5533 = vadd.f32 %v5204, %v5532
      %v5534 = vpop.f32.mrf.mxu0
      %v5535 = vadd.f32 %v5206, %v5534
      %5536 = vmatmul.bf16.gmra.mxu0 %v4171
      %v5537 = vpop.f32.mrf.mxu0
      %v5538 = vadd.f32 %v5209, %v5537
      %v5539 = vpop.f32.mrf.mxu0
      %v5540 = vadd.f32 %v5211, %v5539
      %5541 = vmatmul.bf16.gmra.mxu0 %v4173
      %v5542 = vpop.f32.mrf.mxu0
      %v5543 = vadd.f32 %v5214, %v5542
      %v5544 = vpop.f32.mrf.mxu0
      %v5545 = vadd.f32 %v5216, %v5544
      %5546 = vmatmul.bf16.gmra.mxu0 %v4175
      %v5547 = vpop.f32.mrf.mxu0
      %v5548 = vadd.f32 %v5219, %v5547
      %v5549 = vpop.f32.mrf.mxu0
      %v5550 = vadd.f32 %v5221, %v5549
      %5551 = vmatmul.bf16.gmra.mxu0 %v4177
      %v5552 = vpop.f32.mrf.mxu0
      %v5553 = vadd.f32 %v5224, %v5552
      %v5554 = vpop.f32.mrf.mxu0
      %v5555 = vadd.f32 %v5226, %v5554
      %5556 = vmatmul.bf16.gmra.mxu0 %v4179
      %v5557 = vpop.f32.mrf.mxu0
      %v5558 = vadd.f32 %v5229, %v5557
      %v5559 = vpop.f32.mrf.mxu0
      %v5560 = vadd.f32 %v5231, %v5559
      %5561 = vmatmul.bf16.gmra.mxu0 %v4181
      %v5562 = vpop.f32.mrf.mxu0
      %v5563 = vadd.f32 %v5234, %v5562
      %v5564 = vpop.f32.mrf.mxu0
      %v5565 = vadd.f32 %v5236, %v5564
      %5566 = vmatmul.bf16.gmra.mxu0 %v4183
      %v5567 = vpop.f32.mrf.mxu0
      %v5568 = vadd.f32 %v5239, %v5567
      %v5569 = vpop.f32.mrf.mxu0
      %v5570 = vadd.f32 %v5241, %v5569
      %5571 = vmatmul.bf16.gmra.mxu0 %v4185
      %v5572 = vpop.f32.mrf.mxu0
      %v5573 = vadd.f32 %v5244, %v5572
      %v5574 = vpop.f32.mrf.mxu0
      %v5575 = vadd.f32 %v5246, %v5574
      %5576 = vmatmul.bf16.gmra.mxu0 %v4187
      %v5577 = vpop.f32.mrf.mxu0
      %v5578 = vadd.f32 %v5249, %v5577
      %v5579 = vpop.f32.mrf.mxu0
      %v5580 = vadd.f32 %v5251, %v5579
      %5581 = vmatmul.bf16.gmra.mxu0 %v4189
      %v5582 = vpop.f32.mrf.mxu0
      %v5583 = vadd.f32 %v5254, %v5582
      %v5584 = vpop.f32.mrf.mxu0
      %v5585 = vadd.f32 %v5256, %v5584
      %5586 = vmatmul.bf16.gmra.mxu0 %v4191
      %v5587 = vpop.f32.mrf.mxu0
      %v5588 = vadd.f32 %v5259, %v5587
      %v5589 = vpop.f32.mrf.mxu0
      %v5590 = vadd.f32 %v5261, %v5589
      %5591 = vmatmul.bf16.gmra.mxu0 %v4193
      %v5592 = vpop.f32.mrf.mxu0
      %v5593 = vadd.f32 %v5264, %v5592
      %v5594 = vpop.f32.mrf.mxu0
      %v5595 = vadd.f32 %v5266, %v5594
      %5596 = vmatmul.bf16.gmra.mxu0 %v4195
      %v5597 = vpop.f32.mrf.mxu0
      %v5598 = vadd.f32 %v5269, %v5597
      %v5599 = vpop.f32.mrf.mxu0
      %v5600 = vadd.f32 %v5271, %v5599
      %5601 = vmatmul.bf16.gmra.mxu0 %v4197
      %v5602 = vpop.f32.mrf.mxu0
      %v5603 = vadd.f32 %v5274, %v5602
      %v5604 = vpop.f32.mrf.mxu0
      %v5605 = vadd.f32 %v5276, %v5604
      %5606 = vmatmul.bf16.gmra.mxu0 %v4199
      %v5607 = vpop.f32.mrf.mxu0
      %v5608 = vadd.f32 %v5279, %v5607
      %v5609 = vpop.f32.mrf.mxu0
      %v5610 = vadd.f32 %v5281, %v5609
      %5611 = vmatmul.bf16.gmra.mxu0 %v4201
      %v5612 = vpop.f32.mrf.mxu0
      %v5613 = vadd.f32 %v5284, %v5612
      %v5614 = vpop.f32.mrf.mxu0
      %v5615 = vadd.f32 %v5286, %v5614
      %5616 = vmatmul.bf16.gmra.mxu0 %v4203
      %v5617 = vpop.f32.mrf.mxu0
      %v5618 = vadd.f32 %v5289, %v5617
      %v5619 = vpop.f32.mrf.mxu0
      %v5620 = vadd.f32 %v5291, %v5619
      %5621 = vmatmul.bf16.gmra.mxu0 %v4205
      %v5622 = vpop.f32.mrf.mxu0
      %v5623 = vadd.f32 %v5294, %v5622
      %v5624 = vpop.f32.mrf.mxu0
      %v5625 = vadd.f32 %v5296, %v5624
      %5626 = vmatmul.bf16.gmra.mxu0 %v4207
      %v5627 = vpop.f32.mrf.mxu0
      %v5628 = vadd.f32 %v5299, %v5627
      %v5629 = vpop.f32.mrf.mxu0
      %v5630 = vadd.f32 %v5301, %v5629
      %5631 = vmatmul.bf16.gmra.mxu0 %v4209
      %v5632 = vpop.f32.mrf.mxu0
      %v5633 = vadd.f32 %v5304, %v5632
      %v5634 = vpop.f32.mrf.mxu0
      %v5635 = vadd.f32 %v5306, %v5634
      %5636 = vmatmul.bf16.gmra.mxu0 %v4211
      %v5637 = vpop.f32.mrf.mxu0
      %v5638 = vadd.f32 %v5309, %v5637
      %v5639 = vpop.f32.mrf.mxu0
      %v5640 = vadd.f32 %v5311, %v5639
      %5641 = vmatmul.bf16.gmra.mxu0 %v4213
      %v5642 = vpop.f32.mrf.mxu0
      %v5643 = vadd.f32 %v5314, %v5642
      %v5644 = vpop.f32.mrf.mxu0
      %v5645 = vadd.f32 %v5316, %v5644
      %5646 = vmatmul.bf16.gmra.mxu0 %v4215
      %v5647 = vpop.f32.mrf.mxu0
      %v5648 = vadd.f32 %v5319, %v5647
      %v5649 = vpop.f32.mrf.mxu0
      %v5650 = vadd.f32 %v5321, %v5649
      %5651 = vmatmul.bf16.gmra.mxu0 %v4217
      %v5652 = vpop.f32.mrf.mxu0
      %v5653 = vadd.f32 %v5324, %v5652
      %v5654 = vpop.f32.mrf.mxu0
      %v5655 = vadd.f32 %v5326, %v5654
      %5656 = vmatmul.bf16.gmra.mxu0 %v4219
      %v5657 = vpop.f32.mrf.mxu0
      %v5658 = vadd.f32 %v5329, %v5657
      %v5659 = vpop.f32.mrf.mxu0
      %v5660 = vadd.f32 %v5331, %v5659
      %5661 = vmatmul.bf16.gmra.mxu0 %v4221
      %v5662 = vpop.f32.mrf.mxu0
      %v5663 = vadd.f32 %v5334, %v5662
      %v5664 = vpop.f32.mrf.mxu0
      %v5665 = vadd.f32 %v5336, %v5664
      %5666 = vmatmul.bf16.gmra.mxu0 %v4223
      %v5667 = vpop.f32.mrf.mxu0
      %v5668 = vadd.f32 %v5339, %v5667
      %v5669 = vpop.f32.mrf.mxu0
      %v5670 = vadd.f32 %v5341, %v5669
      %5671 = vmatmul.bf16.gmra.mxu0 %v4225
      %v5672 = vpop.f32.mrf.mxu0
      %v5673 = vadd.f32 %v5344, %v5672
      %v5674 = vpop.f32.mrf.mxu0
      %v5675 = vadd.f32 %v5346, %v5674
      %5676 = vmatmul.bf16.gmra.mxu0 %v4227
      %v5677 = vpop.f32.mrf.mxu0
      %v5678 = vadd.f32 %v5349, %v5677
      %v5679 = vpop.f32.mrf.mxu0
      %v5680 = vadd.f32 %v5351, %v5679
      %5681 = vmatmul.bf16.gmra.mxu0 %v4229
      %v5682 = vpop.f32.mrf.mxu0
      %v5683 = vadd.f32 %v5354, %v5682
      %v5684 = vpop.f32.mrf.mxu0
      %v5685 = vadd.f32 %v5356, %v5684
      %5686 = vmatmul.bf16.gmra.mxu0 %v4231
      %v5687 = vpop.f32.mrf.mxu0
      %v5688 = vadd.f32 %v5359, %v5687
      %v5689 = vpop.f32.mrf.mxu0
      %v5690 = vadd.f32 %v5361, %v5689
      %5691 = vmatmul.bf16.gmra.mxu0 %v4233
      %v5692 = vpop.f32.mrf.mxu0
      %v5693 = vadd.f32 %v5364, %v5692
      %v5694 = vpop.f32.mrf.mxu0
      %v5695 = vadd.f32 %v5366, %v5694
      %5696 = vmatmul.bf16.gmra.mxu0 %v4235
      %v5697 = vpop.f32.mrf.mxu0
      %v5698 = vadd.f32 %v5369, %v5697
      %v5699 = vpop.f32.mrf.mxu0
      %v5700 = vadd.f32 %v5371, %v5699
      %5701 = vmatmul.bf16.gmra.mxu0 %v4237
      %v5702 = vpop.f32.mrf.mxu0
      %v5703 = vadd.f32 %v5374, %v5702
      %v5704 = vpop.f32.mrf.mxu0
      %v5705 = vadd.f32 %v5376, %v5704
      %5706 = vmatmul.bf16.gmra.mxu0 %v4239
      %v5707 = vpop.f32.mrf.mxu0
      %v5708 = vadd.f32 %v5379, %v5707
      %v5709 = vpop.f32.mrf.mxu0
      %v5710 = vadd.f32 %v5381, %v5709
      %5711 = vmatmul.bf16.gmra.mxu0 %v4241
      %v5712 = vpop.f32.mrf.mxu0
      %v5713 = vadd.f32 %v5384, %v5712
      %v5714 = vpop.f32.mrf.mxu0
      %v5715 = vadd.f32 %v5386, %v5714
      %5716 = vmatmul.bf16.gmra.mxu0 %v4243
      %v5717 = vpop.f32.mrf.mxu0
      %v5718 = vadd.f32 %v5389, %v5717
      %v5719 = vpop.f32.mrf.mxu0
      %v5720 = vadd.f32 %v5391, %v5719
      %5721 = vmatmul.bf16.gmra.mxu0 %v4245
      %v5722 = vpop.f32.mrf.mxu0
      %v5723 = vadd.f32 %v5394, %v5722
      %v5724 = vpop.f32.mrf.mxu0
      %v5725 = vadd.f32 %v5396, %v5724
      %5726 = vmatmul.bf16.gmra.mxu0 %v4247
      %v5727 = vpop.f32.mrf.mxu0
      %v5728 = vadd.f32 %v5399, %v5727
      %v5729 = vpop.f32.mrf.mxu0
      %v5730 = vadd.f32 %v5401, %v5729
      %5731 = vmatmul.bf16.gmra.mxu0 %v4249
      %v5732 = vpop.f32.mrf.mxu0
      %v5733 = vadd.f32 %v5404, %v5732
      %v5734 = vpop.f32.mrf.mxu0
      %v5735 = vadd.f32 %v5406, %v5734
      %5736 = vmatmul.bf16.gmra.mxu0 %v4251
      %v5737 = vpop.f32.mrf.mxu0
      %v5738 = vadd.f32 %v5409, %v5737
      %v5739 = vpop.f32.mrf.mxu0
      %v5740 = vadd.f32 %v5411, %v5739
      %5741 = vmatmul.bf16.gmra.mxu0 %v4253
      %v5742 = vpop.f32.mrf.mxu0
      %v5743 = vadd.f32 %v5414, %v5742
      %v5744 = vpop.f32.mrf.mxu0
      %v5745 = vadd.f32 %v5416, %v5744
      %5746 = vmatmul.bf16.gmra.mxu0 %v4255
      %v5747 = vpop.f32.mrf.mxu0
      %v5748 = vadd.f32 %v5419, %v5747
      %v5749 = vpop.f32.mrf.mxu0
      %v5750 = vadd.f32 %v5421, %v5749
      %5751 = vmatmul.bf16.gmra.mxu0 %v4257
      %v5752 = vpop.f32.mrf.mxu0
      %v5753 = vadd.f32 %v5424, %v5752
      %v5754 = vpop.f32.mrf.mxu0
      %v5755 = vadd.f32 %v5426, %v5754
      %5756 = vmatmul.bf16.gmra.mxu0 %v4259
      %v5757 = vpop.f32.mrf.mxu0
      %v5758 = vadd.f32 %v5429, %v5757
      %v5759 = vpop.f32.mrf.mxu0
      %v5760 = vadd.f32 %v5431, %v5759
      %5761 = vmatmul.bf16.gmra.mxu0 %v4261
      %v5762 = vpop.f32.mrf.mxu0
      %v5763 = vadd.f32 %v5434, %v5762
      %v5764 = vpop.f32.mrf.mxu0
      %v5765 = vadd.f32 %v5436, %v5764
      %5766 = vmatmul.bf16.gmra.mxu0 %v4263
      %v5767 = vpop.f32.mrf.mxu0
      %v5768 = vadd.f32 %v5439, %v5767
      %v5769 = vpop.f32.mrf.mxu0
      %v5770 = vadd.f32 %v5441, %v5769
      %5771 = vmatmul.bf16.gmra.mxu0 %v4265
      %v5772 = vpop.f32.mrf.mxu0
      %v5773 = vadd.f32 %v5444, %v5772
      %v5774 = vpop.f32.mrf.mxu0
      %v5775 = vadd.f32 %v5446, %v5774
      %5776 = vmatmul.bf16.gmra.mxu0 %v4267
      %v5777 = vpop.f32.mrf.mxu0
      %v5778 = vadd.f32 %v5449, %v5777
      %v5779 = vpop.f32.mrf.mxu0
      %v5780 = vadd.f32 %v5451, %v5779
      %5781 = vdwg.mxu0
      %v5782 = vmax.f32 %v4805, 0.0
      %v5783 = vmax.f32 %v5463, 0.0
      %v5784 = vmax.f32 %v4807, 0.0
      %v5785 = vmax.f32 %v5465, 0.0
      %v5786 = vmax.f32 %v4810, 0.0
      %v5787 = vmax.f32 %v5468, 0.0
      %v5788 = vmax.f32 %v4812, 0.0
      %v5789 = vmax.f32 %v5470, 0.0
      %v5790 = vmax.f32 %v4815, 0.0
      %v5791 = vmax.f32 %v5473, 0.0
      %v5792 = vmax.f32 %v4817, 0.0
      %v5793 = vmax.f32 %v5475, 0.0
      %v5794 = vmax.f32 %v4820, 0.0
      %v5795 = vmax.f32 %v5478, 0.0
      %v5796 = vmax.f32 %v4822, 0.0
      %v5797 = vmax.f32 %v5480, 0.0
      %v5798 = vmax.f32 %v4825, 0.0
      %v5799 = vmax.f32 %v5483, 0.0
      %v5800 = vmax.f32 %v4827, 0.0
      %v5801 = vmax.f32 %v5485, 0.0
      %v5802 = vmax.f32 %v4830, 0.0
      %v5803 = vmax.f32 %v5488, 0.0
      %v5804 = vmax.f32 %v4832, 0.0
      %v5805 = vmax.f32 %v5490, 0.0
      %v5806 = vmax.f32 %v4835, 0.0
      %v5807 = vmax.f32 %v5493, 0.0
      %v5808 = vmax.f32 %v4837, 0.0
      %v5809 = vmax.f32 %v5495, 0.0
      %v5810 = vmax.f32 %v4840, 0.0
      %v5811 = vmax.f32 %v5498, 0.0
      %v5812 = vmax.f32 %v4842, 0.0
      %v5813 = vmax.f32 %v5500, 0.0
      %v5814 = vmax.f32 %v4845, 0.0
      %v5815 = vmax.f32 %v5503, 0.0
      %v5816 = vmax.f32 %v4847, 0.0
      %v5817 = vmax.f32 %v5505, 0.0
      %v5818 = vmax.f32 %v4850, 0.0
      %v5819 = vmax.f32 %v5508, 0.0
      %v5820 = vmax.f32 %v4852, 0.0
      %v5821 = vmax.f32 %v5510, 0.0
      %v5822 = vmax.f32 %v4855, 0.0
      %v5823 = vmax.f32 %v5513, 0.0
      %v5824 = vmax.f32 %v4857, 0.0
      %v5825 = vmax.f32 %v5515, 0.0
      %v5826 = vmax.f32 %v4860, 0.0
      %v5827 = vmax.f32 %v5518, 0.0
      %v5828 = vmax.f32 %v4862, 0.0
      %v5829 = vmax.f32 %v5520, 0.0
      %v5830 = vmax.f32 %v4865, 0.0
      %v5831 = vmax.f32 %v5523, 0.0
      %v5832 = vmax.f32 %v4867, 0.0
      %v5833 = vmax.f32 %v5525, 0.0
      %v5834 = vmax.f32 %v4870, 0.0
      %v5835 = vmax.f32 %v5528, 0.0
      %v5836 = vmax.f32 %v4872, 0.0
      %v5837 = vmax.f32 %v5530, 0.0
      %v5838 = vmax.f32 %v4875, 0.0
      %v5839 = vmax.f32 %v5533, 0.0
      %v5840 = vmax.f32 %v4877, 0.0
      %v5841 = vmax.f32 %v5535, 0.0
      %v5842 = vmax.f32 %v4880, 0.0
      %v5843 = vmax.f32 %v5538, 0.0
      %v5844 = vmax.f32 %v4882, 0.0
      %v5845 = vmax.f32 %v5540, 0.0
      %v5846 = vmax.f32 %v4885, 0.0
      %v5847 = vmax.f32 %v5543, 0.0
      %v5848 = vmax.f32 %v4887, 0.0
      %v5849 = vmax.f32 %v5545, 0.0
      %v5850 = vmax.f32 %v4890, 0.0
      %v5851 = vmax.f32 %v5548, 0.0
      %v5852 = vmax.f32 %v4892, 0.0
      %v5853 = vmax.f32 %v5550, 0.0
      %v5854 = vmax.f32 %v4895, 0.0
      %v5855 = vmax.f32 %v5553, 0.0
      %v5856 = vmax.f32 %v4897, 0.0
      %v5857 = vmax.f32 %v5555, 0.0
      %v5858 = vmax.f32 %v4900, 0.0
      %v5859 = vmax.f32 %v5558, 0.0
      %v5860 = vmax.f32 %v4902, 0.0
      %v5861 = vmax.f32 %v5560, 0.0
      %v5862 = vmax.f32 %v4905, 0.0
      %v5863 = vmax.f32 %v5563, 0.0
      %v5864 = vmax.f32 %v4907, 0.0
      %v5865 = vmax.f32 %v5565, 0.0
      %v5866 = vmax.f32 %v4910, 0.0
      %v5867 = vmax.f32 %v5568, 0.0
      %v5868 = vmax.f32 %v4912, 0.0
      %v5869 = vmax.f32 %v5570, 0.0
      %v5870 = vmax.f32 %v4915, 0.0
      %v5871 = vmax.f32 %v5573, 0.0
      %v5872 = vmax.f32 %v4917, 0.0
      %v5873 = vmax.f32 %v5575, 0.0
      %v5874 = vmax.f32 %v4920, 0.0
      %v5875 = vmax.f32 %v5578, 0.0
      %v5876 = vmax.f32 %v4922, 0.0
      %v5877 = vmax.f32 %v5580, 0.0
      %v5878 = vmax.f32 %v4925, 0.0
      %v5879 = vmax.f32 %v5583, 0.0
      %v5880 = vmax.f32 %v4927, 0.0
      %v5881 = vmax.f32 %v5585, 0.0
      %v5882 = vmax.f32 %v4930, 0.0
      %v5883 = vmax.f32 %v5588, 0.0
      %v5884 = vmax.f32 %v4932, 0.0
      %v5885 = vmax.f32 %v5590, 0.0
      %v5886 = vmax.f32 %v4935, 0.0
      %v5887 = vmax.f32 %v5593, 0.0
      %v5888 = vmax.f32 %v4937, 0.0
      %v5889 = vmax.f32 %v5595, 0.0
      %v5890 = vmax.f32 %v4940, 0.0
      %v5891 = vmax.f32 %v5598, 0.0
      %v5892 = vmax.f32 %v4942, 0.0
      %v5893 = vmax.f32 %v5600, 0.0
      %v5894 = vmax.f32 %v4945, 0.0
      %v5895 = vmax.f32 %v5603, 0.0
      %v5896 = vmax.f32 %v4947, 0.0
      %v5897 = vmax.f32 %v5605, 0.0
      %v5898 = vmax.f32 %v4950, 0.0
      %v5899 = vmax.f32 %v5608, 0.0
      %v5900 = vmax.f32 %v4952, 0.0
      %v5901 = vmax.f32 %v5610, 0.0
      %v5902 = vmax.f32 %v4955, 0.0
      %v5903 = vmax.f32 %v5613, 0.0
      %v5904 = vmax.f32 %v4957, 0.0
      %v5905 = vmax.f32 %v5615, 0.0
      %v5906 = vmax.f32 %v4960, 0.0
      %v5907 = vmax.f32 %v5618, 0.0
      %v5908 = vmax.f32 %v4962, 0.0
      %v5909 = vmax.f32 %v5620, 0.0
      %v5910 = vmax.f32 %v4965, 0.0
      %v5911 = vmax.f32 %v5623, 0.0
      %v5912 = vmax.f32 %v4967, 0.0
      %v5913 = vmax.f32 %v5625, 0.0
      %v5914 = vmax.f32 %v4970, 0.0
      %v5915 = vmax.f32 %v5628, 0.0
      %v5916 = vmax.f32 %v4972, 0.0
      %v5917 = vmax.f32 %v5630, 0.0
      %v5918 = vmax.f32 %v4975, 0.0
      %v5919 = vmax.f32 %v5633, 0.0
      %v5920 = vmax.f32 %v4977, 0.0
      %v5921 = vmax.f32 %v5635, 0.0
      %v5922 = vmax.f32 %v4980, 0.0
      %v5923 = vmax.f32 %v5638, 0.0
      %v5924 = vmax.f32 %v4982, 0.0
      %v5925 = vmax.f32 %v5640, 0.0
      %v5926 = vmax.f32 %v4985, 0.0
      %v5927 = vmax.f32 %v5643, 0.0
      %v5928 = vmax.f32 %v4987, 0.0
      %v5929 = vmax.f32 %v5645, 0.0
      %v5930 = vmax.f32 %v4990, 0.0
      %v5931 = vmax.f32 %v5648, 0.0
      %v5932 = vmax.f32 %v4992, 0.0
      %v5933 = vmax.f32 %v5650, 0.0
      %v5934 = vmax.f32 %v4995, 0.0
      %v5935 = vmax.f32 %v5653, 0.0
      %v5936 = vmax.f32 %v4997, 0.0
      %v5937 = vmax.f32 %v5655, 0.0
      %v5938 = vmax.f32 %v5000, 0.0
      %v5939 = vmax.f32 %v5658, 0.0
      %v5940 = vmax.f32 %v5002, 0.0
      %v5941 = vmax.f32 %v5660, 0.0
      %v5942 = vmax.f32 %v5005, 0.0
      %v5943 = vmax.f32 %v5663, 0.0
      %v5944 = vmax.f32 %v5007, 0.0
      %v5945 = vmax.f32 %v5665, 0.0
      %v5946 = vmax.f32 %v5010, 0.0
      %v5947 = vmax.f32 %v5668, 0.0
      %v5948 = vmax.f32 %v5012, 0.0
      %v5949 = vmax.f32 %v5670, 0.0
      %v5950 = vmax.f32 %v5015, 0.0
      %v5951 = vmax.f32 %v5673, 0.0
      %v5952 = vmax.f32 %v5017, 0.0
      %v5953 = vmax.f32 %v5675, 0.0
      %v5954 = vmax.f32 %v5020, 0.0
      %v5955 = vmax.f32 %v5678, 0.0
      %v5956 = vmax.f32 %v5022, 0.0
      %v5957 = vmax.f32 %v5680, 0.0
      %v5958 = vmax.f32 %v5025, 0.0
      %v5959 = vmax.f32 %v5683, 0.0
      %v5960 = vmax.f32 %v5027, 0.0
      %v5961 = vmax.f32 %v5685, 0.0
      %v5962 = vmax.f32 %v5030, 0.0
      %v5963 = vmax.f32 %v5688, 0.0
      %v5964 = vmax.f32 %v5032, 0.0
      %v5965 = vmax.f32 %v5690, 0.0
      %v5966 = vmax.f32 %v5035, 0.0
      %v5967 = vmax.f32 %v5693, 0.0
      %v5968 = vmax.f32 %v5037, 0.0
      %v5969 = vmax.f32 %v5695, 0.0
      %v5970 = vmax.f32 %v5040, 0.0
      %v5971 = vmax.f32 %v5698, 0.0
      %v5972 = vmax.f32 %v5042, 0.0
      %v5973 = vmax.f32 %v5700, 0.0
      %v5974 = vmax.f32 %v5045, 0.0
      %v5975 = vmax.f32 %v5703, 0.0
      %v5976 = vmax.f32 %v5047, 0.0
      %v5977 = vmax.f32 %v5705, 0.0
      %v5978 = vmax.f32 %v5050, 0.0
      %v5979 = vmax.f32 %v5708, 0.0
      %v5980 = vmax.f32 %v5052, 0.0
      %v5981 = vmax.f32 %v5710, 0.0
      %v5982 = vmax.f32 %v5055, 0.0
      %v5983 = vmax.f32 %v5713, 0.0
      %v5984 = vmax.f32 %v5057, 0.0
      %v5985 = vmax.f32 %v5715, 0.0
      %v5986 = vmax.f32 %v5060, 0.0
      %v5987 = vmax.f32 %v5718, 0.0
      %v5988 = vmax.f32 %v5062, 0.0
      %v5989 = vmax.f32 %v5720, 0.0
      %v5990 = vmax.f32 %v5065, 0.0
      %v5991 = vmax.f32 %v5723, 0.0
      %v5992 = vmax.f32 %v5067, 0.0
      %v5993 = vmax.f32 %v5725, 0.0
      %v5994 = vmax.f32 %v5070, 0.0
      %v5995 = vmax.f32 %v5728, 0.0
      %v5996 = vmax.f32 %v5072, 0.0
      %v5997 = vmax.f32 %v5730, 0.0
      %v5998 = vmax.f32 %v5075, 0.0
      %v5999 = vmax.f32 %v5733, 0.0
      %v6000 = vmax.f32 %v5077, 0.0
      %v6001 = vmax.f32 %v5735, 0.0
      %v6002 = vmax.f32 %v5080, 0.0
      %v6003 = vmax.f32 %v5738, 0.0
      %v6004 = vmax.f32 %v5082, 0.0
      %v6005 = vmax.f32 %v5740, 0.0
      %v6006 = vmax.f32 %v5085, 0.0
      %v6007 = vmax.f32 %v5743, 0.0
      %v6008 = vmax.f32 %v5087, 0.0
      %v6009 = vmax.f32 %v5745, 0.0
      %v6010 = vmax.f32 %v5090, 0.0
      %v6011 = vmax.f32 %v5748, 0.0
      %v6012 = vmax.f32 %v5092, 0.0
      %v6013 = vmax.f32 %v5750, 0.0
      %v6014 = vmax.f32 %v5095, 0.0
      %v6015 = vmax.f32 %v5753, 0.0
      %v6016 = vmax.f32 %v5097, 0.0
      %v6017 = vmax.f32 %v5755, 0.0
      %v6018 = vmax.f32 %v5100, 0.0
      %v6019 = vmax.f32 %v5758, 0.0
      %v6020 = vmax.f32 %v5102, 0.0
      %v6021 = vmax.f32 %v5760, 0.0
      %v6022 = vmax.f32 %v5105, 0.0
      %v6023 = vmax.f32 %v5763, 0.0
      %v6024 = vmax.f32 %v5107, 0.0
      %v6025 = vmax.f32 %v5765, 0.0
      %v6026 = vmax.f32 %v5110, 0.0
      %v6027 = vmax.f32 %v5768, 0.0
      %v6028 = vmax.f32 %v5112, 0.0
      %v6029 = vmax.f32 %v5770, 0.0
      %v6030 = vmax.f32 %v5115, 0.0
      %v6031 = vmax.f32 %v5773, 0.0
      %v6032 = vmax.f32 %v5117, 0.0
      %v6033 = vmax.f32 %v5775, 0.0
      %v6034 = vmax.f32 %v5120, 0.0
      %v6035 = vmax.f32 %v5778, 0.0
      %v6036 = vmax.f32 %v5122, 0.0
      %v6037 = vmax.f32 %v5780, 0.0
      %v6038 = vpack.c.bf16 %v5784, %v5782
      %v6039 = vpack.c.bf16 %v5785, %v5783
      %v6040 = vpack.c.bf16 %v5788, %v5786
      %v6041 = vpack.c.bf16 %v5789, %v5787
      %v6042 = vpack.c.bf16 %v5792, %v5790
      %v6043 = vpack.c.bf16 %v5793, %v5791
      %v6044 = vpack.c.bf16 %v5796, %v5794
      %v6045 = vpack.c.bf16 %v5797, %v5795
      %v6046 = vpack.c.bf16 %v5800, %v5798
      %v6047 = vpack.c.bf16 %v5801, %v5799
      %v6048 = vpack.c.bf16 %v5804, %v5802
      %v6049 = vpack.c.bf16 %v5805, %v5803
      %v6050 = vpack.c.bf16 %v5808, %v5806
      %v6051 = vpack.c.bf16 %v5809, %v5807
      %v6052 = vpack.c.bf16 %v5812, %v5810
      %v6053 = vpack.c.bf16 %v5813, %v5811
      %v6054 = vpack.c.bf16 %v5816, %v5814
      %v6055 = vpack.c.bf16 %v5817, %v5815
      %v6056 = vpack.c.bf16 %v5820, %v5818
      %v6057 = vpack.c.bf16 %v5821, %v5819
      %v6058 = vpack.c.bf16 %v5824, %v5822
      %v6059 = vpack.c.bf16 %v5825, %v5823
      %v6060 = vpack.c.bf16 %v5828, %v5826
      %v6061 = vpack.c.bf16 %v5829, %v5827
      %v6062 = vpack.c.bf16 %v5832, %v5830
      %v6063 = vpack.c.bf16 %v5833, %v5831
      %v6064 = vpack.c.bf16 %v5836, %v5834
      %v6065 = vpack.c.bf16 %v5837, %v5835
      %v6066 = vpack.c.bf16 %v5840, %v5838
      %v6067 = vpack.c.bf16 %v5841, %v5839
      %v6068 = vpack.c.bf16 %v5844, %v5842
      %v6069 = vpack.c.bf16 %v5845, %v5843
      %v6070 = vpack.c.bf16 %v5848, %v5846
      %v6071 = vpack.c.bf16 %v5849, %v5847
      %v6072 = vpack.c.bf16 %v5852, %v5850
      %v6073 = vpack.c.bf16 %v5853, %v5851
      %v6074 = vpack.c.bf16 %v5856, %v5854
      %v6075 = vpack.c.bf16 %v5857, %v5855
      %v6076 = vpack.c.bf16 %v5860, %v5858
      %v6077 = vpack.c.bf16 %v5861, %v5859
      %v6078 = vpack.c.bf16 %v5864, %v5862
      %v6079 = vpack.c.bf16 %v5865, %v5863
      %v6080 = vpack.c.bf16 %v5868, %v5866
      %v6081 = vpack.c.bf16 %v5869, %v5867
      %v6082 = vpack.c.bf16 %v5872, %v5870
      %v6083 = vpack.c.bf16 %v5873, %v5871
      %v6084 = vpack.c.bf16 %v5876, %v5874
      %v6085 = vpack.c.bf16 %v5877, %v5875
      %v6086 = vpack.c.bf16 %v5880, %v5878
      %v6087 = vpack.c.bf16 %v5881, %v5879
      %v6088 = vpack.c.bf16 %v5884, %v5882
      %v6089 = vpack.c.bf16 %v5885, %v5883
      %v6090 = vpack.c.bf16 %v5888, %v5886
      %v6091 = vpack.c.bf16 %v5889, %v5887
      %v6092 = vpack.c.bf16 %v5892, %v5890
      %v6093 = vpack.c.bf16 %v5893, %v5891
      %v6094 = vpack.c.bf16 %v5896, %v5894
      %v6095 = vpack.c.bf16 %v5897, %v5895
      %v6096 = vpack.c.bf16 %v5900, %v5898
      %v6097 = vpack.c.bf16 %v5901, %v5899
      %v6098 = vpack.c.bf16 %v5904, %v5902
      %v6099 = vpack.c.bf16 %v5905, %v5903
      %v6100 = vpack.c.bf16 %v5908, %v5906
      %v6101 = vpack.c.bf16 %v5909, %v5907
      %v6102 = vpack.c.bf16 %v5912, %v5910
      %v6103 = vpack.c.bf16 %v5913, %v5911
      %v6104 = vpack.c.bf16 %v5916, %v5914
      %v6105 = vpack.c.bf16 %v5917, %v5915
      %v6106 = vpack.c.bf16 %v5920, %v5918
      %v6107 = vpack.c.bf16 %v5921, %v5919
      %v6108 = vpack.c.bf16 %v5924, %v5922
      %v6109 = vpack.c.bf16 %v5925, %v5923
      %v6110 = vpack.c.bf16 %v5928, %v5926
      %v6111 = vpack.c.bf16 %v5929, %v5927
      %v6112 = vpack.c.bf16 %v5932, %v5930
      %v6113 = vpack.c.bf16 %v5933, %v5931
      %v6114 = vpack.c.bf16 %v5936, %v5934
      %v6115 = vpack.c.bf16 %v5937, %v5935
      %v6116 = vpack.c.bf16 %v5940, %v5938
      %v6117 = vpack.c.bf16 %v5941, %v5939
      %v6118 = vpack.c.bf16 %v5944, %v5942
      %v6119 = vpack.c.bf16 %v5945, %v5943
      %v6120 = vpack.c.bf16 %v5948, %v5946
      %v6121 = vpack.c.bf16 %v5949, %v5947
      %v6122 = vpack.c.bf16 %v5952, %v5950
      %v6123 = vpack.c.bf16 %v5953, %v5951
      %v6124 = vpack.c.bf16 %v5956, %v5954
      %v6125 = vpack.c.bf16 %v5957, %v5955
      %v6126 = vpack.c.bf16 %v5960, %v5958
      %v6127 = vpack.c.bf16 %v5961, %v5959
      %v6128 = vpack.c.bf16 %v5964, %v5962
      %v6129 = vpack.c.bf16 %v5965, %v5963
      %v6130 = vpack.c.bf16 %v5968, %v5966
      %v6131 = vpack.c.bf16 %v5969, %v5967
      %v6132 = vpack.c.bf16 %v5972, %v5970
      %v6133 = vpack.c.bf16 %v5973, %v5971
      %v6134 = vpack.c.bf16 %v5976, %v5974
      %v6135 = vpack.c.bf16 %v5977, %v5975
      %v6136 = vpack.c.bf16 %v5980, %v5978
      %v6137 = vpack.c.bf16 %v5981, %v5979
      %v6138 = vpack.c.bf16 %v5984, %v5982
      %v6139 = vpack.c.bf16 %v5985, %v5983
      %v6140 = vpack.c.bf16 %v5988, %v5986
      %v6141 = vpack.c.bf16 %v5989, %v5987
      %v6142 = vpack.c.bf16 %v5992, %v5990
      %v6143 = vpack.c.bf16 %v5993, %v5991
      %v6144 = vpack.c.bf16 %v5996, %v5994
      %v6145 = vpack.c.bf16 %v5997, %v5995
      %v6146 = vpack.c.bf16 %v6000, %v5998
      %v6147 = vpack.c.bf16 %v6001, %v5999
      %v6148 = vpack.c.bf16 %v6004, %v6002
      %v6149 = vpack.c.bf16 %v6005, %v6003
      %v6150 = vpack.c.bf16 %v6008, %v6006
      %v6151 = vpack.c.bf16 %v6009, %v6007
      %v6152 = vpack.c.bf16 %v6012, %v6010
      %v6153 = vpack.c.bf16 %v6013, %v6011
      %v6154 = vpack.c.bf16 %v6016, %v6014
      %v6155 = vpack.c.bf16 %v6017, %v6015
      %v6156 = vpack.c.bf16 %v6020, %v6018
      %v6157 = vpack.c.bf16 %v6021, %v6019
      %v6158 = vpack.c.bf16 %v6024, %v6022
      %v6159 = vpack.c.bf16 %v6025, %v6023
      %v6160 = vpack.c.bf16 %v6028, %v6026
      %v6161 = vpack.c.bf16 %v6029, %v6027
      %v6162 = vpack.c.bf16 %v6032, %v6030
      %v6163 = vpack.c.bf16 %v6033, %v6031
      %v6164 = vpack.c.bf16 %v6036, %v6034
      %v6165 = vpack.c.bf16 %v6037, %v6035
      %v6166 = vld [vmem:[%s507] sm:$0xff]
      %v6167 = vld [vmem:[%s507 + $0x8] sm:$0xff]
      %v6168 = vld [vmem:[%s507 + $0x10] sm:$0xff]
      %v6169 = vld [vmem:[%s507 + $0x18] sm:$0xff]
      %v6170 = vld [vmem:[%s507 + $0x20] sm:$0xff]
      %v6171 = vld [vmem:[%s507 + $0x28] sm:$0xff]
      %v6172 = vld [vmem:[%s507 + $0x30] sm:$0xff]
      %v6173 = vld [vmem:[%s507 + $0x38] sm:$0xff]
      %v6174 = vld [vmem:[%s507 + $0x40] sm:$0xff]
      %v6175 = vld [vmem:[%s507 + $0x48] sm:$0xff]
      %v6176 = vld [vmem:[%s507 + $0x50] sm:$0xff]
      %v6177 = vld [vmem:[%s507 + $0x58] sm:$0xff]
      %v6178 = vld [vmem:[%s507 + $0x60] sm:$0xff]
      %v6179 = vld [vmem:[%s507 + $0x68] sm:$0xff]
      %v6180 = vld [vmem:[%s507 + $0x70] sm:$0xff]
      %v6181 = vld [vmem:[%s507 + $0x78] sm:$0xff]
      %v6182 = vld [vmem:[%s507 + $0x80] sm:$0xff]
      %v6183 = vld [vmem:[%s507 + $0x88] sm:$0xff]
      %v6184 = vld [vmem:[%s507 + $0x90] sm:$0xff]
      %v6185 = vld [vmem:[%s507 + $0x98] sm:$0xff]
      %v6186 = vld [vmem:[%s507 + $0xa0] sm:$0xff]
      %v6187 = vld [vmem:[%s507 + $0xa8] sm:$0xff]
      %v6188 = vld [vmem:[%s507 + $0xb0] sm:$0xff]
      %v6189 = vld [vmem:[%s507 + $0xb8] sm:$0xff]
      %v6190 = vld [vmem:[%s507 + $0xc0] sm:$0xff]
      %v6191 = vld [vmem:[%s507 + $0xc8] sm:$0xff]
      %v6192 = vld [vmem:[%s507 + $0xd0] sm:$0xff]
      %v6193 = vld [vmem:[%s507 + $0xd8] sm:$0xff]
      %v6194 = vld [vmem:[%s507 + $0xe0] sm:$0xff]
      %v6195 = vld [vmem:[%s507 + $0xe8] sm:$0xff]
      %v6196 = vld [vmem:[%s507 + $0xf0] sm:$0xff]
      %v6197 = vld [vmem:[%s507 + $0xf8] sm:$0xff]
      %v6198 = vld [vmem:[%s511] sm:$0x3]
      %v6200 = vperm.slane %v6198, 0
      %v6201 = vperm.slane %v6198, 1
      %v6236 = vunpack.c.l.b16 %v6166
      %v6237 = vunpack.c.h.b16 %v6166
      %v6238 = vunpack.c.l.b16 %v6167
      %v6239 = vunpack.c.h.b16 %v6167
      %v6240 = vunpack.c.l.b16 %v6168
      %v6241 = vunpack.c.h.b16 %v6168
      %v6242 = vunpack.c.l.b16 %v6169
      %v6243 = vunpack.c.h.b16 %v6169
      %v6244 = vunpack.c.l.b16 %v6170
      %v6245 = vunpack.c.h.b16 %v6170
      %v6246 = vunpack.c.l.b16 %v6171
      %v6247 = vunpack.c.h.b16 %v6171
      %v6248 = vunpack.c.l.b16 %v6172
      %v6249 = vunpack.c.h.b16 %v6172
      %v6250 = vunpack.c.l.b16 %v6173
      %v6251 = vunpack.c.h.b16 %v6173
      %v6252 = vunpack.c.l.b16 %v6174
      %v6253 = vunpack.c.h.b16 %v6174
      %v6254 = vunpack.c.l.b16 %v6175
      %v6255 = vunpack.c.h.b16 %v6175
      %v6256 = vunpack.c.l.b16 %v6176
      %v6257 = vunpack.c.h.b16 %v6176
      %v6258 = vunpack.c.l.b16 %v6177
      %v6259 = vunpack.c.h.b16 %v6177
      %v6260 = vunpack.c.l.b16 %v6178
      %v6261 = vunpack.c.h.b16 %v6178
      %v6262 = vunpack.c.l.b16 %v6179
      %v6263 = vunpack.c.h.b16 %v6179
      %v6264 = vunpack.c.l.b16 %v6180
      %v6265 = vunpack.c.h.b16 %v6180
      %v6266 = vunpack.c.l.b16 %v6181
      %v6267 = vunpack.c.h.b16 %v6181
      %v6268 = vunpack.c.l.b16 %v6182
      %v6269 = vunpack.c.h.b16 %v6182
      %v6270 = vunpack.c.l.b16 %v6183
      %v6271 = vunpack.c.h.b16 %v6183
      %v6272 = vunpack.c.l.b16 %v6184
      %v6273 = vunpack.c.h.b16 %v6184
      %v6274 = vunpack.c.l.b16 %v6185
      %v6275 = vunpack.c.h.b16 %v6185
      %v6276 = vunpack.c.l.b16 %v6186
      %v6277 = vunpack.c.h.b16 %v6186
      %v6278 = vunpack.c.l.b16 %v6187
      %v6279 = vunpack.c.h.b16 %v6187
      %v6280 = vunpack.c.l.b16 %v6188
      %v6281 = vunpack.c.h.b16 %v6188
      %v6282 = vunpack.c.l.b16 %v6189
      %v6283 = vunpack.c.h.b16 %v6189
      %v6284 = vunpack.c.l.b16 %v6190
      %v6285 = vunpack.c.h.b16 %v6190
      %v6286 = vunpack.c.l.b16 %v6191
      %v6287 = vunpack.c.h.b16 %v6191
      %v6288 = vunpack.c.l.b16 %v6192
      %v6289 = vunpack.c.h.b16 %v6192
      %v6290 = vunpack.c.l.b16 %v6193
      %v6291 = vunpack.c.h.b16 %v6193
      %v6292 = vunpack.c.l.b16 %v6194
      %v6293 = vunpack.c.h.b16 %v6194
      %v6294 = vunpack.c.l.b16 %v6195
      %v6295 = vunpack.c.h.b16 %v6195
      %v6296 = vunpack.c.l.b16 %v6196
      %v6297 = vunpack.c.h.b16 %v6196
      %v6298 = vunpack.c.l.b16 %v6197
      %v6299 = vunpack.c.h.b16 %v6197
      %v6300 = vpack.c.b16 %v6238, %v6236
      %v6301 = vpack.c.b16 %v6239, %v6237
      %v6302 = vpack.c.b16 %v6242, %v6240
      %v6303 = vpack.c.b16 %v6243, %v6241
      %v6304 = vpack.c.b16 %v6246, %v6244
      %v6305 = vpack.c.b16 %v6247, %v6245
      %v6306 = vpack.c.b16 %v6250, %v6248
      %v6307 = vpack.c.b16 %v6251, %v6249
      %v6308 = vpack.c.b16 %v6254, %v6252
      %v6309 = vpack.c.b16 %v6255, %v6253
      %v6310 = vpack.c.b16 %v6258, %v6256
      %v6311 = vpack.c.b16 %v6259, %v6257
      %v6312 = vpack.c.b16 %v6262, %v6260
      %v6313 = vpack.c.b16 %v6263, %v6261
      %v6314 = vpack.c.b16 %v6266, %v6264
      %v6315 = vpack.c.b16 %v6267, %v6265
      %v6316 = vpack.c.b16 %v6270, %v6268
      %v6317 = vpack.c.b16 %v6271, %v6269
      %v6318 = vpack.c.b16 %v6274, %v6272
      %v6319 = vpack.c.b16 %v6275, %v6273
      %v6320 = vpack.c.b16 %v6278, %v6276
      %v6321 = vpack.c.b16 %v6279, %v6277
      %v6322 = vpack.c.b16 %v6282, %v6280
      %v6323 = vpack.c.b16 %v6283, %v6281
      %v6324 = vpack.c.b16 %v6286, %v6284
      %v6325 = vpack.c.b16 %v6287, %v6285
      %v6326 = vpack.c.b16 %v6290, %v6288
      %v6327 = vpack.c.b16 %v6291, %v6289
      %v6328 = vpack.c.b16 %v6294, %v6292
      %v6329 = vpack.c.b16 %v6295, %v6293
      %v6330 = vpack.c.b16 %v6298, %v6296
      %v6331 = vpack.c.b16 %v6299, %v6297
      %6364 = vmatpush.bf16.msra.mxu0 %v6314
      %6365 = vmatpush.bf16.msra.mxu0 %v6312
      %6366 = vmatpush.bf16.msra.mxu0 %v6310
      %6367 = vmatpush.bf16.msra.mxu0 %v6308
      %6368 = vmatpush.bf16.msra.mxu0 %v6306
      %6369 = vmatpush.bf16.msra.mxu0 %v6304
      %6370 = vmatpush.bf16.msra.mxu0 %v6302
      %6371 = vmatpush.bf16.msra.mxu0 %v6300
      %6372 = vmatmul.bf16.gmra.mxu0 %v6038
      %v6373 = vpop.f32.mrf.mxu0
      %v6374 = vadd.f32 %v6200, %v6373
      %v6375 = vpop.f32.mrf.mxu0
      %v6376 = vadd.f32 %v6200, %v6375
      %6377 = vmatmul.bf16.gmra.mxu0 %v6040
      %v6378 = vpop.f32.mrf.mxu0
      %v6379 = vadd.f32 %v6200, %v6378
      %v6380 = vpop.f32.mrf.mxu0
      %v6381 = vadd.f32 %v6200, %v6380
      %6382 = vmatmul.bf16.gmra.mxu0 %v6042
      %v6383 = vpop.f32.mrf.mxu0
      %v6384 = vadd.f32 %v6200, %v6383
      %v6385 = vpop.f32.mrf.mxu0
      %v6386 = vadd.f32 %v6200, %v6385
      %6387 = vmatmul.bf16.gmra.mxu0 %v6044
      %v6388 = vpop.f32.mrf.mxu0
      %v6389 = vadd.f32 %v6200, %v6388
      %v6390 = vpop.f32.mrf.mxu0
      %v6391 = vadd.f32 %v6200, %v6390
      %6392 = vmatmul.bf16.gmra.mxu0 %v6046
      %v6393 = vpop.f32.mrf.mxu0
      %v6394 = vadd.f32 %v6200, %v6393
      %v6395 = vpop.f32.mrf.mxu0
      %v6396 = vadd.f32 %v6200, %v6395
      %6397 = vmatmul.bf16.gmra.mxu0 %v6048
      %v6398 = vpop.f32.mrf.mxu0
      %v6399 = vadd.f32 %v6200, %v6398
      %v6400 = vpop.f32.mrf.mxu0
      %v6401 = vadd.f32 %v6200, %v6400
      %6402 = vmatmul.bf16.gmra.mxu0 %v6050
      %v6403 = vpop.f32.mrf.mxu0
      %v6404 = vadd.f32 %v6200, %v6403
      %v6405 = vpop.f32.mrf.mxu0
      %v6406 = vadd.f32 %v6200, %v6405
      %6407 = vmatmul.bf16.gmra.mxu0 %v6052
      %v6408 = vpop.f32.mrf.mxu0
      %v6409 = vadd.f32 %v6200, %v6408
      %v6410 = vpop.f32.mrf.mxu0
      %v6411 = vadd.f32 %v6200, %v6410
      %6412 = vmatmul.bf16.gmra.mxu0 %v6054
      %v6413 = vpop.f32.mrf.mxu0
      %v6414 = vadd.f32 %v6200, %v6413
      %v6415 = vpop.f32.mrf.mxu0
      %v6416 = vadd.f32 %v6200, %v6415
      %6417 = vmatmul.bf16.gmra.mxu0 %v6056
      %v6418 = vpop.f32.mrf.mxu0
      %v6419 = vadd.f32 %v6200, %v6418
      %v6420 = vpop.f32.mrf.mxu0
      %v6421 = vadd.f32 %v6200, %v6420
      %6422 = vmatmul.bf16.gmra.mxu0 %v6058
      %v6423 = vpop.f32.mrf.mxu0
      %v6424 = vadd.f32 %v6200, %v6423
      %v6425 = vpop.f32.mrf.mxu0
      %v6426 = vadd.f32 %v6200, %v6425
      %6427 = vmatmul.bf16.gmra.mxu0 %v6060
      %v6428 = vpop.f32.mrf.mxu0
      %v6429 = vadd.f32 %v6200, %v6428
      %v6430 = vpop.f32.mrf.mxu0
      %v6431 = vadd.f32 %v6200, %v6430
      %6432 = vmatmul.bf16.gmra.mxu0 %v6062
      %v6433 = vpop.f32.mrf.mxu0
      %v6434 = vadd.f32 %v6200, %v6433
      %v6435 = vpop.f32.mrf.mxu0
      %v6436 = vadd.f32 %v6200, %v6435
      %6437 = vmatmul.bf16.gmra.mxu0 %v6064
      %v6438 = vpop.f32.mrf.mxu0
      %v6439 = vadd.f32 %v6200, %v6438
      %v6440 = vpop.f32.mrf.mxu0
      %v6441 = vadd.f32 %v6200, %v6440
      %6442 = vmatmul.bf16.gmra.mxu0 %v6066
      %v6443 = vpop.f32.mrf.mxu0
      %v6444 = vadd.f32 %v6200, %v6443
      %v6445 = vpop.f32.mrf.mxu0
      %v6446 = vadd.f32 %v6200, %v6445
      %6447 = vmatmul.bf16.gmra.mxu0 %v6068
      %v6448 = vpop.f32.mrf.mxu0
      %v6449 = vadd.f32 %v6200, %v6448
      %v6450 = vpop.f32.mrf.mxu0
      %v6451 = vadd.f32 %v6200, %v6450
      %6452 = vmatmul.bf16.gmra.mxu0 %v6070
      %v6453 = vpop.f32.mrf.mxu0
      %v6454 = vadd.f32 %v6200, %v6453
      %v6455 = vpop.f32.mrf.mxu0
      %v6456 = vadd.f32 %v6200, %v6455
      %6457 = vmatmul.bf16.gmra.mxu0 %v6072
      %v6458 = vpop.f32.mrf.mxu0
      %v6459 = vadd.f32 %v6200, %v6458
      %v6460 = vpop.f32.mrf.mxu0
      %v6461 = vadd.f32 %v6200, %v6460
      %6462 = vmatmul.bf16.gmra.mxu0 %v6074
      %v6463 = vpop.f32.mrf.mxu0
      %v6464 = vadd.f32 %v6200, %v6463
      %v6465 = vpop.f32.mrf.mxu0
      %v6466 = vadd.f32 %v6200, %v6465
      %6467 = vmatmul.bf16.gmra.mxu0 %v6076
      %v6468 = vpop.f32.mrf.mxu0
      %v6469 = vadd.f32 %v6200, %v6468
      %v6470 = vpop.f32.mrf.mxu0
      %v6471 = vadd.f32 %v6200, %v6470
      %6472 = vmatmul.bf16.gmra.mxu0 %v6078
      %v6473 = vpop.f32.mrf.mxu0
      %v6474 = vadd.f32 %v6200, %v6473
      %v6475 = vpop.f32.mrf.mxu0
      %v6476 = vadd.f32 %v6200, %v6475
      %6477 = vmatmul.bf16.gmra.mxu0 %v6080
      %v6478 = vpop.f32.mrf.mxu0
      %v6479 = vadd.f32 %v6200, %v6478
      %v6480 = vpop.f32.mrf.mxu0
      %v6481 = vadd.f32 %v6200, %v6480
      %6482 = vmatmul.bf16.gmra.mxu0 %v6082
      %v6483 = vpop.f32.mrf.mxu0
      %v6484 = vadd.f32 %v6200, %v6483
      %v6485 = vpop.f32.mrf.mxu0
      %v6486 = vadd.f32 %v6200, %v6485
      %6487 = vmatmul.bf16.gmra.mxu0 %v6084
      %v6488 = vpop.f32.mrf.mxu0
      %v6489 = vadd.f32 %v6200, %v6488
      %v6490 = vpop.f32.mrf.mxu0
      %v6491 = vadd.f32 %v6200, %v6490
      %6492 = vmatmul.bf16.gmra.mxu0 %v6086
      %v6493 = vpop.f32.mrf.mxu0
      %v6494 = vadd.f32 %v6200, %v6493
      %v6495 = vpop.f32.mrf.mxu0
      %v6496 = vadd.f32 %v6200, %v6495
      %6497 = vmatmul.bf16.gmra.mxu0 %v6088
      %v6498 = vpop.f32.mrf.mxu0
      %v6499 = vadd.f32 %v6200, %v6498
      %v6500 = vpop.f32.mrf.mxu0
      %v6501 = vadd.f32 %v6200, %v6500
      %6502 = vmatmul.bf16.gmra.mxu0 %v6090
      %v6503 = vpop.f32.mrf.mxu0
      %v6504 = vadd.f32 %v6200, %v6503
      %v6505 = vpop.f32.mrf.mxu0
      %v6506 = vadd.f32 %v6200, %v6505
      %6507 = vmatmul.bf16.gmra.mxu0 %v6092
      %v6508 = vpop.f32.mrf.mxu0
      %v6509 = vadd.f32 %v6200, %v6508
      %v6510 = vpop.f32.mrf.mxu0
      %v6511 = vadd.f32 %v6200, %v6510
      %6512 = vmatmul.bf16.gmra.mxu0 %v6094
      %v6513 = vpop.f32.mrf.mxu0
      %v6514 = vadd.f32 %v6200, %v6513
      %v6515 = vpop.f32.mrf.mxu0
      %v6516 = vadd.f32 %v6200, %v6515
      %6517 = vmatmul.bf16.gmra.mxu0 %v6096
      %v6518 = vpop.f32.mrf.mxu0
      %v6519 = vadd.f32 %v6200, %v6518
      %v6520 = vpop.f32.mrf.mxu0
      %v6521 = vadd.f32 %v6200, %v6520
      %6522 = vmatmul.bf16.gmra.mxu0 %v6098
      %v6523 = vpop.f32.mrf.mxu0
      %v6524 = vadd.f32 %v6200, %v6523
      %v6525 = vpop.f32.mrf.mxu0
      %v6526 = vadd.f32 %v6200, %v6525
      %6527 = vmatmul.bf16.gmra.mxu0 %v6100
      %v6528 = vpop.f32.mrf.mxu0
      %v6529 = vadd.f32 %v6200, %v6528
      %v6530 = vpop.f32.mrf.mxu0
      %v6531 = vadd.f32 %v6200, %v6530
      %6532 = vmatmul.bf16.gmra.mxu0 %v6102
      %v6533 = vpop.f32.mrf.mxu0
      %v6534 = vadd.f32 %v6200, %v6533
      %v6535 = vpop.f32.mrf.mxu0
      %v6536 = vadd.f32 %v6200, %v6535
      %6537 = vmatmul.bf16.gmra.mxu0 %v6104
      %v6538 = vpop.f32.mrf.mxu0
      %v6539 = vadd.f32 %v6200, %v6538
      %v6540 = vpop.f32.mrf.mxu0
      %v6541 = vadd.f32 %v6200, %v6540
      %6542 = vmatmul.bf16.gmra.mxu0 %v6106
      %v6543 = vpop.f32.mrf.mxu0
      %v6544 = vadd.f32 %v6200, %v6543
      %v6545 = vpop.f32.mrf.mxu0
      %v6546 = vadd.f32 %v6200, %v6545
      %6547 = vmatmul.bf16.gmra.mxu0 %v6108
      %v6548 = vpop.f32.mrf.mxu0
      %v6549 = vadd.f32 %v6200, %v6548
      %v6550 = vpop.f32.mrf.mxu0
      %v6551 = vadd.f32 %v6200, %v6550
      %6552 = vmatmul.bf16.gmra.mxu0 %v6110
      %v6553 = vpop.f32.mrf.mxu0
      %v6554 = vadd.f32 %v6200, %v6553
      %v6555 = vpop.f32.mrf.mxu0
      %v6556 = vadd.f32 %v6200, %v6555
      %6557 = vmatmul.bf16.gmra.mxu0 %v6112
      %v6558 = vpop.f32.mrf.mxu0
      %v6559 = vadd.f32 %v6200, %v6558
      %v6560 = vpop.f32.mrf.mxu0
      %v6561 = vadd.f32 %v6200, %v6560
      %6562 = vmatmul.bf16.gmra.mxu0 %v6114
      %v6563 = vpop.f32.mrf.mxu0
      %v6564 = vadd.f32 %v6200, %v6563
      %v6565 = vpop.f32.mrf.mxu0
      %v6566 = vadd.f32 %v6200, %v6565
      %6567 = vmatmul.bf16.gmra.mxu0 %v6116
      %v6568 = vpop.f32.mrf.mxu0
      %v6569 = vadd.f32 %v6200, %v6568
      %v6570 = vpop.f32.mrf.mxu0
      %v6571 = vadd.f32 %v6200, %v6570
      %6572 = vmatmul.bf16.gmra.mxu0 %v6118
      %v6573 = vpop.f32.mrf.mxu0
      %v6574 = vadd.f32 %v6200, %v6573
      %v6575 = vpop.f32.mrf.mxu0
      %v6576 = vadd.f32 %v6200, %v6575
      %6577 = vmatmul.bf16.gmra.mxu0 %v6120
      %v6578 = vpop.f32.mrf.mxu0
      %v6579 = vadd.f32 %v6200, %v6578
      %v6580 = vpop.f32.mrf.mxu0
      %v6581 = vadd.f32 %v6200, %v6580
      %6582 = vmatmul.bf16.gmra.mxu0 %v6122
      %v6583 = vpop.f32.mrf.mxu0
      %v6584 = vadd.f32 %v6200, %v6583
      %v6585 = vpop.f32.mrf.mxu0
      %v6586 = vadd.f32 %v6200, %v6585
      %6587 = vmatmul.bf16.gmra.mxu0 %v6124
      %v6588 = vpop.f32.mrf.mxu0
      %v6589 = vadd.f32 %v6200, %v6588
      %v6590 = vpop.f32.mrf.mxu0
      %v6591 = vadd.f32 %v6200, %v6590
      %6592 = vmatmul.bf16.gmra.mxu0 %v6126
      %v6593 = vpop.f32.mrf.mxu0
      %v6594 = vadd.f32 %v6200, %v6593
      %v6595 = vpop.f32.mrf.mxu0
      %v6596 = vadd.f32 %v6200, %v6595
      %6597 = vmatmul.bf16.gmra.mxu0 %v6128
      %v6598 = vpop.f32.mrf.mxu0
      %v6599 = vadd.f32 %v6200, %v6598
      %v6600 = vpop.f32.mrf.mxu0
      %v6601 = vadd.f32 %v6200, %v6600
      %6602 = vmatmul.bf16.gmra.mxu0 %v6130
      %v6603 = vpop.f32.mrf.mxu0
      %v6604 = vadd.f32 %v6200, %v6603
      %v6605 = vpop.f32.mrf.mxu0
      %v6606 = vadd.f32 %v6200, %v6605
      %6607 = vmatmul.bf16.gmra.mxu0 %v6132
      %v6608 = vpop.f32.mrf.mxu0
      %v6609 = vadd.f32 %v6200, %v6608
      %v6610 = vpop.f32.mrf.mxu0
      %v6611 = vadd.f32 %v6200, %v6610
      %6612 = vmatmul.bf16.gmra.mxu0 %v6134
      %v6613 = vpop.f32.mrf.mxu0
      %v6614 = vadd.f32 %v6200, %v6613
      %v6615 = vpop.f32.mrf.mxu0
      %v6616 = vadd.f32 %v6200, %v6615
      %6617 = vmatmul.bf16.gmra.mxu0 %v6136
      %v6618 = vpop.f32.mrf.mxu0
      %v6619 = vadd.f32 %v6200, %v6618
      %v6620 = vpop.f32.mrf.mxu0
      %v6621 = vadd.f32 %v6200, %v6620
      %6622 = vmatmul.bf16.gmra.mxu0 %v6138
      %v6623 = vpop.f32.mrf.mxu0
      %v6624 = vadd.f32 %v6200, %v6623
      %v6625 = vpop.f32.mrf.mxu0
      %v6626 = vadd.f32 %v6200, %v6625
      %6627 = vmatmul.bf16.gmra.mxu0 %v6140
      %v6628 = vpop.f32.mrf.mxu0
      %v6629 = vadd.f32 %v6200, %v6628
      %v6630 = vpop.f32.mrf.mxu0
      %v6631 = vadd.f32 %v6200, %v6630
      %6632 = vmatmul.bf16.gmra.mxu0 %v6142
      %v6633 = vpop.f32.mrf.mxu0
      %v6634 = vadd.f32 %v6200, %v6633
      %v6635 = vpop.f32.mrf.mxu0
      %v6636 = vadd.f32 %v6200, %v6635
      %6637 = vmatmul.bf16.gmra.mxu0 %v6144
      %v6638 = vpop.f32.mrf.mxu0
      %v6639 = vadd.f32 %v6200, %v6638
      %v6640 = vpop.f32.mrf.mxu0
      %v6641 = vadd.f32 %v6200, %v6640
      %6642 = vmatmul.bf16.gmra.mxu0 %v6146
      %v6643 = vpop.f32.mrf.mxu0
      %v6644 = vadd.f32 %v6200, %v6643
      %v6645 = vpop.f32.mrf.mxu0
      %v6646 = vadd.f32 %v6200, %v6645
      %6647 = vmatmul.bf16.gmra.mxu0 %v6148
      %v6648 = vpop.f32.mrf.mxu0
      %v6649 = vadd.f32 %v6200, %v6648
      %v6650 = vpop.f32.mrf.mxu0
      %v6651 = vadd.f32 %v6200, %v6650
      %6652 = vmatmul.bf16.gmra.mxu0 %v6150
      %v6653 = vpop.f32.mrf.mxu0
      %v6654 = vadd.f32 %v6200, %v6653
      %v6655 = vpop.f32.mrf.mxu0
      %v6656 = vadd.f32 %v6200, %v6655
      %6657 = vmatmul.bf16.gmra.mxu0 %v6152
      %v6658 = vpop.f32.mrf.mxu0
      %v6659 = vadd.f32 %v6200, %v6658
      %v6660 = vpop.f32.mrf.mxu0
      %v6661 = vadd.f32 %v6200, %v6660
      %6662 = vmatmul.bf16.gmra.mxu0 %v6154
      %v6663 = vpop.f32.mrf.mxu0
      %v6664 = vadd.f32 %v6200, %v6663
      %v6665 = vpop.f32.mrf.mxu0
      %v6666 = vadd.f32 %v6200, %v6665
      %6667 = vmatmul.bf16.gmra.mxu0 %v6156
      %v6668 = vpop.f32.mrf.mxu0
      %v6669 = vadd.f32 %v6200, %v6668
      %v6670 = vpop.f32.mrf.mxu0
      %v6671 = vadd.f32 %v6200, %v6670
      %6672 = vmatmul.bf16.gmra.mxu0 %v6158
      %v6673 = vpop.f32.mrf.mxu0
      %v6674 = vadd.f32 %v6200, %v6673
      %v6675 = vpop.f32.mrf.mxu0
      %v6676 = vadd.f32 %v6200, %v6675
      %6677 = vmatmul.bf16.gmra.mxu0 %v6160
      %v6678 = vpop.f32.mrf.mxu0
      %v6679 = vadd.f32 %v6200, %v6678
      %v6680 = vpop.f32.mrf.mxu0
      %v6681 = vadd.f32 %v6200, %v6680
      %6682 = vmatmul.bf16.gmra.mxu0 %v6162
      %v6683 = vpop.f32.mrf.mxu0
      %v6684 = vadd.f32 %v6200, %v6683
      %v6685 = vpop.f32.mrf.mxu0
      %v6686 = vadd.f32 %v6200, %v6685
      %6687 = vmatmul.bf16.gmra.mxu0 %v6164
      %v6688 = vpop.f32.mrf.mxu0
      %v6689 = vadd.f32 %v6200, %v6688
      %v6690 = vpop.f32.mrf.mxu0
      %v6691 = vadd.f32 %v6200, %v6690
      %6692 = vdwg.mxu0
      %6693 = vmatpush.bf16.msra.mxu0 %v6330
      %6694 = vmatpush.bf16.msra.mxu0 %v6328
      %6695 = vmatpush.bf16.msra.mxu0 %v6326
      %6696 = vmatpush.bf16.msra.mxu0 %v6324
      %6697 = vmatpush.bf16.msra.mxu0 %v6322
      %6698 = vmatpush.bf16.msra.mxu0 %v6320
      %6699 = vmatpush.bf16.msra.mxu0 %v6318
      %6700 = vmatpush.bf16.msra.mxu0 %v6316
      %6701 = vmatmul.bf16.gmra.mxu0 %v6039
      %v6702 = vpop.f32.mrf.mxu0
      %v6703 = vadd.f32 %v6374, %v6702
      %v6704 = vpop.f32.mrf.mxu0
      %v6705 = vadd.f32 %v6376, %v6704
      %6706 = vmatmul.bf16.gmra.mxu0 %v6041
      %v6707 = vpop.f32.mrf.mxu0
      %v6708 = vadd.f32 %v6379, %v6707
      %v6709 = vpop.f32.mrf.mxu0
      %v6710 = vadd.f32 %v6381, %v6709
      %6711 = vmatmul.bf16.gmra.mxu0 %v6043
      %v6712 = vpop.f32.mrf.mxu0
      %v6713 = vadd.f32 %v6384, %v6712
      %v6714 = vpop.f32.mrf.mxu0
      %v6715 = vadd.f32 %v6386, %v6714
      %6716 = vmatmul.bf16.gmra.mxu0 %v6045
      %v6717 = vpop.f32.mrf.mxu0
      %v6718 = vadd.f32 %v6389, %v6717
      %v6719 = vpop.f32.mrf.mxu0
      %v6720 = vadd.f32 %v6391, %v6719
      %6721 = vmatmul.bf16.gmra.mxu0 %v6047
      %v6722 = vpop.f32.mrf.mxu0
      %v6723 = vadd.f32 %v6394, %v6722
      %v6724 = vpop.f32.mrf.mxu0
      %v6725 = vadd.f32 %v6396, %v6724
      %6726 = vmatmul.bf16.gmra.mxu0 %v6049
      %v6727 = vpop.f32.mrf.mxu0
      %v6728 = vadd.f32 %v6399, %v6727
      %v6729 = vpop.f32.mrf.mxu0
      %v6730 = vadd.f32 %v6401, %v6729
      %6731 = vmatmul.bf16.gmra.mxu0 %v6051
      %v6732 = vpop.f32.mrf.mxu0
      %v6733 = vadd.f32 %v6404, %v6732
      %v6734 = vpop.f32.mrf.mxu0
      %v6735 = vadd.f32 %v6406, %v6734
      %6736 = vmatmul.bf16.gmra.mxu0 %v6053
      %v6737 = vpop.f32.mrf.mxu0
      %v6738 = vadd.f32 %v6409, %v6737
      %v6739 = vpop.f32.mrf.mxu0
      %v6740 = vadd.f32 %v6411, %v6739
      %6741 = vmatmul.bf16.gmra.mxu0 %v6055
      %v6742 = vpop.f32.mrf.mxu0
      %v6743 = vadd.f32 %v6414, %v6742
      %v6744 = vpop.f32.mrf.mxu0
      %v6745 = vadd.f32 %v6416, %v6744
      %6746 = vmatmul.bf16.gmra.mxu0 %v6057
      %v6747 = vpop.f32.mrf.mxu0
      %v6748 = vadd.f32 %v6419, %v6747
      %v6749 = vpop.f32.mrf.mxu0
      %v6750 = vadd.f32 %v6421, %v6749
      %6751 = vmatmul.bf16.gmra.mxu0 %v6059
      %v6752 = vpop.f32.mrf.mxu0
      %v6753 = vadd.f32 %v6424, %v6752
      %v6754 = vpop.f32.mrf.mxu0
      %v6755 = vadd.f32 %v6426, %v6754
      %6756 = vmatmul.bf16.gmra.mxu0 %v6061
      %v6757 = vpop.f32.mrf.mxu0
      %v6758 = vadd.f32 %v6429, %v6757
      %v6759 = vpop.f32.mrf.mxu0
      %v6760 = vadd.f32 %v6431, %v6759
      %6761 = vmatmul.bf16.gmra.mxu0 %v6063
      %v6762 = vpop.f32.mrf.mxu0
      %v6763 = vadd.f32 %v6434, %v6762
      %v6764 = vpop.f32.mrf.mxu0
      %v6765 = vadd.f32 %v6436, %v6764
      %6766 = vmatmul.bf16.gmra.mxu0 %v6065
      %v6767 = vpop.f32.mrf.mxu0
      %v6768 = vadd.f32 %v6439, %v6767
      %v6769 = vpop.f32.mrf.mxu0
      %v6770 = vadd.f32 %v6441, %v6769
      %6771 = vmatmul.bf16.gmra.mxu0 %v6067
      %v6772 = vpop.f32.mrf.mxu0
      %v6773 = vadd.f32 %v6444, %v6772
      %v6774 = vpop.f32.mrf.mxu0
      %v6775 = vadd.f32 %v6446, %v6774
      %6776 = vmatmul.bf16.gmra.mxu0 %v6069
      %v6777 = vpop.f32.mrf.mxu0
      %v6778 = vadd.f32 %v6449, %v6777
      %v6779 = vpop.f32.mrf.mxu0
      %v6780 = vadd.f32 %v6451, %v6779
      %6781 = vmatmul.bf16.gmra.mxu0 %v6071
      %v6782 = vpop.f32.mrf.mxu0
      %v6783 = vadd.f32 %v6454, %v6782
      %v6784 = vpop.f32.mrf.mxu0
      %v6785 = vadd.f32 %v6456, %v6784
      %6786 = vmatmul.bf16.gmra.mxu0 %v6073
      %v6787 = vpop.f32.mrf.mxu0
      %v6788 = vadd.f32 %v6459, %v6787
      %v6789 = vpop.f32.mrf.mxu0
      %v6790 = vadd.f32 %v6461, %v6789
      %6791 = vmatmul.bf16.gmra.mxu0 %v6075
      %v6792 = vpop.f32.mrf.mxu0
      %v6793 = vadd.f32 %v6464, %v6792
      %v6794 = vpop.f32.mrf.mxu0
      %v6795 = vadd.f32 %v6466, %v6794
      %6796 = vmatmul.bf16.gmra.mxu0 %v6077
      %v6797 = vpop.f32.mrf.mxu0
      %v6798 = vadd.f32 %v6469, %v6797
      %v6799 = vpop.f32.mrf.mxu0
      %v6800 = vadd.f32 %v6471, %v6799
      %6801 = vmatmul.bf16.gmra.mxu0 %v6079
      %v6802 = vpop.f32.mrf.mxu0
      %v6803 = vadd.f32 %v6474, %v6802
      %v6804 = vpop.f32.mrf.mxu0
      %v6805 = vadd.f32 %v6476, %v6804
      %6806 = vmatmul.bf16.gmra.mxu0 %v6081
      %v6807 = vpop.f32.mrf.mxu0
      %v6808 = vadd.f32 %v6479, %v6807
      %v6809 = vpop.f32.mrf.mxu0
      %v6810 = vadd.f32 %v6481, %v6809
      %6811 = vmatmul.bf16.gmra.mxu0 %v6083
      %v6812 = vpop.f32.mrf.mxu0
      %v6813 = vadd.f32 %v6484, %v6812
      %v6814 = vpop.f32.mrf.mxu0
      %v6815 = vadd.f32 %v6486, %v6814
      %6816 = vmatmul.bf16.gmra.mxu0 %v6085
      %v6817 = vpop.f32.mrf.mxu0
      %v6818 = vadd.f32 %v6489, %v6817
      %v6819 = vpop.f32.mrf.mxu0
      %v6820 = vadd.f32 %v6491, %v6819
      %6821 = vmatmul.bf16.gmra.mxu0 %v6087
      %v6822 = vpop.f32.mrf.mxu0
      %v6823 = vadd.f32 %v6494, %v6822
      %v6824 = vpop.f32.mrf.mxu0
      %v6825 = vadd.f32 %v6496, %v6824
      %6826 = vmatmul.bf16.gmra.mxu0 %v6089
      %v6827 = vpop.f32.mrf.mxu0
      %v6828 = vadd.f32 %v6499, %v6827
      %v6829 = vpop.f32.mrf.mxu0
      %v6830 = vadd.f32 %v6501, %v6829
      %6831 = vmatmul.bf16.gmra.mxu0 %v6091
      %v6832 = vpop.f32.mrf.mxu0
      %v6833 = vadd.f32 %v6504, %v6832
      %v6834 = vpop.f32.mrf.mxu0
      %v6835 = vadd.f32 %v6506, %v6834
      %6836 = vmatmul.bf16.gmra.mxu0 %v6093
      %v6837 = vpop.f32.mrf.mxu0
      %v6838 = vadd.f32 %v6509, %v6837
      %v6839 = vpop.f32.mrf.mxu0
      %v6840 = vadd.f32 %v6511, %v6839
      %6841 = vmatmul.bf16.gmra.mxu0 %v6095
      %v6842 = vpop.f32.mrf.mxu0
      %v6843 = vadd.f32 %v6514, %v6842
      %v6844 = vpop.f32.mrf.mxu0
      %v6845 = vadd.f32 %v6516, %v6844
      %6846 = vmatmul.bf16.gmra.mxu0 %v6097
      %v6847 = vpop.f32.mrf.mxu0
      %v6848 = vadd.f32 %v6519, %v6847
      %v6849 = vpop.f32.mrf.mxu0
      %v6850 = vadd.f32 %v6521, %v6849
      %6851 = vmatmul.bf16.gmra.mxu0 %v6099
      %v6852 = vpop.f32.mrf.mxu0
      %v6853 = vadd.f32 %v6524, %v6852
      %v6854 = vpop.f32.mrf.mxu0
      %v6855 = vadd.f32 %v6526, %v6854
      %6856 = vmatmul.bf16.gmra.mxu0 %v6101
      %v6857 = vpop.f32.mrf.mxu0
      %v6858 = vadd.f32 %v6529, %v6857
      %v6859 = vpop.f32.mrf.mxu0
      %v6860 = vadd.f32 %v6531, %v6859
      %6861 = vmatmul.bf16.gmra.mxu0 %v6103
      %v6862 = vpop.f32.mrf.mxu0
      %v6863 = vadd.f32 %v6534, %v6862
      %v6864 = vpop.f32.mrf.mxu0
      %v6865 = vadd.f32 %v6536, %v6864
      %6866 = vmatmul.bf16.gmra.mxu0 %v6105
      %v6867 = vpop.f32.mrf.mxu0
      %v6868 = vadd.f32 %v6539, %v6867
      %v6869 = vpop.f32.mrf.mxu0
      %v6870 = vadd.f32 %v6541, %v6869
      %6871 = vmatmul.bf16.gmra.mxu0 %v6107
      %v6872 = vpop.f32.mrf.mxu0
      %v6873 = vadd.f32 %v6544, %v6872
      %v6874 = vpop.f32.mrf.mxu0
      %v6875 = vadd.f32 %v6546, %v6874
      %6876 = vmatmul.bf16.gmra.mxu0 %v6109
      %v6877 = vpop.f32.mrf.mxu0
      %v6878 = vadd.f32 %v6549, %v6877
      %v6879 = vpop.f32.mrf.mxu0
      %v6880 = vadd.f32 %v6551, %v6879
      %6881 = vmatmul.bf16.gmra.mxu0 %v6111
      %v6882 = vpop.f32.mrf.mxu0
      %v6883 = vadd.f32 %v6554, %v6882
      %v6884 = vpop.f32.mrf.mxu0
      %v6885 = vadd.f32 %v6556, %v6884
      %6886 = vmatmul.bf16.gmra.mxu0 %v6113
      %v6887 = vpop.f32.mrf.mxu0
      %v6888 = vadd.f32 %v6559, %v6887
      %v6889 = vpop.f32.mrf.mxu0
      %v6890 = vadd.f32 %v6561, %v6889
      %6891 = vmatmul.bf16.gmra.mxu0 %v6115
      %v6892 = vpop.f32.mrf.mxu0
      %v6893 = vadd.f32 %v6564, %v6892
      %v6894 = vpop.f32.mrf.mxu0
      %v6895 = vadd.f32 %v6566, %v6894
      %6896 = vmatmul.bf16.gmra.mxu0 %v6117
      %v6897 = vpop.f32.mrf.mxu0
      %v6898 = vadd.f32 %v6569, %v6897
      %v6899 = vpop.f32.mrf.mxu0
      %v6900 = vadd.f32 %v6571, %v6899
      %6901 = vmatmul.bf16.gmra.mxu0 %v6119
      %v6902 = vpop.f32.mrf.mxu0
      %v6903 = vadd.f32 %v6574, %v6902
      %v6904 = vpop.f32.mrf.mxu0
      %v6905 = vadd.f32 %v6576, %v6904
      %6906 = vmatmul.bf16.gmra.mxu0 %v6121
      %v6907 = vpop.f32.mrf.mxu0
      %v6908 = vadd.f32 %v6579, %v6907
      %v6909 = vpop.f32.mrf.mxu0
      %v6910 = vadd.f32 %v6581, %v6909
      %6911 = vmatmul.bf16.gmra.mxu0 %v6123
      %v6912 = vpop.f32.mrf.mxu0
      %v6913 = vadd.f32 %v6584, %v6912
      %v6914 = vpop.f32.mrf.mxu0
      %v6915 = vadd.f32 %v6586, %v6914
      %6916 = vmatmul.bf16.gmra.mxu0 %v6125
      %v6917 = vpop.f32.mrf.mxu0
      %v6918 = vadd.f32 %v6589, %v6917
      %v6919 = vpop.f32.mrf.mxu0
      %v6920 = vadd.f32 %v6591, %v6919
      %6921 = vmatmul.bf16.gmra.mxu0 %v6127
      %v6922 = vpop.f32.mrf.mxu0
      %v6923 = vadd.f32 %v6594, %v6922
      %v6924 = vpop.f32.mrf.mxu0
      %v6925 = vadd.f32 %v6596, %v6924
      %6926 = vmatmul.bf16.gmra.mxu0 %v6129
      %v6927 = vpop.f32.mrf.mxu0
      %v6928 = vadd.f32 %v6599, %v6927
      %v6929 = vpop.f32.mrf.mxu0
      %v6930 = vadd.f32 %v6601, %v6929
      %6931 = vmatmul.bf16.gmra.mxu0 %v6131
      %v6932 = vpop.f32.mrf.mxu0
      %v6933 = vadd.f32 %v6604, %v6932
      %v6934 = vpop.f32.mrf.mxu0
      %v6935 = vadd.f32 %v6606, %v6934
      %6936 = vmatmul.bf16.gmra.mxu0 %v6133
      %v6937 = vpop.f32.mrf.mxu0
      %v6938 = vadd.f32 %v6609, %v6937
      %v6939 = vpop.f32.mrf.mxu0
      %v6940 = vadd.f32 %v6611, %v6939
      %6941 = vmatmul.bf16.gmra.mxu0 %v6135
      %v6942 = vpop.f32.mrf.mxu0
      %v6943 = vadd.f32 %v6614, %v6942
      %v6944 = vpop.f32.mrf.mxu0
      %v6945 = vadd.f32 %v6616, %v6944
      %6946 = vmatmul.bf16.gmra.mxu0 %v6137
      %v6947 = vpop.f32.mrf.mxu0
      %v6948 = vadd.f32 %v6619, %v6947
      %v6949 = vpop.f32.mrf.mxu0
      %v6950 = vadd.f32 %v6621, %v6949
      %6951 = vmatmul.bf16.gmra.mxu0 %v6139
      %v6952 = vpop.f32.mrf.mxu0
      %v6953 = vadd.f32 %v6624, %v6952
      %v6954 = vpop.f32.mrf.mxu0
      %v6955 = vadd.f32 %v6626, %v6954
      %6956 = vmatmul.bf16.gmra.mxu0 %v6141
      %v6957 = vpop.f32.mrf.mxu0
      %v6958 = vadd.f32 %v6629, %v6957
      %v6959 = vpop.f32.mrf.mxu0
      %v6960 = vadd.f32 %v6631, %v6959
      %6961 = vmatmul.bf16.gmra.mxu0 %v6143
      %v6962 = vpop.f32.mrf.mxu0
      %v6963 = vadd.f32 %v6634, %v6962
      %v6964 = vpop.f32.mrf.mxu0
      %v6965 = vadd.f32 %v6636, %v6964
      %6966 = vmatmul.bf16.gmra.mxu0 %v6145
      %v6967 = vpop.f32.mrf.mxu0
      %v6968 = vadd.f32 %v6639, %v6967
      %v6969 = vpop.f32.mrf.mxu0
      %v6970 = vadd.f32 %v6641, %v6969
      %6971 = vmatmul.bf16.gmra.mxu0 %v6147
      %v6972 = vpop.f32.mrf.mxu0
      %v6973 = vadd.f32 %v6644, %v6972
      %v6974 = vpop.f32.mrf.mxu0
      %v6975 = vadd.f32 %v6646, %v6974
      %6976 = vmatmul.bf16.gmra.mxu0 %v6149
      %v6977 = vpop.f32.mrf.mxu0
      %v6978 = vadd.f32 %v6649, %v6977
      %v6979 = vpop.f32.mrf.mxu0
      %v6980 = vadd.f32 %v6651, %v6979
      %6981 = vmatmul.bf16.gmra.mxu0 %v6151
      %v6982 = vpop.f32.mrf.mxu0
      %v6983 = vadd.f32 %v6654, %v6982
      %v6984 = vpop.f32.mrf.mxu0
      %v6985 = vadd.f32 %v6656, %v6984
      %6986 = vmatmul.bf16.gmra.mxu0 %v6153
      %v6987 = vpop.f32.mrf.mxu0
      %v6988 = vadd.f32 %v6659, %v6987
      %v6989 = vpop.f32.mrf.mxu0
      %v6990 = vadd.f32 %v6661, %v6989
      %6991 = vmatmul.bf16.gmra.mxu0 %v6155
      %v6992 = vpop.f32.mrf.mxu0
      %v6993 = vadd.f32 %v6664, %v6992
      %v6994 = vpop.f32.mrf.mxu0
      %v6995 = vadd.f32 %v6666, %v6994
      %6996 = vmatmul.bf16.gmra.mxu0 %v6157
      %v6997 = vpop.f32.mrf.mxu0
      %v6998 = vadd.f32 %v6669, %v6997
      %v6999 = vpop.f32.mrf.mxu0
      %v7000 = vadd.f32 %v6671, %v6999
      %7001 = vmatmul.bf16.gmra.mxu0 %v6159
      %v7002 = vpop.f32.mrf.mxu0
      %v7003 = vadd.f32 %v6674, %v7002
      %v7004 = vpop.f32.mrf.mxu0
      %v7005 = vadd.f32 %v6676, %v7004
      %7006 = vmatmul.bf16.gmra.mxu0 %v6161
      %v7007 = vpop.f32.mrf.mxu0
      %v7008 = vadd.f32 %v6679, %v7007
      %v7009 = vpop.f32.mrf.mxu0
      %v7010 = vadd.f32 %v6681, %v7009
      %7011 = vmatmul.bf16.gmra.mxu0 %v6163
      %v7012 = vpop.f32.mrf.mxu0
      %v7013 = vadd.f32 %v6684, %v7012
      %v7014 = vpop.f32.mrf.mxu0
      %v7015 = vadd.f32 %v6686, %v7014
      %7016 = vmatmul.bf16.gmra.mxu0 %v6165
      %v7017 = vpop.f32.mrf.mxu0
      %v7018 = vadd.f32 %v6689, %v7017
      %v7019 = vpop.f32.mrf.mxu0
      %v7020 = vadd.f32 %v6691, %v7019
      %7021 = vdwg.mxu0
      %7022 = vmatpush.bf16.msra.mxu0 %v6315
      %7023 = vmatpush.bf16.msra.mxu0 %v6313
      %7024 = vmatpush.bf16.msra.mxu0 %v6311
      %7025 = vmatpush.bf16.msra.mxu0 %v6309
      %7026 = vmatpush.bf16.msra.mxu0 %v6307
      %7027 = vmatpush.bf16.msra.mxu0 %v6305
      %7028 = vmatpush.bf16.msra.mxu0 %v6303
      %7029 = vmatpush.bf16.msra.mxu0 %v6301
      %7030 = vmatmul.bf16.gmra.mxu0 %v6038
      %v7031 = vpop.f32.mrf.mxu0
      %v7032 = vadd.f32 %v6201, %v7031
      %v7033 = vpop.f32.mrf.mxu0
      %v7034 = vadd.f32 %v6201, %v7033
      %7035 = vmatmul.bf16.gmra.mxu0 %v6040
      %v7036 = vpop.f32.mrf.mxu0
      %v7037 = vadd.f32 %v6201, %v7036
      %v7038 = vpop.f32.mrf.mxu0
      %v7039 = vadd.f32 %v6201, %v7038
      %7040 = vmatmul.bf16.gmra.mxu0 %v6042
      %v7041 = vpop.f32.mrf.mxu0
      %v7042 = vadd.f32 %v6201, %v7041
      %v7043 = vpop.f32.mrf.mxu0
      %v7044 = vadd.f32 %v6201, %v7043
      %7045 = vmatmul.bf16.gmra.mxu0 %v6044
      %v7046 = vpop.f32.mrf.mxu0
      %v7047 = vadd.f32 %v6201, %v7046
      %v7048 = vpop.f32.mrf.mxu0
      %v7049 = vadd.f32 %v6201, %v7048
      %7050 = vmatmul.bf16.gmra.mxu0 %v6046
      %v7051 = vpop.f32.mrf.mxu0
      %v7052 = vadd.f32 %v6201, %v7051
      %v7053 = vpop.f32.mrf.mxu0
      %v7054 = vadd.f32 %v6201, %v7053
      %7055 = vmatmul.bf16.gmra.mxu0 %v6048
      %v7056 = vpop.f32.mrf.mxu0
      %v7057 = vadd.f32 %v6201, %v7056
      %v7058 = vpop.f32.mrf.mxu0
      %v7059 = vadd.f32 %v6201, %v7058
      %7060 = vmatmul.bf16.gmra.mxu0 %v6050
      %v7061 = vpop.f32.mrf.mxu0
      %v7062 = vadd.f32 %v6201, %v7061
      %v7063 = vpop.f32.mrf.mxu0
      %v7064 = vadd.f32 %v6201, %v7063
      %7065 = vmatmul.bf16.gmra.mxu0 %v6052
      %v7066 = vpop.f32.mrf.mxu0
      %v7067 = vadd.f32 %v6201, %v7066
      %v7068 = vpop.f32.mrf.mxu0
      %v7069 = vadd.f32 %v6201, %v7068
      %7070 = vmatmul.bf16.gmra.mxu0 %v6054
      %v7071 = vpop.f32.mrf.mxu0
      %v7072 = vadd.f32 %v6201, %v7071
      %v7073 = vpop.f32.mrf.mxu0
      %v7074 = vadd.f32 %v6201, %v7073
      %7075 = vmatmul.bf16.gmra.mxu0 %v6056
      %v7076 = vpop.f32.mrf.mxu0
      %v7077 = vadd.f32 %v6201, %v7076
      %v7078 = vpop.f32.mrf.mxu0
      %v7079 = vadd.f32 %v6201, %v7078
      %7080 = vmatmul.bf16.gmra.mxu0 %v6058
      %v7081 = vpop.f32.mrf.mxu0
      %v7082 = vadd.f32 %v6201, %v7081
      %v7083 = vpop.f32.mrf.mxu0
      %v7084 = vadd.f32 %v6201, %v7083
      %7085 = vmatmul.bf16.gmra.mxu0 %v6060
      %v7086 = vpop.f32.mrf.mxu0
      %v7087 = vadd.f32 %v6201, %v7086
      %v7088 = vpop.f32.mrf.mxu0
      %v7089 = vadd.f32 %v6201, %v7088
      %7090 = vmatmul.bf16.gmra.mxu0 %v6062
      %v7091 = vpop.f32.mrf.mxu0
      %v7092 = vadd.f32 %v6201, %v7091
      %v7093 = vpop.f32.mrf.mxu0
      %v7094 = vadd.f32 %v6201, %v7093
      %7095 = vmatmul.bf16.gmra.mxu0 %v6064
      %v7096 = vpop.f32.mrf.mxu0
      %v7097 = vadd.f32 %v6201, %v7096
      %v7098 = vpop.f32.mrf.mxu0
      %v7099 = vadd.f32 %v6201, %v7098
      %7100 = vmatmul.bf16.gmra.mxu0 %v6066
      %v7101 = vpop.f32.mrf.mxu0
      %v7102 = vadd.f32 %v6201, %v7101
      %v7103 = vpop.f32.mrf.mxu0
      %v7104 = vadd.f32 %v6201, %v7103
      %7105 = vmatmul.bf16.gmra.mxu0 %v6068
      %v7106 = vpop.f32.mrf.mxu0
      %v7107 = vadd.f32 %v6201, %v7106
      %v7108 = vpop.f32.mrf.mxu0
      %v7109 = vadd.f32 %v6201, %v7108
      %7110 = vmatmul.bf16.gmra.mxu0 %v6070
      %v7111 = vpop.f32.mrf.mxu0
      %v7112 = vadd.f32 %v6201, %v7111
      %v7113 = vpop.f32.mrf.mxu0
      %v7114 = vadd.f32 %v6201, %v7113
      %7115 = vmatmul.bf16.gmra.mxu0 %v6072
      %v7116 = vpop.f32.mrf.mxu0
      %v7117 = vadd.f32 %v6201, %v7116
      %v7118 = vpop.f32.mrf.mxu0
      %v7119 = vadd.f32 %v6201, %v7118
      %7120 = vmatmul.bf16.gmra.mxu0 %v6074
      %v7121 = vpop.f32.mrf.mxu0
      %v7122 = vadd.f32 %v6201, %v7121
      %v7123 = vpop.f32.mrf.mxu0
      %v7124 = vadd.f32 %v6201, %v7123
      %7125 = vmatmul.bf16.gmra.mxu0 %v6076
      %v7126 = vpop.f32.mrf.mxu0
      %v7127 = vadd.f32 %v6201, %v7126
      %v7128 = vpop.f32.mrf.mxu0
      %v7129 = vadd.f32 %v6201, %v7128
      %7130 = vmatmul.bf16.gmra.mxu0 %v6078
      %v7131 = vpop.f32.mrf.mxu0
      %v7132 = vadd.f32 %v6201, %v7131
      %v7133 = vpop.f32.mrf.mxu0
      %v7134 = vadd.f32 %v6201, %v7133
      %7135 = vmatmul.bf16.gmra.mxu0 %v6080
      %v7136 = vpop.f32.mrf.mxu0
      %v7137 = vadd.f32 %v6201, %v7136
      %v7138 = vpop.f32.mrf.mxu0
      %v7139 = vadd.f32 %v6201, %v7138
      %7140 = vmatmul.bf16.gmra.mxu0 %v6082
      %v7141 = vpop.f32.mrf.mxu0
      %v7142 = vadd.f32 %v6201, %v7141
      %v7143 = vpop.f32.mrf.mxu0
      %v7144 = vadd.f32 %v6201, %v7143
      %7145 = vmatmul.bf16.gmra.mxu0 %v6084
      %v7146 = vpop.f32.mrf.mxu0
      %v7147 = vadd.f32 %v6201, %v7146
      %v7148 = vpop.f32.mrf.mxu0
      %v7149 = vadd.f32 %v6201, %v7148
      %7150 = vmatmul.bf16.gmra.mxu0 %v6086
      %v7151 = vpop.f32.mrf.mxu0
      %v7152 = vadd.f32 %v6201, %v7151
      %v7153 = vpop.f32.mrf.mxu0
      %v7154 = vadd.f32 %v6201, %v7153
      %7155 = vmatmul.bf16.gmra.mxu0 %v6088
      %v7156 = vpop.f32.mrf.mxu0
      %v7157 = vadd.f32 %v6201, %v7156
      %v7158 = vpop.f32.mrf.mxu0
      %v7159 = vadd.f32 %v6201, %v7158
      %7160 = vmatmul.bf16.gmra.mxu0 %v6090
      %v7161 = vpop.f32.mrf.mxu0
      %v7162 = vadd.f32 %v6201, %v7161
      %v7163 = vpop.f32.mrf.mxu0
      %v7164 = vadd.f32 %v6201, %v7163
      %7165 = vmatmul.bf16.gmra.mxu0 %v6092
      %v7166 = vpop.f32.mrf.mxu0
      %v7167 = vadd.f32 %v6201, %v7166
      %v7168 = vpop.f32.mrf.mxu0
      %v7169 = vadd.f32 %v6201, %v7168
      %7170 = vmatmul.bf16.gmra.mxu0 %v6094
      %v7171 = vpop.f32.mrf.mxu0
      %v7172 = vadd.f32 %v6201, %v7171
      %v7173 = vpop.f32.mrf.mxu0
      %v7174 = vadd.f32 %v6201, %v7173
      %7175 = vmatmul.bf16.gmra.mxu0 %v6096
      %v7176 = vpop.f32.mrf.mxu0
      %v7177 = vadd.f32 %v6201, %v7176
      %v7178 = vpop.f32.mrf.mxu0
      %v7179 = vadd.f32 %v6201, %v7178
      %7180 = vmatmul.bf16.gmra.mxu0 %v6098
      %v7181 = vpop.f32.mrf.mxu0
      %v7182 = vadd.f32 %v6201, %v7181
      %v7183 = vpop.f32.mrf.mxu0
      %v7184 = vadd.f32 %v6201, %v7183
      %7185 = vmatmul.bf16.gmra.mxu0 %v6100
      %v7186 = vpop.f32.mrf.mxu0
      %v7187 = vadd.f32 %v6201, %v7186
      %v7188 = vpop.f32.mrf.mxu0
      %v7189 = vadd.f32 %v6201, %v7188
      %7190 = vmatmul.bf16.gmra.mxu0 %v6102
      %v7191 = vpop.f32.mrf.mxu0
      %v7192 = vadd.f32 %v6201, %v7191
      %v7193 = vpop.f32.mrf.mxu0
      %v7194 = vadd.f32 %v6201, %v7193
      %7195 = vmatmul.bf16.gmra.mxu0 %v6104
      %v7196 = vpop.f32.mrf.mxu0
      %v7197 = vadd.f32 %v6201, %v7196
      %v7198 = vpop.f32.mrf.mxu0
      %v7199 = vadd.f32 %v6201, %v7198
      %7200 = vmatmul.bf16.gmra.mxu0 %v6106
      %v7201 = vpop.f32.mrf.mxu0
      %v7202 = vadd.f32 %v6201, %v7201
      %v7203 = vpop.f32.mrf.mxu0
      %v7204 = vadd.f32 %v6201, %v7203
      %7205 = vmatmul.bf16.gmra.mxu0 %v6108
      %v7206 = vpop.f32.mrf.mxu0
      %v7207 = vadd.f32 %v6201, %v7206
      %v7208 = vpop.f32.mrf.mxu0
      %v7209 = vadd.f32 %v6201, %v7208
      %7210 = vmatmul.bf16.gmra.mxu0 %v6110
      %v7211 = vpop.f32.mrf.mxu0
      %v7212 = vadd.f32 %v6201, %v7211
      %v7213 = vpop.f32.mrf.mxu0
      %v7214 = vadd.f32 %v6201, %v7213
      %7215 = vmatmul.bf16.gmra.mxu0 %v6112
      %v7216 = vpop.f32.mrf.mxu0
      %v7217 = vadd.f32 %v6201, %v7216
      %v7218 = vpop.f32.mrf.mxu0
      %v7219 = vadd.f32 %v6201, %v7218
      %7220 = vmatmul.bf16.gmra.mxu0 %v6114
      %v7221 = vpop.f32.mrf.mxu0
      %v7222 = vadd.f32 %v6201, %v7221
      %v7223 = vpop.f32.mrf.mxu0
      %v7224 = vadd.f32 %v6201, %v7223
      %7225 = vmatmul.bf16.gmra.mxu0 %v6116
      %v7226 = vpop.f32.mrf.mxu0
      %v7227 = vadd.f32 %v6201, %v7226
      %v7228 = vpop.f32.mrf.mxu0
      %v7229 = vadd.f32 %v6201, %v7228
      %7230 = vmatmul.bf16.gmra.mxu0 %v6118
      %v7231 = vpop.f32.mrf.mxu0
      %v7232 = vadd.f32 %v6201, %v7231
      %v7233 = vpop.f32.mrf.mxu0
      %v7234 = vadd.f32 %v6201, %v7233
      %7235 = vmatmul.bf16.gmra.mxu0 %v6120
      %v7236 = vpop.f32.mrf.mxu0
      %v7237 = vadd.f32 %v6201, %v7236
      %v7238 = vpop.f32.mrf.mxu0
      %v7239 = vadd.f32 %v6201, %v7238
      %7240 = vmatmul.bf16.gmra.mxu0 %v6122
      %v7241 = vpop.f32.mrf.mxu0
      %v7242 = vadd.f32 %v6201, %v7241
      %v7243 = vpop.f32.mrf.mxu0
      %v7244 = vadd.f32 %v6201, %v7243
      %7245 = vmatmul.bf16.gmra.mxu0 %v6124
      %v7246 = vpop.f32.mrf.mxu0
      %v7247 = vadd.f32 %v6201, %v7246
      %v7248 = vpop.f32.mrf.mxu0
      %v7249 = vadd.f32 %v6201, %v7248
      %7250 = vmatmul.bf16.gmra.mxu0 %v6126
      %v7251 = vpop.f32.mrf.mxu0
      %v7252 = vadd.f32 %v6201, %v7251
      %v7253 = vpop.f32.mrf.mxu0
      %v7254 = vadd.f32 %v6201, %v7253
      %7255 = vmatmul.bf16.gmra.mxu0 %v6128
      %v7256 = vpop.f32.mrf.mxu0
      %v7257 = vadd.f32 %v6201, %v7256
      %v7258 = vpop.f32.mrf.mxu0
      %v7259 = vadd.f32 %v6201, %v7258
      %7260 = vmatmul.bf16.gmra.mxu0 %v6130
      %v7261 = vpop.f32.mrf.mxu0
      %v7262 = vadd.f32 %v6201, %v7261
      %v7263 = vpop.f32.mrf.mxu0
      %v7264 = vadd.f32 %v6201, %v7263
      %7265 = vmatmul.bf16.gmra.mxu0 %v6132
      %v7266 = vpop.f32.mrf.mxu0
      %v7267 = vadd.f32 %v6201, %v7266
      %v7268 = vpop.f32.mrf.mxu0
      %v7269 = vadd.f32 %v6201, %v7268
      %7270 = vmatmul.bf16.gmra.mxu0 %v6134
      %v7271 = vpop.f32.mrf.mxu0
      %v7272 = vadd.f32 %v6201, %v7271
      %v7273 = vpop.f32.mrf.mxu0
      %v7274 = vadd.f32 %v6201, %v7273
      %7275 = vmatmul.bf16.gmra.mxu0 %v6136
      %v7276 = vpop.f32.mrf.mxu0
      %v7277 = vadd.f32 %v6201, %v7276
      %v7278 = vpop.f32.mrf.mxu0
      %v7279 = vadd.f32 %v6201, %v7278
      %7280 = vmatmul.bf16.gmra.mxu0 %v6138
      %v7281 = vpop.f32.mrf.mxu0
      %v7282 = vadd.f32 %v6201, %v7281
      %v7283 = vpop.f32.mrf.mxu0
      %v7284 = vadd.f32 %v6201, %v7283
      %7285 = vmatmul.bf16.gmra.mxu0 %v6140
      %v7286 = vpop.f32.mrf.mxu0
      %v7287 = vadd.f32 %v6201, %v7286
      %v7288 = vpop.f32.mrf.mxu0
      %v7289 = vadd.f32 %v6201, %v7288
      %7290 = vmatmul.bf16.gmra.mxu0 %v6142
      %v7291 = vpop.f32.mrf.mxu0
      %v7292 = vadd.f32 %v6201, %v7291
      %v7293 = vpop.f32.mrf.mxu0
      %v7294 = vadd.f32 %v6201, %v7293
      %7295 = vmatmul.bf16.gmra.mxu0 %v6144
      %v7296 = vpop.f32.mrf.mxu0
      %v7297 = vadd.f32 %v6201, %v7296
      %v7298 = vpop.f32.mrf.mxu0
      %v7299 = vadd.f32 %v6201, %v7298
      %7300 = vmatmul.bf16.gmra.mxu0 %v6146
      %v7301 = vpop.f32.mrf.mxu0
      %v7302 = vadd.f32 %v6201, %v7301
      %v7303 = vpop.f32.mrf.mxu0
      %v7304 = vadd.f32 %v6201, %v7303
      %7305 = vmatmul.bf16.gmra.mxu0 %v6148
      %v7306 = vpop.f32.mrf.mxu0
      %v7307 = vadd.f32 %v6201, %v7306
      %v7308 = vpop.f32.mrf.mxu0
      %v7309 = vadd.f32 %v6201, %v7308
      %7310 = vmatmul.bf16.gmra.mxu0 %v6150
      %v7311 = vpop.f32.mrf.mxu0
      %v7312 = vadd.f32 %v6201, %v7311
      %v7313 = vpop.f32.mrf.mxu0
      %v7314 = vadd.f32 %v6201, %v7313
      %7315 = vmatmul.bf16.gmra.mxu0 %v6152
      %v7316 = vpop.f32.mrf.mxu0
      %v7317 = vadd.f32 %v6201, %v7316
      %v7318 = vpop.f32.mrf.mxu0
      %v7319 = vadd.f32 %v6201, %v7318
      %7320 = vmatmul.bf16.gmra.mxu0 %v6154
      %v7321 = vpop.f32.mrf.mxu0
      %v7322 = vadd.f32 %v6201, %v7321
      %v7323 = vpop.f32.mrf.mxu0
      %v7324 = vadd.f32 %v6201, %v7323
      %7325 = vmatmul.bf16.gmra.mxu0 %v6156
      %v7326 = vpop.f32.mrf.mxu0
      %v7327 = vadd.f32 %v6201, %v7326
      %v7328 = vpop.f32.mrf.mxu0
      %v7329 = vadd.f32 %v6201, %v7328
      %7330 = vmatmul.bf16.gmra.mxu0 %v6158
      %v7331 = vpop.f32.mrf.mxu0
      %v7332 = vadd.f32 %v6201, %v7331
      %v7333 = vpop.f32.mrf.mxu0
      %v7334 = vadd.f32 %v6201, %v7333
      %7335 = vmatmul.bf16.gmra.mxu0 %v6160
      %v7336 = vpop.f32.mrf.mxu0
      %v7337 = vadd.f32 %v6201, %v7336
      %v7338 = vpop.f32.mrf.mxu0
      %v7339 = vadd.f32 %v6201, %v7338
      %7340 = vmatmul.bf16.gmra.mxu0 %v6162
      %v7341 = vpop.f32.mrf.mxu0
      %v7342 = vadd.f32 %v6201, %v7341
      %v7343 = vpop.f32.mrf.mxu0
      %v7344 = vadd.f32 %v6201, %v7343
      %7345 = vmatmul.bf16.gmra.mxu0 %v6164
      %v7346 = vpop.f32.mrf.mxu0
      %v7347 = vadd.f32 %v6201, %v7346
      %v7348 = vpop.f32.mrf.mxu0
      %v7349 = vadd.f32 %v6201, %v7348
      %7350 = vdwg.mxu0
      %7351 = vmatpush.bf16.msra.mxu0 %v6331
      %7352 = vmatpush.bf16.msra.mxu0 %v6329
      %7353 = vmatpush.bf16.msra.mxu0 %v6327
      %7354 = vmatpush.bf16.msra.mxu0 %v6325
      %7355 = vmatpush.bf16.msra.mxu0 %v6323
      %7356 = vmatpush.bf16.msra.mxu0 %v6321
      %7357 = vmatpush.bf16.msra.mxu0 %v6319
      %7358 = vmatpush.bf16.msra.mxu0 %v6317
      %7359 = vmatmul.bf16.gmra.mxu0 %v6039
      %v7360 = vpop.f32.mrf.mxu0
      %v7361 = vadd.f32 %v7032, %v7360
      %v7362 = vpop.f32.mrf.mxu0
      %v7363 = vadd.f32 %v7034, %v7362
      %7364 = vmatmul.bf16.gmra.mxu0 %v6041
      %v7365 = vpop.f32.mrf.mxu0
      %v7366 = vadd.f32 %v7037, %v7365
      %v7367 = vpop.f32.mrf.mxu0
      %v7368 = vadd.f32 %v7039, %v7367
      %7369 = vmatmul.bf16.gmra.mxu0 %v6043
      %v7370 = vpop.f32.mrf.mxu0
      %v7371 = vadd.f32 %v7042, %v7370
      %v7372 = vpop.f32.mrf.mxu0
      %v7373 = vadd.f32 %v7044, %v7372
      %7374 = vmatmul.bf16.gmra.mxu0 %v6045
      %v7375 = vpop.f32.mrf.mxu0
      %v7376 = vadd.f32 %v7047, %v7375
      %v7377 = vpop.f32.mrf.mxu0
      %v7378 = vadd.f32 %v7049, %v7377
      %7379 = vmatmul.bf16.gmra.mxu0 %v6047
      %v7380 = vpop.f32.mrf.mxu0
      %v7381 = vadd.f32 %v7052, %v7380
      %v7382 = vpop.f32.mrf.mxu0
      %v7383 = vadd.f32 %v7054, %v7382
      %7384 = vmatmul.bf16.gmra.mxu0 %v6049
      %v7385 = vpop.f32.mrf.mxu0
      %v7386 = vadd.f32 %v7057, %v7385
      %v7387 = vpop.f32.mrf.mxu0
      %v7388 = vadd.f32 %v7059, %v7387
      %7389 = vmatmul.bf16.gmra.mxu0 %v6051
      %v7390 = vpop.f32.mrf.mxu0
      %v7391 = vadd.f32 %v7062, %v7390
      %v7392 = vpop.f32.mrf.mxu0
      %v7393 = vadd.f32 %v7064, %v7392
      %7394 = vmatmul.bf16.gmra.mxu0 %v6053
      %v7395 = vpop.f32.mrf.mxu0
      %v7396 = vadd.f32 %v7067, %v7395
      %v7397 = vpop.f32.mrf.mxu0
      %v7398 = vadd.f32 %v7069, %v7397
      %7399 = vmatmul.bf16.gmra.mxu0 %v6055
      %v7400 = vpop.f32.mrf.mxu0
      %v7401 = vadd.f32 %v7072, %v7400
      %v7402 = vpop.f32.mrf.mxu0
      %v7403 = vadd.f32 %v7074, %v7402
      %7404 = vmatmul.bf16.gmra.mxu0 %v6057
      %v7405 = vpop.f32.mrf.mxu0
      %v7406 = vadd.f32 %v7077, %v7405
      %v7407 = vpop.f32.mrf.mxu0
      %v7408 = vadd.f32 %v7079, %v7407
      %7409 = vmatmul.bf16.gmra.mxu0 %v6059
      %v7410 = vpop.f32.mrf.mxu0
      %v7411 = vadd.f32 %v7082, %v7410
      %v7412 = vpop.f32.mrf.mxu0
      %v7413 = vadd.f32 %v7084, %v7412
      %7414 = vmatmul.bf16.gmra.mxu0 %v6061
      %v7415 = vpop.f32.mrf.mxu0
      %v7416 = vadd.f32 %v7087, %v7415
      %v7417 = vpop.f32.mrf.mxu0
      %v7418 = vadd.f32 %v7089, %v7417
      %7419 = vmatmul.bf16.gmra.mxu0 %v6063
      %v7420 = vpop.f32.mrf.mxu0
      %v7421 = vadd.f32 %v7092, %v7420
      %v7422 = vpop.f32.mrf.mxu0
      %v7423 = vadd.f32 %v7094, %v7422
      %7424 = vmatmul.bf16.gmra.mxu0 %v6065
      %v7425 = vpop.f32.mrf.mxu0
      %v7426 = vadd.f32 %v7097, %v7425
      %v7427 = vpop.f32.mrf.mxu0
      %v7428 = vadd.f32 %v7099, %v7427
      %7429 = vmatmul.bf16.gmra.mxu0 %v6067
      %v7430 = vpop.f32.mrf.mxu0
      %v7431 = vadd.f32 %v7102, %v7430
      %v7432 = vpop.f32.mrf.mxu0
      %v7433 = vadd.f32 %v7104, %v7432
      %7434 = vmatmul.bf16.gmra.mxu0 %v6069
      %v7435 = vpop.f32.mrf.mxu0
      %v7436 = vadd.f32 %v7107, %v7435
      %v7437 = vpop.f32.mrf.mxu0
      %v7438 = vadd.f32 %v7109, %v7437
      %7439 = vmatmul.bf16.gmra.mxu0 %v6071
      %v7440 = vpop.f32.mrf.mxu0
      %v7441 = vadd.f32 %v7112, %v7440
      %v7442 = vpop.f32.mrf.mxu0
      %v7443 = vadd.f32 %v7114, %v7442
      %7444 = vmatmul.bf16.gmra.mxu0 %v6073
      %v7445 = vpop.f32.mrf.mxu0
      %v7446 = vadd.f32 %v7117, %v7445
      %v7447 = vpop.f32.mrf.mxu0
      %v7448 = vadd.f32 %v7119, %v7447
      %7449 = vmatmul.bf16.gmra.mxu0 %v6075
      %v7450 = vpop.f32.mrf.mxu0
      %v7451 = vadd.f32 %v7122, %v7450
      %v7452 = vpop.f32.mrf.mxu0
      %v7453 = vadd.f32 %v7124, %v7452
      %7454 = vmatmul.bf16.gmra.mxu0 %v6077
      %v7455 = vpop.f32.mrf.mxu0
      %v7456 = vadd.f32 %v7127, %v7455
      %v7457 = vpop.f32.mrf.mxu0
      %v7458 = vadd.f32 %v7129, %v7457
      %7459 = vmatmul.bf16.gmra.mxu0 %v6079
      %v7460 = vpop.f32.mrf.mxu0
      %v7461 = vadd.f32 %v7132, %v7460
      %v7462 = vpop.f32.mrf.mxu0
      %v7463 = vadd.f32 %v7134, %v7462
      %7464 = vmatmul.bf16.gmra.mxu0 %v6081
      %v7465 = vpop.f32.mrf.mxu0
      %v7466 = vadd.f32 %v7137, %v7465
      %v7467 = vpop.f32.mrf.mxu0
      %v7468 = vadd.f32 %v7139, %v7467
      %7469 = vmatmul.bf16.gmra.mxu0 %v6083
      %v7470 = vpop.f32.mrf.mxu0
      %v7471 = vadd.f32 %v7142, %v7470
      %v7472 = vpop.f32.mrf.mxu0
      %v7473 = vadd.f32 %v7144, %v7472
      %7474 = vmatmul.bf16.gmra.mxu0 %v6085
      %v7475 = vpop.f32.mrf.mxu0
      %v7476 = vadd.f32 %v7147, %v7475
      %v7477 = vpop.f32.mrf.mxu0
      %v7478 = vadd.f32 %v7149, %v7477
      %7479 = vmatmul.bf16.gmra.mxu0 %v6087
      %v7480 = vpop.f32.mrf.mxu0
      %v7481 = vadd.f32 %v7152, %v7480
      %v7482 = vpop.f32.mrf.mxu0
      %v7483 = vadd.f32 %v7154, %v7482
      %7484 = vmatmul.bf16.gmra.mxu0 %v6089
      %v7485 = vpop.f32.mrf.mxu0
      %v7486 = vadd.f32 %v7157, %v7485
      %v7487 = vpop.f32.mrf.mxu0
      %v7488 = vadd.f32 %v7159, %v7487
      %7489 = vmatmul.bf16.gmra.mxu0 %v6091
      %v7490 = vpop.f32.mrf.mxu0
      %v7491 = vadd.f32 %v7162, %v7490
      %v7492 = vpop.f32.mrf.mxu0
      %v7493 = vadd.f32 %v7164, %v7492
      %7494 = vmatmul.bf16.gmra.mxu0 %v6093
      %v7495 = vpop.f32.mrf.mxu0
      %v7496 = vadd.f32 %v7167, %v7495
      %v7497 = vpop.f32.mrf.mxu0
      %v7498 = vadd.f32 %v7169, %v7497
      %7499 = vmatmul.bf16.gmra.mxu0 %v6095
      %v7500 = vpop.f32.mrf.mxu0
      %v7501 = vadd.f32 %v7172, %v7500
      %v7502 = vpop.f32.mrf.mxu0
      %v7503 = vadd.f32 %v7174, %v7502
      %7504 = vmatmul.bf16.gmra.mxu0 %v6097
      %v7505 = vpop.f32.mrf.mxu0
      %v7506 = vadd.f32 %v7177, %v7505
      %v7507 = vpop.f32.mrf.mxu0
      %v7508 = vadd.f32 %v7179, %v7507
      %7509 = vmatmul.bf16.gmra.mxu0 %v6099
      %v7510 = vpop.f32.mrf.mxu0
      %v7511 = vadd.f32 %v7182, %v7510
      %v7512 = vpop.f32.mrf.mxu0
      %v7513 = vadd.f32 %v7184, %v7512
      %7514 = vmatmul.bf16.gmra.mxu0 %v6101
      %v7515 = vpop.f32.mrf.mxu0
      %v7516 = vadd.f32 %v7187, %v7515
      %v7517 = vpop.f32.mrf.mxu0
      %v7518 = vadd.f32 %v7189, %v7517
      %7519 = vmatmul.bf16.gmra.mxu0 %v6103
      %v7520 = vpop.f32.mrf.mxu0
      %v7521 = vadd.f32 %v7192, %v7520
      %v7522 = vpop.f32.mrf.mxu0
      %v7523 = vadd.f32 %v7194, %v7522
      %7524 = vmatmul.bf16.gmra.mxu0 %v6105
      %v7525 = vpop.f32.mrf.mxu0
      %v7526 = vadd.f32 %v7197, %v7525
      %v7527 = vpop.f32.mrf.mxu0
      %v7528 = vadd.f32 %v7199, %v7527
      %7529 = vmatmul.bf16.gmra.mxu0 %v6107
      %v7530 = vpop.f32.mrf.mxu0
      %v7531 = vadd.f32 %v7202, %v7530
      %v7532 = vpop.f32.mrf.mxu0
      %v7533 = vadd.f32 %v7204, %v7532
      %7534 = vmatmul.bf16.gmra.mxu0 %v6109
      %v7535 = vpop.f32.mrf.mxu0
      %v7536 = vadd.f32 %v7207, %v7535
      %v7537 = vpop.f32.mrf.mxu0
      %v7538 = vadd.f32 %v7209, %v7537
      %7539 = vmatmul.bf16.gmra.mxu0 %v6111
      %v7540 = vpop.f32.mrf.mxu0
      %v7541 = vadd.f32 %v7212, %v7540
      %v7542 = vpop.f32.mrf.mxu0
      %v7543 = vadd.f32 %v7214, %v7542
      %7544 = vmatmul.bf16.gmra.mxu0 %v6113
      %v7545 = vpop.f32.mrf.mxu0
      %v7546 = vadd.f32 %v7217, %v7545
      %v7547 = vpop.f32.mrf.mxu0
      %v7548 = vadd.f32 %v7219, %v7547
      %7549 = vmatmul.bf16.gmra.mxu0 %v6115
      %v7550 = vpop.f32.mrf.mxu0
      %v7551 = vadd.f32 %v7222, %v7550
      %v7552 = vpop.f32.mrf.mxu0
      %v7553 = vadd.f32 %v7224, %v7552
      %7554 = vmatmul.bf16.gmra.mxu0 %v6117
      %v7555 = vpop.f32.mrf.mxu0
      %v7556 = vadd.f32 %v7227, %v7555
      %v7557 = vpop.f32.mrf.mxu0
      %v7558 = vadd.f32 %v7229, %v7557
      %7559 = vmatmul.bf16.gmra.mxu0 %v6119
      %v7560 = vpop.f32.mrf.mxu0
      %v7561 = vadd.f32 %v7232, %v7560
      %v7562 = vpop.f32.mrf.mxu0
      %v7563 = vadd.f32 %v7234, %v7562
      %7564 = vmatmul.bf16.gmra.mxu0 %v6121
      %v7565 = vpop.f32.mrf.mxu0
      %v7566 = vadd.f32 %v7237, %v7565
      %v7567 = vpop.f32.mrf.mxu0
      %v7568 = vadd.f32 %v7239, %v7567
      %7569 = vmatmul.bf16.gmra.mxu0 %v6123
      %v7570 = vpop.f32.mrf.mxu0
      %v7571 = vadd.f32 %v7242, %v7570
      %v7572 = vpop.f32.mrf.mxu0
      %v7573 = vadd.f32 %v7244, %v7572
      %7574 = vmatmul.bf16.gmra.mxu0 %v6125
      %v7575 = vpop.f32.mrf.mxu0
      %v7576 = vadd.f32 %v7247, %v7575
      %v7577 = vpop.f32.mrf.mxu0
      %v7578 = vadd.f32 %v7249, %v7577
      %7579 = vmatmul.bf16.gmra.mxu0 %v6127
      %v7580 = vpop.f32.mrf.mxu0
      %v7581 = vadd.f32 %v7252, %v7580
      %v7582 = vpop.f32.mrf.mxu0
      %v7583 = vadd.f32 %v7254, %v7582
      %7584 = vmatmul.bf16.gmra.mxu0 %v6129
      %v7585 = vpop.f32.mrf.mxu0
      %v7586 = vadd.f32 %v7257, %v7585
      %v7587 = vpop.f32.mrf.mxu0
      %v7588 = vadd.f32 %v7259, %v7587
      %7589 = vmatmul.bf16.gmra.mxu0 %v6131
      %v7590 = vpop.f32.mrf.mxu0
      %v7591 = vadd.f32 %v7262, %v7590
      %v7592 = vpop.f32.mrf.mxu0
      %v7593 = vadd.f32 %v7264, %v7592
      %7594 = vmatmul.bf16.gmra.mxu0 %v6133
      %v7595 = vpop.f32.mrf.mxu0
      %v7596 = vadd.f32 %v7267, %v7595
      %v7597 = vpop.f32.mrf.mxu0
      %v7598 = vadd.f32 %v7269, %v7597
      %7599 = vmatmul.bf16.gmra.mxu0 %v6135
      %v7600 = vpop.f32.mrf.mxu0
      %v7601 = vadd.f32 %v7272, %v7600
      %v7602 = vpop.f32.mrf.mxu0
      %v7603 = vadd.f32 %v7274, %v7602
      %7604 = vmatmul.bf16.gmra.mxu0 %v6137
      %v7605 = vpop.f32.mrf.mxu0
      %v7606 = vadd.f32 %v7277, %v7605
      %v7607 = vpop.f32.mrf.mxu0
      %v7608 = vadd.f32 %v7279, %v7607
      %7609 = vmatmul.bf16.gmra.mxu0 %v6139
      %v7610 = vpop.f32.mrf.mxu0
      %v7611 = vadd.f32 %v7282, %v7610
      %v7612 = vpop.f32.mrf.mxu0
      %v7613 = vadd.f32 %v7284, %v7612
      %7614 = vmatmul.bf16.gmra.mxu0 %v6141
      %v7615 = vpop.f32.mrf.mxu0
      %v7616 = vadd.f32 %v7287, %v7615
      %v7617 = vpop.f32.mrf.mxu0
      %v7618 = vadd.f32 %v7289, %v7617
      %7619 = vmatmul.bf16.gmra.mxu0 %v6143
      %v7620 = vpop.f32.mrf.mxu0
      %v7621 = vadd.f32 %v7292, %v7620
      %v7622 = vpop.f32.mrf.mxu0
      %v7623 = vadd.f32 %v7294, %v7622
      %7624 = vmatmul.bf16.gmra.mxu0 %v6145
      %v7625 = vpop.f32.mrf.mxu0
      %v7626 = vadd.f32 %v7297, %v7625
      %v7627 = vpop.f32.mrf.mxu0
      %v7628 = vadd.f32 %v7299, %v7627
      %7629 = vmatmul.bf16.gmra.mxu0 %v6147
      %v7630 = vpop.f32.mrf.mxu0
      %v7631 = vadd.f32 %v7302, %v7630
      %v7632 = vpop.f32.mrf.mxu0
      %v7633 = vadd.f32 %v7304, %v7632
      %7634 = vmatmul.bf16.gmra.mxu0 %v6149
      %v7635 = vpop.f32.mrf.mxu0
      %v7636 = vadd.f32 %v7307, %v7635
      %v7637 = vpop.f32.mrf.mxu0
      %v7638 = vadd.f32 %v7309, %v7637
      %7639 = vmatmul.bf16.gmra.mxu0 %v6151
      %v7640 = vpop.f32.mrf.mxu0
      %v7641 = vadd.f32 %v7312, %v7640
      %v7642 = vpop.f32.mrf.mxu0
      %v7643 = vadd.f32 %v7314, %v7642
      %7644 = vmatmul.bf16.gmra.mxu0 %v6153
      %v7645 = vpop.f32.mrf.mxu0
      %v7646 = vadd.f32 %v7317, %v7645
      %v7647 = vpop.f32.mrf.mxu0
      %v7648 = vadd.f32 %v7319, %v7647
      %7649 = vmatmul.bf16.gmra.mxu0 %v6155
      %v7650 = vpop.f32.mrf.mxu0
      %v7651 = vadd.f32 %v7322, %v7650
      %v7652 = vpop.f32.mrf.mxu0
      %v7653 = vadd.f32 %v7324, %v7652
      %7654 = vmatmul.bf16.gmra.mxu0 %v6157
      %v7655 = vpop.f32.mrf.mxu0
      %v7656 = vadd.f32 %v7327, %v7655
      %v7657 = vpop.f32.mrf.mxu0
      %v7658 = vadd.f32 %v7329, %v7657
      %7659 = vmatmul.bf16.gmra.mxu0 %v6159
      %v7660 = vpop.f32.mrf.mxu0
      %v7661 = vadd.f32 %v7332, %v7660
      %v7662 = vpop.f32.mrf.mxu0
      %v7663 = vadd.f32 %v7334, %v7662
      %7664 = vmatmul.bf16.gmra.mxu0 %v6161
      %v7665 = vpop.f32.mrf.mxu0
      %v7666 = vadd.f32 %v7337, %v7665
      %v7667 = vpop.f32.mrf.mxu0
      %v7668 = vadd.f32 %v7339, %v7667
      %7669 = vmatmul.bf16.gmra.mxu0 %v6163
      %v7670 = vpop.f32.mrf.mxu0
      %v7671 = vadd.f32 %v7342, %v7670
      %v7672 = vpop.f32.mrf.mxu0
      %v7673 = vadd.f32 %v7344, %v7672
      %7674 = vmatmul.bf16.gmra.mxu0 %v6165
      %v7675 = vpop.f32.mrf.mxu0
      %v7676 = vadd.f32 %v7347, %v7675
      %v7677 = vpop.f32.mrf.mxu0
      %v7678 = vadd.f32 %v7349, %v7677
      %7679 = vdwg.mxu0
      %v7680 = vmax.f32 %v6703, 0.0
      %v7681 = vmax.f32 %v7361, 0.0
      %v7682 = vmax.f32 %v6705, 0.0
      %v7683 = vmax.f32 %v7363, 0.0
      %v7684 = vmax.f32 %v6708, 0.0
      %v7685 = vmax.f32 %v7366, 0.0
      %v7686 = vmax.f32 %v6710, 0.0
      %v7687 = vmax.f32 %v7368, 0.0
      %v7688 = vmax.f32 %v6713, 0.0
      %v7689 = vmax.f32 %v7371, 0.0
      %v7690 = vmax.f32 %v6715, 0.0
      %v7691 = vmax.f32 %v7373, 0.0
      %v7692 = vmax.f32 %v6718, 0.0
      %v7693 = vmax.f32 %v7376, 0.0
      %v7694 = vmax.f32 %v6720, 0.0
      %v7695 = vmax.f32 %v7378, 0.0
      %v7696 = vmax.f32 %v6723, 0.0
      %v7697 = vmax.f32 %v7381, 0.0
      %v7698 = vmax.f32 %v6725, 0.0
      %v7699 = vmax.f32 %v7383, 0.0
      %v7700 = vmax.f32 %v6728, 0.0
      %v7701 = vmax.f32 %v7386, 0.0
      %v7702 = vmax.f32 %v6730, 0.0
      %v7703 = vmax.f32 %v7388, 0.0
      %v7704 = vmax.f32 %v6733, 0.0
      %v7705 = vmax.f32 %v7391, 0.0
      %v7706 = vmax.f32 %v6735, 0.0
      %v7707 = vmax.f32 %v7393, 0.0
      %v7708 = vmax.f32 %v6738, 0.0
      %v7709 = vmax.f32 %v7396, 0.0
      %v7710 = vmax.f32 %v6740, 0.0
      %v7711 = vmax.f32 %v7398, 0.0
      %v7712 = vmax.f32 %v6743, 0.0
      %v7713 = vmax.f32 %v7401, 0.0
      %v7714 = vmax.f32 %v6745, 0.0
      %v7715 = vmax.f32 %v7403, 0.0
      %v7716 = vmax.f32 %v6748, 0.0
      %v7717 = vmax.f32 %v7406, 0.0
      %v7718 = vmax.f32 %v6750, 0.0
      %v7719 = vmax.f32 %v7408, 0.0
      %v7720 = vmax.f32 %v6753, 0.0
      %v7721 = vmax.f32 %v7411, 0.0
      %v7722 = vmax.f32 %v6755, 0.0
      %v7723 = vmax.f32 %v7413, 0.0
      %v7724 = vmax.f32 %v6758, 0.0
      %v7725 = vmax.f32 %v7416, 0.0
      %v7726 = vmax.f32 %v6760, 0.0
      %v7727 = vmax.f32 %v7418, 0.0
      %v7728 = vmax.f32 %v6763, 0.0
      %v7729 = vmax.f32 %v7421, 0.0
      %v7730 = vmax.f32 %v6765, 0.0
      %v7731 = vmax.f32 %v7423, 0.0
      %v7732 = vmax.f32 %v6768, 0.0
      %v7733 = vmax.f32 %v7426, 0.0
      %v7734 = vmax.f32 %v6770, 0.0
      %v7735 = vmax.f32 %v7428, 0.0
      %v7736 = vmax.f32 %v6773, 0.0
      %v7737 = vmax.f32 %v7431, 0.0
      %v7738 = vmax.f32 %v6775, 0.0
      %v7739 = vmax.f32 %v7433, 0.0
      %v7740 = vmax.f32 %v6778, 0.0
      %v7741 = vmax.f32 %v7436, 0.0
      %v7742 = vmax.f32 %v6780, 0.0
      %v7743 = vmax.f32 %v7438, 0.0
      %v7744 = vmax.f32 %v6783, 0.0
      %v7745 = vmax.f32 %v7441, 0.0
      %v7746 = vmax.f32 %v6785, 0.0
      %v7747 = vmax.f32 %v7443, 0.0
      %v7748 = vmax.f32 %v6788, 0.0
      %v7749 = vmax.f32 %v7446, 0.0
      %v7750 = vmax.f32 %v6790, 0.0
      %v7751 = vmax.f32 %v7448, 0.0
      %v7752 = vmax.f32 %v6793, 0.0
      %v7753 = vmax.f32 %v7451, 0.0
      %v7754 = vmax.f32 %v6795, 0.0
      %v7755 = vmax.f32 %v7453, 0.0
      %v7756 = vmax.f32 %v6798, 0.0
      %v7757 = vmax.f32 %v7456, 0.0
      %v7758 = vmax.f32 %v6800, 0.0
      %v7759 = vmax.f32 %v7458, 0.0
      %v7760 = vmax.f32 %v6803, 0.0
      %v7761 = vmax.f32 %v7461, 0.0
      %v7762 = vmax.f32 %v6805, 0.0
      %v7763 = vmax.f32 %v7463, 0.0
      %v7764 = vmax.f32 %v6808, 0.0
      %v7765 = vmax.f32 %v7466, 0.0
      %v7766 = vmax.f32 %v6810, 0.0
      %v7767 = vmax.f32 %v7468, 0.0
      %v7768 = vmax.f32 %v6813, 0.0
      %v7769 = vmax.f32 %v7471, 0.0
      %v7770 = vmax.f32 %v6815, 0.0
      %v7771 = vmax.f32 %v7473, 0.0
      %v7772 = vmax.f32 %v6818, 0.0
      %v7773 = vmax.f32 %v7476, 0.0
      %v7774 = vmax.f32 %v6820, 0.0
      %v7775 = vmax.f32 %v7478, 0.0
      %v7776 = vmax.f32 %v6823, 0.0
      %v7777 = vmax.f32 %v7481, 0.0
      %v7778 = vmax.f32 %v6825, 0.0
      %v7779 = vmax.f32 %v7483, 0.0
      %v7780 = vmax.f32 %v6828, 0.0
      %v7781 = vmax.f32 %v7486, 0.0
      %v7782 = vmax.f32 %v6830, 0.0
      %v7783 = vmax.f32 %v7488, 0.0
      %v7784 = vmax.f32 %v6833, 0.0
      %v7785 = vmax.f32 %v7491, 0.0
      %v7786 = vmax.f32 %v6835, 0.0
      %v7787 = vmax.f32 %v7493, 0.0
      %v7788 = vmax.f32 %v6838, 0.0
      %v7789 = vmax.f32 %v7496, 0.0
      %v7790 = vmax.f32 %v6840, 0.0
      %v7791 = vmax.f32 %v7498, 0.0
      %v7792 = vmax.f32 %v6843, 0.0
      %v7793 = vmax.f32 %v7501, 0.0
      %v7794 = vmax.f32 %v6845, 0.0
      %v7795 = vmax.f32 %v7503, 0.0
      %v7796 = vmax.f32 %v6848, 0.0
      %v7797 = vmax.f32 %v7506, 0.0
      %v7798 = vmax.f32 %v6850, 0.0
      %v7799 = vmax.f32 %v7508, 0.0
      %v7800 = vmax.f32 %v6853, 0.0
      %v7801 = vmax.f32 %v7511, 0.0
      %v7802 = vmax.f32 %v6855, 0.0
      %v7803 = vmax.f32 %v7513, 0.0
      %v7804 = vmax.f32 %v6858, 0.0
      %v7805 = vmax.f32 %v7516, 0.0
      %v7806 = vmax.f32 %v6860, 0.0
      %v7807 = vmax.f32 %v7518, 0.0
      %v7808 = vmax.f32 %v6863, 0.0
      %v7809 = vmax.f32 %v7521, 0.0
      %v7810 = vmax.f32 %v6865, 0.0
      %v7811 = vmax.f32 %v7523, 0.0
      %v7812 = vmax.f32 %v6868, 0.0
      %v7813 = vmax.f32 %v7526, 0.0
      %v7814 = vmax.f32 %v6870, 0.0
      %v7815 = vmax.f32 %v7528, 0.0
      %v7816 = vmax.f32 %v6873, 0.0
      %v7817 = vmax.f32 %v7531, 0.0
      %v7818 = vmax.f32 %v6875, 0.0
      %v7819 = vmax.f32 %v7533, 0.0
      %v7820 = vmax.f32 %v6878, 0.0
      %v7821 = vmax.f32 %v7536, 0.0
      %v7822 = vmax.f32 %v6880, 0.0
      %v7823 = vmax.f32 %v7538, 0.0
      %v7824 = vmax.f32 %v6883, 0.0
      %v7825 = vmax.f32 %v7541, 0.0
      %v7826 = vmax.f32 %v6885, 0.0
      %v7827 = vmax.f32 %v7543, 0.0
      %v7828 = vmax.f32 %v6888, 0.0
      %v7829 = vmax.f32 %v7546, 0.0
      %v7830 = vmax.f32 %v6890, 0.0
      %v7831 = vmax.f32 %v7548, 0.0
      %v7832 = vmax.f32 %v6893, 0.0
      %v7833 = vmax.f32 %v7551, 0.0
      %v7834 = vmax.f32 %v6895, 0.0
      %v7835 = vmax.f32 %v7553, 0.0
      %v7836 = vmax.f32 %v6898, 0.0
      %v7837 = vmax.f32 %v7556, 0.0
      %v7838 = vmax.f32 %v6900, 0.0
      %v7839 = vmax.f32 %v7558, 0.0
      %v7840 = vmax.f32 %v6903, 0.0
      %v7841 = vmax.f32 %v7561, 0.0
      %v7842 = vmax.f32 %v6905, 0.0
      %v7843 = vmax.f32 %v7563, 0.0
      %v7844 = vmax.f32 %v6908, 0.0
      %v7845 = vmax.f32 %v7566, 0.0
      %v7846 = vmax.f32 %v6910, 0.0
      %v7847 = vmax.f32 %v7568, 0.0
      %v7848 = vmax.f32 %v6913, 0.0
      %v7849 = vmax.f32 %v7571, 0.0
      %v7850 = vmax.f32 %v6915, 0.0
      %v7851 = vmax.f32 %v7573, 0.0
      %v7852 = vmax.f32 %v6918, 0.0
      %v7853 = vmax.f32 %v7576, 0.0
      %v7854 = vmax.f32 %v6920, 0.0
      %v7855 = vmax.f32 %v7578, 0.0
      %v7856 = vmax.f32 %v6923, 0.0
      %v7857 = vmax.f32 %v7581, 0.0
      %v7858 = vmax.f32 %v6925, 0.0
      %v7859 = vmax.f32 %v7583, 0.0
      %v7860 = vmax.f32 %v6928, 0.0
      %v7861 = vmax.f32 %v7586, 0.0
      %v7862 = vmax.f32 %v6930, 0.0
      %v7863 = vmax.f32 %v7588, 0.0
      %v7864 = vmax.f32 %v6933, 0.0
      %v7865 = vmax.f32 %v7591, 0.0
      %v7866 = vmax.f32 %v6935, 0.0
      %v7867 = vmax.f32 %v7593, 0.0
      %v7868 = vmax.f32 %v6938, 0.0
      %v7869 = vmax.f32 %v7596, 0.0
      %v7870 = vmax.f32 %v6940, 0.0
      %v7871 = vmax.f32 %v7598, 0.0
      %v7872 = vmax.f32 %v6943, 0.0
      %v7873 = vmax.f32 %v7601, 0.0
      %v7874 = vmax.f32 %v6945, 0.0
      %v7875 = vmax.f32 %v7603, 0.0
      %v7876 = vmax.f32 %v6948, 0.0
      %v7877 = vmax.f32 %v7606, 0.0
      %v7878 = vmax.f32 %v6950, 0.0
      %v7879 = vmax.f32 %v7608, 0.0
      %v7880 = vmax.f32 %v6953, 0.0
      %v7881 = vmax.f32 %v7611, 0.0
      %v7882 = vmax.f32 %v6955, 0.0
      %v7883 = vmax.f32 %v7613, 0.0
      %v7884 = vmax.f32 %v6958, 0.0
      %v7885 = vmax.f32 %v7616, 0.0
      %v7886 = vmax.f32 %v6960, 0.0
      %v7887 = vmax.f32 %v7618, 0.0
      %v7888 = vmax.f32 %v6963, 0.0
      %v7889 = vmax.f32 %v7621, 0.0
      %v7890 = vmax.f32 %v6965, 0.0
      %v7891 = vmax.f32 %v7623, 0.0
      %v7892 = vmax.f32 %v6968, 0.0
      %v7893 = vmax.f32 %v7626, 0.0
      %v7894 = vmax.f32 %v6970, 0.0
      %v7895 = vmax.f32 %v7628, 0.0
      %v7896 = vmax.f32 %v6973, 0.0
      %v7897 = vmax.f32 %v7631, 0.0
      %v7898 = vmax.f32 %v6975, 0.0
      %v7899 = vmax.f32 %v7633, 0.0
      %v7900 = vmax.f32 %v6978, 0.0
      %v7901 = vmax.f32 %v7636, 0.0
      %v7902 = vmax.f32 %v6980, 0.0
      %v7903 = vmax.f32 %v7638, 0.0
      %v7904 = vmax.f32 %v6983, 0.0
      %v7905 = vmax.f32 %v7641, 0.0
      %v7906 = vmax.f32 %v6985, 0.0
      %v7907 = vmax.f32 %v7643, 0.0
      %v7908 = vmax.f32 %v6988, 0.0
      %v7909 = vmax.f32 %v7646, 0.0
      %v7910 = vmax.f32 %v6990, 0.0
      %v7911 = vmax.f32 %v7648, 0.0
      %v7912 = vmax.f32 %v6993, 0.0
      %v7913 = vmax.f32 %v7651, 0.0
      %v7914 = vmax.f32 %v6995, 0.0
      %v7915 = vmax.f32 %v7653, 0.0
      %v7916 = vmax.f32 %v6998, 0.0
      %v7917 = vmax.f32 %v7656, 0.0
      %v7918 = vmax.f32 %v7000, 0.0
      %v7919 = vmax.f32 %v7658, 0.0
      %v7920 = vmax.f32 %v7003, 0.0
      %v7921 = vmax.f32 %v7661, 0.0
      %v7922 = vmax.f32 %v7005, 0.0
      %v7923 = vmax.f32 %v7663, 0.0
      %v7924 = vmax.f32 %v7008, 0.0
      %v7925 = vmax.f32 %v7666, 0.0
      %v7926 = vmax.f32 %v7010, 0.0
      %v7927 = vmax.f32 %v7668, 0.0
      %v7928 = vmax.f32 %v7013, 0.0
      %v7929 = vmax.f32 %v7671, 0.0
      %v7930 = vmax.f32 %v7015, 0.0
      %v7931 = vmax.f32 %v7673, 0.0
      %v7932 = vmax.f32 %v7018, 0.0
      %v7933 = vmax.f32 %v7676, 0.0
      %v7934 = vmax.f32 %v7020, 0.0
      %v7935 = vmax.f32 %v7678, 0.0
      %v7936 = vpack.c.bf16 %v7682, %v7680
      %v7937 = vpack.c.bf16 %v7683, %v7681
      %v7938 = vpack.c.bf16 %v7686, %v7684
      %v7939 = vpack.c.bf16 %v7687, %v7685
      %v7940 = vpack.c.bf16 %v7690, %v7688
      %v7941 = vpack.c.bf16 %v7691, %v7689
      %v7942 = vpack.c.bf16 %v7694, %v7692
      %v7943 = vpack.c.bf16 %v7695, %v7693
      %v7944 = vpack.c.bf16 %v7698, %v7696
      %v7945 = vpack.c.bf16 %v7699, %v7697
      %v7946 = vpack.c.bf16 %v7702, %v7700
      %v7947 = vpack.c.bf16 %v7703, %v7701
      %v7948 = vpack.c.bf16 %v7706, %v7704
      %v7949 = vpack.c.bf16 %v7707, %v7705
      %v7950 = vpack.c.bf16 %v7710, %v7708
      %v7951 = vpack.c.bf16 %v7711, %v7709
      %v7952 = vpack.c.bf16 %v7714, %v7712
      %v7953 = vpack.c.bf16 %v7715, %v7713
      %v7954 = vpack.c.bf16 %v7718, %v7716
      %v7955 = vpack.c.bf16 %v7719, %v7717
      %v7956 = vpack.c.bf16 %v7722, %v7720
      %v7957 = vpack.c.bf16 %v7723, %v7721
      %v7958 = vpack.c.bf16 %v7726, %v7724
      %v7959 = vpack.c.bf16 %v7727, %v7725
      %v7960 = vpack.c.bf16 %v7730, %v7728
      %v7961 = vpack.c.bf16 %v7731, %v7729
      %v7962 = vpack.c.bf16 %v7734, %v7732
      %v7963 = vpack.c.bf16 %v7735, %v7733
      %v7964 = vpack.c.bf16 %v7738, %v7736
      %v7965 = vpack.c.bf16 %v7739, %v7737
      %v7966 = vpack.c.bf16 %v7742, %v7740
      %v7967 = vpack.c.bf16 %v7743, %v7741
      %v7968 = vpack.c.bf16 %v7746, %v7744
      %v7969 = vpack.c.bf16 %v7747, %v7745
      %v7970 = vpack.c.bf16 %v7750, %v7748
      %v7971 = vpack.c.bf16 %v7751, %v7749
      %v7972 = vpack.c.bf16 %v7754, %v7752
      %v7973 = vpack.c.bf16 %v7755, %v7753
      %v7974 = vpack.c.bf16 %v7758, %v7756
      %v7975 = vpack.c.bf16 %v7759, %v7757
      %v7976 = vpack.c.bf16 %v7762, %v7760
      %v7977 = vpack.c.bf16 %v7763, %v7761
      %v7978 = vpack.c.bf16 %v7766, %v7764
      %v7979 = vpack.c.bf16 %v7767, %v7765
      %v7980 = vpack.c.bf16 %v7770, %v7768
      %v7981 = vpack.c.bf16 %v7771, %v7769
      %v7982 = vpack.c.bf16 %v7774, %v7772
      %v7983 = vpack.c.bf16 %v7775, %v7773
      %v7984 = vpack.c.bf16 %v7778, %v7776
      %v7985 = vpack.c.bf16 %v7779, %v7777
      %v7986 = vpack.c.bf16 %v7782, %v7780
      %v7987 = vpack.c.bf16 %v7783, %v7781
      %v7988 = vpack.c.bf16 %v7786, %v7784
      %v7989 = vpack.c.bf16 %v7787, %v7785
      %v7990 = vpack.c.bf16 %v7790, %v7788
      %v7991 = vpack.c.bf16 %v7791, %v7789
      %v7992 = vpack.c.bf16 %v7794, %v7792
      %v7993 = vpack.c.bf16 %v7795, %v7793
      %v7994 = vpack.c.bf16 %v7798, %v7796
      %v7995 = vpack.c.bf16 %v7799, %v7797
      %v7996 = vpack.c.bf16 %v7802, %v7800
      %v7997 = vpack.c.bf16 %v7803, %v7801
      %v7998 = vpack.c.bf16 %v7806, %v7804
      %v7999 = vpack.c.bf16 %v7807, %v7805
      %v8000 = vpack.c.bf16 %v7810, %v7808
      %v8001 = vpack.c.bf16 %v7811, %v7809
      %v8002 = vpack.c.bf16 %v7814, %v7812
      %v8003 = vpack.c.bf16 %v7815, %v7813
      %v8004 = vpack.c.bf16 %v7818, %v7816
      %v8005 = vpack.c.bf16 %v7819, %v7817
      %v8006 = vpack.c.bf16 %v7822, %v7820
      %v8007 = vpack.c.bf16 %v7823, %v7821
      %v8008 = vpack.c.bf16 %v7826, %v7824
      %v8009 = vpack.c.bf16 %v7827, %v7825
      %v8010 = vpack.c.bf16 %v7830, %v7828
      %v8011 = vpack.c.bf16 %v7831, %v7829
      %v8012 = vpack.c.bf16 %v7834, %v7832
      %v8013 = vpack.c.bf16 %v7835, %v7833
      %v8014 = vpack.c.bf16 %v7838, %v7836
      %v8015 = vpack.c.bf16 %v7839, %v7837
      %v8016 = vpack.c.bf16 %v7842, %v7840
      %v8017 = vpack.c.bf16 %v7843, %v7841
      %v8018 = vpack.c.bf16 %v7846, %v7844
      %v8019 = vpack.c.bf16 %v7847, %v7845
      %v8020 = vpack.c.bf16 %v7850, %v7848
      %v8021 = vpack.c.bf16 %v7851, %v7849
      %v8022 = vpack.c.bf16 %v7854, %v7852
      %v8023 = vpack.c.bf16 %v7855, %v7853
      %v8024 = vpack.c.bf16 %v7858, %v7856
      %v8025 = vpack.c.bf16 %v7859, %v7857
      %v8026 = vpack.c.bf16 %v7862, %v7860
      %v8027 = vpack.c.bf16 %v7863, %v7861
      %v8028 = vpack.c.bf16 %v7866, %v7864
      %v8029 = vpack.c.bf16 %v7867, %v7865
      %v8030 = vpack.c.bf16 %v7870, %v7868
      %v8031 = vpack.c.bf16 %v7871, %v7869
      %v8032 = vpack.c.bf16 %v7874, %v7872
      %v8033 = vpack.c.bf16 %v7875, %v7873
      %v8034 = vpack.c.bf16 %v7878, %v7876
      %v8035 = vpack.c.bf16 %v7879, %v7877
      %v8036 = vpack.c.bf16 %v7882, %v7880
      %v8037 = vpack.c.bf16 %v7883, %v7881
      %v8038 = vpack.c.bf16 %v7886, %v7884
      %v8039 = vpack.c.bf16 %v7887, %v7885
      %v8040 = vpack.c.bf16 %v7890, %v7888
      %v8041 = vpack.c.bf16 %v7891, %v7889
      %v8042 = vpack.c.bf16 %v7894, %v7892
      %v8043 = vpack.c.bf16 %v7895, %v7893
      %v8044 = vpack.c.bf16 %v7898, %v7896
      %v8045 = vpack.c.bf16 %v7899, %v7897
      %v8046 = vpack.c.bf16 %v7902, %v7900
      %v8047 = vpack.c.bf16 %v7903, %v7901
      %v8048 = vpack.c.bf16 %v7906, %v7904
      %v8049 = vpack.c.bf16 %v7907, %v7905
      %v8050 = vpack.c.bf16 %v7910, %v7908
      %v8051 = vpack.c.bf16 %v7911, %v7909
      %v8052 = vpack.c.bf16 %v7914, %v7912
      %v8053 = vpack.c.bf16 %v7915, %v7913
      %v8054 = vpack.c.bf16 %v7918, %v7916
      %v8055 = vpack.c.bf16 %v7919, %v7917
      %v8056 = vpack.c.bf16 %v7922, %v7920
      %v8057 = vpack.c.bf16 %v7923, %v7921
      %v8058 = vpack.c.bf16 %v7926, %v7924
      %v8059 = vpack.c.bf16 %v7927, %v7925
      %v8060 = vpack.c.bf16 %v7930, %v7928
      %v8061 = vpack.c.bf16 %v7931, %v7929
      %v8062 = vpack.c.bf16 %v7934, %v7932
      %v8063 = vpack.c.bf16 %v7935, %v7933
      %v8064 = vld [vmem:[%s516] sm:$0xf]
      %v8065 = vld [vmem:[%s516 + $0x4] sm:$0xf]
      %v8066 = vld [vmem:[%s516 + $0x8] sm:$0xf]
      %v8067 = vld [vmem:[%s516 + $0xc] sm:$0xf]
      %v8068 = vld [vmem:[%s516 + $0x10] sm:$0xf]
      %v8069 = vld [vmem:[%s516 + $0x14] sm:$0xf]
      %v8070 = vld [vmem:[%s516 + $0x18] sm:$0xf]
      %v8071 = vld [vmem:[%s516 + $0x1c] sm:$0xf]
      %v8072 = vld [vmem:[%s516 + $0x20] sm:$0xf]
      %v8073 = vld [vmem:[%s516 + $0x24] sm:$0xf]
      %v8074 = vld [vmem:[%s516 + $0x28] sm:$0xf]
      %v8075 = vld [vmem:[%s516 + $0x2c] sm:$0xf]
      %v8076 = vld [vmem:[%s516 + $0x30] sm:$0xf]
      %v8077 = vld [vmem:[%s516 + $0x34] sm:$0xf]
      %v8078 = vld [vmem:[%s516 + $0x38] sm:$0xf]
      %v8079 = vld [vmem:[%s516 + $0x3c] sm:$0xf]
      %v8080 = vld [vmem:[%s516 + $0x40] sm:$0xf]
      %v8081 = vld [vmem:[%s516 + $0x44] sm:$0xf]
      %v8082 = vld [vmem:[%s516 + $0x48] sm:$0xf]
      %v8083 = vld [vmem:[%s516 + $0x4c] sm:$0xf]
      %v8084 = vld [vmem:[%s516 + $0x50] sm:$0xf]
      %v8085 = vld [vmem:[%s516 + $0x54] sm:$0xf]
      %v8086 = vld [vmem:[%s516 + $0x58] sm:$0xf]
      %v8087 = vld [vmem:[%s516 + $0x5c] sm:$0xf]
      %v8088 = vld [vmem:[%s516 + $0x60] sm:$0xf]
      %v8089 = vld [vmem:[%s516 + $0x64] sm:$0xf]
      %v8090 = vld [vmem:[%s516 + $0x68] sm:$0xf]
      %v8091 = vld [vmem:[%s516 + $0x6c] sm:$0xf]
      %v8092 = vld [vmem:[%s516 + $0x70] sm:$0xf]
      %v8093 = vld [vmem:[%s516 + $0x74] sm:$0xf]
      %v8094 = vld [vmem:[%s516 + $0x78] sm:$0xf]
      %v8095 = vld [vmem:[%s516 + $0x7c] sm:$0xf]
      %v8096 = vld [vmem:[%s519] sm:$0x1]
      %v8098 = vperm.slane %v8096, 0
      %v8132 = vunpack.c.l.b16 %v8064
      %v8133 = vunpack.c.l.b16 %v8065
      %v8134 = vunpack.c.l.b16 %v8066
      %v8135 = vunpack.c.l.b16 %v8067
      %v8136 = vunpack.c.l.b16 %v8068
      %v8137 = vunpack.c.l.b16 %v8069
      %v8138 = vunpack.c.l.b16 %v8070
      %v8139 = vunpack.c.l.b16 %v8071
      %v8140 = vunpack.c.l.b16 %v8072
      %v8141 = vunpack.c.l.b16 %v8073
      %v8142 = vunpack.c.l.b16 %v8074
      %v8143 = vunpack.c.l.b16 %v8075
      %v8144 = vunpack.c.l.b16 %v8076
      %v8145 = vunpack.c.l.b16 %v8077
      %v8146 = vunpack.c.l.b16 %v8078
      %v8147 = vunpack.c.l.b16 %v8079
      %v8148 = vunpack.c.l.b16 %v8080
      %v8149 = vunpack.c.l.b16 %v8081
      %v8150 = vunpack.c.l.b16 %v8082
      %v8151 = vunpack.c.l.b16 %v8083
      %v8152 = vunpack.c.l.b16 %v8084
      %v8153 = vunpack.c.l.b16 %v8085
      %v8154 = vunpack.c.l.b16 %v8086
      %v8155 = vunpack.c.l.b16 %v8087
      %v8156 = vunpack.c.l.b16 %v8088
      %v8157 = vunpack.c.l.b16 %v8089
      %v8158 = vunpack.c.l.b16 %v8090
      %v8159 = vunpack.c.l.b16 %v8091
      %v8160 = vunpack.c.l.b16 %v8092
      %v8161 = vunpack.c.l.b16 %v8093
      %v8162 = vunpack.c.l.b16 %v8094
      %v8163 = vunpack.c.l.b16 %v8095
      %v8164 = vpack.c.b16 %v8133, %v8132
      %v8165 = vpack.c.b16 %v8135, %v8134
      %v8166 = vpack.c.b16 %v8137, %v8136
      %v8167 = vpack.c.b16 %v8139, %v8138
      %v8168 = vpack.c.b16 %v8141, %v8140
      %v8169 = vpack.c.b16 %v8143, %v8142
      %v8170 = vpack.c.b16 %v8145, %v8144
      %v8171 = vpack.c.b16 %v8147, %v8146
      %v8172 = vpack.c.b16 %v8149, %v8148
      %v8173 = vpack.c.b16 %v8151, %v8150
      %v8174 = vpack.c.b16 %v8153, %v8152
      %v8175 = vpack.c.b16 %v8155, %v8154
      %v8176 = vpack.c.b16 %v8157, %v8156
      %v8177 = vpack.c.b16 %v8159, %v8158
      %v8178 = vpack.c.b16 %v8161, %v8160
      %v8179 = vpack.c.b16 %v8163, %v8162
      %8196 = vmatpush.bf16.msra.mxu0 %v8171
      %8197 = vmatpush.bf16.msra.mxu0 %v8170
      %8198 = vmatpush.bf16.msra.mxu0 %v8169
      %8199 = vmatpush.bf16.msra.mxu0 %v8168
      %8200 = vmatpush.bf16.msra.mxu0 %v8167
      %8201 = vmatpush.bf16.msra.mxu0 %v8166
      %8202 = vmatpush.bf16.msra.mxu0 %v8165
      %8203 = vmatpush.bf16.msra.mxu0 %v8164
      %8204 = vmatmul.bf16.gmra.mxu0 %v7936
      %v8205 = vpop.f32.mrf.mxu0
      %v8206 = vadd.f32 %v8098, %v8205
      %v8207 = vpop.f32.mrf.mxu0
      %v8208 = vadd.f32 %v8098, %v8207
      %8209 = vmatmul.bf16.gmra.mxu0 %v7938
      %v8210 = vpop.f32.mrf.mxu0
      %v8211 = vadd.f32 %v8098, %v8210
      %v8212 = vpop.f32.mrf.mxu0
      %v8213 = vadd.f32 %v8098, %v8212
      %8214 = vmatmul.bf16.gmra.mxu0 %v7940
      %v8215 = vpop.f32.mrf.mxu0
      %v8216 = vadd.f32 %v8098, %v8215
      %v8217 = vpop.f32.mrf.mxu0
      %v8218 = vadd.f32 %v8098, %v8217
      %8219 = vmatmul.bf16.gmra.mxu0 %v7942
      %v8220 = vpop.f32.mrf.mxu0
      %v8221 = vadd.f32 %v8098, %v8220
      %v8222 = vpop.f32.mrf.mxu0
      %v8223 = vadd.f32 %v8098, %v8222
      %8224 = vmatmul.bf16.gmra.mxu0 %v7944
      %v8225 = vpop.f32.mrf.mxu0
      %v8226 = vadd.f32 %v8098, %v8225
      %v8227 = vpop.f32.mrf.mxu0
      %v8228 = vadd.f32 %v8098, %v8227
      %8229 = vmatmul.bf16.gmra.mxu0 %v7946
      %v8230 = vpop.f32.mrf.mxu0
      %v8231 = vadd.f32 %v8098, %v8230
      %v8232 = vpop.f32.mrf.mxu0
      %v8233 = vadd.f32 %v8098, %v8232
      %8234 = vmatmul.bf16.gmra.mxu0 %v7948
      %v8235 = vpop.f32.mrf.mxu0
      %v8236 = vadd.f32 %v8098, %v8235
      %v8237 = vpop.f32.mrf.mxu0
      %v8238 = vadd.f32 %v8098, %v8237
      %8239 = vmatmul.bf16.gmra.mxu0 %v7950
      %v8240 = vpop.f32.mrf.mxu0
      %v8241 = vadd.f32 %v8098, %v8240
      %v8242 = vpop.f32.mrf.mxu0
      %v8243 = vadd.f32 %v8098, %v8242
      %8244 = vmatmul.bf16.gmra.mxu0 %v7952
      %v8245 = vpop.f32.mrf.mxu0
      %v8246 = vadd.f32 %v8098, %v8245
      %v8247 = vpop.f32.mrf.mxu0
      %v8248 = vadd.f32 %v8098, %v8247
      %8249 = vmatmul.bf16.gmra.mxu0 %v7954
      %v8250 = vpop.f32.mrf.mxu0
      %v8251 = vadd.f32 %v8098, %v8250
      %v8252 = vpop.f32.mrf.mxu0
      %v8253 = vadd.f32 %v8098, %v8252
      %8254 = vmatmul.bf16.gmra.mxu0 %v7956
      %v8255 = vpop.f32.mrf.mxu0
      %v8256 = vadd.f32 %v8098, %v8255
      %v8257 = vpop.f32.mrf.mxu0
      %v8258 = vadd.f32 %v8098, %v8257
      %8259 = vmatmul.bf16.gmra.mxu0 %v7958
      %v8260 = vpop.f32.mrf.mxu0
      %v8261 = vadd.f32 %v8098, %v8260
      %v8262 = vpop.f32.mrf.mxu0
      %v8263 = vadd.f32 %v8098, %v8262
      %8264 = vmatmul.bf16.gmra.mxu0 %v7960
      %v8265 = vpop.f32.mrf.mxu0
      %v8266 = vadd.f32 %v8098, %v8265
      %v8267 = vpop.f32.mrf.mxu0
      %v8268 = vadd.f32 %v8098, %v8267
      %8269 = vmatmul.bf16.gmra.mxu0 %v7962
      %v8270 = vpop.f32.mrf.mxu0
      %v8271 = vadd.f32 %v8098, %v8270
      %v8272 = vpop.f32.mrf.mxu0
      %v8273 = vadd.f32 %v8098, %v8272
      %8274 = vmatmul.bf16.gmra.mxu0 %v7964
      %v8275 = vpop.f32.mrf.mxu0
      %v8276 = vadd.f32 %v8098, %v8275
      %v8277 = vpop.f32.mrf.mxu0
      %v8278 = vadd.f32 %v8098, %v8277
      %8279 = vmatmul.bf16.gmra.mxu0 %v7966
      %v8280 = vpop.f32.mrf.mxu0
      %v8281 = vadd.f32 %v8098, %v8280
      %v8282 = vpop.f32.mrf.mxu0
      %v8283 = vadd.f32 %v8098, %v8282
      %8284 = vmatmul.bf16.gmra.mxu0 %v7968
      %v8285 = vpop.f32.mrf.mxu0
      %v8286 = vadd.f32 %v8098, %v8285
      %v8287 = vpop.f32.mrf.mxu0
      %v8288 = vadd.f32 %v8098, %v8287
      %8289 = vmatmul.bf16.gmra.mxu0 %v7970
      %v8290 = vpop.f32.mrf.mxu0
      %v8291 = vadd.f32 %v8098, %v8290
      %v8292 = vpop.f32.mrf.mxu0
      %v8293 = vadd.f32 %v8098, %v8292
      %8294 = vmatmul.bf16.gmra.mxu0 %v7972
      %v8295 = vpop.f32.mrf.mxu0
      %v8296 = vadd.f32 %v8098, %v8295
      %v8297 = vpop.f32.mrf.mxu0
      %v8298 = vadd.f32 %v8098, %v8297
      %8299 = vmatmul.bf16.gmra.mxu0 %v7974
      %v8300 = vpop.f32.mrf.mxu0
      %v8301 = vadd.f32 %v8098, %v8300
      %v8302 = vpop.f32.mrf.mxu0
      %v8303 = vadd.f32 %v8098, %v8302
      %8304 = vmatmul.bf16.gmra.mxu0 %v7976
      %v8305 = vpop.f32.mrf.mxu0
      %v8306 = vadd.f32 %v8098, %v8305
      %v8307 = vpop.f32.mrf.mxu0
      %v8308 = vadd.f32 %v8098, %v8307
      %8309 = vmatmul.bf16.gmra.mxu0 %v7978
      %v8310 = vpop.f32.mrf.mxu0
      %v8311 = vadd.f32 %v8098, %v8310
      %v8312 = vpop.f32.mrf.mxu0
      %v8313 = vadd.f32 %v8098, %v8312
      %8314 = vmatmul.bf16.gmra.mxu0 %v7980
      %v8315 = vpop.f32.mrf.mxu0
      %v8316 = vadd.f32 %v8098, %v8315
      %v8317 = vpop.f32.mrf.mxu0
      %v8318 = vadd.f32 %v8098, %v8317
      %8319 = vmatmul.bf16.gmra.mxu0 %v7982
      %v8320 = vpop.f32.mrf.mxu0
      %v8321 = vadd.f32 %v8098, %v8320
      %v8322 = vpop.f32.mrf.mxu0
      %v8323 = vadd.f32 %v8098, %v8322
      %8324 = vmatmul.bf16.gmra.mxu0 %v7984
      %v8325 = vpop.f32.mrf.mxu0
      %v8326 = vadd.f32 %v8098, %v8325
      %v8327 = vpop.f32.mrf.mxu0
      %v8328 = vadd.f32 %v8098, %v8327
      %8329 = vmatmul.bf16.gmra.mxu0 %v7986
      %v8330 = vpop.f32.mrf.mxu0
      %v8331 = vadd.f32 %v8098, %v8330
      %v8332 = vpop.f32.mrf.mxu0
      %v8333 = vadd.f32 %v8098, %v8332
      %8334 = vmatmul.bf16.gmra.mxu0 %v7988
      %v8335 = vpop.f32.mrf.mxu0
      %v8336 = vadd.f32 %v8098, %v8335
      %v8337 = vpop.f32.mrf.mxu0
      %v8338 = vadd.f32 %v8098, %v8337
      %8339 = vmatmul.bf16.gmra.mxu0 %v7990
      %v8340 = vpop.f32.mrf.mxu0
      %v8341 = vadd.f32 %v8098, %v8340
      %v8342 = vpop.f32.mrf.mxu0
      %v8343 = vadd.f32 %v8098, %v8342
      %8344 = vmatmul.bf16.gmra.mxu0 %v7992
      %v8345 = vpop.f32.mrf.mxu0
      %v8346 = vadd.f32 %v8098, %v8345
      %v8347 = vpop.f32.mrf.mxu0
      %v8348 = vadd.f32 %v8098, %v8347
      %8349 = vmatmul.bf16.gmra.mxu0 %v7994
      %v8350 = vpop.f32.mrf.mxu0
      %v8351 = vadd.f32 %v8098, %v8350
      %v8352 = vpop.f32.mrf.mxu0
      %v8353 = vadd.f32 %v8098, %v8352
      %8354 = vmatmul.bf16.gmra.mxu0 %v7996
      %v8355 = vpop.f32.mrf.mxu0
      %v8356 = vadd.f32 %v8098, %v8355
      %v8357 = vpop.f32.mrf.mxu0
      %v8358 = vadd.f32 %v8098, %v8357
      %8359 = vmatmul.bf16.gmra.mxu0 %v7998
      %v8360 = vpop.f32.mrf.mxu0
      %v8361 = vadd.f32 %v8098, %v8360
      %v8362 = vpop.f32.mrf.mxu0
      %v8363 = vadd.f32 %v8098, %v8362
      %8364 = vmatmul.bf16.gmra.mxu0 %v8000
      %v8365 = vpop.f32.mrf.mxu0
      %v8366 = vadd.f32 %v8098, %v8365
      %v8367 = vpop.f32.mrf.mxu0
      %v8368 = vadd.f32 %v8098, %v8367
      %8369 = vmatmul.bf16.gmra.mxu0 %v8002
      %v8370 = vpop.f32.mrf.mxu0
      %v8371 = vadd.f32 %v8098, %v8370
      %v8372 = vpop.f32.mrf.mxu0
      %v8373 = vadd.f32 %v8098, %v8372
      %8374 = vmatmul.bf16.gmra.mxu0 %v8004
      %v8375 = vpop.f32.mrf.mxu0
      %v8376 = vadd.f32 %v8098, %v8375
      %v8377 = vpop.f32.mrf.mxu0
      %v8378 = vadd.f32 %v8098, %v8377
      %8379 = vmatmul.bf16.gmra.mxu0 %v8006
      %v8380 = vpop.f32.mrf.mxu0
      %v8381 = vadd.f32 %v8098, %v8380
      %v8382 = vpop.f32.mrf.mxu0
      %v8383 = vadd.f32 %v8098, %v8382
      %8384 = vmatmul.bf16.gmra.mxu0 %v8008
      %v8385 = vpop.f32.mrf.mxu0
      %v8386 = vadd.f32 %v8098, %v8385
      %v8387 = vpop.f32.mrf.mxu0
      %v8388 = vadd.f32 %v8098, %v8387
      %8389 = vmatmul.bf16.gmra.mxu0 %v8010
      %v8390 = vpop.f32.mrf.mxu0
      %v8391 = vadd.f32 %v8098, %v8390
      %v8392 = vpop.f32.mrf.mxu0
      %v8393 = vadd.f32 %v8098, %v8392
      %8394 = vmatmul.bf16.gmra.mxu0 %v8012
      %v8395 = vpop.f32.mrf.mxu0
      %v8396 = vadd.f32 %v8098, %v8395
      %v8397 = vpop.f32.mrf.mxu0
      %v8398 = vadd.f32 %v8098, %v8397
      %8399 = vmatmul.bf16.gmra.mxu0 %v8014
      %v8400 = vpop.f32.mrf.mxu0
      %v8401 = vadd.f32 %v8098, %v8400
      %v8402 = vpop.f32.mrf.mxu0
      %v8403 = vadd.f32 %v8098, %v8402
      %8404 = vmatmul.bf16.gmra.mxu0 %v8016
      %v8405 = vpop.f32.mrf.mxu0
      %v8406 = vadd.f32 %v8098, %v8405
      %v8407 = vpop.f32.mrf.mxu0
      %v8408 = vadd.f32 %v8098, %v8407
      %8409 = vmatmul.bf16.gmra.mxu0 %v8018
      %v8410 = vpop.f32.mrf.mxu0
      %v8411 = vadd.f32 %v8098, %v8410
      %v8412 = vpop.f32.mrf.mxu0
      %v8413 = vadd.f32 %v8098, %v8412
      %8414 = vmatmul.bf16.gmra.mxu0 %v8020
      %v8415 = vpop.f32.mrf.mxu0
      %v8416 = vadd.f32 %v8098, %v8415
      %v8417 = vpop.f32.mrf.mxu0
      %v8418 = vadd.f32 %v8098, %v8417
      %8419 = vmatmul.bf16.gmra.mxu0 %v8022
      %v8420 = vpop.f32.mrf.mxu0
      %v8421 = vadd.f32 %v8098, %v8420
      %v8422 = vpop.f32.mrf.mxu0
      %v8423 = vadd.f32 %v8098, %v8422
      %8424 = vmatmul.bf16.gmra.mxu0 %v8024
      %v8425 = vpop.f32.mrf.mxu0
      %v8426 = vadd.f32 %v8098, %v8425
      %v8427 = vpop.f32.mrf.mxu0
      %v8428 = vadd.f32 %v8098, %v8427
      %8429 = vmatmul.bf16.gmra.mxu0 %v8026
      %v8430 = vpop.f32.mrf.mxu0
      %v8431 = vadd.f32 %v8098, %v8430
      %v8432 = vpop.f32.mrf.mxu0
      %v8433 = vadd.f32 %v8098, %v8432
      %8434 = vmatmul.bf16.gmra.mxu0 %v8028
      %v8435 = vpop.f32.mrf.mxu0
      %v8436 = vadd.f32 %v8098, %v8435
      %v8437 = vpop.f32.mrf.mxu0
      %v8438 = vadd.f32 %v8098, %v8437
      %8439 = vmatmul.bf16.gmra.mxu0 %v8030
      %v8440 = vpop.f32.mrf.mxu0
      %v8441 = vadd.f32 %v8098, %v8440
      %v8442 = vpop.f32.mrf.mxu0
      %v8443 = vadd.f32 %v8098, %v8442
      %8444 = vmatmul.bf16.gmra.mxu0 %v8032
      %v8445 = vpop.f32.mrf.mxu0
      %v8446 = vadd.f32 %v8098, %v8445
      %v8447 = vpop.f32.mrf.mxu0
      %v8448 = vadd.f32 %v8098, %v8447
      %8449 = vmatmul.bf16.gmra.mxu0 %v8034
      %v8450 = vpop.f32.mrf.mxu0
      %v8451 = vadd.f32 %v8098, %v8450
      %v8452 = vpop.f32.mrf.mxu0
      %v8453 = vadd.f32 %v8098, %v8452
      %8454 = vmatmul.bf16.gmra.mxu0 %v8036
      %v8455 = vpop.f32.mrf.mxu0
      %v8456 = vadd.f32 %v8098, %v8455
      %v8457 = vpop.f32.mrf.mxu0
      %v8458 = vadd.f32 %v8098, %v8457
      %8459 = vmatmul.bf16.gmra.mxu0 %v8038
      %v8460 = vpop.f32.mrf.mxu0
      %v8461 = vadd.f32 %v8098, %v8460
      %v8462 = vpop.f32.mrf.mxu0
      %v8463 = vadd.f32 %v8098, %v8462
      %8464 = vmatmul.bf16.gmra.mxu0 %v8040
      %v8465 = vpop.f32.mrf.mxu0
      %v8466 = vadd.f32 %v8098, %v8465
      %v8467 = vpop.f32.mrf.mxu0
      %v8468 = vadd.f32 %v8098, %v8467
      %8469 = vmatmul.bf16.gmra.mxu0 %v8042
      %v8470 = vpop.f32.mrf.mxu0
      %v8471 = vadd.f32 %v8098, %v8470
      %v8472 = vpop.f32.mrf.mxu0
      %v8473 = vadd.f32 %v8098, %v8472
      %8474 = vmatmul.bf16.gmra.mxu0 %v8044
      %v8475 = vpop.f32.mrf.mxu0
      %v8476 = vadd.f32 %v8098, %v8475
      %v8477 = vpop.f32.mrf.mxu0
      %v8478 = vadd.f32 %v8098, %v8477
      %8479 = vmatmul.bf16.gmra.mxu0 %v8046
      %v8480 = vpop.f32.mrf.mxu0
      %v8481 = vadd.f32 %v8098, %v8480
      %v8482 = vpop.f32.mrf.mxu0
      %v8483 = vadd.f32 %v8098, %v8482
      %8484 = vmatmul.bf16.gmra.mxu0 %v8048
      %v8485 = vpop.f32.mrf.mxu0
      %v8486 = vadd.f32 %v8098, %v8485
      %v8487 = vpop.f32.mrf.mxu0
      %v8488 = vadd.f32 %v8098, %v8487
      %8489 = vmatmul.bf16.gmra.mxu0 %v8050
      %v8490 = vpop.f32.mrf.mxu0
      %v8491 = vadd.f32 %v8098, %v8490
      %v8492 = vpop.f32.mrf.mxu0
      %v8493 = vadd.f32 %v8098, %v8492
      %8494 = vmatmul.bf16.gmra.mxu0 %v8052
      %v8495 = vpop.f32.mrf.mxu0
      %v8496 = vadd.f32 %v8098, %v8495
      %v8497 = vpop.f32.mrf.mxu0
      %v8498 = vadd.f32 %v8098, %v8497
      %8499 = vmatmul.bf16.gmra.mxu0 %v8054
      %v8500 = vpop.f32.mrf.mxu0
      %v8501 = vadd.f32 %v8098, %v8500
      %v8502 = vpop.f32.mrf.mxu0
      %v8503 = vadd.f32 %v8098, %v8502
      %8504 = vmatmul.bf16.gmra.mxu0 %v8056
      %v8505 = vpop.f32.mrf.mxu0
      %v8506 = vadd.f32 %v8098, %v8505
      %v8507 = vpop.f32.mrf.mxu0
      %v8508 = vadd.f32 %v8098, %v8507
      %8509 = vmatmul.bf16.gmra.mxu0 %v8058
      %v8510 = vpop.f32.mrf.mxu0
      %v8511 = vadd.f32 %v8098, %v8510
      %v8512 = vpop.f32.mrf.mxu0
      %v8513 = vadd.f32 %v8098, %v8512
      %8514 = vmatmul.bf16.gmra.mxu0 %v8060
      %v8515 = vpop.f32.mrf.mxu0
      %v8516 = vadd.f32 %v8098, %v8515
      %v8517 = vpop.f32.mrf.mxu0
      %v8518 = vadd.f32 %v8098, %v8517
      %8519 = vmatmul.bf16.gmra.mxu0 %v8062
      %v8520 = vpop.f32.mrf.mxu0
      %v8521 = vadd.f32 %v8098, %v8520
      %v8522 = vpop.f32.mrf.mxu0
      %v8523 = vadd.f32 %v8098, %v8522
      %8524 = vdwg.mxu0
      %8525 = vmatpush.bf16.msra.mxu0 %v8179
      %8526 = vmatpush.bf16.msra.mxu0 %v8178
      %8527 = vmatpush.bf16.msra.mxu0 %v8177
      %8528 = vmatpush.bf16.msra.mxu0 %v8176
      %8529 = vmatpush.bf16.msra.mxu0 %v8175
      %8530 = vmatpush.bf16.msra.mxu0 %v8174
      %8531 = vmatpush.bf16.msra.mxu0 %v8173
      %8532 = vmatpush.bf16.msra.mxu0 %v8172
      %8533 = vmatmul.bf16.gmra.mxu0 %v7937
      %v8534 = vpop.f32.mrf.mxu0
      %v8535 = vadd.f32 %v8206, %v8534
      %v8536 = vpop.f32.mrf.mxu0
      %v8537 = vadd.f32 %v8208, %v8536
      %8538 = vmatmul.bf16.gmra.mxu0 %v7939
      %v8539 = vpop.f32.mrf.mxu0
      %v8540 = vadd.f32 %v8211, %v8539
      %v8541 = vpop.f32.mrf.mxu0
      %v8542 = vadd.f32 %v8213, %v8541
      %8543 = vmatmul.bf16.gmra.mxu0 %v7941
      %v8544 = vpop.f32.mrf.mxu0
      %v8545 = vadd.f32 %v8216, %v8544
      %v8546 = vpop.f32.mrf.mxu0
      %v8547 = vadd.f32 %v8218, %v8546
      %8548 = vmatmul.bf16.gmra.mxu0 %v7943
      %v8549 = vpop.f32.mrf.mxu0
      %v8550 = vadd.f32 %v8221, %v8549
      %v8551 = vpop.f32.mrf.mxu0
      %v8552 = vadd.f32 %v8223, %v8551
      %8553 = vmatmul.bf16.gmra.mxu0 %v7945
      %v8554 = vpop.f32.mrf.mxu0
      %v8555 = vadd.f32 %v8226, %v8554
      %v8556 = vpop.f32.mrf.mxu0
      %v8557 = vadd.f32 %v8228, %v8556
      %8558 = vmatmul.bf16.gmra.mxu0 %v7947
      %v8559 = vpop.f32.mrf.mxu0
      %v8560 = vadd.f32 %v8231, %v8559
      %v8561 = vpop.f32.mrf.mxu0
      %v8562 = vadd.f32 %v8233, %v8561
      %8563 = vmatmul.bf16.gmra.mxu0 %v7949
      %v8564 = vpop.f32.mrf.mxu0
      %v8565 = vadd.f32 %v8236, %v8564
      %v8566 = vpop.f32.mrf.mxu0
      %v8567 = vadd.f32 %v8238, %v8566
      %8568 = vmatmul.bf16.gmra.mxu0 %v7951
      %v8569 = vpop.f32.mrf.mxu0
      %v8570 = vadd.f32 %v8241, %v8569
      %v8571 = vpop.f32.mrf.mxu0
      %v8572 = vadd.f32 %v8243, %v8571
      %8573 = vmatmul.bf16.gmra.mxu0 %v7953
      %v8574 = vpop.f32.mrf.mxu0
      %v8575 = vadd.f32 %v8246, %v8574
      %v8576 = vpop.f32.mrf.mxu0
      %v8577 = vadd.f32 %v8248, %v8576
      %8578 = vmatmul.bf16.gmra.mxu0 %v7955
      %v8579 = vpop.f32.mrf.mxu0
      %v8580 = vadd.f32 %v8251, %v8579
      %v8581 = vpop.f32.mrf.mxu0
      %v8582 = vadd.f32 %v8253, %v8581
      %8583 = vmatmul.bf16.gmra.mxu0 %v7957
      %v8584 = vpop.f32.mrf.mxu0
      %v8585 = vadd.f32 %v8256, %v8584
      %v8586 = vpop.f32.mrf.mxu0
      %v8587 = vadd.f32 %v8258, %v8586
      %8588 = vmatmul.bf16.gmra.mxu0 %v7959
      %v8589 = vpop.f32.mrf.mxu0
      %v8590 = vadd.f32 %v8261, %v8589
      %v8591 = vpop.f32.mrf.mxu0
      %v8592 = vadd.f32 %v8263, %v8591
      %8593 = vmatmul.bf16.gmra.mxu0 %v7961
      %v8594 = vpop.f32.mrf.mxu0
      %v8595 = vadd.f32 %v8266, %v8594
      %v8596 = vpop.f32.mrf.mxu0
      %v8597 = vadd.f32 %v8268, %v8596
      %8598 = vmatmul.bf16.gmra.mxu0 %v7963
      %v8599 = vpop.f32.mrf.mxu0
      %v8600 = vadd.f32 %v8271, %v8599
      %v8601 = vpop.f32.mrf.mxu0
      %v8602 = vadd.f32 %v8273, %v8601
      %8603 = vmatmul.bf16.gmra.mxu0 %v7965
      %v8604 = vpop.f32.mrf.mxu0
      %v8605 = vadd.f32 %v8276, %v8604
      %v8606 = vpop.f32.mrf.mxu0
      %v8607 = vadd.f32 %v8278, %v8606
      %8608 = vmatmul.bf16.gmra.mxu0 %v7967
      %v8609 = vpop.f32.mrf.mxu0
      %v8610 = vadd.f32 %v8281, %v8609
      %v8611 = vpop.f32.mrf.mxu0
      %v8612 = vadd.f32 %v8283, %v8611
      %8613 = vmatmul.bf16.gmra.mxu0 %v7969
      %v8614 = vpop.f32.mrf.mxu0
      %v8615 = vadd.f32 %v8286, %v8614
      %v8616 = vpop.f32.mrf.mxu0
      %v8617 = vadd.f32 %v8288, %v8616
      %8618 = vmatmul.bf16.gmra.mxu0 %v7971
      %v8619 = vpop.f32.mrf.mxu0
      %v8620 = vadd.f32 %v8291, %v8619
      %v8621 = vpop.f32.mrf.mxu0
      %v8622 = vadd.f32 %v8293, %v8621
      %8623 = vmatmul.bf16.gmra.mxu0 %v7973
      %v8624 = vpop.f32.mrf.mxu0
      %v8625 = vadd.f32 %v8296, %v8624
      %v8626 = vpop.f32.mrf.mxu0
      %v8627 = vadd.f32 %v8298, %v8626
      %8628 = vmatmul.bf16.gmra.mxu0 %v7975
      %v8629 = vpop.f32.mrf.mxu0
      %v8630 = vadd.f32 %v8301, %v8629
      %v8631 = vpop.f32.mrf.mxu0
      %v8632 = vadd.f32 %v8303, %v8631
      %8633 = vmatmul.bf16.gmra.mxu0 %v7977
      %v8634 = vpop.f32.mrf.mxu0
      %v8635 = vadd.f32 %v8306, %v8634
      %v8636 = vpop.f32.mrf.mxu0
      %v8637 = vadd.f32 %v8308, %v8636
      %8638 = vmatmul.bf16.gmra.mxu0 %v7979
      %v8639 = vpop.f32.mrf.mxu0
      %v8640 = vadd.f32 %v8311, %v8639
      %v8641 = vpop.f32.mrf.mxu0
      %v8642 = vadd.f32 %v8313, %v8641
      %8643 = vmatmul.bf16.gmra.mxu0 %v7981
      %v8644 = vpop.f32.mrf.mxu0
      %v8645 = vadd.f32 %v8316, %v8644
      %v8646 = vpop.f32.mrf.mxu0
      %v8647 = vadd.f32 %v8318, %v8646
      %8648 = vmatmul.bf16.gmra.mxu0 %v7983
      %v8649 = vpop.f32.mrf.mxu0
      %v8650 = vadd.f32 %v8321, %v8649
      %v8651 = vpop.f32.mrf.mxu0
      %v8652 = vadd.f32 %v8323, %v8651
      %8653 = vmatmul.bf16.gmra.mxu0 %v7985
      %v8654 = vpop.f32.mrf.mxu0
      %v8655 = vadd.f32 %v8326, %v8654
      %v8656 = vpop.f32.mrf.mxu0
      %v8657 = vadd.f32 %v8328, %v8656
      %8658 = vmatmul.bf16.gmra.mxu0 %v7987
      %v8659 = vpop.f32.mrf.mxu0
      %v8660 = vadd.f32 %v8331, %v8659
      %v8661 = vpop.f32.mrf.mxu0
      %v8662 = vadd.f32 %v8333, %v8661
      %8663 = vmatmul.bf16.gmra.mxu0 %v7989
      %v8664 = vpop.f32.mrf.mxu0
      %v8665 = vadd.f32 %v8336, %v8664
      %v8666 = vpop.f32.mrf.mxu0
      %v8667 = vadd.f32 %v8338, %v8666
      %8668 = vmatmul.bf16.gmra.mxu0 %v7991
      %v8669 = vpop.f32.mrf.mxu0
      %v8670 = vadd.f32 %v8341, %v8669
      %v8671 = vpop.f32.mrf.mxu0
      %v8672 = vadd.f32 %v8343, %v8671
      %8673 = vmatmul.bf16.gmra.mxu0 %v7993
      %v8674 = vpop.f32.mrf.mxu0
      %v8675 = vadd.f32 %v8346, %v8674
      %v8676 = vpop.f32.mrf.mxu0
      %v8677 = vadd.f32 %v8348, %v8676
      %8678 = vmatmul.bf16.gmra.mxu0 %v7995
      %v8679 = vpop.f32.mrf.mxu0
      %v8680 = vadd.f32 %v8351, %v8679
      %v8681 = vpop.f32.mrf.mxu0
      %v8682 = vadd.f32 %v8353, %v8681
      %8683 = vmatmul.bf16.gmra.mxu0 %v7997
      %v8684 = vpop.f32.mrf.mxu0
      %v8685 = vadd.f32 %v8356, %v8684
      %v8686 = vpop.f32.mrf.mxu0
      %v8687 = vadd.f32 %v8358, %v8686
      %8688 = vmatmul.bf16.gmra.mxu0 %v7999
      %v8689 = vpop.f32.mrf.mxu0
      %v8690 = vadd.f32 %v8361, %v8689
      %v8691 = vpop.f32.mrf.mxu0
      %v8692 = vadd.f32 %v8363, %v8691
      %8693 = vmatmul.bf16.gmra.mxu0 %v8001
      %v8694 = vpop.f32.mrf.mxu0
      %v8695 = vadd.f32 %v8366, %v8694
      %v8696 = vpop.f32.mrf.mxu0
      %v8697 = vadd.f32 %v8368, %v8696
      %8698 = vmatmul.bf16.gmra.mxu0 %v8003
      %v8699 = vpop.f32.mrf.mxu0
      %v8700 = vadd.f32 %v8371, %v8699
      %v8701 = vpop.f32.mrf.mxu0
      %v8702 = vadd.f32 %v8373, %v8701
      %8703 = vmatmul.bf16.gmra.mxu0 %v8005
      %v8704 = vpop.f32.mrf.mxu0
      %v8705 = vadd.f32 %v8376, %v8704
      %v8706 = vpop.f32.mrf.mxu0
      %v8707 = vadd.f32 %v8378, %v8706
      %8708 = vmatmul.bf16.gmra.mxu0 %v8007
      %v8709 = vpop.f32.mrf.mxu0
      %v8710 = vadd.f32 %v8381, %v8709
      %v8711 = vpop.f32.mrf.mxu0
      %v8712 = vadd.f32 %v8383, %v8711
      %8713 = vmatmul.bf16.gmra.mxu0 %v8009
      %v8714 = vpop.f32.mrf.mxu0
      %v8715 = vadd.f32 %v8386, %v8714
      %v8716 = vpop.f32.mrf.mxu0
      %v8717 = vadd.f32 %v8388, %v8716
      %8718 = vmatmul.bf16.gmra.mxu0 %v8011
      %v8719 = vpop.f32.mrf.mxu0
      %v8720 = vadd.f32 %v8391, %v8719
      %v8721 = vpop.f32.mrf.mxu0
      %v8722 = vadd.f32 %v8393, %v8721
      %8723 = vmatmul.bf16.gmra.mxu0 %v8013
      %v8724 = vpop.f32.mrf.mxu0
      %v8725 = vadd.f32 %v8396, %v8724
      %v8726 = vpop.f32.mrf.mxu0
      %v8727 = vadd.f32 %v8398, %v8726
      %8728 = vmatmul.bf16.gmra.mxu0 %v8015
      %v8729 = vpop.f32.mrf.mxu0
      %v8730 = vadd.f32 %v8401, %v8729
      %v8731 = vpop.f32.mrf.mxu0
      %v8732 = vadd.f32 %v8403, %v8731
      %8733 = vmatmul.bf16.gmra.mxu0 %v8017
      %v8734 = vpop.f32.mrf.mxu0
      %v8735 = vadd.f32 %v8406, %v8734
      %v8736 = vpop.f32.mrf.mxu0
      %v8737 = vadd.f32 %v8408, %v8736
      %8738 = vmatmul.bf16.gmra.mxu0 %v8019
      %v8739 = vpop.f32.mrf.mxu0
      %v8740 = vadd.f32 %v8411, %v8739
      %v8741 = vpop.f32.mrf.mxu0
      %v8742 = vadd.f32 %v8413, %v8741
      %8743 = vmatmul.bf16.gmra.mxu0 %v8021
      %v8744 = vpop.f32.mrf.mxu0
      %v8745 = vadd.f32 %v8416, %v8744
      %v8746 = vpop.f32.mrf.mxu0
      %v8747 = vadd.f32 %v8418, %v8746
      %8748 = vmatmul.bf16.gmra.mxu0 %v8023
      %v8749 = vpop.f32.mrf.mxu0
      %v8750 = vadd.f32 %v8421, %v8749
      %v8751 = vpop.f32.mrf.mxu0
      %v8752 = vadd.f32 %v8423, %v8751
      %8753 = vmatmul.bf16.gmra.mxu0 %v8025
      %v8754 = vpop.f32.mrf.mxu0
      %v8755 = vadd.f32 %v8426, %v8754
      %v8756 = vpop.f32.mrf.mxu0
      %v8757 = vadd.f32 %v8428, %v8756
      %8758 = vmatmul.bf16.gmra.mxu0 %v8027
      %v8759 = vpop.f32.mrf.mxu0
      %v8760 = vadd.f32 %v8431, %v8759
      %v8761 = vpop.f32.mrf.mxu0
      %v8762 = vadd.f32 %v8433, %v8761
      %8763 = vmatmul.bf16.gmra.mxu0 %v8029
      %v8764 = vpop.f32.mrf.mxu0
      %v8765 = vadd.f32 %v8436, %v8764
      %v8766 = vpop.f32.mrf.mxu0
      %v8767 = vadd.f32 %v8438, %v8766
      %8768 = vmatmul.bf16.gmra.mxu0 %v8031
      %v8769 = vpop.f32.mrf.mxu0
      %v8770 = vadd.f32 %v8441, %v8769
      %v8771 = vpop.f32.mrf.mxu0
      %v8772 = vadd.f32 %v8443, %v8771
      %8773 = vmatmul.bf16.gmra.mxu0 %v8033
      %v8774 = vpop.f32.mrf.mxu0
      %v8775 = vadd.f32 %v8446, %v8774
      %v8776 = vpop.f32.mrf.mxu0
      %v8777 = vadd.f32 %v8448, %v8776
      %8778 = vmatmul.bf16.gmra.mxu0 %v8035
      %v8779 = vpop.f32.mrf.mxu0
      %v8780 = vadd.f32 %v8451, %v8779
      %v8781 = vpop.f32.mrf.mxu0
      %v8782 = vadd.f32 %v8453, %v8781
      %8783 = vmatmul.bf16.gmra.mxu0 %v8037
      %v8784 = vpop.f32.mrf.mxu0
      %v8785 = vadd.f32 %v8456, %v8784
      %v8786 = vpop.f32.mrf.mxu0
      %v8787 = vadd.f32 %v8458, %v8786
      %8788 = vmatmul.bf16.gmra.mxu0 %v8039
      %v8789 = vpop.f32.mrf.mxu0
      %v8790 = vadd.f32 %v8461, %v8789
      %v8791 = vpop.f32.mrf.mxu0
      %v8792 = vadd.f32 %v8463, %v8791
      %8793 = vmatmul.bf16.gmra.mxu0 %v8041
      %v8794 = vpop.f32.mrf.mxu0
      %v8795 = vadd.f32 %v8466, %v8794
      %v8796 = vpop.f32.mrf.mxu0
      %v8797 = vadd.f32 %v8468, %v8796
      %8798 = vmatmul.bf16.gmra.mxu0 %v8043
      %v8799 = vpop.f32.mrf.mxu0
      %v8800 = vadd.f32 %v8471, %v8799
      %v8801 = vpop.f32.mrf.mxu0
      %v8802 = vadd.f32 %v8473, %v8801
      %8803 = vmatmul.bf16.gmra.mxu0 %v8045
      %v8804 = vpop.f32.mrf.mxu0
      %v8805 = vadd.f32 %v8476, %v8804
      %v8806 = vpop.f32.mrf.mxu0
      %v8807 = vadd.f32 %v8478, %v8806
      %8808 = vmatmul.bf16.gmra.mxu0 %v8047
      %v8809 = vpop.f32.mrf.mxu0
      %v8810 = vadd.f32 %v8481, %v8809
      %v8811 = vpop.f32.mrf.mxu0
      %v8812 = vadd.f32 %v8483, %v8811
      %8813 = vmatmul.bf16.gmra.mxu0 %v8049
      %v8814 = vpop.f32.mrf.mxu0
      %v8815 = vadd.f32 %v8486, %v8814
      %v8816 = vpop.f32.mrf.mxu0
      %v8817 = vadd.f32 %v8488, %v8816
      %8818 = vmatmul.bf16.gmra.mxu0 %v8051
      %v8819 = vpop.f32.mrf.mxu0
      %v8820 = vadd.f32 %v8491, %v8819
      %v8821 = vpop.f32.mrf.mxu0
      %v8822 = vadd.f32 %v8493, %v8821
      %8823 = vmatmul.bf16.gmra.mxu0 %v8053
      %v8824 = vpop.f32.mrf.mxu0
      %v8825 = vadd.f32 %v8496, %v8824
      %v8826 = vpop.f32.mrf.mxu0
      %v8827 = vadd.f32 %v8498, %v8826
      %8828 = vmatmul.bf16.gmra.mxu0 %v8055
      %v8829 = vpop.f32.mrf.mxu0
      %v8830 = vadd.f32 %v8501, %v8829
      %v8831 = vpop.f32.mrf.mxu0
      %v8832 = vadd.f32 %v8503, %v8831
      %8833 = vmatmul.bf16.gmra.mxu0 %v8057
      %v8834 = vpop.f32.mrf.mxu0
      %v8835 = vadd.f32 %v8506, %v8834
      %v8836 = vpop.f32.mrf.mxu0
      %v8837 = vadd.f32 %v8508, %v8836
      %8838 = vmatmul.bf16.gmra.mxu0 %v8059
      %v8839 = vpop.f32.mrf.mxu0
      %v8840 = vadd.f32 %v8511, %v8839
      %v8841 = vpop.f32.mrf.mxu0
      %v8842 = vadd.f32 %v8513, %v8841
      %8843 = vmatmul.bf16.gmra.mxu0 %v8061
      %v8844 = vpop.f32.mrf.mxu0
      %v8845 = vadd.f32 %v8516, %v8844
      %v8846 = vpop.f32.mrf.mxu0
      %v8847 = vadd.f32 %v8518, %v8846
      %8848 = vmatmul.bf16.gmra.mxu0 %v8063
      %v8849 = vpop.f32.mrf.mxu0
      %v8850 = vadd.f32 %v8521, %v8849
      %v8851 = vpop.f32.mrf.mxu0
      %v8852 = vadd.f32 %v8523, %v8851
      %8853 = vdwg.mxu0
      %v8854 = vsub.f32 0.0, %v8535
      %v8855 = vsub.f32 0.0, %v8537
      %v8856 = vsub.f32 0.0, %v8540
      %v8857 = vsub.f32 0.0, %v8542
      %v8858 = vsub.f32 0.0, %v8545
      %v8859 = vsub.f32 0.0, %v8547
      %v8860 = vsub.f32 0.0, %v8550
      %v8861 = vsub.f32 0.0, %v8552
      %v8862 = vsub.f32 0.0, %v8555
      %v8863 = vsub.f32 0.0, %v8557
      %v8864 = vsub.f32 0.0, %v8560
      %v8865 = vsub.f32 0.0, %v8562
      %v8866 = vsub.f32 0.0, %v8565
      %v8867 = vsub.f32 0.0, %v8567
      %v8868 = vsub.f32 0.0, %v8570
      %v8869 = vsub.f32 0.0, %v8572
      %v8870 = vsub.f32 0.0, %v8575
      %v8871 = vsub.f32 0.0, %v8577
      %v8872 = vsub.f32 0.0, %v8580
      %v8873 = vsub.f32 0.0, %v8582
      %v8874 = vsub.f32 0.0, %v8585
      %v8875 = vsub.f32 0.0, %v8587
      %v8876 = vsub.f32 0.0, %v8590
      %v8877 = vsub.f32 0.0, %v8592
      %v8878 = vsub.f32 0.0, %v8595
      %v8879 = vsub.f32 0.0, %v8597
      %v8880 = vsub.f32 0.0, %v8600
      %v8881 = vsub.f32 0.0, %v8602
      %v8882 = vsub.f32 0.0, %v8605
      %v8883 = vsub.f32 0.0, %v8607
      %v8884 = vsub.f32 0.0, %v8610
      %v8885 = vsub.f32 0.0, %v8612
      %v8886 = vsub.f32 0.0, %v8615
      %v8887 = vsub.f32 0.0, %v8617
      %v8888 = vsub.f32 0.0, %v8620
      %v8889 = vsub.f32 0.0, %v8622
      %v8890 = vsub.f32 0.0, %v8625
      %v8891 = vsub.f32 0.0, %v8627
      %v8892 = vsub.f32 0.0, %v8630
      %v8893 = vsub.f32 0.0, %v8632
      %v8894 = vsub.f32 0.0, %v8635
      %v8895 = vsub.f32 0.0, %v8637
      %v8896 = vsub.f32 0.0, %v8640
      %v8897 = vsub.f32 0.0, %v8642
      %v8898 = vsub.f32 0.0, %v8645
      %v8899 = vsub.f32 0.0, %v8647
      %v8900 = vsub.f32 0.0, %v8650
      %v8901 = vsub.f32 0.0, %v8652
      %v8902 = vsub.f32 0.0, %v8655
      %v8903 = vsub.f32 0.0, %v8657
      %v8904 = vsub.f32 0.0, %v8660
      %v8905 = vsub.f32 0.0, %v8662
      %v8906 = vsub.f32 0.0, %v8665
      %v8907 = vsub.f32 0.0, %v8667
      %v8908 = vsub.f32 0.0, %v8670
      %v8909 = vsub.f32 0.0, %v8672
      %v8910 = vsub.f32 0.0, %v8675
      %v8911 = vsub.f32 0.0, %v8677
      %v8912 = vsub.f32 0.0, %v8680
      %v8913 = vsub.f32 0.0, %v8682
      %v8914 = vsub.f32 0.0, %v8685
      %v8915 = vsub.f32 0.0, %v8687
      %v8916 = vsub.f32 0.0, %v8690
      %v8917 = vsub.f32 0.0, %v8692
      %v8918 = vsub.f32 0.0, %v8695
      %v8919 = vsub.f32 0.0, %v8697
      %v8920 = vsub.f32 0.0, %v8700
      %v8921 = vsub.f32 0.0, %v8702
      %v8922 = vsub.f32 0.0, %v8705
      %v8923 = vsub.f32 0.0, %v8707
      %v8924 = vsub.f32 0.0, %v8710
      %v8925 = vsub.f32 0.0, %v8712
      %v8926 = vsub.f32 0.0, %v8715
      %v8927 = vsub.f32 0.0, %v8717
      %v8928 = vsub.f32 0.0, %v8720
      %v8929 = vsub.f32 0.0, %v8722
      %v8930 = vsub.f32 0.0, %v8725
      %v8931 = vsub.f32 0.0, %v8727
      %v8932 = vsub.f32 0.0, %v8730
      %v8933 = vsub.f32 0.0, %v8732
      %v8934 = vsub.f32 0.0, %v8735
      %v8935 = vsub.f32 0.0, %v8737
      %v8936 = vsub.f32 0.0, %v8740
      %v8937 = vsub.f32 0.0, %v8742
      %v8938 = vsub.f32 0.0, %v8745
      %v8939 = vsub.f32 0.0, %v8747
      %v8940 = vsub.f32 0.0, %v8750
      %v8941 = vsub.f32 0.0, %v8752
      %v8942 = vsub.f32 0.0, %v8755
      %v8943 = vsub.f32 0.0, %v8757
      %v8944 = vsub.f32 0.0, %v8760
      %v8945 = vsub.f32 0.0, %v8762
      %v8946 = vsub.f32 0.0, %v8765
      %v8947 = vsub.f32 0.0, %v8767
      %v8948 = vsub.f32 0.0, %v8770
      %v8949 = vsub.f32 0.0, %v8772
      %v8950 = vsub.f32 0.0, %v8775
      %v8951 = vsub.f32 0.0, %v8777
      %v8952 = vsub.f32 0.0, %v8780
      %v8953 = vsub.f32 0.0, %v8782
      %v8954 = vsub.f32 0.0, %v8785
      %v8955 = vsub.f32 0.0, %v8787
      %v8956 = vsub.f32 0.0, %v8790
      %v8957 = vsub.f32 0.0, %v8792
      %v8958 = vsub.f32 0.0, %v8795
      %v8959 = vsub.f32 0.0, %v8797
      %v8960 = vsub.f32 0.0, %v8800
      %v8961 = vsub.f32 0.0, %v8802
      %v8962 = vsub.f32 0.0, %v8805
      %v8963 = vsub.f32 0.0, %v8807
      %v8964 = vsub.f32 0.0, %v8810
      %v8965 = vsub.f32 0.0, %v8812
      %v8966 = vsub.f32 0.0, %v8815
      %v8967 = vsub.f32 0.0, %v8817
      %v8968 = vsub.f32 0.0, %v8820
      %v8969 = vsub.f32 0.0, %v8822
      %v8970 = vsub.f32 0.0, %v8825
      %v8971 = vsub.f32 0.0, %v8827
      %v8972 = vsub.f32 0.0, %v8830
      %v8973 = vsub.f32 0.0, %v8832
      %v8974 = vsub.f32 0.0, %v8835
      %v8975 = vsub.f32 0.0, %v8837
      %v8976 = vsub.f32 0.0, %v8840
      %v8977 = vsub.f32 0.0, %v8842
      %v8978 = vsub.f32 0.0, %v8845
      %v8979 = vsub.f32 0.0, %v8847
      %v8980 = vsub.f32 0.0, %v8850
      %v8981 = vsub.f32 0.0, %v8852
      %v8982 = vmul.f32 %v8854, 1.442695
      %v8983 = vpow.pop %v8982
      %v8984 = vmul.f32 %v8855, 1.442695
      %v8985 = vpow.pop %v8984
      %v8986 = vmul.f32 %v8856, 1.442695
      %v8987 = vpow.pop %v8986
      %v8988 = vmul.f32 %v8857, 1.442695
      %v8989 = vpow.pop %v8988
      %v8990 = vmul.f32 %v8858, 1.442695
      %v8991 = vpow.pop %v8990
      %v8992 = vmul.f32 %v8859, 1.442695
      %v8993 = vpow.pop %v8992
      %v8994 = vmul.f32 %v8860, 1.442695
      %v8995 = vpow.pop %v8994
      %v8996 = vmul.f32 %v8861, 1.442695
      %v8997 = vpow.pop %v8996
      %v8998 = vmul.f32 %v8862, 1.442695
      %v8999 = vpow.pop %v8998
      %v9000 = vmul.f32 %v8863, 1.442695
      %v9001 = vpow.pop %v9000
      %v9002 = vmul.f32 %v8864, 1.442695
      %v9003 = vpow.pop %v9002
      %v9004 = vmul.f32 %v8865, 1.442695
      %v9005 = vpow.pop %v9004
      %v9006 = vmul.f32 %v8866, 1.442695
      %v9007 = vpow.pop %v9006
      %v9008 = vmul.f32 %v8867, 1.442695
      %v9009 = vpow.pop %v9008
      %v9010 = vmul.f32 %v8868, 1.442695
      %v9011 = vpow.pop %v9010
      %v9012 = vmul.f32 %v8869, 1.442695
      %v9013 = vpow.pop %v9012
      %v9014 = vmul.f32 %v8870, 1.442695
      %v9015 = vpow.pop %v9014
      %v9016 = vmul.f32 %v8871, 1.442695
      %v9017 = vpow.pop %v9016
      %v9018 = vmul.f32 %v8872, 1.442695
      %v9019 = vpow.pop %v9018
      %v9020 = vmul.f32 %v8873, 1.442695
      %v9021 = vpow.pop %v9020
      %v9022 = vmul.f32 %v8874, 1.442695
      %v9023 = vpow.pop %v9022
      %v9024 = vmul.f32 %v8875, 1.442695
      %v9025 = vpow.pop %v9024
      %v9026 = vmul.f32 %v8876, 1.442695
      %v9027 = vpow.pop %v9026
      %v9028 = vmul.f32 %v8877, 1.442695
      %v9029 = vpow.pop %v9028
      %v9030 = vmul.f32 %v8878, 1.442695
      %v9031 = vpow.pop %v9030
      %v9032 = vmul.f32 %v8879, 1.442695
      %v9033 = vpow.pop %v9032
      %v9034 = vmul.f32 %v8880, 1.442695
      %v9035 = vpow.pop %v9034
      %v9036 = vmul.f32 %v8881, 1.442695
      %v9037 = vpow.pop %v9036
      %v9038 = vmul.f32 %v8882, 1.442695
      %v9039 = vpow.pop %v9038
      %v9040 = vmul.f32 %v8883, 1.442695
      %v9041 = vpow.pop %v9040
      %v9042 = vmul.f32 %v8884, 1.442695
      %v9043 = vpow.pop %v9042
      %v9044 = vmul.f32 %v8885, 1.442695
      %v9045 = vpow.pop %v9044
      %v9046 = vmul.f32 %v8886, 1.442695
      %v9047 = vpow.pop %v9046
      %v9048 = vmul.f32 %v8887, 1.442695
      %v9049 = vpow.pop %v9048
      %v9050 = vmul.f32 %v8888, 1.442695
      %v9051 = vpow.pop %v9050
      %v9052 = vmul.f32 %v8889, 1.442695
      %v9053 = vpow.pop %v9052
      %v9054 = vmul.f32 %v8890, 1.442695
      %v9055 = vpow.pop %v9054
      %v9056 = vmul.f32 %v8891, 1.442695
      %v9057 = vpow.pop %v9056
      %v9058 = vmul.f32 %v8892, 1.442695
      %v9059 = vpow.pop %v9058
      %v9060 = vmul.f32 %v8893, 1.442695
      %v9061 = vpow.pop %v9060
      %v9062 = vmul.f32 %v8894, 1.442695
      %v9063 = vpow.pop %v9062
      %v9064 = vmul.f32 %v8895, 1.442695
      %v9065 = vpow.pop %v9064
      %v9066 = vmul.f32 %v8896, 1.442695
      %v9067 = vpow.pop %v9066
      %v9068 = vmul.f32 %v8897, 1.442695
      %v9069 = vpow.pop %v9068
      %v9070 = vmul.f32 %v8898, 1.442695
      %v9071 = vpow.pop %v9070
      %v9072 = vmul.f32 %v8899, 1.442695
      %v9073 = vpow.pop %v9072
      %v9074 = vmul.f32 %v8900, 1.442695
      %v9075 = vpow.pop %v9074
      %v9076 = vmul.f32 %v8901, 1.442695
      %v9077 = vpow.pop %v9076
      %v9078 = vmul.f32 %v8902, 1.442695
      %v9079 = vpow.pop %v9078
      %v9080 = vmul.f32 %v8903, 1.442695
      %v9081 = vpow.pop %v9080
      %v9082 = vmul.f32 %v8904, 1.442695
      %v9083 = vpow.pop %v9082
      %v9084 = vmul.f32 %v8905, 1.442695
      %v9085 = vpow.pop %v9084
      %v9086 = vmul.f32 %v8906, 1.442695
      %v9087 = vpow.pop %v9086
      %v9088 = vmul.f32 %v8907, 1.442695
      %v9089 = vpow.pop %v9088
      %v9090 = vmul.f32 %v8908, 1.442695
      %v9091 = vpow.pop %v9090
      %v9092 = vmul.f32 %v8909, 1.442695
      %v9093 = vpow.pop %v9092
      %v9094 = vmul.f32 %v8910, 1.442695
      %v9095 = vpow.pop %v9094
      %v9096 = vmul.f32 %v8911, 1.442695
      %v9097 = vpow.pop %v9096
      %v9098 = vmul.f32 %v8912, 1.442695
      %v9099 = vpow.pop %v9098
      %v9100 = vmul.f32 %v8913, 1.442695
      %v9101 = vpow.pop %v9100
      %v9102 = vmul.f32 %v8914, 1.442695
      %v9103 = vpow.pop %v9102
      %v9104 = vmul.f32 %v8915, 1.442695
      %v9105 = vpow.pop %v9104
      %v9106 = vmul.f32 %v8916, 1.442695
      %v9107 = vpow.pop %v9106
      %v9108 = vmul.f32 %v8917, 1.442695
      %v9109 = vpow.pop %v9108
      %v9110 = vmul.f32 %v8918, 1.442695
      %v9111 = vpow.pop %v9110
      %v9112 = vmul.f32 %v8919, 1.442695
      %v9113 = vpow.pop %v9112
      %v9114 = vmul.f32 %v8920, 1.442695
      %v9115 = vpow.pop %v9114
      %v9116 = vmul.f32 %v8921, 1.442695
      %v9117 = vpow.pop %v9116
      %v9118 = vmul.f32 %v8922, 1.442695
      %v9119 = vpow.pop %v9118
      %v9120 = vmul.f32 %v8923, 1.442695
      %v9121 = vpow.pop %v9120
      %v9122 = vmul.f32 %v8924, 1.442695
      %v9123 = vpow.pop %v9122
      %v9124 = vmul.f32 %v8925, 1.442695
      %v9125 = vpow.pop %v9124
      %v9126 = vmul.f32 %v8926, 1.442695
      %v9127 = vpow.pop %v9126
      %v9128 = vmul.f32 %v8927, 1.442695
      %v9129 = vpow.pop %v9128
      %v9130 = vmul.f32 %v8928, 1.442695
      %v9131 = vpow.pop %v9130
      %v9132 = vmul.f32 %v8929, 1.442695
      %v9133 = vpow.pop %v9132
      %v9134 = vmul.f32 %v8930, 1.442695
      %v9135 = vpow.pop %v9134
      %v9136 = vmul.f32 %v8931, 1.442695
      %v9137 = vpow.pop %v9136
      %v9138 = vmul.f32 %v8932, 1.442695
      %v9139 = vpow.pop %v9138
      %v9140 = vmul.f32 %v8933, 1.442695
      %v9141 = vpow.pop %v9140
      %v9142 = vmul.f32 %v8934, 1.442695
      %v9143 = vpow.pop %v9142
      %v9144 = vmul.f32 %v8935, 1.442695
      %v9145 = vpow.pop %v9144
      %v9146 = vmul.f32 %v8936, 1.442695
      %v9147 = vpow.pop %v9146
      %v9148 = vmul.f32 %v8937, 1.442695
      %v9149 = vpow.pop %v9148
      %v9150 = vmul.f32 %v8938, 1.442695
      %v9151 = vpow.pop %v9150
      %v9152 = vmul.f32 %v8939, 1.442695
      %v9153 = vpow.pop %v9152
      %v9154 = vmul.f32 %v8940, 1.442695
      %v9155 = vpow.pop %v9154
      %v9156 = vmul.f32 %v8941, 1.442695
      %v9157 = vpow.pop %v9156
      %v9158 = vmul.f32 %v8942, 1.442695
      %v9159 = vpow.pop %v9158
      %v9160 = vmul.f32 %v8943, 1.442695
      %v9161 = vpow.pop %v9160
      %v9162 = vmul.f32 %v8944, 1.442695
      %v9163 = vpow.pop %v9162
      %v9164 = vmul.f32 %v8945, 1.442695
      %v9165 = vpow.pop %v9164
      %v9166 = vmul.f32 %v8946, 1.442695
      %v9167 = vpow.pop %v9166
      %v9168 = vmul.f32 %v8947, 1.442695
      %v9169 = vpow.pop %v9168
      %v9170 = vmul.f32 %v8948, 1.442695
      %v9171 = vpow.pop %v9170
      %v9172 = vmul.f32 %v8949, 1.442695
      %v9173 = vpow.pop %v9172
      %v9174 = vmul.f32 %v8950, 1.442695
      %v9175 = vpow.pop %v9174
      %v9176 = vmul.f32 %v8951, 1.442695
      %v9177 = vpow.pop %v9176
      %v9178 = vmul.f32 %v8952, 1.442695
      %v9179 = vpow.pop %v9178
      %v9180 = vmul.f32 %v8953, 1.442695
      %v9181 = vpow.pop %v9180
      %v9182 = vmul.f32 %v8954, 1.442695
      %v9183 = vpow.pop %v9182
      %v9184 = vmul.f32 %v8955, 1.442695
      %v9185 = vpow.pop %v9184
      %v9186 = vmul.f32 %v8956, 1.442695
      %v9187 = vpow.pop %v9186
      %v9188 = vmul.f32 %v8957, 1.442695
      %v9189 = vpow.pop %v9188
      %v9190 = vmul.f32 %v8958, 1.442695
      %v9191 = vpow.pop %v9190
      %v9192 = vmul.f32 %v8959, 1.442695
      %v9193 = vpow.pop %v9192
      %v9194 = vmul.f32 %v8960, 1.442695
      %v9195 = vpow.pop %v9194
      %v9196 = vmul.f32 %v8961, 1.442695
      %v9197 = vpow.pop %v9196
      %v9198 = vmul.f32 %v8962, 1.442695
      %v9199 = vpow.pop %v9198
      %v9200 = vmul.f32 %v8963, 1.442695
      %v9201 = vpow.pop %v9200
      %v9202 = vmul.f32 %v8964, 1.442695
      %v9203 = vpow.pop %v9202
      %v9204 = vmul.f32 %v8965, 1.442695
      %v9205 = vpow.pop %v9204
      %v9206 = vmul.f32 %v8966, 1.442695
      %v9207 = vpow.pop %v9206
      %v9208 = vmul.f32 %v8967, 1.442695
      %v9209 = vpow.pop %v9208
      %v9210 = vmul.f32 %v8968, 1.442695
      %v9211 = vpow.pop %v9210
      %v9212 = vmul.f32 %v8969, 1.442695
      %v9213 = vpow.pop %v9212
      %v9214 = vmul.f32 %v8970, 1.442695
      %v9215 = vpow.pop %v9214
      %v9216 = vmul.f32 %v8971, 1.442695
      %v9217 = vpow.pop %v9216
      %v9218 = vmul.f32 %v8972, 1.442695
      %v9219 = vpow.pop %v9218
      %v9220 = vmul.f32 %v8973, 1.442695
      %v9221 = vpow.pop %v9220
      %v9222 = vmul.f32 %v8974, 1.442695
      %v9223 = vpow.pop %v9222
      %v9224 = vmul.f32 %v8975, 1.442695
      %v9225 = vpow.pop %v9224
      %v9226 = vmul.f32 %v8976, 1.442695
      %v9227 = vpow.pop %v9226
      %v9228 = vmul.f32 %v8977, 1.442695
      %v9229 = vpow.pop %v9228
      %v9230 = vmul.f32 %v8978, 1.442695
      %v9231 = vpow.pop %v9230
      %v9232 = vmul.f32 %v8979, 1.442695
      %v9233 = vpow.pop %v9232
      %v9234 = vmul.f32 %v8980, 1.442695
      %v9235 = vpow.pop %v9234
      %v9236 = vmul.f32 %v8981, 1.442695
      %v9237 = vpow.pop %v9236
      %v9238 = vadd.f32 %v8983, 1.0
      %v9239 = vadd.f32 %v8985, 1.0
      %v9240 = vadd.f32 %v8987, 1.0
      %v9241 = vadd.f32 %v8989, 1.0
      %v9242 = vadd.f32 %v8991, 1.0
      %v9243 = vadd.f32 %v8993, 1.0
      %v9244 = vadd.f32 %v8995, 1.0
      %v9245 = vadd.f32 %v8997, 1.0
      %v9246 = vadd.f32 %v8999, 1.0
      %v9247 = vadd.f32 %v9001, 1.0
      %v9248 = vadd.f32 %v9003, 1.0
      %v9249 = vadd.f32 %v9005, 1.0
      %v9250 = vadd.f32 %v9007, 1.0
      %v9251 = vadd.f32 %v9009, 1.0
      %v9252 = vadd.f32 %v9011, 1.0
      %v9253 = vadd.f32 %v9013, 1.0
      %v9254 = vadd.f32 %v9015, 1.0
      %v9255 = vadd.f32 %v9017, 1.0
      %v9256 = vadd.f32 %v9019, 1.0
      %v9257 = vadd.f32 %v9021, 1.0
      %v9258 = vadd.f32 %v9023, 1.0
      %v9259 = vadd.f32 %v9025, 1.0
      %v9260 = vadd.f32 %v9027, 1.0
      %v9261 = vadd.f32 %v9029, 1.0
      %v9262 = vadd.f32 %v9031, 1.0
      %v9263 = vadd.f32 %v9033, 1.0
      %v9264 = vadd.f32 %v9035, 1.0
      %v9265 = vadd.f32 %v9037, 1.0
      %v9266 = vadd.f32 %v9039, 1.0
      %v9267 = vadd.f32 %v9041, 1.0
      %v9268 = vadd.f32 %v9043, 1.0
      %v9269 = vadd.f32 %v9045, 1.0
      %v9270 = vadd.f32 %v9047, 1.0
      %v9271 = vadd.f32 %v9049, 1.0
      %v9272 = vadd.f32 %v9051, 1.0
      %v9273 = vadd.f32 %v9053, 1.0
      %v9274 = vadd.f32 %v9055, 1.0
      %v9275 = vadd.f32 %v9057, 1.0
      %v9276 = vadd.f32 %v9059, 1.0
      %v9277 = vadd.f32 %v9061, 1.0
      %v9278 = vadd.f32 %v9063, 1.0
      %v9279 = vadd.f32 %v9065, 1.0
      %v9280 = vadd.f32 %v9067, 1.0
      %v9281 = vadd.f32 %v9069, 1.0
      %v9282 = vadd.f32 %v9071, 1.0
      %v9283 = vadd.f32 %v9073, 1.0
      %v9284 = vadd.f32 %v9075, 1.0
      %v9285 = vadd.f32 %v9077, 1.0
      %v9286 = vadd.f32 %v9079, 1.0
      %v9287 = vadd.f32 %v9081, 1.0
      %v9288 = vadd.f32 %v9083, 1.0
      %v9289 = vadd.f32 %v9085, 1.0
      %v9290 = vadd.f32 %v9087, 1.0
      %v9291 = vadd.f32 %v9089, 1.0
      %v9292 = vadd.f32 %v9091, 1.0
      %v9293 = vadd.f32 %v9093, 1.0
      %v9294 = vadd.f32 %v9095, 1.0
      %v9295 = vadd.f32 %v9097, 1.0
      %v9296 = vadd.f32 %v9099, 1.0
      %v9297 = vadd.f32 %v9101, 1.0
      %v9298 = vadd.f32 %v9103, 1.0
      %v9299 = vadd.f32 %v9105, 1.0
      %v9300 = vadd.f32 %v9107, 1.0
      %v9301 = vadd.f32 %v9109, 1.0
      %v9302 = vadd.f32 %v9111, 1.0
      %v9303 = vadd.f32 %v9113, 1.0
      %v9304 = vadd.f32 %v9115, 1.0
      %v9305 = vadd.f32 %v9117, 1.0
      %v9306 = vadd.f32 %v9119, 1.0
      %v9307 = vadd.f32 %v9121, 1.0
      %v9308 = vadd.f32 %v9123, 1.0
      %v9309 = vadd.f32 %v9125, 1.0
      %v9310 = vadd.f32 %v9127, 1.0
      %v9311 = vadd.f32 %v9129, 1.0
      %v9312 = vadd.f32 %v9131, 1.0
      %v9313 = vadd.f32 %v9133, 1.0
      %v9314 = vadd.f32 %v9135, 1.0
      %v9315 = vadd.f32 %v9137, 1.0
      %v9316 = vadd.f32 %v9139, 1.0
      %v9317 = vadd.f32 %v9141, 1.0
      %v9318 = vadd.f32 %v9143, 1.0
      %v9319 = vadd.f32 %v9145, 1.0
      %v9320 = vadd.f32 %v9147, 1.0
      %v9321 = vadd.f32 %v9149, 1.0
      %v9322 = vadd.f32 %v9151, 1.0
      %v9323 = vadd.f32 %v9153, 1.0
      %v9324 = vadd.f32 %v9155, 1.0
      %v9325 = vadd.f32 %v9157, 1.0
      %v9326 = vadd.f32 %v9159, 1.0
      %v9327 = vadd.f32 %v9161, 1.0
      %v9328 = vadd.f32 %v9163, 1.0
      %v9329 = vadd.f32 %v9165, 1.0
      %v9330 = vadd.f32 %v9167, 1.0
      %v9331 = vadd.f32 %v9169, 1.0
      %v9332 = vadd.f32 %v9171, 1.0
      %v9333 = vadd.f32 %v9173, 1.0
      %v9334 = vadd.f32 %v9175, 1.0
      %v9335 = vadd.f32 %v9177, 1.0
      %v9336 = vadd.f32 %v9179, 1.0
      %v9337 = vadd.f32 %v9181, 1.0
      %v9338 = vadd.f32 %v9183, 1.0
      %v9339 = vadd.f32 %v9185, 1.0
      %v9340 = vadd.f32 %v9187, 1.0
      %v9341 = vadd.f32 %v9189, 1.0
      %v9342 = vadd.f32 %v9191, 1.0
      %v9343 = vadd.f32 %v9193, 1.0
      %v9344 = vadd.f32 %v9195, 1.0
      %v9345 = vadd.f32 %v9197, 1.0
      %v9346 = vadd.f32 %v9199, 1.0
      %v9347 = vadd.f32 %v9201, 1.0
      %v9348 = vadd.f32 %v9203, 1.0
      %v9349 = vadd.f32 %v9205, 1.0
      %v9350 = vadd.f32 %v9207, 1.0
      %v9351 = vadd.f32 %v9209, 1.0
      %v9352 = vadd.f32 %v9211, 1.0
      %v9353 = vadd.f32 %v9213, 1.0
      %v9354 = vadd.f32 %v9215, 1.0
      %v9355 = vadd.f32 %v9217, 1.0
      %v9356 = vadd.f32 %v9219, 1.0
      %v9357 = vadd.f32 %v9221, 1.0
      %v9358 = vadd.f32 %v9223, 1.0
      %v9359 = vadd.f32 %v9225, 1.0
      %v9360 = vadd.f32 %v9227, 1.0
      %v9361 = vadd.f32 %v9229, 1.0
      %v9362 = vadd.f32 %v9231, 1.0
      %v9363 = vadd.f32 %v9233, 1.0
      %v9364 = vadd.f32 %v9235, 1.0
      %v9365 = vadd.f32 %v9237, 1.0
      %v9366 = vrcp.pop %v9238
      %v9367 = vrcp.pop %v9239
      %v9368 = vrcp.pop %v9240
      %v9369 = vrcp.pop %v9241
      %v9370 = vrcp.pop %v9242
      %v9371 = vrcp.pop %v9243
      %v9372 = vrcp.pop %v9244
      %v9373 = vrcp.pop %v9245
      %v9374 = vrcp.pop %v9246
      %v9375 = vrcp.pop %v9247
      %v9376 = vrcp.pop %v9248
      %v9377 = vrcp.pop %v9249
      %v9378 = vrcp.pop %v9250
      %v9379 = vrcp.pop %v9251
      %v9380 = vrcp.pop %v9252
      %v9381 = vrcp.pop %v9253
      %v9382 = vrcp.pop %v9254
      %v9383 = vrcp.pop %v9255
      %v9384 = vrcp.pop %v9256
      %v9385 = vrcp.pop %v9257
      %v9386 = vrcp.pop %v9258
      %v9387 = vrcp.pop %v9259
      %v9388 = vrcp.pop %v9260
      %v9389 = vrcp.pop %v9261
      %v9390 = vrcp.pop %v9262
      %v9391 = vrcp.pop %v9263
      %v9392 = vrcp.pop %v9264
      %v9393 = vrcp.pop %v9265
      %v9394 = vrcp.pop %v9266
      %v9395 = vrcp.pop %v9267
      %v9396 = vrcp.pop %v9268
      %v9397 = vrcp.pop %v9269
      %v9398 = vrcp.pop %v9270
      %v9399 = vrcp.pop %v9271
      %v9400 = vrcp.pop %v9272
      %v9401 = vrcp.pop %v9273
      %v9402 = vrcp.pop %v9274
      %v9403 = vrcp.pop %v9275
      %v9404 = vrcp.pop %v9276
      %v9405 = vrcp.pop %v9277
      %v9406 = vrcp.pop %v9278
      %v9407 = vrcp.pop %v9279
      %v9408 = vrcp.pop %v9280
      %v9409 = vrcp.pop %v9281
      %v9410 = vrcp.pop %v9282
      %v9411 = vrcp.pop %v9283
      %v9412 = vrcp.pop %v9284
      %v9413 = vrcp.pop %v9285
      %v9414 = vrcp.pop %v9286
      %v9415 = vrcp.pop %v9287
      %v9416 = vrcp.pop %v9288
      %v9417 = vrcp.pop %v9289
      %v9418 = vrcp.pop %v9290
      %v9419 = vrcp.pop %v9291
      %v9420 = vrcp.pop %v9292
      %v9421 = vrcp.pop %v9293
      %v9422 = vrcp.pop %v9294
      %v9423 = vrcp.pop %v9295
      %v9424 = vrcp.pop %v9296
      %v9425 = vrcp.pop %v9297
      %v9426 = vrcp.pop %v9298
      %v9427 = vrcp.pop %v9299
      %v9428 = vrcp.pop %v9300
      %v9429 = vrcp.pop %v9301
      %v9430 = vrcp.pop %v9302
      %v9431 = vrcp.pop %v9303
      %v9432 = vrcp.pop %v9304
      %v9433 = vrcp.pop %v9305
      %v9434 = vrcp.pop %v9306
      %v9435 = vrcp.pop %v9307
      %v9436 = vrcp.pop %v9308
      %v9437 = vrcp.pop %v9309
      %v9438 = vrcp.pop %v9310
      %v9439 = vrcp.pop %v9311
      %v9440 = vrcp.pop %v9312
      %v9441 = vrcp.pop %v9313
      %v9442 = vrcp.pop %v9314
      %v9443 = vrcp.pop %v9315
      %v9444 = vrcp.pop %v9316
      %v9445 = vrcp.pop %v9317
      %v9446 = vrcp.pop %v9318
      %v9447 = vrcp.pop %v9319
      %v9448 = vrcp.pop %v9320
      %v9449 = vrcp.pop %v9321
      %v9450 = vrcp.pop %v9322
      %v9451 = vrcp.pop %v9323
      %v9452 = vrcp.pop %v9324
      %v9453 = vrcp.pop %v9325
      %v9454 = vrcp.pop %v9326
      %v9455 = vrcp.pop %v9327
      %v9456 = vrcp.pop %v9328
      %v9457 = vrcp.pop %v9329
      %v9458 = vrcp.pop %v9330
      %v9459 = vrcp.pop %v9331
      %v9460 = vrcp.pop %v9332
      %v9461 = vrcp.pop %v9333
      %v9462 = vrcp.pop %v9334
      %v9463 = vrcp.pop %v9335
      %v9464 = vrcp.pop %v9336
      %v9465 = vrcp.pop %v9337
      %v9466 = vrcp.pop %v9338
      %v9467 = vrcp.pop %v9339
      %v9468 = vrcp.pop %v9340
      %v9469 = vrcp.pop %v9341
      %v9470 = vrcp.pop %v9342
      %v9471 = vrcp.pop %v9343
      %v9472 = vrcp.pop %v9344
      %v9473 = vrcp.pop %v9345
      %v9474 = vrcp.pop %v9346
      %v9475 = vrcp.pop %v9347
      %v9476 = vrcp.pop %v9348
      %v9477 = vrcp.pop %v9349
      %v9478 = vrcp.pop %v9350
      %v9479 = vrcp.pop %v9351
      %v9480 = vrcp.pop %v9352
      %v9481 = vrcp.pop %v9353
      %v9482 = vrcp.pop %v9354
      %v9483 = vrcp.pop %v9355
      %v9484 = vrcp.pop %v9356
      %v9485 = vrcp.pop %v9357
      %v9486 = vrcp.pop %v9358
      %v9487 = vrcp.pop %v9359
      %v9488 = vrcp.pop %v9360
      %v9489 = vrcp.pop %v9361
      %v9490 = vrcp.pop %v9362
      %v9491 = vrcp.pop %v9363
      %v9492 = vrcp.pop %v9364
      %v9493 = vrcp.pop %v9365
      %v9494 = vld [vmem:[%s1] sm:$0xff]
      %v9495 = vld [vmem:[%s1 + $0x8] sm:$0xff]
      %v9496 = vld [vmem:[%s1 + $0x10] sm:$0xff]
      %v9497 = vld [vmem:[%s1 + $0x18] sm:$0xff]
      %v9498 = vld [vmem:[%s1 + $0x20] sm:$0xff]
      %v9499 = vld [vmem:[%s1 + $0x28] sm:$0xff]
      %v9500 = vld [vmem:[%s1 + $0x30] sm:$0xff]
      %v9501 = vld [vmem:[%s1 + $0x38] sm:$0xff]
      %v9502 = vld [vmem:[%s1 + $0x40] sm:$0xff]
      %v9503 = vld [vmem:[%s1 + $0x48] sm:$0xff]
      %v9504 = vld [vmem:[%s1 + $0x50] sm:$0xff]
      %v9505 = vld [vmem:[%s1 + $0x58] sm:$0xff]
      %v9506 = vld [vmem:[%s1 + $0x60] sm:$0xff]
      %v9507 = vld [vmem:[%s1 + $0x68] sm:$0xff]
      %v9508 = vld [vmem:[%s1 + $0x70] sm:$0xff]
      %v9509 = vld [vmem:[%s1 + $0x78] sm:$0xff]
      %v9510 = vpack.c.bf16 %v9367, %v9366
      %v9511 = vpack.c.bf16 %v9369, %v9368
      %v9512 = vpack.c.bf16 %v9371, %v9370
      %v9513 = vpack.c.bf16 %v9373, %v9372
      %v9514 = vpack.c.bf16 %v9375, %v9374
      %v9515 = vpack.c.bf16 %v9377, %v9376
      %v9516 = vpack.c.bf16 %v9379, %v9378
      %v9517 = vpack.c.bf16 %v9381, %v9380
      %v9518 = vpack.c.bf16 %v9383, %v9382
      %v9519 = vpack.c.bf16 %v9385, %v9384
      %v9520 = vpack.c.bf16 %v9387, %v9386
      %v9521 = vpack.c.bf16 %v9389, %v9388
      %v9522 = vpack.c.bf16 %v9391, %v9390
      %v9523 = vpack.c.bf16 %v9393, %v9392
      %v9524 = vpack.c.bf16 %v9395, %v9394
      %v9525 = vpack.c.bf16 %v9397, %v9396
      %v9526 = vpack.c.bf16 %v9399, %v9398
      %v9527 = vpack.c.bf16 %v9401, %v9400
      %v9528 = vpack.c.bf16 %v9403, %v9402
      %v9529 = vpack.c.bf16 %v9405, %v9404
      %v9530 = vpack.c.bf16 %v9407, %v9406
      %v9531 = vpack.c.bf16 %v9409, %v9408
      %v9532 = vpack.c.bf16 %v9411, %v9410
      %v9533 = vpack.c.bf16 %v9413, %v9412
      %v9534 = vpack.c.bf16 %v9415, %v9414
      %v9535 = vpack.c.bf16 %v9417, %v9416
      %v9536 = vpack.c.bf16 %v9419, %v9418
      %v9537 = vpack.c.bf16 %v9421, %v9420
      %v9538 = vpack.c.bf16 %v9423, %v9422
      %v9539 = vpack.c.bf16 %v9425, %v9424
      %v9540 = vpack.c.bf16 %v9427, %v9426
      %v9541 = vpack.c.bf16 %v9429, %v9428
      %v9542 = vpack.c.bf16 %v9431, %v9430
      %v9543 = vpack.c.bf16 %v9433, %v9432
      %v9544 = vpack.c.bf16 %v9435, %v9434
      %v9545 = vpack.c.bf16 %v9437, %v9436
      %v9546 = vpack.c.bf16 %v9439, %v9438
      %v9547 = vpack.c.bf16 %v9441, %v9440
      %v9548 = vpack.c.bf16 %v9443, %v9442
      %v9549 = vpack.c.bf16 %v9445, %v9444
      %v9550 = vpack.c.bf16 %v9447, %v9446
      %v9551 = vpack.c.bf16 %v9449, %v9448
      %v9552 = vpack.c.bf16 %v9451, %v9450
      %v9553 = vpack.c.bf16 %v9453, %v9452
      %v9554 = vpack.c.bf16 %v9455, %v9454
      %v9555 = vpack.c.bf16 %v9457, %v9456
      %v9556 = vpack.c.bf16 %v9459, %v9458
      %v9557 = vpack.c.bf16 %v9461, %v9460
      %v9558 = vpack.c.bf16 %v9463, %v9462
      %v9559 = vpack.c.bf16 %v9465, %v9464
      %v9560 = vpack.c.bf16 %v9467, %v9466
      %v9561 = vpack.c.bf16 %v9469, %v9468
      %v9562 = vpack.c.bf16 %v9471, %v9470
      %v9563 = vpack.c.bf16 %v9473, %v9472
      %v9564 = vpack.c.bf16 %v9475, %v9474
      %v9565 = vpack.c.bf16 %v9477, %v9476
      %v9566 = vpack.c.bf16 %v9479, %v9478
      %v9567 = vpack.c.bf16 %v9481, %v9480
      %v9568 = vpack.c.bf16 %v9483, %v9482
      %v9569 = vpack.c.bf16 %v9485, %v9484
      %v9570 = vpack.c.bf16 %v9487, %v9486
      %v9571 = vpack.c.bf16 %v9489, %v9488
      %v9572 = vpack.c.bf16 %v9491, %v9490
      %v9573 = vpack.c.bf16 %v9493, %v9492
      %v9590 = vunpack.c.l.b16 %v9494
      %v9591 = vunpack.c.h.b16 %v9494
      %v9592 = vunpack.c.l.b16 %v9495
      %v9593 = vunpack.c.h.b16 %v9495
      %v9594 = vunpack.c.l.b16 %v9496
      %v9595 = vunpack.c.h.b16 %v9496
      %v9596 = vunpack.c.l.b16 %v9497
      %v9597 = vunpack.c.h.b16 %v9497
      %v9598 = vunpack.c.l.b16 %v9498
      %v9599 = vunpack.c.h.b16 %v9498
      %v9600 = vunpack.c.l.b16 %v9499
      %v9601 = vunpack.c.h.b16 %v9499
      %v9602 = vunpack.c.l.b16 %v9500
      %v9603 = vunpack.c.h.b16 %v9500
      %v9604 = vunpack.c.l.b16 %v9501
      %v9605 = vunpack.c.h.b16 %v9501
      %v9606 = vunpack.c.l.b16 %v9502
      %v9607 = vunpack.c.h.b16 %v9502
      %v9608 = vunpack.c.l.b16 %v9503
      %v9609 = vunpack.c.h.b16 %v9503
      %v9610 = vunpack.c.l.b16 %v9504
      %v9611 = vunpack.c.h.b16 %v9504
      %v9612 = vunpack.c.l.b16 %v9505
      %v9613 = vunpack.c.h.b16 %v9505
      %v9614 = vunpack.c.l.b16 %v9506
      %v9615 = vunpack.c.h.b16 %v9506
      %v9616 = vunpack.c.l.b16 %v9507
      %v9617 = vunpack.c.h.b16 %v9507
      %v9618 = vunpack.c.l.b16 %v9508
      %v9619 = vunpack.c.h.b16 %v9508
      %v9620 = vunpack.c.l.b16 %v9509
      %v9621 = vunpack.c.h.b16 %v9509
      %v9622 = vpack.c.b16 %v9598, %v9590
      %v9623 = vpack.c.b16 %v9599, %v9591
      %v9624 = vpack.c.b16 %v9600, %v9592
      %v9625 = vpack.c.b16 %v9601, %v9593
      %v9626 = vpack.c.b16 %v9602, %v9594
      %v9627 = vpack.c.b16 %v9603, %v9595
      %v9628 = vpack.c.b16 %v9604, %v9596
      %v9629 = vpack.c.b16 %v9605, %v9597
      %v9630 = vpack.c.b16 %v9614, %v9606
      %v9631 = vpack.c.b16 %v9615, %v9607
      %v9632 = vpack.c.b16 %v9616, %v9608
      %v9633 = vpack.c.b16 %v9617, %v9609
      %v9634 = vpack.c.b16 %v9618, %v9610
      %v9635 = vpack.c.b16 %v9619, %v9611
      %v9636 = vpack.c.b16 %v9620, %v9612
      %v9637 = vpack.c.b16 %v9621, %v9613
      %9654 = vmatpush.bf16.msra.mxu0 %v9517
      %9655 = vmatpush.bf16.msra.mxu0 %v9516
      %9656 = vmatpush.bf16.msra.mxu0 %v9515
      %9657 = vmatpush.bf16.msra.mxu0 %v9514
      %9658 = vmatpush.bf16.msra.mxu0 %v9513
      %9659 = vmatpush.bf16.msra.mxu0 %v9512
      %9660 = vmatpush.bf16.msra.mxu0 %v9511
      %9661 = vmatpush.bf16.msra.mxu0 %v9510
      %9662 = vmatmul.bf16.gmra.mxu0 %v9622
      %v9663 = vpop.f32.mrf.mxu0
      %v9664 = vadd.f32 0.0, %v9663
      %v9665 = vpop.f32.mrf.mxu0
      %v9666 = vadd.f32 0.0, %v9665
      %9667 = vmatmul.bf16.gmra.mxu0 %v9630
      %v9668 = vpop.f32.mrf.mxu0
      %v9669 = vadd.f32 0.0, %v9668
      %v9670 = vpop.f32.mrf.mxu0
      %v9671 = vadd.f32 0.0, %v9670
      %9672 = vdwg.mxu0
      %9673 = vmatpush.bf16.msra.mxu0 %v9525
      %9674 = vmatpush.bf16.msra.mxu0 %v9524
      %9675 = vmatpush.bf16.msra.mxu0 %v9523
      %9676 = vmatpush.bf16.msra.mxu0 %v9522
      %9677 = vmatpush.bf16.msra.mxu0 %v9521
      %9678 = vmatpush.bf16.msra.mxu0 %v9520
      %9679 = vmatpush.bf16.msra.mxu0 %v9519
      %9680 = vmatpush.bf16.msra.mxu0 %v9518
      %9681 = vmatmul.bf16.gmra.mxu0 %v9623
      %v9682 = vpop.f32.mrf.mxu0
      %v9683 = vadd.f32 %v9664, %v9682
      %v9684 = vpop.f32.mrf.mxu0
      %v9685 = vadd.f32 %v9666, %v9684
      %9686 = vmatmul.bf16.gmra.mxu0 %v9631
      %v9687 = vpop.f32.mrf.mxu0
      %v9688 = vadd.f32 %v9669, %v9687
      %v9689 = vpop.f32.mrf.mxu0
      %v9690 = vadd.f32 %v9671, %v9689
      %9691 = vdwg.mxu0
      %9692 = vmatpush.bf16.msra.mxu0 %v9533
      %9693 = vmatpush.bf16.msra.mxu0 %v9532
      %9694 = vmatpush.bf16.msra.mxu0 %v9531
      %9695 = vmatpush.bf16.msra.mxu0 %v9530
      %9696 = vmatpush.bf16.msra.mxu0 %v9529
      %9697 = vmatpush.bf16.msra.mxu0 %v9528
      %9698 = vmatpush.bf16.msra.mxu0 %v9527
      %9699 = vmatpush.bf16.msra.mxu0 %v9526
      %9700 = vmatmul.bf16.gmra.mxu0 %v9624
      %v9701 = vpop.f32.mrf.mxu0
      %v9702 = vadd.f32 %v9683, %v9701
      %v9703 = vpop.f32.mrf.mxu0
      %v9704 = vadd.f32 %v9685, %v9703
      %9705 = vmatmul.bf16.gmra.mxu0 %v9632
      %v9706 = vpop.f32.mrf.mxu0
      %v9707 = vadd.f32 %v9688, %v9706
      %v9708 = vpop.f32.mrf.mxu0
      %v9709 = vadd.f32 %v9690, %v9708
      %9710 = vdwg.mxu0
      %9711 = vmatpush.bf16.msra.mxu0 %v9541
      %9712 = vmatpush.bf16.msra.mxu0 %v9540
      %9713 = vmatpush.bf16.msra.mxu0 %v9539
      %9714 = vmatpush.bf16.msra.mxu0 %v9538
      %9715 = vmatpush.bf16.msra.mxu0 %v9537
      %9716 = vmatpush.bf16.msra.mxu0 %v9536
      %9717 = vmatpush.bf16.msra.mxu0 %v9535
      %9718 = vmatpush.bf16.msra.mxu0 %v9534
      %9719 = vmatmul.bf16.gmra.mxu0 %v9625
      %v9720 = vpop.f32.mrf.mxu0
      %v9721 = vadd.f32 %v9702, %v9720
      %v9722 = vpop.f32.mrf.mxu0
      %v9723 = vadd.f32 %v9704, %v9722
      %9724 = vmatmul.bf16.gmra.mxu0 %v9633
      %v9725 = vpop.f32.mrf.mxu0
      %v9726 = vadd.f32 %v9707, %v9725
      %v9727 = vpop.f32.mrf.mxu0
      %v9728 = vadd.f32 %v9709, %v9727
      %9729 = vdwg.mxu0
      %9730 = vmatpush.bf16.msra.mxu0 %v9549
      %9731 = vmatpush.bf16.msra.mxu0 %v9548
      %9732 = vmatpush.bf16.msra.mxu0 %v9547
      %9733 = vmatpush.bf16.msra.mxu0 %v9546
      %9734 = vmatpush.bf16.msra.mxu0 %v9545
      %9735 = vmatpush.bf16.msra.mxu0 %v9544
      %9736 = vmatpush.bf16.msra.mxu0 %v9543
      %9737 = vmatpush.bf16.msra.mxu0 %v9542
      %9738 = vmatmul.bf16.gmra.mxu0 %v9626
      %v9739 = vpop.f32.mrf.mxu0
      %v9740 = vadd.f32 %v9721, %v9739
      %v9741 = vpop.f32.mrf.mxu0
      %v9742 = vadd.f32 %v9723, %v9741
      %9743 = vmatmul.bf16.gmra.mxu0 %v9634
      %v9744 = vpop.f32.mrf.mxu0
      %v9745 = vadd.f32 %v9726, %v9744
      %v9746 = vpop.f32.mrf.mxu0
      %v9747 = vadd.f32 %v9728, %v9746
      %9748 = vdwg.mxu0
      %9749 = vmatpush.bf16.msra.mxu0 %v9557
      %9750 = vmatpush.bf16.msra.mxu0 %v9556
      %9751 = vmatpush.bf16.msra.mxu0 %v9555
      %9752 = vmatpush.bf16.msra.mxu0 %v9554
      %9753 = vmatpush.bf16.msra.mxu0 %v9553
      %9754 = vmatpush.bf16.msra.mxu0 %v9552
      %9755 = vmatpush.bf16.msra.mxu0 %v9551
      %9756 = vmatpush.bf16.msra.mxu0 %v9550
      %9757 = vmatmul.bf16.gmra.mxu0 %v9627
      %v9758 = vpop.f32.mrf.mxu0
      %v9759 = vadd.f32 %v9740, %v9758
      %v9760 = vpop.f32.mrf.mxu0
      %v9761 = vadd.f32 %v9742, %v9760
      %9762 = vmatmul.bf16.gmra.mxu0 %v9635
      %v9763 = vpop.f32.mrf.mxu0
      %v9764 = vadd.f32 %v9745, %v9763
      %v9765 = vpop.f32.mrf.mxu0
      %v9766 = vadd.f32 %v9747, %v9765
      %9767 = vdwg.mxu0
      %9768 = vmatpush.bf16.msra.mxu0 %v9565
      %9769 = vmatpush.bf16.msra.mxu0 %v9564
      %9770 = vmatpush.bf16.msra.mxu0 %v9563
      %9771 = vmatpush.bf16.msra.mxu0 %v9562
      %9772 = vmatpush.bf16.msra.mxu0 %v9561
      %9773 = vmatpush.bf16.msra.mxu0 %v9560
      %9774 = vmatpush.bf16.msra.mxu0 %v9559
      %9775 = vmatpush.bf16.msra.mxu0 %v9558
      %9776 = vmatmul.bf16.gmra.mxu0 %v9628
      %v9777 = vpop.f32.mrf.mxu0
      %v9778 = vadd.f32 %v9759, %v9777
      %v9779 = vpop.f32.mrf.mxu0
      %v9780 = vadd.f32 %v9761, %v9779
      %9781 = vmatmul.bf16.gmra.mxu0 %v9636
      %v9782 = vpop.f32.mrf.mxu0
      %v9783 = vadd.f32 %v9764, %v9782
      %v9784 = vpop.f32.mrf.mxu0
      %v9785 = vadd.f32 %v9766, %v9784
      %9786 = vdwg.mxu0
      %9787 = vmatpush.bf16.msra.mxu0 %v9573
      %9788 = vmatpush.bf16.msra.mxu0 %v9572
      %9789 = vmatpush.bf16.msra.mxu0 %v9571
      %9790 = vmatpush.bf16.msra.mxu0 %v9570
      %9791 = vmatpush.bf16.msra.mxu0 %v9569
      %9792 = vmatpush.bf16.msra.mxu0 %v9568
      %9793 = vmatpush.bf16.msra.mxu0 %v9567
      %9794 = vmatpush.bf16.msra.mxu0 %v9566
      %9795 = vmatmul.bf16.gmra.mxu0 %v9629
      %v9796 = vpop.f32.mrf.mxu0
      %v9797 = vadd.f32 %v9778, %v9796
      %v9798 = vpop.f32.mrf.mxu0
      %v9799 = vadd.f32 %v9780, %v9798
      %9800 = vmatmul.bf16.gmra.mxu0 %v9637
      %v9801 = vpop.f32.mrf.mxu0
      %v9802 = vadd.f32 %v9783, %v9801
      %v9803 = vpop.f32.mrf.mxu0
      %v9804 = vadd.f32 %v9785, %v9803
      %9805 = vdwg.mxu0
      %v9806 = vmul.f32 %v9797, 0.03125
      %v9807 = vmul.f32 %v9799, 0.03125
      %v9808 = vmul.f32 %v9802, 0.03125
      %v9809 = vmul.f32 %v9804, 0.03125
      %9810 = vst [vmem:[%s528] sm:$0xff] %v9806
      %9811 = vst [vmem:[%s528 + $0x8] sm:$0xff] %v9807
      %9812 = vst [vmem:[%s528 + $0x10] sm:$0xff] %v9808
      %9813 = vst [vmem:[%s528 + $0x18] sm:$0xff] %v9809
      %s9814 = smul.u32 4, %s26
      %p9815 = scmp.lt.s32.totalorder %s25, 1
      %s9816 = scalar_select %p9815, %s25, 1
      %p9817 = scmp.lt.s32.totalorder %s9814, 3
      %s9818 = scalar_select %p9817, %s9814, 3
      %s9819 = smul.addr %s9816, 4
      %s9820 = sadd.s32 %s9818, %s9819
      %s9821 = smul.addr %s9820, 8
      %s9822 = scalar_lea.vmem %s10, %s9821
      // Predicated region
      $region61: #{nerf_forward.1} parent=59 // pred_check
        %p9823 = pneg %p308
      $region62: #{nerf_forward.1} parent=59 // pred_check_branch
        %9825 = sbr.rel (%p9823) target = $region64
      $region63: #{nerf_forward.1} parent=59 // pred_region
        %s9826 = smul.u32 4, %s26
      $region64: #{nerf_forward.1} parent=59 // pred_fallthru
        _
    $region60: #{nerf_forward.1} parent=5 // pred_fallthru
      _
    %p9827 = scmp.le.s32.totalorder 2, %s16
    // Predicated region
    $region65: #{nerf_forward.1} parent=5 // pred_check
      %p9828 = pneg %p9827
    $region66: #{nerf_forward.1} parent=5 // pred_check_branch
      %9830 = sbr.rel (%p9828) target = $region68
    $region67: #{nerf_forward.1} parent=5 // pred_region
      %s9831 = ssub.s32 %s16, 2
      // Predicated region
      $region69: #{nerf_forward.1} parent=67 // pred_check
        %p9832 = pneg %p314
      $region70: #{nerf_forward.1} parent=67 // pred_check_branch
        %9834 = sbr.rel (%p9832) target = $region72
      $region71: #{nerf_forward.1} parent=67 // pred_region
        %s9835 = smul.u32 4, %s28
        %p9836 = scmp.lt.s32.totalorder %s27, 1
        %s9837 = scalar_select %p9836, %s27, 1
        %p9838 = scmp.lt.s32.totalorder %s9835, 3
        %s9839 = scalar_select %p9838, %s9835, 3
        %s9840 = smul.addr %s9837, 4
        %s9841 = sadd.s32 %s9839, %s9840
        %s9842 = smul.addr %s9841, 8
        %s9843 = scalar_lea.vmem %s10, %s9842
      $region72: #{nerf_forward.1} parent=67 // pred_fallthru
        _
    $region68: #{nerf_forward.1} parent=5 // pred_fallthru
      _
  $region6: #{nerf_forward.1} parent=0 // loop_footer
    %s20 = sadd.s32 1, %s16
  $region7: #{nerf_forward.1} parent=0 // loop_footer_branch
    %15 = sbr.rel target = $region3
  $region8: #{nerf_forward.1} parent=0 // loop_exit
    _

</llo_original>
